<compile_context>
chip_gen: v7x
topology: tpu7x:2x2x1
jax: 0.10.0
libtpu: 0.0.40
codegen_flags: <defaults>
</compile_context>

<pallas_src>
import functools

import jax
import jax.numpy as jnp
from jax import lax
from jax.experimental import pallas as pl
from jax.experimental.pallas import tpu as pltpu

NUM_CLASSES = 21
FEAT_CH = 2048
POOL = 7
SAMPLING = 2
STRIDE = 32                      # backbone downsampling factor (ResNet-50 => /32)
SCALE = 1.0 / STRIDE             # fixed spatial_scale (torchvision MultiScaleRoIAlign)
N_CORNER = SAMPLING * SAMPLING * 4   # 16 (sample points x bilinear corners) per bin


def _round_up(x, m):
    return ((x + m - 1) // m) * m


def _pick_tile(dim, candidates):
    for c in candidates:
        if dim % c == 0:
            return c
    return candidates[-1]


# ---------------------------------------------------------------------------
# Pallas kernel: tiled bf16 matmul, f32 accumulation in the resident output
# block, fused bias add (+ optional ReLU) in the last-K epilogue.
# ---------------------------------------------------------------------------
def _matmul_bias_kernel(a_ref, b_ref, bias_ref, o_ref, *, relu):
    k = pl.program_id(2)

    @pl.when(k == 0)
    def _():
        o_ref[...] = jnp.zeros_like(o_ref)

    # Output block index is constant across k (innermost axis) => block stays
    # resident in VMEM; accumulate directly into it (no scratch needed).
    o_ref[...] += jnp.dot(a_ref[...], b_ref[...],
                          preferred_element_type=jnp.float32)

    @pl.when(k == pl.num_programs(2) - 1)
    def _():
        out = o_ref[...] + bias_ref[...]
        if relu:
            out = jnp.maximum(out, 0.0)
        o_ref[...] = out


def pallas_matmul(a, b, bias=None, relu=False):
    """out = relu?(a @ b + bias).  a:(M,K), b:(K,N), bias:(N,).  Returns f32 (M,N)."""
    M, K = a.shape
    K2, N = b.shape
    assert K == K2
    if bias is None:
        bias = jnp.zeros((N,), jnp.float32)

    # 128/256-row tiles keep the MXU fed for real ROI counts; for tiny M fall back to an
    # 8-row tile so we do not pay 32x padded FLOPs.  N is tiled lane-dense (<=512) so the
    # bf16 B block stays ~2 MiB and the plan fits comfortably in VMEM with double buffering.
    if M >= 512:
        tm = 256
    elif M >= 128:
        tm = 128
    else:
        tm = max(8, _round_up(M, 8))
    m_pad = _round_up(M, tm)
    k_pad = _round_up(K, 128)
    n_pad = _round_up(N, 128)
    tk = _pick_tile(k_pad, (2048, 1024, 512, 256, 128))
    tn = _pick_tile(n_pad, (512, 256, 128))

    a_p = jnp.pad(a.astype(jnp.bfloat16), ((0, m_pad - M), (0, k_pad - K)))
    b_p = jnp.pad(b.astype(jnp.bfloat16), ((0, k_pad - K), (0, n_pad - N)))
    bias_p = jnp.pad(bias.astype(jnp.float32), (0, n_pad - N)).reshape(1, n_pad)

    grid = (m_pad // tm, n_pad // tn, k_pad // tk)
    out = pl.pallas_call(
        functools.partial(_matmul_bias_kernel, relu=relu),
        out_shape=jax.ShapeDtypeStruct((m_pad, n_pad), jnp.float32),
        grid_spec=pltpu.PrefetchScalarGridSpec(
            num_scalar_prefetch=0,
            grid=grid,
            in_specs=[
                pl.BlockSpec((tm, tk), lambda i, j, k: (i, k)),
                pl.BlockSpec((tk, tn), lambda i, j, k: (k, j)),
                # bias block index is constant across consecutive k steps (k innermost),
                # so Pallas only re-fetches it when j changes.
                pl.BlockSpec((1, tn), lambda i, j, k: (0, j)),
            ],
            out_specs=pl.BlockSpec((tm, tn), lambda i, j, k: (i, j)),
        ),
        compiler_params=pltpu.CompilerParams(
            dimension_semantics=("parallel", "parallel", "arbitrary"),
        ),
    )(a_p, b_p, bias_p)
    return out[:M, :N]


# ---------------------------------------------------------------------------
# Backbone (stand-in): stride-32 patchify conv 3 -> 2048 + ReLU, as a matmul.
# ---------------------------------------------------------------------------
def backbone_features(images, conv_w, conv_b):
    """images: (B, 3, H, W) NCHW -> flat features (B*Hf*Wf, 2048), rows ordered (b, y, x)."""
    B, C, H, W = images.shape
    Hf, Wf = H // STRIDE, W // STRIDE
    patches = images.reshape(B, C, Hf, STRIDE, Wf, STRIDE)
    patches = patches.transpose(0, 2, 4, 1, 3, 5)             # (B, Hf, Wf, C, kh, kw)
    patches = patches.reshape(B * Hf * Wf, C * STRIDE * STRIDE)
    feat = pallas_matmul(patches, conv_w, conv_b, relu=True)  # (B*Hf*Wf, 2048) f32
    return feat, (B, Hf, Wf)


# ---------------------------------------------------------------------------
# ROI Align (output 7x7, sampling_ratio=2, aligned=False) as a gather kernel.
# Corner indices/weights are precomputed in JAX (clamped in-range, zero weight
# when out of bounds); the Pallas kernel gathers feature rows and does the
# weighted sum on the VPU (one grid step per ROI).
# ---------------------------------------------------------------------------
def roi_align_tables(boxes, batch_idx, Hf, Wf, scale):
    """Returns idx:(R, 49*16) int32 flat feature-row indices and w:(R, 49*16) f32 weights."""
    R = boxes.shape[0]
    x1 = boxes[:, 0] * scale
    y1 = boxes[:, 1] * scale
    x2 = boxes[:, 2] * scale
    y2 = boxes[:, 3] * scale
    roi_w = jnp.maximum(x2 - x1, 1.0)
    roi_h = jnp.maximum(y2 - y1, 1.0)
    bin_w = roi_w / POOL
    bin_h = roi_h / POOL

    p = jnp.arange(POOL, dtype=jnp.float32)
    s = jnp.arange(SAMPLING, dtype=jnp.float32)
    ys = y1[:, None, None] + (p[None, :, None] + (s[None, None, :] + 0.5) / SAMPLING) * bin_h[:, None, None]
    xs = x1[:, None, None] + (p[None, :, None] + (s[None, None, :] + 0.5) / SAMPLING) * bin_w[:, None, None]
    shape5 = (R, POOL, POOL, SAMPLING, SAMPLING)     # (roi, ph, pw, iy, ix)
    Y = jnp.broadcast_to(ys[:, :, None, :, None], shape5)
    X = jnp.broadcast_to(xs[:, None, :, None, :], shape5)

    valid = (Y >= -1.0) & (Y <= Hf) & (X >= -1.0) & (X <= Wf)
    Yc = jnp.maximum(Y, 0.0)
    Xc = jnp.maximum(X, 0.0)
    y_lo = jnp.floor(Yc).astype(jnp.int32)
    x_lo = jnp.floor(Xc).astype(jnp.int32)
    y_edge = y_lo >= Hf - 1
    x_edge = x_lo >= Wf - 1
    y_lo = jnp.where(y_edge, Hf - 1, y_lo)
    x_lo = jnp.where(x_edge, Wf - 1, x_lo)
    y_hi = jnp.where(y_edge, Hf - 1, y_lo + 1)
    x_hi = jnp.where(x_edge, Wf - 1, x_lo + 1)
    Yc = jnp.where(y_edge, y_lo.astype(jnp.float32), Yc)
    Xc = jnp.where(x_edge, x_lo.astype(jnp.float32), Xc)
    ly = Yc - y_lo
    lx = Xc - x_lo
    hy = 1.0 - ly
    hx = 1.0 - lx
    norm = valid.astype(jnp.float32) / float(SAMPLING * SAMPLING)
    w1, w2, w3, w4 = hy * hx, hy * lx, ly * hx, ly * lx

    base = batch_idx[:, None, None, None, None] * (Hf * Wf)
    c1 = base + y_lo * Wf + x_lo
    c2 = base + y_lo * Wf + x_hi
    c3 = base + y_hi * Wf + x_lo
    c4 = base + y_hi * Wf + x_hi

    idx = jnp.stack([c1, c2, c3, c4], axis=-1)                       # (R,7,7,2,2,4)
    wts = jnp.stack([w1, w2, w3, w4], axis=-1) * norm[..., None]     # zero weight if invalid
    idx = idx.reshape(R, POOL * POOL * N_CORNER).astype(jnp.int32)
    wts = wts.reshape(R, POOL * POOL * N_CORNER).astype(jnp.float32)
    return idx, wts


def _roi_align_gather_kernel(idx_ref, w_ref, feat_ref, out_ref):
    """idx/w in SMEM (R, 49*16); feat resident in VMEM (Nrows, 8, C/8); out (49, 8, C/8)."""
    r = pl.program_id(0)
    c8 = feat_ref.shape[2]

    @pl.loop(0, POOL * POOL)
    def _(b):
        acc = jnp.zeros((8, c8), jnp.float32)
        base = b * N_CORNER
        for j in range(N_CORNER):                 # 16 unrolled FMAs per bin
            row = idx_ref[r, base + j]            # scalar int32 from SMEM (clamped in-range)
            wt = w_ref[r, base + j]               # scalar f32 from SMEM
            acc = acc + wt * feat_ref[row]        # dynamic leading-dim gather: one (8,C/8) tile
        out_ref[b] = acc


def roi_align_gather(feat_flat, idx, wts):
    """feat_flat:(Nrows, C) f32, idx/wts:(R, 49*16).  Returns pooled (R, 49, C) f32."""
    R = idx.shape[0]
    nrows, C = feat_flat.shape
    assert C % 8 == 0
    c8 = C // 8
    feat3 = feat_flat.reshape(nrows, 8, c8)       # each row = one aligned (8,128)-tiled slab
    pooled4 = pl.pallas_call(
        _roi_align_gather_kernel,
        out_shape=jax.ShapeDtypeStruct((R, POOL * POOL, 8, c8), jnp.float32),
        grid=(R,),
        in_specs=[
            pl.BlockSpec(memory_space=pltpu.MemorySpace.SMEM),   # idx table
            pl.BlockSpec(memory_space=pltpu.MemorySpace.SMEM),   # weight table
            pl.BlockSpec((nrows, 8, c8), lambda r: (0, 0, 0)),   # feature map, VMEM-resident
        ],
        out_specs=pl.BlockSpec((None, POOL * POOL, 8, c8), lambda r: (r, 0, 0, 0)),
        compiler_params=pltpu.CompilerParams(
            dimension_semantics=("parallel",),
        ),
    )(idx, wts, feat3)
    # (R, 49, 8, C/8) -> (R, 49, C): channel index = s*(C/8) + c8, same row-major order as feat3.
    return pooled4.reshape(R, POOL * POOL, C)


# ---------------------------------------------------------------------------
# Full FastRCNN forward.
# ---------------------------------------------------------------------------
def fast_rcnn_forward(images, boxes_list, params):
    feat_flat, (B, Hf, Wf) = backbone_features(images, params["conv_w"], params["conv_b"])

    boxes_all = jnp.concatenate(boxes_list, axis=0)
    batch_idx = jnp.concatenate(
        [jnp.full((b.shape[0],), i, jnp.int32) for i, b in enumerate(boxes_list)])
    R = boxes_all.shape[0]

    idx, wts = roi_align_tables(boxes_all, batch_idx, Hf, Wf, SCALE)
    pooled = roi_align_gather(feat_flat, idx, wts)           # (R, 49, 2048) f32
    # Flatten order here is hw*2048 + c; fc1 weights were row-permuted at init to match,
    # so no pooled transpose is needed.
    pooled_flat = pooled.reshape(R, POOL * POOL * FEAT_CH)   # (R, 100352)

    # Fused heads: one pass over the big pooled operand, lane-dense final output.
    h = pallas_matmul(pooled_flat, params["head_fc1_w"], params["head_fc1_b"])   # (R, 2048)
    out2 = pallas_matmul(h, params["head_fc2_w"], params["head_fc2_b"])          # (R, 25)

    class_logits = out2[:, :NUM_CLASSES]
    bbox_regression = out2[:, NUM_CLASSES:NUM_CLASSES + 4]
    return class_logits, bbox_regression


def init_params(key):
    ks = jax.random.split(key, 8)
    in_dim = FEAT_CH * POOL * POOL      # 2048 * 7 * 7 = 100352
    conv_in = 3 * STRIDE * STRIDE       # 3072

    def lin(k, fan_in, fan_out):
        return jax.random.normal(k, (fan_in, fan_out), jnp.float32) * (1.0 / jnp.sqrt(fan_in))

    # PyTorch-layout head weights (rows indexed by c*49 + hw, as .view(R, -1) expects).
    fc1_w = lin(ks[1], in_dim, 1024)
    fc1_b = jax.random.normal(ks[2], (1024,), jnp.float32) * 0.01
    fc2_w = lin(ks[3], 1024, NUM_CLASSES)
    fc2_b = jnp.zeros((NUM_CLASSES,), jnp.float32)
    bbox_fc1_w = lin(ks[4], in_dim, 1024)
    bbox_fc1_b = jax.random.normal(ks[5], (1024,), jnp.float32) * 0.01
    bbox_fc2_w = lin(ks[6], 1024, 4)
    bbox_fc2_b = jnp.zeros((4,), jnp.float32)

    def permute_rows(w):
        # torch flatten index (c*49 + hw)  ->  our pooled flatten index (hw*2048 + c)
        return (w.reshape(FEAT_CH, POOL * POOL, -1)
                 .transpose(1, 0, 2)
                 .reshape(in_dim, -1))

    # Fuse the two heads so the huge pooled operand is streamed from HBM once.
    head_fc1_w = jnp.concatenate([permute_rows(fc1_w), permute_rows(bbox_fc1_w)], axis=1)
    head_fc1_b = jnp.concatenate([fc1_b, bbox_fc1_b], axis=0)

    # Block-diagonal fused fc2: cols [0,21) from cls path, [21,25) from bbox path.
    head_fc2_w = jnp.zeros((2048, NUM_CLASSES + 4), jnp.float32)
    head_fc2_w = head_fc2_w.at[:1024, :NUM_CLASSES].set(fc2_w)
    head_fc2_w = head_fc2_w.at[1024:, NUM_CLASSES:].set(bbox_fc2_w)
    head_fc2_b = jnp.concatenate([fc2_b, bbox_fc2_b], axis=0)

    return {
        "conv_w": lin(ks[0], conv_in, FEAT_CH).astype(jnp.bfloat16),
        "conv_b": jnp.zeros((FEAT_CH,), jnp.float32),
        "head_fc1_w": head_fc1_w.astype(jnp.bfloat16),
        "head_fc1_b": head_fc1_b,
        "head_fc2_w": head_fc2_w.astype(jnp.bfloat16),
        "head_fc2_b": head_fc2_b,
    }


def make_boxes(key, n, img_size):
    k1, k2 = jax.random.split(key)
    xy1 = jax.random.uniform(k1, (n, 2), minval=0.0, maxval=img_size / 2)
    wh = jax.random.uniform(k2, (n, 2), minval=8.0, maxval=img_size / 2)
    xy2 = jnp.minimum(xy1 + wh, img_size - 1.0)
    return jnp.concatenate([xy1, xy2], axis=1).astype(jnp.float32)  # (x1, y1, x2, y2)


if __name__ == "__main__":
    key = jax.random.PRNGKey(0)
    k_img, k_box, k_params = jax.random.split(key, 3)

    # small shapes: B=2 images, 3x64x64 -> features (2, 2048, 2, 2); 2 boxes per image.
    images = jax.random.normal(k_img, (2, 3, 64, 64), jnp.float32)
    kb0, kb1 = jax.random.split(k_box)
    boxes = [make_boxes(kb0, 2, 64.0), make_boxes(kb1, 2, 64.0)]

    params = init_params(k_params)

    fwd = jax.jit(fast_rcnn_forward)
    class_logits, bbox_regression = fwd(images, boxes, params)
    jax.block_until_ready((class_logits, bbox_regression))

    assert class_logits.shape == (4, NUM_CLASSES)
    assert bbox_regression.shape == (4, 4)
    print("KERNEL_OK")
</pallas_src>

<mosaic_0001>
module attributes {stable_mosaic.version = 11 : i64} {
  func.func @_matmul_bias_kernel(%arg0: i32, %arg1: i32, %arg2: i32, %arg3: memref<8x1024xbf16, #tpu.memory_space<vmem>>, %arg4: memref<1024x512xbf16, #tpu.memory_space<vmem>>, %arg5: memref<1x512xf32, #tpu.memory_space<vmem>>, %arg6: memref<8x512xf32, #tpu.memory_space<vmem>>) attributes {dimension_semantics = [#tpu.dimension_semantics<parallel>, #tpu.dimension_semantics<parallel>, #tpu.dimension_semantics<arbitrary>], iteration_bounds = array<i64: 1, 4, 3>, scalar_prefetch = 0 : i64, scratch_operands = 0 : i64, tpu.core_type = #tpu.core_type<tc>, window_params = [{transform_indices = @transform_0, window_bounds = array<i64: 8, 1024>}, {transform_indices = @transform_1, window_bounds = array<i64: 1024, 512>}, {transform_indices = @transform_2, window_bounds = array<i64: 1, 512>}, {transform_indices = @transform_3, window_bounds = array<i64: 8, 512>}]} {
    %c0_i32 = arith.constant 0 : i32
    %0 = arith.cmpi eq, %arg2, %c0_i32 : i32
    %1 = arith.extui %0 : i1 to i32
    %c0_i32_0 = arith.constant 0 : i32
    %2 = arith.cmpi ne, %1, %c0_i32_0 : i32
    scf.if %2 {
      %cst_9 = arith.constant 0.000000e+00 : f32
      %12 = vector.broadcast %cst_9 : f32 to vector<8x512xf32>
      %c0_10 = arith.constant 0 : index
      %c0_11 = arith.constant 0 : index
      %13 = vector.load %arg6[%c0_10, %c0_11] : memref<8x512xf32, #tpu.memory_space<vmem>>, vector<8x512xf32>
      tpu.vector_store %arg6[%c0_10, %c0_11], %12 {strides = array<i32>} : memref<8x512xf32, #tpu.memory_space<vmem>>, vector<8x512xf32>,
    } else {
    }
    %c0 = arith.constant 0 : index
    %c0_1 = arith.constant 0 : index
    %3 = vector.load %arg6[%c0, %c0_1] : memref<8x512xf32, #tpu.memory_space<vmem>>, vector<8x512xf32>
    %c0_2 = arith.constant 0 : index
    %c0_3 = arith.constant 0 : index
    %4 = vector.load %arg3[%c0_2, %c0_3] : memref<8x1024xbf16, #tpu.memory_space<vmem>>, vector<8x1024xbf16>
    %c0_4 = arith.constant 0 : index
    %c0_5 = arith.constant 0 : index
    %5 = vector.load %arg4[%c0_4, %c0_5] : memref<1024x512xbf16, #tpu.memory_space<vmem>>, vector<1024x512xbf16>
    %cst = arith.constant dense<0.000000e+00> : vector<8x512xf32>
    %6 = tpu.matmul %4, %5, %cst {dimension_numbers = #tpu.dot_dimension_numbers<[1], [0], [0], [1], [0, 0, 1, 1], [], []>} : vector<8x1024xbf16>, vector<1024x512xbf16>, vector<8x512xf32> -> vector<8x512xf32>
    %7 = arith.addf %3, %6 : vector<8x512xf32>
    %c0_6 = arith.constant 0 : index
    %c0_7 = arith.constant 0 : index
    %8 = vector.load %arg6[%c0_6, %c0_7] : memref<8x512xf32, #tpu.memory_space<vmem>>, vector<8x512xf32>
    tpu.vector_store %arg6[%c0_6, %c0_7], %7 {strides = array<i32>} : memref<8x512xf32, #tpu.memory_space<vmem>>, vector<8x512xf32>,
    %c2_i32 = arith.constant 2 : i32
    %9 = arith.cmpi eq, %arg2, %c2_i32 : i32
    %10 = arith.extui %9 : i1 to i32
    %c0_i32_8 = arith.constant 0 : i32
    %11 = arith.cmpi ne, %10, %c0_i32_8 : i32
    scf.if %11 {
      %c0_9 = arith.constant 0 : index
      %c0_10 = arith.constant 0 : index
      %12 = vector.load %arg6[%c0_9, %c0_10] : memref<8x512xf32, #tpu.memory_space<vmem>>, vector<8x512xf32>
      %c0_11 = arith.constant 0 : index
      %c0_12 = arith.constant 0 : index
      %13 = vector.load %arg5[%c0_11, %c0_12] : memref<1x512xf32, #tpu.memory_space<vmem>>, vector<1x512xf32>
      %14 = vector.broadcast %13 : vector<1x512xf32> to vector<8x512xf32>
      %15 = arith.addf %12, %14 : vector<8x512xf32>
      %cst_13 = arith.constant 0.000000e+00 : f32
      %16 = vector.broadcast %cst_13 : f32 to vector<8x512xf32>
      %17 = arith.maximumf %15, %16 : vector<8x512xf32>
      %c0_14 = arith.constant 0 : index
      %c0_15 = arith.constant 0 : index
      %18 = vector.load %arg6[%c0_14, %c0_15] : memref<8x512xf32, #tpu.memory_space<vmem>>, vector<8x512xf32>
      tpu.vector_store %arg6[%c0_14, %c0_15], %17 {strides = array<i32>} : memref<8x512xf32, #tpu.memory_space<vmem>>, vector<8x512xf32>,
    } else {
    }
    return
  }
  func.func @transform_0(%arg0: i32, %arg1: i32, %arg2: i32) -> (i32, i32) {
    %c0_i32 = arith.constant 0 : i32
    return %arg0, %arg2 : i32, i32
  }
  func.func @transform_1(%arg0: i32, %arg1: i32, %arg2: i32) -> (i32, i32) {
    %c0_i32 = arith.constant 0 : i32
    return %arg2, %arg1 : i32, i32
  }
  func.func @transform_2(%arg0: i32, %arg1: i32, %arg2: i32) -> (i32, i32) {
    %c0_i32 = arith.constant 0 : i32
    %c0_i32_0 = arith.constant 0 : i32
    return %c0_i32, %arg1 : i32, i32
  }
  func.func @transform_3(%arg0: i32, %arg1: i32, %arg2: i32) -> (i32, i32) {
    %c0_i32 = arith.constant 0 : i32
    return %arg0, %arg1 : i32, i32
  }
}

module attributes {stable_mosaic.version = 11 : i64} {
  func.func @_roi_align_gather_kernel(%arg0: i32, %arg1: memref<4x784xi32, #tpu.memory_space<smem>>, %arg2: memref<4x784xf32, #tpu.memory_space<smem>>, %arg3: memref<8x8x256xf32, #tpu.memory_space<vmem>>, %arg4: memref<1x49x8x256xf32, #tpu.memory_space<vmem>>) attributes {dimension_semantics = [#tpu.dimension_semantics<parallel>], iteration_bounds = array<i64: 4>, scalar_prefetch = 0 : i64, scratch_operands = 0 : i64, tpu.core_type = #tpu.core_type<tc>, window_params = [{transform_indices = @transform_0, window_bounds = array<i64: 4, 784>}, {transform_indices = @transform_1, window_bounds = array<i64: 4, 784>}, {pipeline_mode = #tpu.pipeline_mode<synchronous>, transform_indices = @transform_2, window_bounds = array<i64: 8, 8, 256>}, {transform_indices = @transform_3, window_bounds = array<i64: 1, 49, 8, 256>}]} {
    %c0_i32 = arith.constant 0 : i32
    %c49_i32 = arith.constant 49 : i32
    %0 = arith.addi %c0_i32, %c49_i32 : i32
    %c1_i32 = arith.constant 1 : i32
    scf.for %arg5 = %c0_i32 to %0 step %c1_i32  : i32 {
      %c1_i32_1 = arith.constant 1 : i32
      %1 = arith.muli %arg5, %c1_i32_1 : i32
      %c0_i32_2 = arith.constant 0 : i32
      %2 = arith.addi %c0_i32_2, %1 : i32
      %cst = arith.constant 0.000000e+00 : f32
      %3 = vector.broadcast %cst : f32 to vector<8x256xf32>
      %c16_i32 = arith.constant 16 : i32
      %4 = arith.muli %2, %c16_i32 : i32
      %c0_i32_3 = arith.constant 0 : i32
      %5 = arith.addi %4, %c0_i32_3 : i32
      %6 = arith.index_cast %arg0 : i32 to index
      %7 = arith.index_cast %5 : i32 to index
      %8 = memref.load %arg1[%6, %7] : memref<4x784xi32, #tpu.memory_space<smem>>
      %c0_i32_4 = arith.constant 0 : i32
      %9 = arith.addi %4, %c0_i32_4 : i32
      %10 = arith.index_cast %arg0 : i32 to index
      %11 = arith.index_cast %9 : i32 to index
      %12 = memref.load %arg2[%10, %11] : memref<4x784xf32, #tpu.memory_space<smem>>
      %13 = arith.index_cast %8 : i32 to index
      %c0 = arith.constant 0 : index
      %c0_5 = arith.constant 0 : index
      %14 = vector.load %arg3[%13, %c0, %c0_5] : memref<8x8x256xf32, #tpu.memory_space<vmem>>, vector<1x8x256xf32>
      %15 = vector.shape_cast %14 : vector<1x8x256xf32> to vector<8x256xf32>
      %16 = vector.broadcast %12 : f32 to vector<8x256xf32>
      %17 = arith.mulf %16, %15 : vector<8x256xf32>
      %18 = arith.addf %3, %17 : vector<8x256xf32>
      %c1_i32_6 = arith.constant 1 : i32
      %19 = arith.addi %4, %c1_i32_6 : i32
      %20 = arith.index_cast %arg0 : i32 to index
      %21 = arith.index_cast %19 : i32 to index
      %22 = memref.load %arg1[%20, %21] : memref<4x784xi32, #tpu.memory_space<smem>>
      %c1_i32_7 = arith.constant 1 : i32
      %23 = arith.addi %4, %c1_i32_7 : i32
      %24 = arith.index_cast %arg0 : i32 to index
      %25 = arith.index_cast %23 : i32 to index
      %26 = memref.load %arg2[%24, %25] : memref<4x784xf32, #tpu.memory_space<smem>>
      %27 = arith.index_cast %22 : i32 to index
      %c0_8 = arith.constant 0 : index
      %c0_9 = arith.constant 0 : index
      %28 = vector.load %arg3[%27, %c0_8, %c0_9] : memref<8x8x256xf32, #tpu.memory_space<vmem>>, vector<1x8x256xf32>
      %29 = vector.shape_cast %28 : vector<1x8x256xf32> to vector<8x256xf32>
      %30 = vector.broadcast %26 : f32 to vector<8x256xf32>
      %31 = arith.mulf %30, %29 : vector<8x256xf32>
      %32 = arith.addf %18, %31 : vector<8x256xf32>
      %c2_i32 = arith.constant 2 : i32
      %33 = arith.addi %4, %c2_i32 : i32
      %34 = arith.index_cast %arg0 : i32 to index
      %35 = arith.index_cast %33 : i32 to index
      %36 = memref.load %arg1[%34, %35] : memref<4x784xi32, #tpu.memory_space<smem>>
      %c2_i32_10 = arith.constant 2 : i32
      %37 = arith.addi %4, %c2_i32_10 : i32
      %38 = arith.index_cast %arg0 : i32 to index
      %39 = arith.index_cast %37 : i32 to index
      %40 = memref.load %arg2[%38, %39] : memref<4x784xf32, #tpu.memory_space<smem>>
      %41 = arith.index_cast %36 : i32 to index
      %c0_11 = arith.constant 0 : index
      %c0_12 = arith.constant 0 : index
      %42 = vector.load %arg3[%41, %c0_11, %c0_12] : memref<8x8x256xf32, #tpu.memory_space<vmem>>, vector<1x8x256xf32>
      %43 = vector.shape_cast %42 : vector<1x8x256xf32> to vector<8x256xf32>
      %44 = vector.broadcast %40 : f32 to vector<8x256xf32>
      %45 = arith.mulf %44, %43 : vector<8x256xf32>
      %46 = arith.addf %32, %45 : vector<8x256xf32>
      %c3_i32 = arith.constant 3 : i32
      %47 = arith.addi %4, %c3_i32 : i32
      %48 = arith.index_cast %arg0 : i32 to index
      %49 = arith.index_cast %47 : i32 to index
      %50 = memref.load %arg1[%48, %49] : memref<4x784xi32, #tpu.memory_space<smem>>
      %c3_i32_13 = arith.constant 3 : i32
      %51 = arith.addi %4, %c3_i32_13 : i32
      %52 = arith.index_cast %arg0 : i32 to index
      %53 = arith.index_cast %51 : i32 to index
      %54 = memref.load %arg2[%52, %53] : memref<4x784xf32, #tpu.memory_space<smem>>
      %55 = arith.index_cast %50 : i32 to index
      %c0_14 = arith.constant 0 : index
      %c0_15 = arith.constant 0 : index
      %56 = vector.load %arg3[%55, %c0_14, %c0_15] : memref<8x8x256xf32, #tpu.memory_space<vmem>>, vector<1x8x256xf32>
      %57 = vector.shape_cast %56 : vector<1x8x256xf32> to vector<8x256xf32>
      %58 = vector.broadcast %54 : f32 to vector<8x256xf32>
      %59 = arith.mulf %58, %57 : vector<8x256xf32>
      %60 = arith.addf %46, %59 : vector<8x256xf32>
      %c4_i32 = arith.constant 4 : i32
      %61 = arith.addi %4, %c4_i32 : i32
      %62 = arith.index_cast %arg0 : i32 to index
      %63 = arith.index_cast %61 : i32 to index
      %64 = memref.load %arg1[%62, %63] : memref<4x784xi32, #tpu.memory_space<smem>>
      %c4_i32_16 = arith.constant 4 : i32
      %65 = arith.addi %4, %c4_i32_16 : i32
      %66 = arith.index_cast %arg0 : i32 to index
      %67 = arith.index_cast %65 : i32 to index
      %68 = memref.load %arg2[%66, %67] : memref<4x784xf32, #tpu.memory_space<smem>>
      %69 = arith.index_cast %64 : i32 to index
      %c0_17 = arith.constant 0 : index
      %c0_18 = arith.constant 0 : index
      %70 = vector.load %arg3[%69, %c0_17, %c0_18] : memref<8x8x256xf32, #tpu.memory_space<vmem>>, vector<1x8x256xf32>
      %71 = vector.shape_cast %70 : vector<1x8x256xf32> to vector<8x256xf32>
      %72 = vector.broadcast %68 : f32 to vector<8x256xf32>
      %73 = arith.mulf %72, %71 : vector<8x256xf32>
      %74 = arith.addf %60, %73 : vector<8x256xf32>
      %c5_i32 = arith.constant 5 : i32
      %75 = arith.addi %4, %c5_i32 : i32
      %76 = arith.index_cast %arg0 : i32 to index
      %77 = arith.index_cast %75 : i32 to index
      %78 = memref.load %arg1[%76, %77] : memref<4x784xi32, #tpu.memory_space<smem>>
      %c5_i32_19 = arith.constant 5 : i32
      %79 = arith.addi %4, %c5_i32_19 : i32
      %80 = arith.index_cast %arg0 : i32 to index
      %81 = arith.index_cast %79 : i32 to index
      %82 = memref.load %arg2[%80, %81] : memref<4x784xf32, #tpu.memory_space<smem>>
      %83 = arith.index_cast %78 : i32 to index
      %c0_20 = arith.constant 0 : index
      %c0_21 = arith.constant 0 : index
      %84 = vector.load %arg3[%83, %c0_20, %c0_21] : memref<8x8x256xf32, #tpu.memory_space<vmem>>, vector<1x8x256xf32>
      %85 = vector.shape_cast %84 : vector<1x8x256xf32> to vector<8x256xf32>
      %86 = vector.broadcast %82 : f32 to vector<8x256xf32>
      %87 = arith.mulf %86, %85 : vector<8x256xf32>
      %88 = arith.addf %74, %87 : vector<8x256xf32>
      %c6_i32 = arith.constant 6 : i32
      %89 = arith.addi %4, %c6_i32 : i32
      %90 = arith.index_cast %arg0 : i32 to index
      %91 = arith.index_cast %89 : i32 to index
      %92 = memref.load %arg1[%90, %91] : memref<4x784xi32, #tpu.memory_space<smem>>
      %c6_i32_22 = arith.constant 6 : i32
      %93 = arith.addi %4, %c6_i32_22 : i32
      %94 = arith.index_cast %arg0 : i32 to index
      %95 = arith.index_cast %93 : i32 to index
      %96 = memref.load %arg2[%94, %95] : memref<4x784xf32, #tpu.memory_space<smem>>
      %97 = arith.index_cast %92 : i32 to index
      %c0_23 = arith.constant 0 : index
      %c0_24 = arith.constant 0 : index
      %98 = vector.load %arg3[%97, %c0_23, %c0_24] : memref<8x8x256xf32, #tpu.memory_space<vmem>>, vector<1x8x256xf32>
      %99 = vector.shape_cast %98 : vector<1x8x256xf32> to vector<8x256xf32>
      %100 = vector.broadcast %96 : f32 to vector<8x256xf32>
      %101 = arith.mulf %100, %99 : vector<8x256xf32>
      %102 = arith.addf %88, %101 : vector<8x256xf32>
      %c7_i32 = arith.constant 7 : i32
      %103 = arith.addi %4, %c7_i32 : i32
      %104 = arith.index_cast %arg0 : i32 to index
      %105 = arith.index_cast %103 : i32 to index
      %106 = memref.load %arg1[%104, %105] : memref<4x784xi32, #tpu.memory_space<smem>>
      %c7_i32_25 = arith.constant 7 : i32
      %107 = arith.addi %4, %c7_i32_25 : i32
      %108 = arith.index_cast %arg0 : i32 to index
      %109 = arith.index_cast %107 : i32 to index
      %110 = memref.load %arg2[%108, %109] : memref<4x784xf32, #tpu.memory_space<smem>>
      %111 = arith.index_cast %106 : i32 to index
      %c0_26 = arith.constant 0 : index
      %c0_27 = arith.constant 0 : index
      %112 = vector.load %arg3[%111, %c0_26, %c0_27] : memref<8x8x256xf32, #tpu.memory_space<vmem>>, vector<1x8x256xf32>
      %113 = vector.shape_cast %112 : vector<1x8x256xf32> to vector<8x256xf32>
      %114 = vector.broadcast %110 : f32 to vector<8x256xf32>
      %115 = arith.mulf %114, %113 : vector<8x256xf32>
      %116 = arith.addf %102, %115 : vector<8x256xf32>
      %c8_i32 = arith.constant 8 : i32
      %117 = arith.addi %4, %c8_i32 : i32
      %118 = arith.index_cast %arg0 : i32 to index
      %119 = arith.index_cast %117 : i32 to index
      %120 = memref.load %arg1[%118, %119] : memref<4x784xi32, #tpu.memory_space<smem>>
      %c8_i32_28 = arith.constant 8 : i32
      %121 = arith.addi %4, %c8_i32_28 : i32
      %122 = arith.index_cast %arg0 : i32 to index
      %123 = arith.index_cast %121 : i32 to index
      %124 = memref.load %arg2[%122, %123] : memref<4x784xf32, #tpu.memory_space<smem>>
      %125 = arith.index_cast %120 : i32 to index
      %c0_29 = arith.constant 0 : index
      %c0_30 = arith.constant 0 : index
      %126 = vector.load %arg3[%125, %c0_29, %c0_30] : memref<8x8x256xf32, #tpu.memory_space<vmem>>, vector<1x8x256xf32>
      %127 = vector.shape_cast %126 : vector<1x8x256xf32> to vector<8x256xf32>
      %128 = vector.broadcast %124 : f32 to vector<8x256xf32>
      %129 = arith.mulf %128, %127 : vector<8x256xf32>
      %130 = arith.addf %116, %129 : vector<8x256xf32>
      %c9_i32 = arith.constant 9 : i32
      %131 = arith.addi %4, %c9_i32 : i32
      %132 = arith.index_cast %arg0 : i32 to index
      %133 = arith.index_cast %131 : i32 to index
      %134 = memref.load %arg1[%132, %133] : memref<4x784xi32, #tpu.memory_space<smem>>
      %c9_i32_31 = arith.constant 9 : i32
      %135 = arith.addi %4, %c9_i32_31 : i32
      %136 = arith.index_cast %arg0 : i32 to index
      %137 = arith.index_cast %135 : i32 to index
      %138 = memref.load %arg2[%136, %137] : memref<4x784xf32, #tpu.memory_space<smem>>
      %139 = arith.index_cast %134 : i32 to index
      %c0_32 = arith.constant 0 : index
      %c0_33 = arith.constant 0 : index
      %140 = vector.load %arg3[%139, %c0_32, %c0_33] : memref<8x8x256xf32, #tpu.memory_space<vmem>>, vector<1x8x256xf32>
      %141 = vector.shape_cast %140 : vector<1x8x256xf32> to vector<8x256xf32>
      %142 = vector.broadcast %138 : f32 to vector<8x256xf32>
      %143 = arith.mulf %142, %141 : vector<8x256xf32>
      %144 = arith.addf %130, %143 : vector<8x256xf32>
      %c10_i32 = arith.constant 10 : i32
      %145 = arith.addi %4, %c10_i32 : i32
      %146 = arith.index_cast %arg0 : i32 to index
      %147 = arith.index_cast %145 : i32 to index
      %148 = memref.load %arg1[%146, %147] : memref<4x784xi32, #tpu.memory_space<smem>>
      %c10_i32_34 = arith.constant 10 : i32
      %149 = arith.addi %4, %c10_i32_34 : i32
      %150 = arith.index_cast %arg0 : i32 to index
      %151 = arith.index_cast %149 : i32 to index
      %152 = memref.load %arg2[%150, %151] : memref<4x784xf32, #tpu.memory_space<smem>>
      %153 = arith.index_cast %148 : i32 to index
      %c0_35 = arith.constant 0 : index
      %c0_36 = arith.constant 0 : index
      %154 = vector.load %arg3[%153, %c0_35, %c0_36] : memref<8x8x256xf32, #tpu.memory_space<vmem>>, vector<1x8x256xf32>
      %155 = vector.shape_cast %154 : vector<1x8x256xf32> to vector<8x256xf32>
      %156 = vector.broadcast %152 : f32 to vector<8x256xf32>
      %157 = arith.mulf %156, %155 : vector<8x256xf32>
      %158 = arith.addf %144, %157 : vector<8x256xf32>
      %c11_i32 = arith.constant 11 : i32
      %159 = arith.addi %4, %c11_i32 : i32
      %160 = arith.index_cast %arg0 : i32 to index
      %161 = arith.index_cast %159 : i32 to index
      %162 = memref.load %arg1[%160, %161] : memref<4x784xi32, #tpu.memory_space<smem>>
      %c11_i32_37 = arith.constant 11 : i32
      %163 = arith.addi %4, %c11_i32_37 : i32
      %164 = arith.index_cast %arg0 : i32 to index
      %165 = arith.index_cast %163 : i32 to index
      %166 = memref.load %arg2[%164, %165] : memref<4x784xf32, #tpu.memory_space<smem>>
      %167 = arith.index_cast %162 : i32 to index
      %c0_38 = arith.constant 0 : index
      %c0_39 = arith.constant 0 : index
      %168 = vector.load %arg3[%167, %c0_38, %c0_39] : memref<8x8x256xf32, #tpu.memory_space<vmem>>, vector<1x8x256xf32>
      %169 = vector.shape_cast %168 : vector<1x8x256xf32> to vector<8x256xf32>
      %170 = vector.broadcast %166 : f32 to vector<8x256xf32>
      %171 = arith.mulf %170, %169 : vector<8x256xf32>
      %172 = arith.addf %158, %171 : vector<8x256xf32>
      %c12_i32 = arith.constant 12 : i32
      %173 = arith.addi %4, %c12_i32 : i32
      %174 = arith.index_cast %arg0 : i32 to index
      %175 = arith.index_cast %173 : i32 to index
      %176 = memref.load %arg1[%174, %175] : memref<4x784xi32, #tpu.memory_space<smem>>
      %c12_i32_40 = arith.constant 12 : i32
      %177 = arith.addi %4, %c12_i32_40 : i32
      %178 = arith.index_cast %arg0 : i32 to index
      %179 = arith.index_cast %177 : i32 to index
      %180 = memref.load %arg2[%178, %179] : memref<4x784xf32, #tpu.memory_space<smem>>
      %181 = arith.index_cast %176 : i32 to index
      %c0_41 = arith.constant 0 : index
      %c0_42 = arith.constant 0 : index
      %182 = vector.load %arg3[%181, %c0_41, %c0_42] : memref<8x8x256xf32, #tpu.memory_space<vmem>>, vector<1x8x256xf32>
      %183 = vector.shape_cast %182 : vector<1x8x256xf32> to vector<8x256xf32>
      %184 = vector.broadcast %180 : f32 to vector<8x256xf32>
      %185 = arith.mulf %184, %183 : vector<8x256xf32>
      %186 = arith.addf %172, %185 : vector<8x256xf32>
      %c13_i32 = arith.constant 13 : i32
      %187 = arith.addi %4, %c13_i32 : i32
      %188 = arith.index_cast %arg0 : i32 to index
      %189 = arith.index_cast %187 : i32 to index
      %190 = memref.load %arg1[%188, %189] : memref<4x784xi32, #tpu.memory_space<smem>>
      %c13_i32_43 = arith.constant 13 : i32
      %191 = arith.addi %4, %c13_i32_43 : i32
      %192 = arith.index_cast %arg0 : i32 to index
      %193 = arith.index_cast %191 : i32 to index
      %194 = memref.load %arg2[%192, %193] : memref<4x784xf32, #tpu.memory_space<smem>>
      %195 = arith.index_cast %190 : i32 to index
      %c0_44 = arith.constant 0 : index
      %c0_45 = arith.constant 0 : index
      %196 = vector.load %arg3[%195, %c0_44, %c0_45] : memref<8x8x256xf32, #tpu.memory_space<vmem>>, vector<1x8x256xf32>
      %197 = vector.shape_cast %196 : vector<1x8x256xf32> to vector<8x256xf32>
      %198 = vector.broadcast %194 : f32 to vector<8x256xf32>
      %199 = arith.mulf %198, %197 : vector<8x256xf32>
      %200 = arith.addf %186, %199 : vector<8x256xf32>
      %c14_i32 = arith.constant 14 : i32
      %201 = arith.addi %4, %c14_i32 : i32
      %202 = arith.index_cast %arg0 : i32 to index
      %203 = arith.index_cast %201 : i32 to index
      %204 = memref.load %arg1[%202, %203] : memref<4x784xi32, #tpu.memory_space<smem>>
      %c14_i32_46 = arith.constant 14 : i32
      %205 = arith.addi %4, %c14_i32_46 : i32
      %206 = arith.index_cast %arg0 : i32 to index
      %207 = arith.index_cast %205 : i32 to index
      %208 = memref.load %arg2[%206, %207] : memref<4x784xf32, #tpu.memory_space<smem>>
      %209 = arith.index_cast %204 : i32 to index
      %c0_47 = arith.constant 0 : index
      %c0_48 = arith.constant 0 : index
      %210 = vector.load %arg3[%209, %c0_47, %c0_48] : memref<8x8x256xf32, #tpu.memory_space<vmem>>, vector<1x8x256xf32>
      %211 = vector.shape_cast %210 : vector<1x8x256xf32> to vector<8x256xf32>
      %212 = vector.broadcast %208 : f32 to vector<8x256xf32>
      %213 = arith.mulf %212, %211 : vector<8x256xf32>
      %214 = arith.addf %200, %213 : vector<8x256xf32>
      %c15_i32 = arith.constant 15 : i32
      %215 = arith.addi %4, %c15_i32 : i32
      %216 = arith.index_cast %arg0 : i32 to index
      %217 = arith.index_cast %215 : i32 to index
      %218 = memref.load %arg1[%216, %217] : memref<4x784xi32, #tpu.memory_space<smem>>
      %c15_i32_49 = arith.constant 15 : i32
      %219 = arith.addi %4, %c15_i32_49 : i32
      %220 = arith.index_cast %arg0 : i32 to index
      %221 = arith.index_cast %219 : i32 to index
      %222 = memref.load %arg2[%220, %221] : memref<4x784xf32, #tpu.memory_space<smem>>
      %223 = arith.index_cast %218 : i32 to index
      %c0_50 = arith.constant 0 : index
      %c0_51 = arith.constant 0 : index
      %224 = vector.load %arg3[%223, %c0_50, %c0_51] : memref<8x8x256xf32, #tpu.memory_space<vmem>>, vector<1x8x256xf32>
      %225 = vector.shape_cast %224 : vector<1x8x256xf32> to vector<8x256xf32>
      %226 = vector.broadcast %222 : f32 to vector<8x256xf32>
      %227 = arith.mulf %226, %225 : vector<8x256xf32>
      %228 = arith.addf %214, %227 : vector<8x256xf32>
      %c0_52 = arith.constant 0 : index
      %229 = arith.index_cast %2 : i32 to index
      %c0_53 = arith.constant 0 : index
      %c0_54 = arith.constant 0 : index
      %230 = vector.load %arg4[%c0_52, %229, %c0_53, %c0_54] : memref<1x49x8x256xf32, #tpu.memory_space<vmem>>, vector<1x1x8x256xf32>
      %231 = vector.shape_cast %230 : vector<1x1x8x256xf32> to vector<8x256xf32>
      %232 = vector.shape_cast %228 : vector<8x256xf32> to vector<1x1x8x256xf32>
      tpu.vector_store %arg4[%c0_52, %229, %c0_53, %c0_54], %232 {strides = array<i32>} : memref<1x49x8x256xf32, #tpu.memory_space<vmem>>, vector<1x1x8x256xf32>,
    }
    %c49_i32_0 = arith.constant 49 : i32
    return
  }
  func.func @transform_0(%arg0: i32) -> (i32, i32) {
    %c0_i32 = arith.constant 0 : i32
    %c0_i32_0 = arith.constant 0 : i32
    %c0_i32_1 = arith.constant 0 : i32
    return %c0_i32, %c0_i32_0 : i32, i32
  }
  func.func @transform_1(%arg0: i32) -> (i32, i32) {
    %c0_i32 = arith.constant 0 : i32
    %c0_i32_0 = arith.constant 0 : i32
    %c0_i32_1 = arith.constant 0 : i32
    return %c0_i32, %c0_i32_0 : i32, i32
  }
  func.func @transform_2(%arg0: i32) -> (i32, i32, i32) {
    %c0_i32 = arith.constant 0 : i32
    %c0_i32_0 = arith.constant 0 : i32
    %c0_i32_1 = arith.constant 0 : i32
    %c0_i32_2 = arith.constant 0 : i32
    return %c0_i32, %c0_i32_0, %c0_i32_1 : i32, i32, i32
  }
  func.func @transform_3(%arg0: i32) -> (i32, i32, i32, i32) {
    %c0_i32 = arith.constant 0 : i32
    %c0_i32_0 = arith.constant 0 : i32
    %c0_i32_1 = arith.constant 0 : i32
    %c0_i32_2 = arith.constant 0 : i32
    return %arg0, %c0_i32, %c0_i32_0, %c0_i32_1 : i32, i32, i32, i32
  }
}

module attributes {stable_mosaic.version = 11 : i64} {
  func.func @_matmul_bias_kernel(%arg0: i32, %arg1: i32, %arg2: i32, %arg3: memref<8x2048xbf16, #tpu.memory_space<vmem>>, %arg4: memref<2048x512xbf16, #tpu.memory_space<vmem>>, %arg5: memref<1x512xf32, #tpu.memory_space<vmem>>, %arg6: memref<8x512xf32, #tpu.memory_space<vmem>>) attributes {dimension_semantics = [#tpu.dimension_semantics<parallel>, #tpu.dimension_semantics<parallel>, #tpu.dimension_semantics<arbitrary>], iteration_bounds = array<i64: 1, 4, 49>, scalar_prefetch = 0 : i64, scratch_operands = 0 : i64, tpu.core_type = #tpu.core_type<tc>, window_params = [{transform_indices = @transform_0, window_bounds = array<i64: 8, 2048>}, {transform_indices = @transform_1, window_bounds = array<i64: 2048, 512>}, {transform_indices = @transform_2, window_bounds = array<i64: 1, 512>}, {transform_indices = @transform_3, window_bounds = array<i64: 8, 512>}]} {
    %c0_i32 = arith.constant 0 : i32
    %0 = arith.cmpi eq, %arg2, %c0_i32 : i32
    %1 = arith.extui %0 : i1 to i32
    %c0_i32_0 = arith.constant 0 : i32
    %2 = arith.cmpi ne, %1, %c0_i32_0 : i32
    scf.if %2 {
      %cst_9 = arith.constant 0.000000e+00 : f32
      %12 = vector.broadcast %cst_9 : f32 to vector<8x512xf32>
      %c0_10 = arith.constant 0 : index
      %c0_11 = arith.constant 0 : index
      %13 = vector.load %arg6[%c0_10, %c0_11] : memref<8x512xf32, #tpu.memory_space<vmem>>, vector<8x512xf32>
      tpu.vector_store %arg6[%c0_10, %c0_11], %12 {strides = array<i32>} : memref<8x512xf32, #tpu.memory_space<vmem>>, vector<8x512xf32>,
    } else {
    }
    %c0 = arith.constant 0 : index
    %c0_1 = arith.constant 0 : index
    %3 = vector.load %arg6[%c0, %c0_1] : memref<8x512xf32, #tpu.memory_space<vmem>>, vector<8x512xf32>
    %c0_2 = arith.constant 0 : index
    %c0_3 = arith.constant 0 : index
    %4 = vector.load %arg3[%c0_2, %c0_3] : memref<8x2048xbf16, #tpu.memory_space<vmem>>, vector<8x2048xbf16>
    %c0_4 = arith.constant 0 : index
    %c0_5 = arith.constant 0 : index
    %5 = vector.load %arg4[%c0_4, %c0_5] : memref<2048x512xbf16, #tpu.memory_space<vmem>>, vector<2048x512xbf16>
    %cst = arith.constant dense<0.000000e+00> : vector<8x512xf32>
    %6 = tpu.matmul %4, %5, %cst {dimension_numbers = #tpu.dot_dimension_numbers<[1], [0], [0], [1], [0, 0, 1, 1], [], []>} : vector<8x2048xbf16>, vector<2048x512xbf16>, vector<8x512xf32> -> vector<8x512xf32>
    %7 = arith.addf %3, %6 : vector<8x512xf32>
    %c0_6 = arith.constant 0 : index
    %c0_7 = arith.constant 0 : index
    %8 = vector.load %arg6[%c0_6, %c0_7] : memref<8x512xf32, #tpu.memory_space<vmem>>, vector<8x512xf32>
    tpu.vector_store %arg6[%c0_6, %c0_7], %7 {strides = array<i32>} : memref<8x512xf32, #tpu.memory_space<vmem>>, vector<8x512xf32>,
    %c48_i32 = arith.constant 48 : i32
    %9 = arith.cmpi eq, %arg2, %c48_i32 : i32
    %10 = arith.extui %9 : i1 to i32
    %c0_i32_8 = arith.constant 0 : i32
    %11 = arith.cmpi ne, %10, %c0_i32_8 : i32
    scf.if %11 {
      %c0_9 = arith.constant 0 : index
      %c0_10 = arith.constant 0 : index
      %12 = vector.load %arg6[%c0_9, %c0_10] : memref<8x512xf32, #tpu.memory_space<vmem>>, vector<8x512xf32>
      %c0_11 = arith.constant 0 : index
      %c0_12 = arith.constant 0 : index
      %13 = vector.load %arg5[%c0_11, %c0_12] : memref<1x512xf32, #tpu.memory_space<vmem>>, vector<1x512xf32>
      %14 = vector.broadcast %13 : vector<1x512xf32> to vector<8x512xf32>
      %15 = arith.addf %12, %14 : vector<8x512xf32>
      %c0_13 = arith.constant 0 : index
      %c0_14 = arith.constant 0 : index
      %16 = vector.load %arg6[%c0_13, %c0_14] : memref<8x512xf32, #tpu.memory_space<vmem>>, vector<8x512xf32>
      tpu.vector_store %arg6[%c0_13, %c0_14], %15 {strides = array<i32>} : memref<8x512xf32, #tpu.memory_space<vmem>>, vector<8x512xf32>,
    } else {
    }
    return
  }
  func.func @transform_0(%arg0: i32, %arg1: i32, %arg2: i32) -> (i32, i32) {
    %c0_i32 = arith.constant 0 : i32
    return %arg0, %arg2 : i32, i32
  }
  func.func @transform_1(%arg0: i32, %arg1: i32, %arg2: i32) -> (i32, i32) {
    %c0_i32 = arith.constant 0 : i32
    return %arg2, %arg1 : i32, i32
  }
  func.func @transform_2(%arg0: i32, %arg1: i32, %arg2: i32) -> (i32, i32) {
    %c0_i32 = arith.constant 0 : i32
    %c0_i32_0 = arith.constant 0 : i32
    return %c0_i32, %arg1 : i32, i32
  }
  func.func @transform_3(%arg0: i32, %arg1: i32, %arg2: i32) -> (i32, i32) {
    %c0_i32 = arith.constant 0 : i32
    return %arg0, %arg1 : i32, i32
  }
}

module attributes {stable_mosaic.version = 11 : i64} {
  func.func @_matmul_bias_kernel(%arg0: i32, %arg1: i32, %arg2: i32, %arg3: memref<8x2048xbf16, #tpu.memory_space<vmem>>, %arg4: memref<2048x128xbf16, #tpu.memory_space<vmem>>, %arg5: memref<1x128xf32, #tpu.memory_space<vmem>>, %arg6: memref<8x128xf32, #tpu.memory_space<vmem>>) attributes {dimension_semantics = [#tpu.dimension_semantics<parallel>, #tpu.dimension_semantics<parallel>, #tpu.dimension_semantics<arbitrary>], iteration_bounds = array<i64: 1, 1, 1>, scalar_prefetch = 0 : i64, scratch_operands = 0 : i64, tpu.core_type = #tpu.core_type<tc>, window_params = [{transform_indices = @transform_0, window_bounds = array<i64: 8, 2048>}, {transform_indices = @transform_1, window_bounds = array<i64: 2048, 128>}, {transform_indices = @transform_2, window_bounds = array<i64: 1, 128>}, {transform_indices = @transform_3, window_bounds = array<i64: 8, 128>}]} {
    %c0_i32 = arith.constant 0 : i32
    %0 = arith.cmpi eq, %arg2, %c0_i32 : i32
    %1 = arith.extui %0 : i1 to i32
    %c0_i32_0 = arith.constant 0 : i32
    %2 = arith.cmpi ne, %1, %c0_i32_0 : i32
    scf.if %2 {
      %cst_10 = arith.constant 0.000000e+00 : f32
      %12 = vector.broadcast %cst_10 : f32 to vector<8x128xf32>
      %c0_11 = arith.constant 0 : index
      %c0_12 = arith.constant 0 : index
      %13 = vector.load %arg6[%c0_11, %c0_12] : memref<8x128xf32, #tpu.memory_space<vmem>>, vector<8x128xf32>
      tpu.vector_store %arg6[%c0_11, %c0_12], %12 {strides = array<i32>} : memref<8x128xf32, #tpu.memory_space<vmem>>, vector<8x128xf32>,
    } else {
    }
    %c0 = arith.constant 0 : index
    %c0_1 = arith.constant 0 : index
    %3 = vector.load %arg6[%c0, %c0_1] : memref<8x128xf32, #tpu.memory_space<vmem>>, vector<8x128xf32>
    %c0_2 = arith.constant 0 : index
    %c0_3 = arith.constant 0 : index
    %4 = vector.load %arg3[%c0_2, %c0_3] : memref<8x2048xbf16, #tpu.memory_space<vmem>>, vector<8x2048xbf16>
    %c0_4 = arith.constant 0 : index
    %c0_5 = arith.constant 0 : index
    %5 = vector.load %arg4[%c0_4, %c0_5] : memref<2048x128xbf16, #tpu.memory_space<vmem>>, vector<2048x128xbf16>
    %cst = arith.constant dense<0.000000e+00> : vector<8x128xf32>
    %6 = tpu.matmul %4, %5, %cst {dimension_numbers = #tpu.dot_dimension_numbers<[1], [0], [0], [1], [0, 0, 1, 1], [], []>} : vector<8x2048xbf16>, vector<2048x128xbf16>, vector<8x128xf32> -> vector<8x128xf32>
    %7 = arith.addf %3, %6 : vector<8x128xf32>
    %c0_6 = arith.constant 0 : index
    %c0_7 = arith.constant 0 : index
    %8 = vector.load %arg6[%c0_6, %c0_7] : memref<8x128xf32, #tpu.memory_space<vmem>>, vector<8x128xf32>
    tpu.vector_store %arg6[%c0_6, %c0_7], %7 {strides = array<i32>} : memref<8x128xf32, #tpu.memory_space<vmem>>, vector<8x128xf32>,
    %c0_i32_8 = arith.constant 0 : i32
    %9 = arith.cmpi eq, %arg2, %c0_i32_8 : i32
    %10 = arith.extui %9 : i1 to i32
    %c0_i32_9 = arith.constant 0 : i32
    %11 = arith.cmpi ne, %10, %c0_i32_9 : i32
    scf.if %11 {
      %c0_10 = arith.constant 0 : index
      %c0_11 = arith.constant 0 : index
      %12 = vector.load %arg6[%c0_10, %c0_11] : memref<8x128xf32, #tpu.memory_space<vmem>>, vector<8x128xf32>
      %c0_12 = arith.constant 0 : index
      %c0_13 = arith.constant 0 : index
      %13 = vector.load %arg5[%c0_12, %c0_13] : memref<1x128xf32, #tpu.memory_space<vmem>>, vector<1x128xf32>
      %14 = vector.broadcast %13 : vector<1x128xf32> to vector<8x128xf32>
      %15 = arith.addf %12, %14 : vector<8x128xf32>
      %c0_14 = arith.constant 0 : index
      %c0_15 = arith.constant 0 : index
      %16 = vector.load %arg6[%c0_14, %c0_15] : memref<8x128xf32, #tpu.memory_space<vmem>>, vector<8x128xf32>
      tpu.vector_store %arg6[%c0_14, %c0_15], %15 {strides = array<i32>} : memref<8x128xf32, #tpu.memory_space<vmem>>, vector<8x128xf32>,
    } else {
    }
    return
  }
  func.func @transform_0(%arg0: i32, %arg1: i32, %arg2: i32) -> (i32, i32) {
    %c0_i32 = arith.constant 0 : i32
    return %arg0, %arg2 : i32, i32
  }
  func.func @transform_1(%arg0: i32, %arg1: i32, %arg2: i32) -> (i32, i32) {
    %c0_i32 = arith.constant 0 : i32
    return %arg2, %arg1 : i32, i32
  }
  func.func @transform_2(%arg0: i32, %arg1: i32, %arg2: i32) -> (i32, i32) {
    %c0_i32 = arith.constant 0 : i32
    %c0_i32_0 = arith.constant 0 : i32
    return %c0_i32, %arg1 : i32, i32
  }
  func.func @transform_3(%arg0: i32, %arg1: i32, %arg2: i32) -> (i32, i32) {
    %c0_i32 = arith.constant 0 : i32
    return %arg0, %arg1 : i32, i32
  }
}

</mosaic_0001>

<llo_original>
// kernel: fast_rcnn_forward.5
$region0: #{fast_rcnn_forward.5}
  #allocation0 [shape = 'u32[]', space=smem, size = 0x4, offset = 0x4, fixed_abs, tag = 'smem constant byte address 0x4 - core index']
  #allocation1 [shape = 'u32[144,128]{1,0:T(1,128)}', space=vmem, size = 0x12000, scoped, tag = 'internal scratch']
  %s0 = inlined_call_operand.vmem [shape: s32[4,784], index: 0, kind: input, shape index: {}]
  %s1 = inlined_call_operand.vmem [shape: f32[4,784], index: 1, kind: input, shape index: {}]
  %s2 = inlined_call_operand.vmem [shape: f32[8,8,256], index: 2, kind: input, shape index: {}]
  %s3 = inlined_call_operand.vmem [shape: f32[4,49,8,256], index: 3, kind: output, shape index: {}]
  %s4 = sld [smem:[#allocation0]]
  $region60: #{fast_rcnn_forward.5} parent=0
    _
  %s6 = ssub.s32 1, %s4
  %s7 = scalar_select 0, %s6, %s4
  $region1: #{fast_rcnn_forward.5} parent=0
    #allocation2 [shape = 'u8[14336]{0}', space=smem, size = 0x3800, scoped, tag = 'input window, operand 0, single buffered']
    #allocation3 [shape = 's32[2]{0}', space=sflag, size = 0x8, scoped, tag = 'scoped memory for fast_rcnn_forward.5']
    #allocation4 [shape = 'u8[14336]{0}', space=smem, size = 0x3800, scoped, tag = 'input window, operand 1, single buffered']
    #allocation5 [shape = 's32[1]{0}', space=sflag, size = 0x4, scoped, tag = 'scoped memory for fast_rcnn_forward.5']
    %8 = vsyncpa [#allocation3], 0
    %9 = vsyncpa [#allocation5], 0
    loop: start=0, step=1, limit=6
    $region2: #{fast_rcnn_forward.5} parent=1 // loop_pre_header
      _
    $region3: #{fast_rcnn_forward.5} parent=1 // loop_header
      %s11 = sphi 0, %s15
      %p12 = scmp.ge.s32.totalorder %s11, 6
      %s19 = sphi 0, %s19
      %s21 = sphi 0, %s19
      %s22 = sphi 0, %s21
      %s36 = sphi 0, %s22
      %s40 = sphi 0, %s40
      %s42 = sphi 0, %s40
      %s43 = sphi 0, %s42
      %s57 = sphi 0, %s43
      %s61 = sphi 0, %s61
      %s63 = sphi 0, %s61
      %s64 = sphi 0, %s63
      %s78 = sphi 0, %s64
      %s84 = sphi 0, %s86
      %s87 = sphi 0, %s84
      %s88 = sphi 0, %s87
      %s104 = sphi 0, %s88
    $region4: #{fast_rcnn_forward.5} parent=1 // loop_header_branch
      %14 = sbr.rel (%p12) target = $region8
    $region5: #{fast_rcnn_forward.5} parent=1 // loop_body
      %s16 = ssub.s32 %s11, 1
      %s17 = ssub.s32 %s11, 2
      %s18 = sadd.s32 %s11, 1
      %s20 = sadd.s32 %s19, 1
      %p23 = scmp.eq.s32.totalorder %s11, 3
      %p24 = scmp.ne.s32.totalorder %s19, %s21
      %p25 = scmp.eq.s32.totalorder %s11, 0
      %p26 = por %p24, %p25
      %p27 = scmp.ne.s32.totalorder %s19, %s21
      %p28 = scmp.eq.s32.totalorder %s16, 3
      %p29 = por %p27, %p28
      %p30 = scmp.ne.s32.totalorder %s21, %s22
      %p31 = scmp.eq.s32.totalorder %s16, 0
      %p32 = por %p30, %p31
      %p33 = scmp.ne.s32.totalorder %s21, %s22
      %p34 = scmp.eq.s32.totalorder %s17, 3
      %p35 = por %p33, %p34
      %p37 = scmp.ne.s32.totalorder %s22, %s36
      %p38 = scmp.eq.s32.totalorder %s17, 0
      %p39 = por %p37, %p38
      %s41 = sadd.s32 %s40, 1
      %p44 = scmp.eq.s32.totalorder %s11, 3
      %p45 = scmp.ne.s32.totalorder %s40, %s42
      %p46 = scmp.eq.s32.totalorder %s11, 0
      %p47 = por %p45, %p46
      %p48 = scmp.ne.s32.totalorder %s40, %s42
      %p49 = scmp.eq.s32.totalorder %s16, 3
      %p50 = por %p48, %p49
      %p51 = scmp.ne.s32.totalorder %s42, %s43
      %p52 = scmp.eq.s32.totalorder %s16, 0
      %p53 = por %p51, %p52
      %p54 = scmp.ne.s32.totalorder %s42, %s43
      %p55 = scmp.eq.s32.totalorder %s17, 3
      %p56 = por %p54, %p55
      %p58 = scmp.ne.s32.totalorder %s43, %s57
      %p59 = scmp.eq.s32.totalorder %s17, 0
      %p60 = por %p58, %p59
      %s62 = sadd.s32 %s61, 1
      %p65 = scmp.eq.s32.totalorder %s11, 3
      %p66 = scmp.ne.s32.totalorder %s61, %s63
      %p67 = scmp.eq.s32.totalorder %s11, 0
      %p68 = por %p66, %p67
      %p69 = scmp.ne.s32.totalorder %s61, %s63
      %p70 = scmp.eq.s32.totalorder %s16, 3
      %p71 = por %p69, %p70
      %p72 = scmp.ne.s32.totalorder %s63, %s64
      %p73 = scmp.eq.s32.totalorder %s16, 0
      %p74 = por %p72, %p73
      %p75 = scmp.ne.s32.totalorder %s63, %s64
      %p76 = scmp.eq.s32.totalorder %s17, 3
      %p77 = por %p75, %p76
      %p79 = scmp.ne.s32.totalorder %s64, %s78
      %p80 = scmp.eq.s32.totalorder %s17, 0
      %p81 = por %p79, %p80
      %s82 = ssub.s32 %s11, %s18
      %p83 = scmp.eq.s32.totalorder %s82, 0
      %s85 = sadd.s32 %s84, 1
      %s86 = scalar_select %p83, %s84, %s85
      %p89 = pneg %p83
      %p90 = scmp.eq.s32.totalorder %s11, 3
      %p91 = por %p89, %p90
      %p92 = scmp.ne.s32.totalorder %s84, %s87
      %p93 = scmp.eq.s32.totalorder %s11, 0
      %p94 = por %p92, %p93
      %p95 = scmp.ne.s32.totalorder %s84, %s87
      %p96 = scmp.eq.s32.totalorder %s16, 3
      %p97 = por %p95, %p96
      %p98 = scmp.ne.s32.totalorder %s87, %s88
      %p99 = scmp.eq.s32.totalorder %s16, 0
      %p100 = por %p98, %p99
      %p101 = scmp.ne.s32.totalorder %s87, %s88
      %p102 = scmp.eq.s32.totalorder %s17, 3
      %p103 = por %p101, %p102
      %p105 = scmp.ne.s32.totalorder %s88, %s104
      %p106 = scmp.eq.s32.totalorder %s17, 0
      %p107 = por %p105, %p106
      %p108 = scmp.le.s32.totalorder 1, %s11
      %p109 = scmp.lt.s32.totalorder %s11, 5
      %p110 = pnand %p108, %p109
      %p111 = pneg %p110
      // Predicated region
      $region9: #{fast_rcnn_forward.5} parent=5 // pred_check
        _
      $region10: #{fast_rcnn_forward.5} parent=5 // pred_check_branch
        %113 = sbr.rel (%p110) target = $region12
      $region11: #{fast_rcnn_forward.5} parent=5 // pred_region
        %s114 = ssub.s32 %s11, 1
        // Predicated region
        $region13: #{fast_rcnn_forward.5} parent=11 // pred_check
          %p115 = pneg %p32
        $region14: #{fast_rcnn_forward.5} parent=11 // pred_check_branch
          %117 = sbr.rel (%p115) target = $region16
        $region15: #{fast_rcnn_forward.5} parent=11 // pred_region
          %s119 = ssub.s32 448, 448
          %120 = vsyncadd [#allocation3], %s119
          %s122 = sshll.u32 %s0, 4
          %s123 = int_to_ptr.vmem [resolvable:$true] %s122
          %125 = dma.vmem_to_smem %s123, 448, [#allocation2], [#allocation3]
        $region16: #{fast_rcnn_forward.5} parent=11 // pred_fallthru
          _
        // Predicated region
        $region17: #{fast_rcnn_forward.5} parent=11 // pred_check
          %p126 = pneg %p53
        $region18: #{fast_rcnn_forward.5} parent=11 // pred_check_branch
          %128 = sbr.rel (%p126) target = $region20
        $region19: #{fast_rcnn_forward.5} parent=11 // pred_region
          %s130 = ssub.s32 448, 448
          %131 = vsyncadd [#allocation5], %s130
          %s133 = sshll.u32 %s1, 4
          %s134 = int_to_ptr.vmem [resolvable:$true] %s133
          %136 = dma.vmem_to_smem %s134, 448, [#allocation4], [#allocation5]
        $region20: #{fast_rcnn_forward.5} parent=11 // pred_fallthru
          _
        // Predicated region
        $region21: #{fast_rcnn_forward.5} parent=11 // pred_check
          %p137 = pneg %p74
        $region22: #{fast_rcnn_forward.5} parent=11 // pred_check_branch
          %139 = sbr.rel (%p137) target = $region24
        $region23: #{fast_rcnn_forward.5} parent=11 // pred_region
          _
        $region24: #{fast_rcnn_forward.5} parent=11 // pred_fallthru
          _
      $region12: #{fast_rcnn_forward.5} parent=5 // pred_fallthru
        _
      %p140 = scmp.lt.s32.totalorder %s11, 4
      // Predicated region
      $region25: #{fast_rcnn_forward.5} parent=5 // pred_check
        %p141 = pneg %p140
      $region26: #{fast_rcnn_forward.5} parent=5 // pred_check_branch
        %143 = sbr.rel (%p141) target = $region28
      $region27: #{fast_rcnn_forward.5} parent=5 // pred_region
        _
      $region28: #{fast_rcnn_forward.5} parent=5 // pred_fallthru
        _
      %p144 = scmp.le.s32.totalorder 1, %s11
      %p145 = scmp.lt.s32.totalorder %s11, 5
      %p146 = pnand %p144, %p145
      %p147 = pneg %p146
      // Predicated region
      $region29: #{fast_rcnn_forward.5} parent=5 // pred_check
        _
      $region30: #{fast_rcnn_forward.5} parent=5 // pred_check_branch
        %149 = sbr.rel (%p146) target = $region32
      $region31: #{fast_rcnn_forward.5} parent=5 // pred_region
        %s150 = ssub.s32 %s11, 1
        // Predicated region
        $region33: #{fast_rcnn_forward.5} parent=31 // pred_check
          %p151 = pneg %p32
        $region34: #{fast_rcnn_forward.5} parent=31 // pred_check_branch
          %153 = sbr.rel (%p151) target = $region36
        $region35: #{fast_rcnn_forward.5} parent=31 // pred_region
          %154 = dma.done [#allocation3], 448
        $region36: #{fast_rcnn_forward.5} parent=31 // pred_fallthru
          _
        // Predicated region
        $region37: #{fast_rcnn_forward.5} parent=31 // pred_check
          %p155 = pneg %p53
        $region38: #{fast_rcnn_forward.5} parent=31 // pred_check_branch
          %157 = sbr.rel (%p155) target = $region40
        $region39: #{fast_rcnn_forward.5} parent=31 // pred_region
          %158 = dma.done [#allocation5], 448
        $region40: #{fast_rcnn_forward.5} parent=31 // pred_fallthru
          _
        %159 = sfence
        %p160 = pneg %p32
        %p161 = pneg %p29
        %p162 = pneg %p53
        %p163 = pneg %p50
        %p164 = pneg %p74
        %p165 = pneg %p71
        %p166 = pneg %p100
        %p167 = pneg %p97
        %p168 = scmp.lt.s32.totalorder %s16, 3
        %s169 = scalar_select %p168, %s16, 3
        %s170 = smul.addr %s169, 98
        %s171 = smul.addr %s170, 8
        %s172 = scalar_lea.vmem %s3, %s171
        %p173 = scmp.lt.s32.totalorder %s16, 3
        %s174 = scalar_select %p173, %s16, 3
        %s175 = smul.addr %s174, 98
        %s176 = smul.addr %s175, 8
        %s177 = scalar_lea.vmem %s3, %s176
        loop: start=0, step=1, limit=49
        $region41: #{fast_rcnn_forward.5} parent=31 // loop_pre_header
          _
        $region42: #{fast_rcnn_forward.5} parent=31 // loop_header
          %s179 = sphi 0, %s183
          %p180 = scmp.ge.s32.totalorder %s179, 49
        $region43: #{fast_rcnn_forward.5} parent=31 // loop_header_branch
          %182 = sbr.rel (%p180) target = $region47
        $region44: #{fast_rcnn_forward.5} parent=31 // loop_body
          %s184 = smul.u32 %s179, 16
          %s185 = sshra.s32 %s184, 7
          %s186 = sand.u32 %s184, 127
          %s187 = sshra.s32 %s16, 2
          %s188 = sand.u32 %s16, 3
          %s189 = smul.u32 %s187, 7
          %s190 = sadd.s32 %s185, %s189
          %s191 = smul.u32 %s190, 512
          %s192 = sshra.s32 %s16, 2
          %s193 = sand.u32 %s16, 3
          %s194 = sshra.s32 %s184, 7
          %s195 = sand.u32 %s184, 127
          %s196 = smul.u32 %s193, 128
          %s197 = sadd.s32 %s196, %s195
          %s198 = sadd.s32 %s191, %s197
          %s199 = sld [smem:[#allocation2 + %s198]]
          %s200 = sld [smem:[#allocation4 + %s198]]
          %s201 = smul.u32 %s199, 2
          %s202 = smul.addr %s201, 8
          %s203 = scalar_lea.vmem %s2, %s202
          %v204 = vld [vmem:[%s203] sm:$0xff]
          %v205 = vld [vmem:[%s203 + $0x8] sm:$0xff]
          %v206 = vstv %s200
          %v207 = vmul.f32 %v206, %v204
          %v208 = vmul.f32 %v206, %v205
          %v209 = vadd.f32 %v207, 0.0
          %v210 = vadd.f32 %v208, 0.0
          %s211 = sadd.s32 %s184, 1
          %s212 = sshra.s32 %s211, 7
          %s213 = sand.u32 %s211, 127
          %s214 = sadd.s32 %s212, %s189
          %s215 = smul.u32 %s214, 512
          %s216 = sshra.s32 %s211, 7
          %s217 = sand.u32 %s211, 127
          %s218 = sadd.s32 %s196, %s217
          %s219 = sadd.s32 %s215, %s218
          %s220 = sld [smem:[#allocation2 + %s219]]
          %s221 = sld [smem:[#allocation4 + %s219]]
          %s222 = smul.u32 %s220, 2
          %s223 = smul.addr %s222, 8
          %s224 = scalar_lea.vmem %s2, %s223
          %v225 = vld [vmem:[%s224] sm:$0xff]
          %v226 = vld [vmem:[%s224 + $0x8] sm:$0xff]
          %v227 = vstv %s221
          %v228 = vmul.f32 %v227, %v225
          %v229 = vmul.f32 %v227, %v226
          %v230 = vadd.f32 %v209, %v228
          %v231 = vadd.f32 %v210, %v229
          %s232 = sadd.s32 %s184, 2
          %s233 = sshra.s32 %s232, 7
          %s234 = sand.u32 %s232, 127
          %s235 = sadd.s32 %s233, %s189
          %s236 = smul.u32 %s235, 512
          %s237 = sshra.s32 %s232, 7
          %s238 = sand.u32 %s232, 127
          %s239 = sadd.s32 %s196, %s238
          %s240 = sadd.s32 %s236, %s239
          %s241 = sld [smem:[#allocation2 + %s240]]
          %s242 = sld [smem:[#allocation4 + %s240]]
          %s243 = smul.u32 %s241, 2
          %s244 = smul.addr %s243, 8
          %s245 = scalar_lea.vmem %s2, %s244
          %v246 = vld [vmem:[%s245] sm:$0xff]
          %v247 = vld [vmem:[%s245 + $0x8] sm:$0xff]
          %v248 = vstv %s242
          %v249 = vmul.f32 %v248, %v246
          %v250 = vmul.f32 %v248, %v247
          %v251 = vadd.f32 %v230, %v249
          %v252 = vadd.f32 %v231, %v250
          %s253 = sadd.s32 %s184, 3
          %s254 = sshra.s32 %s253, 7
          %s255 = sand.u32 %s253, 127
          %s256 = sadd.s32 %s254, %s189
          %s257 = smul.u32 %s256, 512
          %s258 = sshra.s32 %s253, 7
          %s259 = sand.u32 %s253, 127
          %s260 = sadd.s32 %s196, %s259
          %s261 = sadd.s32 %s257, %s260
          %s262 = sld [smem:[#allocation2 + %s261]]
          %s263 = sld [smem:[#allocation4 + %s261]]
          %s264 = smul.u32 %s262, 2
          %s265 = smul.addr %s264, 8
          %s266 = scalar_lea.vmem %s2, %s265
          %v267 = vld [vmem:[%s266] sm:$0xff]
          %v268 = vld [vmem:[%s266 + $0x8] sm:$0xff]
          %v269 = vstv %s263
          %v270 = vmul.f32 %v269, %v267
          %v271 = vmul.f32 %v269, %v268
          %v272 = vadd.f32 %v251, %v270
          %v273 = vadd.f32 %v252, %v271
          %s274 = sadd.s32 %s184, 4
          %s275 = sshra.s32 %s274, 7
          %s276 = sand.u32 %s274, 127
          %s277 = sadd.s32 %s275, %s189
          %s278 = smul.u32 %s277, 512
          %s279 = sshra.s32 %s274, 7
          %s280 = sand.u32 %s274, 127
          %s281 = sadd.s32 %s196, %s280
          %s282 = sadd.s32 %s278, %s281
          %s283 = sld [smem:[#allocation2 + %s282]]
          %s284 = sld [smem:[#allocation4 + %s282]]
          %s285 = smul.u32 %s283, 2
          %s286 = smul.addr %s285, 8
          %s287 = scalar_lea.vmem %s2, %s286
          %v288 = vld [vmem:[%s287] sm:$0xff]
          %v289 = vld [vmem:[%s287 + $0x8] sm:$0xff]
          %v290 = vstv %s284
          %v291 = vmul.f32 %v290, %v288
          %v292 = vmul.f32 %v290, %v289
          %v293 = vadd.f32 %v272, %v291
          %v294 = vadd.f32 %v273, %v292
          %s295 = sadd.s32 %s184, 5
          %s296 = sshra.s32 %s295, 7
          %s297 = sand.u32 %s295, 127
          %s298 = sadd.s32 %s296, %s189
          %s299 = smul.u32 %s298, 512
          %s300 = sshra.s32 %s295, 7
          %s301 = sand.u32 %s295, 127
          %s302 = sadd.s32 %s196, %s301
          %s303 = sadd.s32 %s299, %s302
          %s304 = sld [smem:[#allocation2 + %s303]]
          %s305 = sld [smem:[#allocation4 + %s303]]
          %s306 = smul.u32 %s304, 2
          %s307 = smul.addr %s306, 8
          %s308 = scalar_lea.vmem %s2, %s307
          %v309 = vld [vmem:[%s308] sm:$0xff]
          %v310 = vld [vmem:[%s308 + $0x8] sm:$0xff]
          %v311 = vstv %s305
          %v312 = vmul.f32 %v311, %v309
          %v313 = vmul.f32 %v311, %v310
          %v314 = vadd.f32 %v293, %v312
          %v315 = vadd.f32 %v294, %v313
          %s316 = sadd.s32 %s184, 6
          %s317 = sshra.s32 %s316, 7
          %s318 = sand.u32 %s316, 127
          %s319 = sadd.s32 %s317, %s189
          %s320 = smul.u32 %s319, 512
          %s321 = sshra.s32 %s316, 7
          %s322 = sand.u32 %s316, 127
          %s323 = sadd.s32 %s196, %s322
          %s324 = sadd.s32 %s320, %s323
          %s325 = sld [smem:[#allocation2 + %s324]]
          %s326 = sld [smem:[#allocation4 + %s324]]
          %s327 = smul.u32 %s325, 2
          %s328 = smul.addr %s327, 8
          %s329 = scalar_lea.vmem %s2, %s328
          %v330 = vld [vmem:[%s329] sm:$0xff]
          %v331 = vld [vmem:[%s329 + $0x8] sm:$0xff]
          %v332 = vstv %s326
          %v333 = vmul.f32 %v332, %v330
          %v334 = vmul.f32 %v332, %v331
          %v335 = vadd.f32 %v314, %v333
          %v336 = vadd.f32 %v315, %v334
          %s337 = sadd.s32 %s184, 7
          %s338 = sshra.s32 %s337, 7
          %s339 = sand.u32 %s337, 127
          %s340 = sadd.s32 %s338, %s189
          %s341 = smul.u32 %s340, 512
          %s342 = sshra.s32 %s337, 7
          %s343 = sand.u32 %s337, 127
          %s344 = sadd.s32 %s196, %s343
          %s345 = sadd.s32 %s341, %s344
          %s346 = sld [smem:[#allocation2 + %s345]]
          %s347 = sld [smem:[#allocation4 + %s345]]
          %s348 = smul.u32 %s346, 2
          %s349 = smul.addr %s348, 8
          %s350 = scalar_lea.vmem %s2, %s349
          %v351 = vld [vmem:[%s350] sm:$0xff]
          %v352 = vld [vmem:[%s350 + $0x8] sm:$0xff]
          %v353 = vstv %s347
          %v354 = vmul.f32 %v353, %v351
          %v355 = vmul.f32 %v353, %v352
          %v356 = vadd.f32 %v335, %v354
          %v357 = vadd.f32 %v336, %v355
          %s358 = sadd.s32 %s184, 8
          %s359 = sshra.s32 %s358, 7
          %s360 = sand.u32 %s358, 127
          %s361 = sadd.s32 %s359, %s189
          %s362 = smul.u32 %s361, 512
          %s363 = sshra.s32 %s358, 7
          %s364 = sand.u32 %s358, 127
          %s365 = sadd.s32 %s196, %s364
          %s366 = sadd.s32 %s362, %s365
          %s367 = sld [smem:[#allocation2 + %s366]]
          %s368 = sld [smem:[#allocation4 + %s366]]
          %s369 = smul.u32 %s367, 2
          %s370 = smul.addr %s369, 8
          %s371 = scalar_lea.vmem %s2, %s370
          %v372 = vld [vmem:[%s371] sm:$0xff]
          %v373 = vld [vmem:[%s371 + $0x8] sm:$0xff]
          %v374 = vstv %s368
          %v375 = vmul.f32 %v374, %v372
          %v376 = vmul.f32 %v374, %v373
          %v377 = vadd.f32 %v356, %v375
          %v378 = vadd.f32 %v357, %v376
          %s379 = sadd.s32 %s184, 9
          %s380 = sshra.s32 %s379, 7
          %s381 = sand.u32 %s379, 127
          %s382 = sadd.s32 %s380, %s189
          %s383 = smul.u32 %s382, 512
          %s384 = sshra.s32 %s379, 7
          %s385 = sand.u32 %s379, 127
          %s386 = sadd.s32 %s196, %s385
          %s387 = sadd.s32 %s383, %s386
          %s388 = sld [smem:[#allocation2 + %s387]]
          %s389 = sld [smem:[#allocation4 + %s387]]
          %s390 = smul.u32 %s388, 2
          %s391 = smul.addr %s390, 8
          %s392 = scalar_lea.vmem %s2, %s391
          %v393 = vld [vmem:[%s392] sm:$0xff]
          %v394 = vld [vmem:[%s392 + $0x8] sm:$0xff]
          %v395 = vstv %s389
          %v396 = vmul.f32 %v395, %v393
          %v397 = vmul.f32 %v395, %v394
          %v398 = vadd.f32 %v377, %v396
          %v399 = vadd.f32 %v378, %v397
          %s400 = sadd.s32 %s184, 10
          %s401 = sshra.s32 %s400, 7
          %s402 = sand.u32 %s400, 127
          %s403 = sadd.s32 %s401, %s189
          %s404 = smul.u32 %s403, 512
          %s405 = sshra.s32 %s400, 7
          %s406 = sand.u32 %s400, 127
          %s407 = sadd.s32 %s196, %s406
          %s408 = sadd.s32 %s404, %s407
          %s409 = sld [smem:[#allocation2 + %s408]]
          %s410 = sld [smem:[#allocation4 + %s408]]
          %s411 = smul.u32 %s409, 2
          %s412 = smul.addr %s411, 8
          %s413 = scalar_lea.vmem %s2, %s412
          %v414 = vld [vmem:[%s413] sm:$0xff]
          %v415 = vld [vmem:[%s413 + $0x8] sm:$0xff]
          %v416 = vstv %s410
          %v417 = vmul.f32 %v416, %v414
          %v418 = vmul.f32 %v416, %v415
          %v419 = vadd.f32 %v398, %v417
          %v420 = vadd.f32 %v399, %v418
          %s421 = sadd.s32 %s184, 11
          %s422 = sshra.s32 %s421, 7
          %s423 = sand.u32 %s421, 127
          %s424 = sadd.s32 %s422, %s189
          %s425 = smul.u32 %s424, 512
          %s426 = sshra.s32 %s421, 7
          %s427 = sand.u32 %s421, 127
          %s428 = sadd.s32 %s196, %s427
          %s429 = sadd.s32 %s425, %s428
          %s430 = sld [smem:[#allocation2 + %s429]]
          %s431 = sld [smem:[#allocation4 + %s429]]
          %s432 = smul.u32 %s430, 2
          %s433 = smul.addr %s432, 8
          %s434 = scalar_lea.vmem %s2, %s433
          %v435 = vld [vmem:[%s434] sm:$0xff]
          %v436 = vld [vmem:[%s434 + $0x8] sm:$0xff]
          %v437 = vstv %s431
          %v438 = vmul.f32 %v437, %v435
          %v439 = vmul.f32 %v437, %v436
          %v440 = vadd.f32 %v419, %v438
          %v441 = vadd.f32 %v420, %v439
          %s442 = sadd.s32 %s184, 12
          %s443 = sshra.s32 %s442, 7
          %s444 = sand.u32 %s442, 127
          %s445 = sadd.s32 %s443, %s189
          %s446 = smul.u32 %s445, 512
          %s447 = sshra.s32 %s442, 7
          %s448 = sand.u32 %s442, 127
          %s449 = sadd.s32 %s196, %s448
          %s450 = sadd.s32 %s446, %s449
          %s451 = sld [smem:[#allocation2 + %s450]]
          %s452 = sld [smem:[#allocation4 + %s450]]
          %s453 = smul.u32 %s451, 2
          %s454 = smul.addr %s453, 8
          %s455 = scalar_lea.vmem %s2, %s454
          %v456 = vld [vmem:[%s455] sm:$0xff]
          %v457 = vld [vmem:[%s455 + $0x8] sm:$0xff]
          %v458 = vstv %s452
          %v459 = vmul.f32 %v458, %v456
          %v460 = vmul.f32 %v458, %v457
          %v461 = vadd.f32 %v440, %v459
          %v462 = vadd.f32 %v441, %v460
          %s463 = sadd.s32 %s184, 13
          %s464 = sshra.s32 %s463, 7
          %s465 = sand.u32 %s463, 127
          %s466 = sadd.s32 %s464, %s189
          %s467 = smul.u32 %s466, 512
          %s468 = sshra.s32 %s463, 7
          %s469 = sand.u32 %s463, 127
          %s470 = sadd.s32 %s196, %s469
          %s471 = sadd.s32 %s467, %s470
          %s472 = sld [smem:[#allocation2 + %s471]]
          %s473 = sld [smem:[#allocation4 + %s471]]
          %s474 = smul.u32 %s472, 2
          %s475 = smul.addr %s474, 8
          %s476 = scalar_lea.vmem %s2, %s475
          %v477 = vld [vmem:[%s476] sm:$0xff]
          %v478 = vld [vmem:[%s476 + $0x8] sm:$0xff]
          %v479 = vstv %s473
          %v480 = vmul.f32 %v479, %v477
          %v481 = vmul.f32 %v479, %v478
          %v482 = vadd.f32 %v461, %v480
          %v483 = vadd.f32 %v462, %v481
          %s484 = sadd.s32 %s184, 14
          %s485 = sshra.s32 %s484, 7
          %s486 = sand.u32 %s484, 127
          %s487 = sadd.s32 %s485, %s189
          %s488 = smul.u32 %s487, 512
          %s489 = sshra.s32 %s484, 7
          %s490 = sand.u32 %s484, 127
          %s491 = sadd.s32 %s196, %s490
          %s492 = sadd.s32 %s488, %s491
          %s493 = sld [smem:[#allocation2 + %s492]]
          %s494 = sld [smem:[#allocation4 + %s492]]
          %s495 = smul.u32 %s493, 2
          %s496 = smul.addr %s495, 8
          %s497 = scalar_lea.vmem %s2, %s496
          %v498 = vld [vmem:[%s497] sm:$0xff]
          %v499 = vld [vmem:[%s497 + $0x8] sm:$0xff]
          %v500 = vstv %s494
          %v501 = vmul.f32 %v500, %v498
          %v502 = vmul.f32 %v500, %v499
          %v503 = vadd.f32 %v482, %v501
          %v504 = vadd.f32 %v483, %v502
          %s505 = sadd.s32 %s184, 15
          %s506 = sshra.s32 %s505, 7
          %s507 = sand.u32 %s505, 127
          %s508 = sadd.s32 %s506, %s189
          %s509 = smul.u32 %s508, 512
          %s510 = sshra.s32 %s505, 7
          %s511 = sand.u32 %s505, 127
          %s512 = sadd.s32 %s196, %s511
          %s513 = sadd.s32 %s509, %s512
          %s514 = sld [smem:[#allocation2 + %s513]]
          %s515 = sld [smem:[#allocation4 + %s513]]
          %s516 = smul.u32 %s514, 2
          %s517 = smul.addr %s516, 8
          %s518 = scalar_lea.vmem %s2, %s517
          %v519 = vld [vmem:[%s518] sm:$0xff]
          %v520 = vld [vmem:[%s518 + $0x8] sm:$0xff]
          %v521 = vstv %s515
          %v522 = vmul.f32 %v521, %v519
          %v523 = vmul.f32 %v521, %v520
          %v524 = vadd.f32 %v503, %v522
          %v525 = vadd.f32 %v504, %v523
          %s526 = smul.u32 %s179, 2
          %s527 = smul.addr %s526, 8
          %s528 = scalar_lea.vmem %s177, %s527
          %529 = vst [vmem:[%s528] sm:$0xff] %v524
          %530 = vst [vmem:[%s528 + $0x8] sm:$0xff] %v525
        $region45: #{fast_rcnn_forward.5} parent=31 // loop_footer
          %s183 = sadd.s32 1, %s179
        $region46: #{fast_rcnn_forward.5} parent=31 // loop_footer_branch
          %178 = sbr.rel target = $region42
        $region47: #{fast_rcnn_forward.5} parent=31 // loop_exit
          _
        %p531 = scmp.lt.s32.totalorder %s16, 3
        %s532 = scalar_select %p531, %s16, 3
        %s533 = smul.addr %s532, 98
        %s534 = smul.addr %s533, 8
        %s535 = scalar_lea.vmem %s3, %s534
        // Predicated region
        $region48: #{fast_rcnn_forward.5} parent=31 // pred_check
          %p536 = pneg %p97
        $region49: #{fast_rcnn_forward.5} parent=31 // pred_check_branch
          %538 = sbr.rel (%p536) target = $region51
        $region50: #{fast_rcnn_forward.5} parent=31 // pred_region
          _
        $region51: #{fast_rcnn_forward.5} parent=31 // pred_fallthru
          _
      $region32: #{fast_rcnn_forward.5} parent=5 // pred_fallthru
        _
      %p539 = scmp.le.s32.totalorder 2, %s11
      // Predicated region
      $region52: #{fast_rcnn_forward.5} parent=5 // pred_check
        %p540 = pneg %p539
      $region53: #{fast_rcnn_forward.5} parent=5 // pred_check_branch
        %542 = sbr.rel (%p540) target = $region55
      $region54: #{fast_rcnn_forward.5} parent=5 // pred_region
        %s543 = ssub.s32 %s11, 2
        // Predicated region
        $region56: #{fast_rcnn_forward.5} parent=54 // pred_check
          %p544 = pneg %p103
        $region57: #{fast_rcnn_forward.5} parent=54 // pred_check_branch
          %546 = sbr.rel (%p544) target = $region59
        $region58: #{fast_rcnn_forward.5} parent=54 // pred_region
          %p547 = scmp.lt.s32.totalorder %s17, 3
          %s548 = scalar_select %p547, %s17, 3
          %s549 = smul.addr %s548, 98
          %s550 = smul.addr %s549, 8
          %s551 = scalar_lea.vmem %s3, %s550
        $region59: #{fast_rcnn_forward.5} parent=54 // pred_fallthru
          _
      $region55: #{fast_rcnn_forward.5} parent=5 // pred_fallthru
        _
    $region6: #{fast_rcnn_forward.5} parent=1 // loop_footer
      %s15 = sadd.s32 1, %s11
    $region7: #{fast_rcnn_forward.5} parent=1 // loop_footer_branch
      %10 = sbr.rel target = $region3
    $region8: #{fast_rcnn_forward.5} parent=1 // loop_exit
      _
    %552 = vsyncpa [#allocation3], 1
    %s553 = scalar_lea.sflag [#allocation3], 1
    %554 = vsyncpa %s553, 1
    %555 = vsyncpa [#allocation5], 1

// kernel: fast_rcnn_forward.4
$region0: #{fast_rcnn_forward.4}
  #allocation0 [shape = 'u32[]', space=smem, size = 0x4, offset = 0x4, fixed_abs, tag = 'smem constant byte address 0x4 - core index']
  #allocation1 [shape = 'u32[144,128]{1,0:T(1,128)}', space=vmem, size = 0x12000, scoped, tag = 'internal scratch']
  %s0 = inlined_call_operand.vmem [shape: bf16[8,3072], index: 0, kind: input, shape index: {}]
  %s1 = inlined_call_operand.hbm [shape: bf16[3072,2048], index: 1, kind: input, shape index: {}]
  %s2 = inlined_call_operand.vmem [shape: f32[1,2048], index: 2, kind: input, shape index: {}]
  %s3 = inlined_call_operand.vmem [shape: f32[8,2048], index: 3, kind: output, shape index: {}]
  %s4 = sld [smem:[#allocation0]]
  $region57: #{fast_rcnn_forward.4} parent=0
    _
  %s6 = ssub.s32 1, %s4
  %s7 = scalar_select 0, %s6, %s4
  $region1: #{fast_rcnn_forward.4} parent=0
    #allocation2 [shape = 'u8[2097152]{0}', space=vmem, size = 0x200000, scoped, tag = 'input window, operand 1']
    #allocation3 [shape = 's32[2]{0}', space=sflag, size = 0x8, scoped, tag = 'scoped memory for fast_rcnn_forward.4']
    %8 = vsyncpa [#allocation3], 0
    %s9 = scalar_lea.sflag [#allocation3], 1
    %10 = vsyncpa %s9, 0
    loop: start=0, step=1, limit=14
    $region2: #{fast_rcnn_forward.4} parent=1 // loop_pre_header
      _
    $region3: #{fast_rcnn_forward.4} parent=1 // loop_header
      %s12 = sphi 0, %s16
      %p13 = scmp.ge.s32.totalorder %s12, 14
      %s19 = sphi 0, %s38
      %s20 = sphi 0, %s34
      %s21 = sphi 0, %s30
      %s22 = sphi 0, %s19
      %s23 = sphi 0, %s20
      %s24 = sphi 0, %s21
      %s25 = sphi 0, %s22
      %s26 = sphi 0, %s23
      %s27 = sphi 0, %s24
      %s43 = sphi 0, %s45
      %s46 = sphi 0, %s43
      %s47 = sphi 0, %s46
      %s63 = sphi 0, %s47
      %s71 = sphi 0, %s73
      %s74 = sphi 0, %s71
      %s75 = sphi 0, %s74
      %s91 = sphi 0, %s75
      %s97 = sphi 0, %s99
      %s100 = sphi 0, %s97
      %s101 = sphi 0, %s100
      %s117 = sphi 0, %s101
      %s125 = sphi 0, %s127
      %s128 = sphi 0, %s125
      %s129 = sphi 0, %s128
      %s145 = sphi 0, %s129
    $region4: #{fast_rcnn_forward.4} parent=1 // loop_header_branch
      %15 = sbr.rel (%p13) target = $region8
    $region5: #{fast_rcnn_forward.4} parent=1 // loop_body
      %s17 = ssub.s32 %s12, 1
      %s18 = ssub.s32 %s12, 2
      %s28 = sadd.s32 1, %s21
      %p29 = scmp.ge.s32.totalorder %s28, 3
      %s30 = scalar_select %p29, 0, %s28
      %s31 = sadd.s32 1, %s20
      %s32 = scalar_select %p29, %s31, %s20
      %p33 = scmp.ge.s32.totalorder %s32, 4
      %s34 = scalar_select %p33, 0, %s32
      %s35 = sadd.s32 1, %s19
      %s36 = scalar_select %p33, %s35, %s19
      %p37 = scmp.ge.s32.totalorder %s36, 1
      %s38 = scalar_select %p37, 0, %s36
      %s39 = ssub.s32 %s19, %s38
      %s40 = ssub.s32 %s21, %s30
      %s41 = sor.u32 %s39, %s40
      %p42 = scmp.eq.s32.totalorder %s41, 0
      %s44 = sadd.s32 %s43, 1
      %s45 = scalar_select %p42, %s43, %s44
      %p48 = pneg %p42
      %p49 = scmp.eq.s32.totalorder %s12, 11
      %p50 = por %p48, %p49
      %p51 = scmp.ne.s32.totalorder %s43, %s46
      %p52 = scmp.eq.s32.totalorder %s12, 0
      %p53 = por %p51, %p52
      %p54 = scmp.ne.s32.totalorder %s43, %s46
      %p55 = scmp.eq.s32.totalorder %s17, 11
      %p56 = por %p54, %p55
      %p57 = scmp.ne.s32.totalorder %s46, %s47
      %p58 = scmp.eq.s32.totalorder %s17, 0
      %p59 = por %p57, %p58
      %p60 = scmp.ne.s32.totalorder %s46, %s47
      %p61 = scmp.eq.s32.totalorder %s18, 11
      %p62 = por %p60, %p61
      %p64 = scmp.ne.s32.totalorder %s47, %s63
      %p65 = scmp.eq.s32.totalorder %s18, 0
      %p66 = por %p64, %p65
      %s67 = ssub.s32 %s21, %s30
      %s68 = ssub.s32 %s20, %s34
      %s69 = sor.u32 %s67, %s68
      %p70 = scmp.eq.s32.totalorder %s69, 0
      %s72 = sadd.s32 %s71, 1
      %s73 = scalar_select %p70, %s71, %s72
      %p76 = pneg %p70
      %p77 = scmp.eq.s32.totalorder %s12, 11
      %p78 = por %p76, %p77
      %p79 = scmp.ne.s32.totalorder %s71, %s74
      %p80 = scmp.eq.s32.totalorder %s12, 0
      %p81 = por %p79, %p80
      %p82 = scmp.ne.s32.totalorder %s71, %s74
      %p83 = scmp.eq.s32.totalorder %s17, 11
      %p84 = por %p82, %p83
      %p85 = scmp.ne.s32.totalorder %s74, %s75
      %p86 = scmp.eq.s32.totalorder %s17, 0
      %p87 = por %p85, %p86
      %p88 = scmp.ne.s32.totalorder %s74, %s75
      %p89 = scmp.eq.s32.totalorder %s18, 11
      %p90 = por %p88, %p89
      %p92 = scmp.ne.s32.totalorder %s75, %s91
      %p93 = scmp.eq.s32.totalorder %s18, 0
      %p94 = por %p92, %p93
      %s95 = ssub.s32 %s20, %s34
      %p96 = scmp.eq.s32.totalorder %s95, 0
      %s98 = sadd.s32 %s97, 1
      %s99 = scalar_select %p96, %s97, %s98
      %p102 = pneg %p96
      %p103 = scmp.eq.s32.totalorder %s12, 11
      %p104 = por %p102, %p103
      %p105 = scmp.ne.s32.totalorder %s97, %s100
      %p106 = scmp.eq.s32.totalorder %s12, 0
      %p107 = por %p105, %p106
      %p108 = scmp.ne.s32.totalorder %s97, %s100
      %p109 = scmp.eq.s32.totalorder %s17, 11
      %p110 = por %p108, %p109
      %p111 = scmp.ne.s32.totalorder %s100, %s101
      %p112 = scmp.eq.s32.totalorder %s17, 0
      %p113 = por %p111, %p112
      %p114 = scmp.ne.s32.totalorder %s100, %s101
      %p115 = scmp.eq.s32.totalorder %s18, 11
      %p116 = por %p114, %p115
      %p118 = scmp.ne.s32.totalorder %s101, %s117
      %p119 = scmp.eq.s32.totalorder %s18, 0
      %p120 = por %p118, %p119
      %s121 = ssub.s32 %s19, %s38
      %s122 = ssub.s32 %s20, %s34
      %s123 = sor.u32 %s121, %s122
      %p124 = scmp.eq.s32.totalorder %s123, 0
      %s126 = sadd.s32 %s125, 1
      %s127 = scalar_select %p124, %s125, %s126
      %p130 = pneg %p124
      %p131 = scmp.eq.s32.totalorder %s12, 11
      %p132 = por %p130, %p131
      %p133 = scmp.ne.s32.totalorder %s125, %s128
      %p134 = scmp.eq.s32.totalorder %s12, 0
      %p135 = por %p133, %p134
      %p136 = scmp.ne.s32.totalorder %s125, %s128
      %p137 = scmp.eq.s32.totalorder %s17, 11
      %p138 = por %p136, %p137
      %p139 = scmp.ne.s32.totalorder %s128, %s129
      %p140 = scmp.eq.s32.totalorder %s17, 0
      %p141 = por %p139, %p140
      %p142 = scmp.ne.s32.totalorder %s128, %s129
      %p143 = scmp.eq.s32.totalorder %s18, 11
      %p144 = por %p142, %p143
      %p146 = scmp.ne.s32.totalorder %s129, %s145
      %p147 = scmp.eq.s32.totalorder %s18, 0
      %p148 = por %p146, %p147
      %p149 = scmp.le.s32.totalorder 1, %s12
      %p150 = scmp.lt.s32.totalorder %s12, 13
      %p151 = pnand %p149, %p150
      %p152 = pneg %p151
      // Predicated region
      $region9: #{fast_rcnn_forward.4} parent=5 // pred_check
        _
      $region10: #{fast_rcnn_forward.4} parent=5 // pred_check_branch
        %154 = sbr.rel (%p151) target = $region12
      $region11: #{fast_rcnn_forward.4} parent=5 // pred_region
        %s155 = ssub.s32 %s12, 1
      $region12: #{fast_rcnn_forward.4} parent=5 // pred_fallthru
        _
      %p156 = scmp.lt.s32.totalorder %s12, 12
      // Predicated region
      $region13: #{fast_rcnn_forward.4} parent=5 // pred_check
        %p157 = pneg %p156
      $region14: #{fast_rcnn_forward.4} parent=5 // pred_check_branch
        %159 = sbr.rel (%p157) target = $region16
      $region15: #{fast_rcnn_forward.4} parent=5 // pred_region
        // Predicated region
        $region17: #{fast_rcnn_forward.4} parent=15 // pred_check
          %p160 = pneg %p53
        $region18: #{fast_rcnn_forward.4} parent=15 // pred_check_branch
          %162 = sbr.rel (%p160) target = $region20
        $region19: #{fast_rcnn_forward.4} parent=15 // pred_region
          %s163 = smul.u32 8, %s21
          %p164 = scmp.lt.s32.totalorder %s19, 0
          %s165 = scalar_select %p164, %s19, 0
          %p166 = scmp.lt.s32.totalorder %s163, 23
          %s167 = scalar_select %p166, %s163, 23
          %s168 = smul.addr %s165, 24
          %s169 = sadd.s32 %s167, %s168
          %s170 = smul.addr %s169, 4
          %s171 = scalar_lea.vmem %s0, %s170
          %s172 = smul.u32 8, %s21
        $region20: #{fast_rcnn_forward.4} parent=15 // pred_fallthru
          _
        // Predicated region
        $region21: #{fast_rcnn_forward.4} parent=15 // pred_check
          %p173 = pneg %p81
        $region22: #{fast_rcnn_forward.4} parent=15 // pred_check_branch
          %175 = sbr.rel (%p173) target = $region24
        $region23: #{fast_rcnn_forward.4} parent=15 // pred_region
          %s176 = sand.u32 %s71, 1
          %s177 = scalar_lea.sflag [#allocation3], %s176
          %s178 = sand.u32 %s71, 1
          %s179 = smul.addr %s178, 2048
          %s180 = scalar_lea.vmem [#allocation2], %s179
          %s181 = smul.u32 128, %s21
          %s182 = smul.u32 4, %s20
          %s184 = ssub.s32 32768, 32768
          %185 = vsyncadd %s177, %s184
          %s186 = smul.addr %s181, 16
          %s187 = sadd.s32 %s182, %s186
          %s188 = smul.addr %s187, 64
          %s189 = scalar_lea.hbm %s1, %s188
          %s190 = sshll.u32 %s180, 4
          %s191 = int_to_ptr.vmem [resolvable:$true] %s190
          %196 = dma.hbm_to_vmem [thread:$0]  %s189, 32768, %s191, %s177, 1024, 256, 16
        $region24: #{fast_rcnn_forward.4} parent=15 // pred_fallthru
          _
        // Predicated region
        $region25: #{fast_rcnn_forward.4} parent=15 // pred_check
          %p197 = pneg %p107
        $region26: #{fast_rcnn_forward.4} parent=15 // pred_check_branch
          %199 = sbr.rel (%p197) target = $region28
        $region27: #{fast_rcnn_forward.4} parent=15 // pred_region
          %s200 = smul.u32 4, %s20
          %p201 = scmp.lt.s32.totalorder %s200, 15
          %s202 = scalar_select %p201, %s200, 15
          %s203 = scalar_lea.vmem %s2, %s202
          %s204 = smul.u32 4, %s20
        $region28: #{fast_rcnn_forward.4} parent=15 // pred_fallthru
          _
      $region16: #{fast_rcnn_forward.4} parent=5 // pred_fallthru
        _
      %p205 = scmp.le.s32.totalorder 1, %s12
      %p206 = scmp.lt.s32.totalorder %s12, 13
      %p207 = pnand %p205, %p206
      %p208 = pneg %p207
      // Predicated region
      $region29: #{fast_rcnn_forward.4} parent=5 // pred_check
        _
      $region30: #{fast_rcnn_forward.4} parent=5 // pred_check_branch
        %210 = sbr.rel (%p207) target = $region32
      $region31: #{fast_rcnn_forward.4} parent=5 // pred_region
        %s211 = ssub.s32 %s12, 1
        %s212 = sand.u32 %s74, 1
        %s213 = scalar_lea.sflag [#allocation3], %s212
        %s214 = sand.u32 %s74, 1
        %s215 = smul.addr %s214, 2048
        %s216 = scalar_lea.vmem [#allocation2], %s215
        // Predicated region
        $region33: #{fast_rcnn_forward.4} parent=31 // pred_check
          %p217 = pneg %p87
        $region34: #{fast_rcnn_forward.4} parent=31 // pred_check_branch
          %219 = sbr.rel (%p217) target = $region36
        $region35: #{fast_rcnn_forward.4} parent=31 // pred_region
          %220 = dma.done %s213, 32768
        $region36: #{fast_rcnn_forward.4} parent=31 // pred_fallthru
          _
        %s221 = smul.u32 8, %s24
        %p222 = scmp.lt.s32.totalorder %s22, 0
        %s223 = scalar_select %p222, %s22, 0
        %p224 = scmp.lt.s32.totalorder %s221, 23
        %s225 = scalar_select %p224, %s221, 23
        %s226 = smul.addr %s223, 24
        %s227 = sadd.s32 %s225, %s226
        %s228 = smul.addr %s227, 4
        %s229 = scalar_lea.vmem %s0, %s228
        %p230 = pneg %p59
        %p231 = pneg %p56
        %s232 = sand.u32 %s74, 1
        %s233 = scalar_lea.sflag [#allocation3], %s232
        %s234 = sand.u32 %s74, 1
        %s235 = smul.addr %s234, 2048
        %s236 = scalar_lea.vmem [#allocation2], %s235
        %p237 = pneg %p87
        %p238 = pneg %p84
        %s239 = smul.u32 4, %s23
        %p240 = scmp.lt.s32.totalorder %s239, 15
        %s241 = scalar_select %p240, %s239, 15
        %s242 = scalar_lea.vmem %s2, %s241
        %p243 = pneg %p113
        %p244 = pneg %p110
        %p245 = pneg %p141
        %p246 = pneg %p138
        %s247 = smul.u32 4, %s23
        %p248 = scmp.lt.s32.totalorder %s22, 0
        %s249 = scalar_select %p248, %s22, 0
        %p250 = scmp.lt.s32.totalorder %s247, 15
        %s251 = scalar_select %p250, %s247, 15
        %s252 = smul.addr %s249, 16
        %s253 = sadd.s32 %s251, %s252
        %s254 = smul.addr %s253, 8
        %s255 = scalar_lea.vmem %s3, %s254
        %s256 = smul.u32 8, %s24
        %p257 = scmp.lt.s32.totalorder %s22, 0
        %s258 = scalar_select %p257, %s22, 0
        %p259 = scmp.lt.s32.totalorder %s256, 23
        %s260 = scalar_select %p259, %s256, 23
        %s261 = smul.addr %s258, 24
        %s262 = sadd.s32 %s260, %s261
        %s263 = smul.addr %s262, 4
        %s264 = scalar_lea.vmem %s0, %s263
        %s265 = smul.u32 8, %s24
        %s266 = smul.u32 128, %s24
        %s267 = smul.u32 4, %s23
        %s268 = smul.u32 4, %s23
        %p269 = scmp.lt.s32.totalorder %s268, 15
        %s270 = scalar_select %p269, %s268, 15
        %s271 = scalar_lea.vmem %s2, %s270
        %s272 = smul.u32 4, %s23
        %s273 = smul.u32 4, %s23
        %p274 = scmp.lt.s32.totalorder %s22, 0
        %s275 = scalar_select %p274, %s22, 0
        %p276 = scmp.lt.s32.totalorder %s273, 15
        %s277 = scalar_select %p276, %s273, 15
        %s278 = smul.addr %s275, 16
        %s279 = sadd.s32 %s277, %s278
        %s280 = smul.addr %s279, 8
        %s281 = scalar_lea.vmem %s3, %s280
        %s282 = smul.u32 4, %s23
        %p283 = scmp.eq.s32.totalorder %s24, 0
        // Predicated region
        $region37: #{fast_rcnn_forward.4} parent=31 // pred_check
          %p284 = pneg %p283
        $region38: #{fast_rcnn_forward.4} parent=31 // pred_check_branch
          %286 = sbr.rel (%p284) target = $region40
        $region39: #{fast_rcnn_forward.4} parent=31 // pred_region
          %287 = vst [vmem:[%s281] sm:$0xff] 0.0
          %288 = vst [vmem:[%s281 + $0x8] sm:$0xff] 0.0
          %289 = vst [vmem:[%s281 + $0x10] sm:$0xff] 0.0
          %290 = vst [vmem:[%s281 + $0x18] sm:$0xff] 0.0
        $region40: #{fast_rcnn_forward.4} parent=31 // pred_fallthru
          _
        %v291 = vld [vmem:[%s281] sm:$0xff]
        %v292 = vld [vmem:[%s281 + $0x8] sm:$0xff]
        %v293 = vld [vmem:[%s281 + $0x10] sm:$0xff]
        %v294 = vld [vmem:[%s281 + $0x18] sm:$0xff]
        %v295 = vld [vmem:[%s264] sm:$0xff]
        %v296 = vld [vmem:[%s264 + $0x8] sm:$0xff]
        %v297 = vld [vmem:[%s264 + $0x10] sm:$0xff]
        %v298 = vld [vmem:[%s264 + $0x18] sm:$0xff]
        %v299 = vld [vmem:[%s216] sm:$0xff]
        %v300 = vld [vmem:[%s216 + $0x8] sm:$0xff]
        %v301 = vld [vmem:[%s216 + $0x10] sm:$0xff]
        %v302 = vld [vmem:[%s216 + $0x18] sm:$0xff]
        %v303 = vld [vmem:[%s216 + $0x20] sm:$0xff]
        %v304 = vld [vmem:[%s216 + $0x28] sm:$0xff]
        %v305 = vld [vmem:[%s216 + $0x30] sm:$0xff]
        %v306 = vld [vmem:[%s216 + $0x38] sm:$0xff]
        %v307 = vld [vmem:[%s216 + $0x40] sm:$0xff]
        %v308 = vld [vmem:[%s216 + $0x48] sm:$0xff]
        %v309 = vld [vmem:[%s216 + $0x50] sm:$0xff]
        %v310 = vld [vmem:[%s216 + $0x58] sm:$0xff]
        %v311 = vld [vmem:[%s216 + $0x60] sm:$0xff]
        %v312 = vld [vmem:[%s216 + $0x68] sm:$0xff]
        %v313 = vld [vmem:[%s216 + $0x70] sm:$0xff]
        %v314 = vld [vmem:[%s216 + $0x78] sm:$0xff]
        %v315 = vld [vmem:[%s216 + $0x80] sm:$0xff]
        %v316 = vld [vmem:[%s216 + $0x88] sm:$0xff]
        %v317 = vld [vmem:[%s216 + $0x90] sm:$0xff]
        %v318 = vld [vmem:[%s216 + $0x98] sm:$0xff]
        %v319 = vld [vmem:[%s216 + $0xa0] sm:$0xff]
        %v320 = vld [vmem:[%s216 + $0xa8] sm:$0xff]
        %v321 = vld [vmem:[%s216 + $0xb0] sm:$0xff]
        %v322 = vld [vmem:[%s216 + $0xb8] sm:$0xff]
        %v323 = vld [vmem:[%s216 + $0xc0] sm:$0xff]
        %v324 = vld [vmem:[%s216 + $0xc8] sm:$0xff]
        %v325 = vld [vmem:[%s216 + $0xd0] sm:$0xff]
        %v326 = vld [vmem:[%s216 + $0xd8] sm:$0xff]
        %v327 = vld [vmem:[%s216 + $0xe0] sm:$0xff]
        %v328 = vld [vmem:[%s216 + $0xe8] sm:$0xff]
        %v329 = vld [vmem:[%s216 + $0xf0] sm:$0xff]
        %v330 = vld [vmem:[%s216 + $0xf8] sm:$0xff]
        %v331 = vld [vmem:[%s216 + $0x100] sm:$0xff]
        %v332 = vld [vmem:[%s216 + $0x108] sm:$0xff]
        %v333 = vld [vmem:[%s216 + $0x110] sm:$0xff]
        %v334 = vld [vmem:[%s216 + $0x118] sm:$0xff]
        %v335 = vld [vmem:[%s216 + $0x120] sm:$0xff]
        %v336 = vld [vmem:[%s216 + $0x128] sm:$0xff]
        %v337 = vld [vmem:[%s216 + $0x130] sm:$0xff]
        %v338 = vld [vmem:[%s216 + $0x138] sm:$0xff]
        %v339 = vld [vmem:[%s216 + $0x140] sm:$0xff]
        %v340 = vld [vmem:[%s216 + $0x148] sm:$0xff]
        %v341 = vld [vmem:[%s216 + $0x150] sm:$0xff]
        %v342 = vld [vmem:[%s216 + $0x158] sm:$0xff]
        %v343 = vld [vmem:[%s216 + $0x160] sm:$0xff]
        %v344 = vld [vmem:[%s216 + $0x168] sm:$0xff]
        %v345 = vld [vmem:[%s216 + $0x170] sm:$0xff]
        %v346 = vld [vmem:[%s216 + $0x178] sm:$0xff]
        %v347 = vld [vmem:[%s216 + $0x180] sm:$0xff]
        %v348 = vld [vmem:[%s216 + $0x188] sm:$0xff]
        %v349 = vld [vmem:[%s216 + $0x190] sm:$0xff]
        %v350 = vld [vmem:[%s216 + $0x198] sm:$0xff]
        %v351 = vld [vmem:[%s216 + $0x1a0] sm:$0xff]
        %v352 = vld [vmem:[%s216 + $0x1a8] sm:$0xff]
        %v353 = vld [vmem:[%s216 + $0x1b0] sm:$0xff]
        %v354 = vld [vmem:[%s216 + $0x1b8] sm:$0xff]
        %v355 = vld [vmem:[%s216 + $0x1c0] sm:$0xff]
        %v356 = vld [vmem:[%s216 + $0x1c8] sm:$0xff]
        %v357 = vld [vmem:[%s216 + $0x1d0] sm:$0xff]
        %v358 = vld [vmem:[%s216 + $0x1d8] sm:$0xff]
        %v359 = vld [vmem:[%s216 + $0x1e0] sm:$0xff]
        %v360 = vld [vmem:[%s216 + $0x1e8] sm:$0xff]
        %v361 = vld [vmem:[%s216 + $0x1f0] sm:$0xff]
        %v362 = vld [vmem:[%s216 + $0x1f8] sm:$0xff]
        %v363 = vld [vmem:[%s216 + $0x200] sm:$0xff]
        %v364 = vld [vmem:[%s216 + $0x208] sm:$0xff]
        %v365 = vld [vmem:[%s216 + $0x210] sm:$0xff]
        %v366 = vld [vmem:[%s216 + $0x218] sm:$0xff]
        %v367 = vld [vmem:[%s216 + $0x220] sm:$0xff]
        %v368 = vld [vmem:[%s216 + $0x228] sm:$0xff]
        %v369 = vld [vmem:[%s216 + $0x230] sm:$0xff]
        %v370 = vld [vmem:[%s216 + $0x238] sm:$0xff]
        %v371 = vld [vmem:[%s216 + $0x240] sm:$0xff]
        %v372 = vld [vmem:[%s216 + $0x248] sm:$0xff]
        %v373 = vld [vmem:[%s216 + $0x250] sm:$0xff]
        %v374 = vld [vmem:[%s216 + $0x258] sm:$0xff]
        %v375 = vld [vmem:[%s216 + $0x260] sm:$0xff]
        %v376 = vld [vmem:[%s216 + $0x268] sm:$0xff]
        %v377 = vld [vmem:[%s216 + $0x270] sm:$0xff]
        %v378 = vld [vmem:[%s216 + $0x278] sm:$0xff]
        %v379 = vld [vmem:[%s216 + $0x280] sm:$0xff]
        %v380 = vld [vmem:[%s216 + $0x288] sm:$0xff]
        %v381 = vld [vmem:[%s216 + $0x290] sm:$0xff]
        %v382 = vld [vmem:[%s216 + $0x298] sm:$0xff]
        %v383 = vld [vmem:[%s216 + $0x2a0] sm:$0xff]
        %v384 = vld [vmem:[%s216 + $0x2a8] sm:$0xff]
        %v385 = vld [vmem:[%s216 + $0x2b0] sm:$0xff]
        %v386 = vld [vmem:[%s216 + $0x2b8] sm:$0xff]
        %v387 = vld [vmem:[%s216 + $0x2c0] sm:$0xff]
        %v388 = vld [vmem:[%s216 + $0x2c8] sm:$0xff]
        %v389 = vld [vmem:[%s216 + $0x2d0] sm:$0xff]
        %v390 = vld [vmem:[%s216 + $0x2d8] sm:$0xff]
        %v391 = vld [vmem:[%s216 + $0x2e0] sm:$0xff]
        %v392 = vld [vmem:[%s216 + $0x2e8] sm:$0xff]
        %v393 = vld [vmem:[%s216 + $0x2f0] sm:$0xff]
        %v394 = vld [vmem:[%s216 + $0x2f8] sm:$0xff]
        %v395 = vld [vmem:[%s216 + $0x300] sm:$0xff]
        %v396 = vld [vmem:[%s216 + $0x308] sm:$0xff]
        %v397 = vld [vmem:[%s216 + $0x310] sm:$0xff]
        %v398 = vld [vmem:[%s216 + $0x318] sm:$0xff]
        %v399 = vld [vmem:[%s216 + $0x320] sm:$0xff]
        %v400 = vld [vmem:[%s216 + $0x328] sm:$0xff]
        %v401 = vld [vmem:[%s216 + $0x330] sm:$0xff]
        %v402 = vld [vmem:[%s216 + $0x338] sm:$0xff]
        %v403 = vld [vmem:[%s216 + $0x340] sm:$0xff]
        %v404 = vld [vmem:[%s216 + $0x348] sm:$0xff]
        %v405 = vld [vmem:[%s216 + $0x350] sm:$0xff]
        %v406 = vld [vmem:[%s216 + $0x358] sm:$0xff]
        %v407 = vld [vmem:[%s216 + $0x360] sm:$0xff]
        %v408 = vld [vmem:[%s216 + $0x368] sm:$0xff]
        %v409 = vld [vmem:[%s216 + $0x370] sm:$0xff]
        %v410 = vld [vmem:[%s216 + $0x378] sm:$0xff]
        %v411 = vld [vmem:[%s216 + $0x380] sm:$0xff]
        %v412 = vld [vmem:[%s216 + $0x388] sm:$0xff]
        %v413 = vld [vmem:[%s216 + $0x390] sm:$0xff]
        %v414 = vld [vmem:[%s216 + $0x398] sm:$0xff]
        %v415 = vld [vmem:[%s216 + $0x3a0] sm:$0xff]
        %v416 = vld [vmem:[%s216 + $0x3a8] sm:$0xff]
        %v417 = vld [vmem:[%s216 + $0x3b0] sm:$0xff]
        %v418 = vld [vmem:[%s216 + $0x3b8] sm:$0xff]
        %v419 = vld [vmem:[%s216 + $0x3c0] sm:$0xff]
        %v420 = vld [vmem:[%s216 + $0x3c8] sm:$0xff]
        %v421 = vld [vmem:[%s216 + $0x3d0] sm:$0xff]
        %v422 = vld [vmem:[%s216 + $0x3d8] sm:$0xff]
        %v423 = vld [vmem:[%s216 + $0x3e0] sm:$0xff]
        %v424 = vld [vmem:[%s216 + $0x3e8] sm:$0xff]
        %v425 = vld [vmem:[%s216 + $0x3f0] sm:$0xff]
        %v426 = vld [vmem:[%s216 + $0x3f8] sm:$0xff]
        %v427 = vld [vmem:[%s216 + $0x400] sm:$0xff]
        %v428 = vld [vmem:[%s216 + $0x408] sm:$0xff]
        %v429 = vld [vmem:[%s216 + $0x410] sm:$0xff]
        %v430 = vld [vmem:[%s216 + $0x418] sm:$0xff]
        %v431 = vld [vmem:[%s216 + $0x420] sm:$0xff]
        %v432 = vld [vmem:[%s216 + $0x428] sm:$0xff]
        %v433 = vld [vmem:[%s216 + $0x430] sm:$0xff]
        %v434 = vld [vmem:[%s216 + $0x438] sm:$0xff]
        %v435 = vld [vmem:[%s216 + $0x440] sm:$0xff]
        %v436 = vld [vmem:[%s216 + $0x448] sm:$0xff]
        %v437 = vld [vmem:[%s216 + $0x450] sm:$0xff]
        %v438 = vld [vmem:[%s216 + $0x458] sm:$0xff]
        %v439 = vld [vmem:[%s216 + $0x460] sm:$0xff]
        %v440 = vld [vmem:[%s216 + $0x468] sm:$0xff]
        %v441 = vld [vmem:[%s216 + $0x470] sm:$0xff]
        %v442 = vld [vmem:[%s216 + $0x478] sm:$0xff]
        %v443 = vld [vmem:[%s216 + $0x480] sm:$0xff]
        %v444 = vld [vmem:[%s216 + $0x488] sm:$0xff]
        %v445 = vld [vmem:[%s216 + $0x490] sm:$0xff]
        %v446 = vld [vmem:[%s216 + $0x498] sm:$0xff]
        %v447 = vld [vmem:[%s216 + $0x4a0] sm:$0xff]
        %v448 = vld [vmem:[%s216 + $0x4a8] sm:$0xff]
        %v449 = vld [vmem:[%s216 + $0x4b0] sm:$0xff]
        %v450 = vld [vmem:[%s216 + $0x4b8] sm:$0xff]
        %v451 = vld [vmem:[%s216 + $0x4c0] sm:$0xff]
        %v452 = vld [vmem:[%s216 + $0x4c8] sm:$0xff]
        %v453 = vld [vmem:[%s216 + $0x4d0] sm:$0xff]
        %v454 = vld [vmem:[%s216 + $0x4d8] sm:$0xff]
        %v455 = vld [vmem:[%s216 + $0x4e0] sm:$0xff]
        %v456 = vld [vmem:[%s216 + $0x4e8] sm:$0xff]
        %v457 = vld [vmem:[%s216 + $0x4f0] sm:$0xff]
        %v458 = vld [vmem:[%s216 + $0x4f8] sm:$0xff]
        %v459 = vld [vmem:[%s216 + $0x500] sm:$0xff]
        %v460 = vld [vmem:[%s216 + $0x508] sm:$0xff]
        %v461 = vld [vmem:[%s216 + $0x510] sm:$0xff]
        %v462 = vld [vmem:[%s216 + $0x518] sm:$0xff]
        %v463 = vld [vmem:[%s216 + $0x520] sm:$0xff]
        %v464 = vld [vmem:[%s216 + $0x528] sm:$0xff]
        %v465 = vld [vmem:[%s216 + $0x530] sm:$0xff]
        %v466 = vld [vmem:[%s216 + $0x538] sm:$0xff]
        %v467 = vld [vmem:[%s216 + $0x540] sm:$0xff]
        %v468 = vld [vmem:[%s216 + $0x548] sm:$0xff]
        %v469 = vld [vmem:[%s216 + $0x550] sm:$0xff]
        %v470 = vld [vmem:[%s216 + $0x558] sm:$0xff]
        %v471 = vld [vmem:[%s216 + $0x560] sm:$0xff]
        %v472 = vld [vmem:[%s216 + $0x568] sm:$0xff]
        %v473 = vld [vmem:[%s216 + $0x570] sm:$0xff]
        %v474 = vld [vmem:[%s216 + $0x578] sm:$0xff]
        %v475 = vld [vmem:[%s216 + $0x580] sm:$0xff]
        %v476 = vld [vmem:[%s216 + $0x588] sm:$0xff]
        %v477 = vld [vmem:[%s216 + $0x590] sm:$0xff]
        %v478 = vld [vmem:[%s216 + $0x598] sm:$0xff]
        %v479 = vld [vmem:[%s216 + $0x5a0] sm:$0xff]
        %v480 = vld [vmem:[%s216 + $0x5a8] sm:$0xff]
        %v481 = vld [vmem:[%s216 + $0x5b0] sm:$0xff]
        %v482 = vld [vmem:[%s216 + $0x5b8] sm:$0xff]
        %v483 = vld [vmem:[%s216 + $0x5c0] sm:$0xff]
        %v484 = vld [vmem:[%s216 + $0x5c8] sm:$0xff]
        %v485 = vld [vmem:[%s216 + $0x5d0] sm:$0xff]
        %v486 = vld [vmem:[%s216 + $0x5d8] sm:$0xff]
        %v487 = vld [vmem:[%s216 + $0x5e0] sm:$0xff]
        %v488 = vld [vmem:[%s216 + $0x5e8] sm:$0xff]
        %v489 = vld [vmem:[%s216 + $0x5f0] sm:$0xff]
        %v490 = vld [vmem:[%s216 + $0x5f8] sm:$0xff]
        %v491 = vld [vmem:[%s216 + $0x600] sm:$0xff]
        %v492 = vld [vmem:[%s216 + $0x608] sm:$0xff]
        %v493 = vld [vmem:[%s216 + $0x610] sm:$0xff]
        %v494 = vld [vmem:[%s216 + $0x618] sm:$0xff]
        %v495 = vld [vmem:[%s216 + $0x620] sm:$0xff]
        %v496 = vld [vmem:[%s216 + $0x628] sm:$0xff]
        %v497 = vld [vmem:[%s216 + $0x630] sm:$0xff]
        %v498 = vld [vmem:[%s216 + $0x638] sm:$0xff]
        %v499 = vld [vmem:[%s216 + $0x640] sm:$0xff]
        %v500 = vld [vmem:[%s216 + $0x648] sm:$0xff]
        %v501 = vld [vmem:[%s216 + $0x650] sm:$0xff]
        %v502 = vld [vmem:[%s216 + $0x658] sm:$0xff]
        %v503 = vld [vmem:[%s216 + $0x660] sm:$0xff]
        %v504 = vld [vmem:[%s216 + $0x668] sm:$0xff]
        %v505 = vld [vmem:[%s216 + $0x670] sm:$0xff]
        %v506 = vld [vmem:[%s216 + $0x678] sm:$0xff]
        %v507 = vld [vmem:[%s216 + $0x680] sm:$0xff]
        %v508 = vld [vmem:[%s216 + $0x688] sm:$0xff]
        %v509 = vld [vmem:[%s216 + $0x690] sm:$0xff]
        %v510 = vld [vmem:[%s216 + $0x698] sm:$0xff]
        %v511 = vld [vmem:[%s216 + $0x6a0] sm:$0xff]
        %v512 = vld [vmem:[%s216 + $0x6a8] sm:$0xff]
        %v513 = vld [vmem:[%s216 + $0x6b0] sm:$0xff]
        %v514 = vld [vmem:[%s216 + $0x6b8] sm:$0xff]
        %v515 = vld [vmem:[%s216 + $0x6c0] sm:$0xff]
        %v516 = vld [vmem:[%s216 + $0x6c8] sm:$0xff]
        %v517 = vld [vmem:[%s216 + $0x6d0] sm:$0xff]
        %v518 = vld [vmem:[%s216 + $0x6d8] sm:$0xff]
        %v519 = vld [vmem:[%s216 + $0x6e0] sm:$0xff]
        %v520 = vld [vmem:[%s216 + $0x6e8] sm:$0xff]
        %v521 = vld [vmem:[%s216 + $0x6f0] sm:$0xff]
        %v522 = vld [vmem:[%s216 + $0x6f8] sm:$0xff]
        %v523 = vld [vmem:[%s216 + $0x700] sm:$0xff]
        %v524 = vld [vmem:[%s216 + $0x708] sm:$0xff]
        %v525 = vld [vmem:[%s216 + $0x710] sm:$0xff]
        %v526 = vld [vmem:[%s216 + $0x718] sm:$0xff]
        %v527 = vld [vmem:[%s216 + $0x720] sm:$0xff]
        %v528 = vld [vmem:[%s216 + $0x728] sm:$0xff]
        %v529 = vld [vmem:[%s216 + $0x730] sm:$0xff]
        %v530 = vld [vmem:[%s216 + $0x738] sm:$0xff]
        %v531 = vld [vmem:[%s216 + $0x740] sm:$0xff]
        %v532 = vld [vmem:[%s216 + $0x748] sm:$0xff]
        %v533 = vld [vmem:[%s216 + $0x750] sm:$0xff]
        %v534 = vld [vmem:[%s216 + $0x758] sm:$0xff]
        %v535 = vld [vmem:[%s216 + $0x760] sm:$0xff]
        %v536 = vld [vmem:[%s216 + $0x768] sm:$0xff]
        %v537 = vld [vmem:[%s216 + $0x770] sm:$0xff]
        %v538 = vld [vmem:[%s216 + $0x778] sm:$0xff]
        %v539 = vld [vmem:[%s216 + $0x780] sm:$0xff]
        %v540 = vld [vmem:[%s216 + $0x788] sm:$0xff]
        %v541 = vld [vmem:[%s216 + $0x790] sm:$0xff]
        %v542 = vld [vmem:[%s216 + $0x798] sm:$0xff]
        %v543 = vld [vmem:[%s216 + $0x7a0] sm:$0xff]
        %v544 = vld [vmem:[%s216 + $0x7a8] sm:$0xff]
        %v545 = vld [vmem:[%s216 + $0x7b0] sm:$0xff]
        %v546 = vld [vmem:[%s216 + $0x7b8] sm:$0xff]
        %v547 = vld [vmem:[%s216 + $0x7c0] sm:$0xff]
        %v548 = vld [vmem:[%s216 + $0x7c8] sm:$0xff]
        %v549 = vld [vmem:[%s216 + $0x7d0] sm:$0xff]
        %v550 = vld [vmem:[%s216 + $0x7d8] sm:$0xff]
        %v551 = vld [vmem:[%s216 + $0x7e0] sm:$0xff]
        %v552 = vld [vmem:[%s216 + $0x7e8] sm:$0xff]
        %v553 = vld [vmem:[%s216 + $0x7f0] sm:$0xff]
        %v554 = vld [vmem:[%s216 + $0x7f8] sm:$0xff]
        %v559 = vunpack.c.l.b16 %v295
        %v560 = vunpack.c.h.b16 %v295
        %v561 = vunpack.c.l.b16 %v296
        %v562 = vunpack.c.h.b16 %v296
        %v563 = vunpack.c.l.b16 %v297
        %v564 = vunpack.c.h.b16 %v297
        %v565 = vunpack.c.l.b16 %v298
        %v566 = vunpack.c.h.b16 %v298
        %v567 = vpack.c.b16 %v559, %v559
        %v568 = vpack.c.b16 %v560, %v560
        %v569 = vpack.c.b16 %v561, %v561
        %v570 = vpack.c.b16 %v562, %v562
        %v571 = vpack.c.b16 %v563, %v563
        %v572 = vpack.c.b16 %v564, %v564
        %v573 = vpack.c.b16 %v565, %v565
        %v574 = vpack.c.b16 %v566, %v566
        %v839 = vunpack.c.l.b16 %v299
        %v840 = vunpack.c.h.b16 %v299
        %v841 = vunpack.c.l.b16 %v300
        %v842 = vunpack.c.h.b16 %v300
        %v843 = vunpack.c.l.b16 %v301
        %v844 = vunpack.c.h.b16 %v301
        %v845 = vunpack.c.l.b16 %v302
        %v846 = vunpack.c.h.b16 %v302
        %v847 = vunpack.c.l.b16 %v303
        %v848 = vunpack.c.h.b16 %v303
        %v849 = vunpack.c.l.b16 %v304
        %v850 = vunpack.c.h.b16 %v304
        %v851 = vunpack.c.l.b16 %v305
        %v852 = vunpack.c.h.b16 %v305
        %v853 = vunpack.c.l.b16 %v306
        %v854 = vunpack.c.h.b16 %v306
        %v855 = vunpack.c.l.b16 %v307
        %v856 = vunpack.c.h.b16 %v307
        %v857 = vunpack.c.l.b16 %v308
        %v858 = vunpack.c.h.b16 %v308
        %v859 = vunpack.c.l.b16 %v309
        %v860 = vunpack.c.h.b16 %v309
        %v861 = vunpack.c.l.b16 %v310
        %v862 = vunpack.c.h.b16 %v310
        %v863 = vunpack.c.l.b16 %v311
        %v864 = vunpack.c.h.b16 %v311
        %v865 = vunpack.c.l.b16 %v312
        %v866 = vunpack.c.h.b16 %v312
        %v867 = vunpack.c.l.b16 %v313
        %v868 = vunpack.c.h.b16 %v313
        %v869 = vunpack.c.l.b16 %v314
        %v870 = vunpack.c.h.b16 %v314
        %v871 = vunpack.c.l.b16 %v315
        %v872 = vunpack.c.h.b16 %v315
        %v873 = vunpack.c.l.b16 %v316
        %v874 = vunpack.c.h.b16 %v316
        %v875 = vunpack.c.l.b16 %v317
        %v876 = vunpack.c.h.b16 %v317
        %v877 = vunpack.c.l.b16 %v318
        %v878 = vunpack.c.h.b16 %v318
        %v879 = vunpack.c.l.b16 %v319
        %v880 = vunpack.c.h.b16 %v319
        %v881 = vunpack.c.l.b16 %v320
        %v882 = vunpack.c.h.b16 %v320
        %v883 = vunpack.c.l.b16 %v321
        %v884 = vunpack.c.h.b16 %v321
        %v885 = vunpack.c.l.b16 %v322
        %v886 = vunpack.c.h.b16 %v322
        %v887 = vunpack.c.l.b16 %v323
        %v888 = vunpack.c.h.b16 %v323
        %v889 = vunpack.c.l.b16 %v324
        %v890 = vunpack.c.h.b16 %v324
        %v891 = vunpack.c.l.b16 %v325
        %v892 = vunpack.c.h.b16 %v325
        %v893 = vunpack.c.l.b16 %v326
        %v894 = vunpack.c.h.b16 %v326
        %v895 = vunpack.c.l.b16 %v327
        %v896 = vunpack.c.h.b16 %v327
        %v897 = vunpack.c.l.b16 %v328
        %v898 = vunpack.c.h.b16 %v328
        %v899 = vunpack.c.l.b16 %v329
        %v900 = vunpack.c.h.b16 %v329
        %v901 = vunpack.c.l.b16 %v330
        %v902 = vunpack.c.h.b16 %v330
        %v903 = vunpack.c.l.b16 %v331
        %v904 = vunpack.c.h.b16 %v331
        %v905 = vunpack.c.l.b16 %v332
        %v906 = vunpack.c.h.b16 %v332
        %v907 = vunpack.c.l.b16 %v333
        %v908 = vunpack.c.h.b16 %v333
        %v909 = vunpack.c.l.b16 %v334
        %v910 = vunpack.c.h.b16 %v334
        %v911 = vunpack.c.l.b16 %v335
        %v912 = vunpack.c.h.b16 %v335
        %v913 = vunpack.c.l.b16 %v336
        %v914 = vunpack.c.h.b16 %v336
        %v915 = vunpack.c.l.b16 %v337
        %v916 = vunpack.c.h.b16 %v337
        %v917 = vunpack.c.l.b16 %v338
        %v918 = vunpack.c.h.b16 %v338
        %v919 = vunpack.c.l.b16 %v339
        %v920 = vunpack.c.h.b16 %v339
        %v921 = vunpack.c.l.b16 %v340
        %v922 = vunpack.c.h.b16 %v340
        %v923 = vunpack.c.l.b16 %v341
        %v924 = vunpack.c.h.b16 %v341
        %v925 = vunpack.c.l.b16 %v342
        %v926 = vunpack.c.h.b16 %v342
        %v927 = vunpack.c.l.b16 %v343
        %v928 = vunpack.c.h.b16 %v343
        %v929 = vunpack.c.l.b16 %v344
        %v930 = vunpack.c.h.b16 %v344
        %v931 = vunpack.c.l.b16 %v345
        %v932 = vunpack.c.h.b16 %v345
        %v933 = vunpack.c.l.b16 %v346
        %v934 = vunpack.c.h.b16 %v346
        %v935 = vunpack.c.l.b16 %v347
        %v936 = vunpack.c.h.b16 %v347
        %v937 = vunpack.c.l.b16 %v348
        %v938 = vunpack.c.h.b16 %v348
        %v939 = vunpack.c.l.b16 %v349
        %v940 = vunpack.c.h.b16 %v349
        %v941 = vunpack.c.l.b16 %v350
        %v942 = vunpack.c.h.b16 %v350
        %v943 = vunpack.c.l.b16 %v351
        %v944 = vunpack.c.h.b16 %v351
        %v945 = vunpack.c.l.b16 %v352
        %v946 = vunpack.c.h.b16 %v352
        %v947 = vunpack.c.l.b16 %v353
        %v948 = vunpack.c.h.b16 %v353
        %v949 = vunpack.c.l.b16 %v354
        %v950 = vunpack.c.h.b16 %v354
        %v951 = vunpack.c.l.b16 %v355
        %v952 = vunpack.c.h.b16 %v355
        %v953 = vunpack.c.l.b16 %v356
        %v954 = vunpack.c.h.b16 %v356
        %v955 = vunpack.c.l.b16 %v357
        %v956 = vunpack.c.h.b16 %v357
        %v957 = vunpack.c.l.b16 %v358
        %v958 = vunpack.c.h.b16 %v358
        %v959 = vunpack.c.l.b16 %v359
        %v960 = vunpack.c.h.b16 %v359
        %v961 = vunpack.c.l.b16 %v360
        %v962 = vunpack.c.h.b16 %v360
        %v963 = vunpack.c.l.b16 %v361
        %v964 = vunpack.c.h.b16 %v361
        %v965 = vunpack.c.l.b16 %v362
        %v966 = vunpack.c.h.b16 %v362
        %v967 = vunpack.c.l.b16 %v363
        %v968 = vunpack.c.h.b16 %v363
        %v969 = vunpack.c.l.b16 %v364
        %v970 = vunpack.c.h.b16 %v364
        %v971 = vunpack.c.l.b16 %v365
        %v972 = vunpack.c.h.b16 %v365
        %v973 = vunpack.c.l.b16 %v366
        %v974 = vunpack.c.h.b16 %v366
        %v975 = vunpack.c.l.b16 %v367
        %v976 = vunpack.c.h.b16 %v367
        %v977 = vunpack.c.l.b16 %v368
        %v978 = vunpack.c.h.b16 %v368
        %v979 = vunpack.c.l.b16 %v369
        %v980 = vunpack.c.h.b16 %v369
        %v981 = vunpack.c.l.b16 %v370
        %v982 = vunpack.c.h.b16 %v370
        %v983 = vunpack.c.l.b16 %v371
        %v984 = vunpack.c.h.b16 %v371
        %v985 = vunpack.c.l.b16 %v372
        %v986 = vunpack.c.h.b16 %v372
        %v987 = vunpack.c.l.b16 %v373
        %v988 = vunpack.c.h.b16 %v373
        %v989 = vunpack.c.l.b16 %v374
        %v990 = vunpack.c.h.b16 %v374
        %v991 = vunpack.c.l.b16 %v375
        %v992 = vunpack.c.h.b16 %v375
        %v993 = vunpack.c.l.b16 %v376
        %v994 = vunpack.c.h.b16 %v376
        %v995 = vunpack.c.l.b16 %v377
        %v996 = vunpack.c.h.b16 %v377
        %v997 = vunpack.c.l.b16 %v378
        %v998 = vunpack.c.h.b16 %v378
        %v999 = vunpack.c.l.b16 %v379
        %v1000 = vunpack.c.h.b16 %v379
        %v1001 = vunpack.c.l.b16 %v380
        %v1002 = vunpack.c.h.b16 %v380
        %v1003 = vunpack.c.l.b16 %v381
        %v1004 = vunpack.c.h.b16 %v381
        %v1005 = vunpack.c.l.b16 %v382
        %v1006 = vunpack.c.h.b16 %v382
        %v1007 = vunpack.c.l.b16 %v383
        %v1008 = vunpack.c.h.b16 %v383
        %v1009 = vunpack.c.l.b16 %v384
        %v1010 = vunpack.c.h.b16 %v384
        %v1011 = vunpack.c.l.b16 %v385
        %v1012 = vunpack.c.h.b16 %v385
        %v1013 = vunpack.c.l.b16 %v386
        %v1014 = vunpack.c.h.b16 %v386
        %v1015 = vunpack.c.l.b16 %v387
        %v1016 = vunpack.c.h.b16 %v387
        %v1017 = vunpack.c.l.b16 %v388
        %v1018 = vunpack.c.h.b16 %v388
        %v1019 = vunpack.c.l.b16 %v389
        %v1020 = vunpack.c.h.b16 %v389
        %v1021 = vunpack.c.l.b16 %v390
        %v1022 = vunpack.c.h.b16 %v390
        %v1023 = vunpack.c.l.b16 %v391
        %v1024 = vunpack.c.h.b16 %v391
        %v1025 = vunpack.c.l.b16 %v392
        %v1026 = vunpack.c.h.b16 %v392
        %v1027 = vunpack.c.l.b16 %v393
        %v1028 = vunpack.c.h.b16 %v393
        %v1029 = vunpack.c.l.b16 %v394
        %v1030 = vunpack.c.h.b16 %v394
        %v1031 = vunpack.c.l.b16 %v395
        %v1032 = vunpack.c.h.b16 %v395
        %v1033 = vunpack.c.l.b16 %v396
        %v1034 = vunpack.c.h.b16 %v396
        %v1035 = vunpack.c.l.b16 %v397
        %v1036 = vunpack.c.h.b16 %v397
        %v1037 = vunpack.c.l.b16 %v398
        %v1038 = vunpack.c.h.b16 %v398
        %v1039 = vunpack.c.l.b16 %v399
        %v1040 = vunpack.c.h.b16 %v399
        %v1041 = vunpack.c.l.b16 %v400
        %v1042 = vunpack.c.h.b16 %v400
        %v1043 = vunpack.c.l.b16 %v401
        %v1044 = vunpack.c.h.b16 %v401
        %v1045 = vunpack.c.l.b16 %v402
        %v1046 = vunpack.c.h.b16 %v402
        %v1047 = vunpack.c.l.b16 %v403
        %v1048 = vunpack.c.h.b16 %v403
        %v1049 = vunpack.c.l.b16 %v404
        %v1050 = vunpack.c.h.b16 %v404
        %v1051 = vunpack.c.l.b16 %v405
        %v1052 = vunpack.c.h.b16 %v405
        %v1053 = vunpack.c.l.b16 %v406
        %v1054 = vunpack.c.h.b16 %v406
        %v1055 = vunpack.c.l.b16 %v407
        %v1056 = vunpack.c.h.b16 %v407
        %v1057 = vunpack.c.l.b16 %v408
        %v1058 = vunpack.c.h.b16 %v408
        %v1059 = vunpack.c.l.b16 %v409
        %v1060 = vunpack.c.h.b16 %v409
        %v1061 = vunpack.c.l.b16 %v410
        %v1062 = vunpack.c.h.b16 %v410
        %v1063 = vunpack.c.l.b16 %v411
        %v1064 = vunpack.c.h.b16 %v411
        %v1065 = vunpack.c.l.b16 %v412
        %v1066 = vunpack.c.h.b16 %v412
        %v1067 = vunpack.c.l.b16 %v413
        %v1068 = vunpack.c.h.b16 %v413
        %v1069 = vunpack.c.l.b16 %v414
        %v1070 = vunpack.c.h.b16 %v414
        %v1071 = vunpack.c.l.b16 %v415
        %v1072 = vunpack.c.h.b16 %v415
        %v1073 = vunpack.c.l.b16 %v416
        %v1074 = vunpack.c.h.b16 %v416
        %v1075 = vunpack.c.l.b16 %v417
        %v1076 = vunpack.c.h.b16 %v417
        %v1077 = vunpack.c.l.b16 %v418
        %v1078 = vunpack.c.h.b16 %v418
        %v1079 = vunpack.c.l.b16 %v419
        %v1080 = vunpack.c.h.b16 %v419
        %v1081 = vunpack.c.l.b16 %v420
        %v1082 = vunpack.c.h.b16 %v420
        %v1083 = vunpack.c.l.b16 %v421
        %v1084 = vunpack.c.h.b16 %v421
        %v1085 = vunpack.c.l.b16 %v422
        %v1086 = vunpack.c.h.b16 %v422
        %v1087 = vunpack.c.l.b16 %v423
        %v1088 = vunpack.c.h.b16 %v423
        %v1089 = vunpack.c.l.b16 %v424
        %v1090 = vunpack.c.h.b16 %v424
        %v1091 = vunpack.c.l.b16 %v425
        %v1092 = vunpack.c.h.b16 %v425
        %v1093 = vunpack.c.l.b16 %v426
        %v1094 = vunpack.c.h.b16 %v426
        %v1095 = vunpack.c.l.b16 %v427
        %v1096 = vunpack.c.h.b16 %v427
        %v1097 = vunpack.c.l.b16 %v428
        %v1098 = vunpack.c.h.b16 %v428
        %v1099 = vunpack.c.l.b16 %v429
        %v1100 = vunpack.c.h.b16 %v429
        %v1101 = vunpack.c.l.b16 %v430
        %v1102 = vunpack.c.h.b16 %v430
        %v1103 = vunpack.c.l.b16 %v431
        %v1104 = vunpack.c.h.b16 %v431
        %v1105 = vunpack.c.l.b16 %v432
        %v1106 = vunpack.c.h.b16 %v432
        %v1107 = vunpack.c.l.b16 %v433
        %v1108 = vunpack.c.h.b16 %v433
        %v1109 = vunpack.c.l.b16 %v434
        %v1110 = vunpack.c.h.b16 %v434
        %v1111 = vunpack.c.l.b16 %v435
        %v1112 = vunpack.c.h.b16 %v435
        %v1113 = vunpack.c.l.b16 %v436
        %v1114 = vunpack.c.h.b16 %v436
        %v1115 = vunpack.c.l.b16 %v437
        %v1116 = vunpack.c.h.b16 %v437
        %v1117 = vunpack.c.l.b16 %v438
        %v1118 = vunpack.c.h.b16 %v438
        %v1119 = vunpack.c.l.b16 %v439
        %v1120 = vunpack.c.h.b16 %v439
        %v1121 = vunpack.c.l.b16 %v440
        %v1122 = vunpack.c.h.b16 %v440
        %v1123 = vunpack.c.l.b16 %v441
        %v1124 = vunpack.c.h.b16 %v441
        %v1125 = vunpack.c.l.b16 %v442
        %v1126 = vunpack.c.h.b16 %v442
        %v1127 = vunpack.c.l.b16 %v443
        %v1128 = vunpack.c.h.b16 %v443
        %v1129 = vunpack.c.l.b16 %v444
        %v1130 = vunpack.c.h.b16 %v444
        %v1131 = vunpack.c.l.b16 %v445
        %v1132 = vunpack.c.h.b16 %v445
        %v1133 = vunpack.c.l.b16 %v446
        %v1134 = vunpack.c.h.b16 %v446
        %v1135 = vunpack.c.l.b16 %v447
        %v1136 = vunpack.c.h.b16 %v447
        %v1137 = vunpack.c.l.b16 %v448
        %v1138 = vunpack.c.h.b16 %v448
        %v1139 = vunpack.c.l.b16 %v449
        %v1140 = vunpack.c.h.b16 %v449
        %v1141 = vunpack.c.l.b16 %v450
        %v1142 = vunpack.c.h.b16 %v450
        %v1143 = vunpack.c.l.b16 %v451
        %v1144 = vunpack.c.h.b16 %v451
        %v1145 = vunpack.c.l.b16 %v452
        %v1146 = vunpack.c.h.b16 %v452
        %v1147 = vunpack.c.l.b16 %v453
        %v1148 = vunpack.c.h.b16 %v453
        %v1149 = vunpack.c.l.b16 %v454
        %v1150 = vunpack.c.h.b16 %v454
        %v1151 = vunpack.c.l.b16 %v455
        %v1152 = vunpack.c.h.b16 %v455
        %v1153 = vunpack.c.l.b16 %v456
        %v1154 = vunpack.c.h.b16 %v456
        %v1155 = vunpack.c.l.b16 %v457
        %v1156 = vunpack.c.h.b16 %v457
        %v1157 = vunpack.c.l.b16 %v458
        %v1158 = vunpack.c.h.b16 %v458
        %v1159 = vunpack.c.l.b16 %v459
        %v1160 = vunpack.c.h.b16 %v459
        %v1161 = vunpack.c.l.b16 %v460
        %v1162 = vunpack.c.h.b16 %v460
        %v1163 = vunpack.c.l.b16 %v461
        %v1164 = vunpack.c.h.b16 %v461
        %v1165 = vunpack.c.l.b16 %v462
        %v1166 = vunpack.c.h.b16 %v462
        %v1167 = vunpack.c.l.b16 %v463
        %v1168 = vunpack.c.h.b16 %v463
        %v1169 = vunpack.c.l.b16 %v464
        %v1170 = vunpack.c.h.b16 %v464
        %v1171 = vunpack.c.l.b16 %v465
        %v1172 = vunpack.c.h.b16 %v465
        %v1173 = vunpack.c.l.b16 %v466
        %v1174 = vunpack.c.h.b16 %v466
        %v1175 = vunpack.c.l.b16 %v467
        %v1176 = vunpack.c.h.b16 %v467
        %v1177 = vunpack.c.l.b16 %v468
        %v1178 = vunpack.c.h.b16 %v468
        %v1179 = vunpack.c.l.b16 %v469
        %v1180 = vunpack.c.h.b16 %v469
        %v1181 = vunpack.c.l.b16 %v470
        %v1182 = vunpack.c.h.b16 %v470
        %v1183 = vunpack.c.l.b16 %v471
        %v1184 = vunpack.c.h.b16 %v471
        %v1185 = vunpack.c.l.b16 %v472
        %v1186 = vunpack.c.h.b16 %v472
        %v1187 = vunpack.c.l.b16 %v473
        %v1188 = vunpack.c.h.b16 %v473
        %v1189 = vunpack.c.l.b16 %v474
        %v1190 = vunpack.c.h.b16 %v474
        %v1191 = vunpack.c.l.b16 %v475
        %v1192 = vunpack.c.h.b16 %v475
        %v1193 = vunpack.c.l.b16 %v476
        %v1194 = vunpack.c.h.b16 %v476
        %v1195 = vunpack.c.l.b16 %v477
        %v1196 = vunpack.c.h.b16 %v477
        %v1197 = vunpack.c.l.b16 %v478
        %v1198 = vunpack.c.h.b16 %v478
        %v1199 = vunpack.c.l.b16 %v479
        %v1200 = vunpack.c.h.b16 %v479
        %v1201 = vunpack.c.l.b16 %v480
        %v1202 = vunpack.c.h.b16 %v480
        %v1203 = vunpack.c.l.b16 %v481
        %v1204 = vunpack.c.h.b16 %v481
        %v1205 = vunpack.c.l.b16 %v482
        %v1206 = vunpack.c.h.b16 %v482
        %v1207 = vunpack.c.l.b16 %v483
        %v1208 = vunpack.c.h.b16 %v483
        %v1209 = vunpack.c.l.b16 %v484
        %v1210 = vunpack.c.h.b16 %v484
        %v1211 = vunpack.c.l.b16 %v485
        %v1212 = vunpack.c.h.b16 %v485
        %v1213 = vunpack.c.l.b16 %v486
        %v1214 = vunpack.c.h.b16 %v486
        %v1215 = vunpack.c.l.b16 %v487
        %v1216 = vunpack.c.h.b16 %v487
        %v1217 = vunpack.c.l.b16 %v488
        %v1218 = vunpack.c.h.b16 %v488
        %v1219 = vunpack.c.l.b16 %v489
        %v1220 = vunpack.c.h.b16 %v489
        %v1221 = vunpack.c.l.b16 %v490
        %v1222 = vunpack.c.h.b16 %v490
        %v1223 = vunpack.c.l.b16 %v491
        %v1224 = vunpack.c.h.b16 %v491
        %v1225 = vunpack.c.l.b16 %v492
        %v1226 = vunpack.c.h.b16 %v492
        %v1227 = vunpack.c.l.b16 %v493
        %v1228 = vunpack.c.h.b16 %v493
        %v1229 = vunpack.c.l.b16 %v494
        %v1230 = vunpack.c.h.b16 %v494
        %v1231 = vunpack.c.l.b16 %v495
        %v1232 = vunpack.c.h.b16 %v495
        %v1233 = vunpack.c.l.b16 %v496
        %v1234 = vunpack.c.h.b16 %v496
        %v1235 = vunpack.c.l.b16 %v497
        %v1236 = vunpack.c.h.b16 %v497
        %v1237 = vunpack.c.l.b16 %v498
        %v1238 = vunpack.c.h.b16 %v498
        %v1239 = vunpack.c.l.b16 %v499
        %v1240 = vunpack.c.h.b16 %v499
        %v1241 = vunpack.c.l.b16 %v500
        %v1242 = vunpack.c.h.b16 %v500
        %v1243 = vunpack.c.l.b16 %v501
        %v1244 = vunpack.c.h.b16 %v501
        %v1245 = vunpack.c.l.b16 %v502
        %v1246 = vunpack.c.h.b16 %v502
        %v1247 = vunpack.c.l.b16 %v503
        %v1248 = vunpack.c.h.b16 %v503
        %v1249 = vunpack.c.l.b16 %v504
        %v1250 = vunpack.c.h.b16 %v504
        %v1251 = vunpack.c.l.b16 %v505
        %v1252 = vunpack.c.h.b16 %v505
        %v1253 = vunpack.c.l.b16 %v506
        %v1254 = vunpack.c.h.b16 %v506
        %v1255 = vunpack.c.l.b16 %v507
        %v1256 = vunpack.c.h.b16 %v507
        %v1257 = vunpack.c.l.b16 %v508
        %v1258 = vunpack.c.h.b16 %v508
        %v1259 = vunpack.c.l.b16 %v509
        %v1260 = vunpack.c.h.b16 %v509
        %v1261 = vunpack.c.l.b16 %v510
        %v1262 = vunpack.c.h.b16 %v510
        %v1263 = vunpack.c.l.b16 %v511
        %v1264 = vunpack.c.h.b16 %v511
        %v1265 = vunpack.c.l.b16 %v512
        %v1266 = vunpack.c.h.b16 %v512
        %v1267 = vunpack.c.l.b16 %v513
        %v1268 = vunpack.c.h.b16 %v513
        %v1269 = vunpack.c.l.b16 %v514
        %v1270 = vunpack.c.h.b16 %v514
        %v1271 = vunpack.c.l.b16 %v515
        %v1272 = vunpack.c.h.b16 %v515
        %v1273 = vunpack.c.l.b16 %v516
        %v1274 = vunpack.c.h.b16 %v516
        %v1275 = vunpack.c.l.b16 %v517
        %v1276 = vunpack.c.h.b16 %v517
        %v1277 = vunpack.c.l.b16 %v518
        %v1278 = vunpack.c.h.b16 %v518
        %v1279 = vunpack.c.l.b16 %v519
        %v1280 = vunpack.c.h.b16 %v519
        %v1281 = vunpack.c.l.b16 %v520
        %v1282 = vunpack.c.h.b16 %v520
        %v1283 = vunpack.c.l.b16 %v521
        %v1284 = vunpack.c.h.b16 %v521
        %v1285 = vunpack.c.l.b16 %v522
        %v1286 = vunpack.c.h.b16 %v522
        %v1287 = vunpack.c.l.b16 %v523
        %v1288 = vunpack.c.h.b16 %v523
        %v1289 = vunpack.c.l.b16 %v524
        %v1290 = vunpack.c.h.b16 %v524
        %v1291 = vunpack.c.l.b16 %v525
        %v1292 = vunpack.c.h.b16 %v525
        %v1293 = vunpack.c.l.b16 %v526
        %v1294 = vunpack.c.h.b16 %v526
        %v1295 = vunpack.c.l.b16 %v527
        %v1296 = vunpack.c.h.b16 %v527
        %v1297 = vunpack.c.l.b16 %v528
        %v1298 = vunpack.c.h.b16 %v528
        %v1299 = vunpack.c.l.b16 %v529
        %v1300 = vunpack.c.h.b16 %v529
        %v1301 = vunpack.c.l.b16 %v530
        %v1302 = vunpack.c.h.b16 %v530
        %v1303 = vunpack.c.l.b16 %v531
        %v1304 = vunpack.c.h.b16 %v531
        %v1305 = vunpack.c.l.b16 %v532
        %v1306 = vunpack.c.h.b16 %v532
        %v1307 = vunpack.c.l.b16 %v533
        %v1308 = vunpack.c.h.b16 %v533
        %v1309 = vunpack.c.l.b16 %v534
        %v1310 = vunpack.c.h.b16 %v534
        %v1311 = vunpack.c.l.b16 %v535
        %v1312 = vunpack.c.h.b16 %v535
        %v1313 = vunpack.c.l.b16 %v536
        %v1314 = vunpack.c.h.b16 %v536
        %v1315 = vunpack.c.l.b16 %v537
        %v1316 = vunpack.c.h.b16 %v537
        %v1317 = vunpack.c.l.b16 %v538
        %v1318 = vunpack.c.h.b16 %v538
        %v1319 = vunpack.c.l.b16 %v539
        %v1320 = vunpack.c.h.b16 %v539
        %v1321 = vunpack.c.l.b16 %v540
        %v1322 = vunpack.c.h.b16 %v540
        %v1323 = vunpack.c.l.b16 %v541
        %v1324 = vunpack.c.h.b16 %v541
        %v1325 = vunpack.c.l.b16 %v542
        %v1326 = vunpack.c.h.b16 %v542
        %v1327 = vunpack.c.l.b16 %v543
        %v1328 = vunpack.c.h.b16 %v543
        %v1329 = vunpack.c.l.b16 %v544
        %v1330 = vunpack.c.h.b16 %v544
        %v1331 = vunpack.c.l.b16 %v545
        %v1332 = vunpack.c.h.b16 %v545
        %v1333 = vunpack.c.l.b16 %v546
        %v1334 = vunpack.c.h.b16 %v546
        %v1335 = vunpack.c.l.b16 %v547
        %v1336 = vunpack.c.h.b16 %v547
        %v1337 = vunpack.c.l.b16 %v548
        %v1338 = vunpack.c.h.b16 %v548
        %v1339 = vunpack.c.l.b16 %v549
        %v1340 = vunpack.c.h.b16 %v549
        %v1341 = vunpack.c.l.b16 %v550
        %v1342 = vunpack.c.h.b16 %v550
        %v1343 = vunpack.c.l.b16 %v551
        %v1344 = vunpack.c.h.b16 %v551
        %v1345 = vunpack.c.l.b16 %v552
        %v1346 = vunpack.c.h.b16 %v552
        %v1347 = vunpack.c.l.b16 %v553
        %v1348 = vunpack.c.h.b16 %v553
        %v1349 = vunpack.c.l.b16 %v554
        %v1350 = vunpack.c.h.b16 %v554
        %v1351 = vpack.c.b16 %v843, %v839
        %v1352 = vpack.c.b16 %v844, %v840
        %v1353 = vpack.c.b16 %v845, %v841
        %v1354 = vpack.c.b16 %v846, %v842
        %v1355 = vpack.c.b16 %v851, %v847
        %v1356 = vpack.c.b16 %v852, %v848
        %v1357 = vpack.c.b16 %v853, %v849
        %v1358 = vpack.c.b16 %v854, %v850
        %v1359 = vpack.c.b16 %v859, %v855
        %v1360 = vpack.c.b16 %v860, %v856
        %v1361 = vpack.c.b16 %v861, %v857
        %v1362 = vpack.c.b16 %v862, %v858
        %v1363 = vpack.c.b16 %v867, %v863
        %v1364 = vpack.c.b16 %v868, %v864
        %v1365 = vpack.c.b16 %v869, %v865
        %v1366 = vpack.c.b16 %v870, %v866
        %v1367 = vpack.c.b16 %v875, %v871
        %v1368 = vpack.c.b16 %v876, %v872
        %v1369 = vpack.c.b16 %v877, %v873
        %v1370 = vpack.c.b16 %v878, %v874
        %v1371 = vpack.c.b16 %v883, %v879
        %v1372 = vpack.c.b16 %v884, %v880
        %v1373 = vpack.c.b16 %v885, %v881
        %v1374 = vpack.c.b16 %v886, %v882
        %v1375 = vpack.c.b16 %v891, %v887
        %v1376 = vpack.c.b16 %v892, %v888
        %v1377 = vpack.c.b16 %v893, %v889
        %v1378 = vpack.c.b16 %v894, %v890
        %v1379 = vpack.c.b16 %v899, %v895
        %v1380 = vpack.c.b16 %v900, %v896
        %v1381 = vpack.c.b16 %v901, %v897
        %v1382 = vpack.c.b16 %v902, %v898
        %v1383 = vpack.c.b16 %v907, %v903
        %v1384 = vpack.c.b16 %v908, %v904
        %v1385 = vpack.c.b16 %v909, %v905
        %v1386 = vpack.c.b16 %v910, %v906
        %v1387 = vpack.c.b16 %v915, %v911
        %v1388 = vpack.c.b16 %v916, %v912
        %v1389 = vpack.c.b16 %v917, %v913
        %v1390 = vpack.c.b16 %v918, %v914
        %v1391 = vpack.c.b16 %v923, %v919
        %v1392 = vpack.c.b16 %v924, %v920
        %v1393 = vpack.c.b16 %v925, %v921
        %v1394 = vpack.c.b16 %v926, %v922
        %v1395 = vpack.c.b16 %v931, %v927
        %v1396 = vpack.c.b16 %v932, %v928
        %v1397 = vpack.c.b16 %v933, %v929
        %v1398 = vpack.c.b16 %v934, %v930
        %v1399 = vpack.c.b16 %v939, %v935
        %v1400 = vpack.c.b16 %v940, %v936
        %v1401 = vpack.c.b16 %v941, %v937
        %v1402 = vpack.c.b16 %v942, %v938
        %v1403 = vpack.c.b16 %v947, %v943
        %v1404 = vpack.c.b16 %v948, %v944
        %v1405 = vpack.c.b16 %v949, %v945
        %v1406 = vpack.c.b16 %v950, %v946
        %v1407 = vpack.c.b16 %v955, %v951
        %v1408 = vpack.c.b16 %v956, %v952
        %v1409 = vpack.c.b16 %v957, %v953
        %v1410 = vpack.c.b16 %v958, %v954
        %v1411 = vpack.c.b16 %v963, %v959
        %v1412 = vpack.c.b16 %v964, %v960
        %v1413 = vpack.c.b16 %v965, %v961
        %v1414 = vpack.c.b16 %v966, %v962
        %v1415 = vpack.c.b16 %v971, %v967
        %v1416 = vpack.c.b16 %v972, %v968
        %v1417 = vpack.c.b16 %v973, %v969
        %v1418 = vpack.c.b16 %v974, %v970
        %v1419 = vpack.c.b16 %v979, %v975
        %v1420 = vpack.c.b16 %v980, %v976
        %v1421 = vpack.c.b16 %v981, %v977
        %v1422 = vpack.c.b16 %v982, %v978
        %v1423 = vpack.c.b16 %v987, %v983
        %v1424 = vpack.c.b16 %v988, %v984
        %v1425 = vpack.c.b16 %v989, %v985
        %v1426 = vpack.c.b16 %v990, %v986
        %v1427 = vpack.c.b16 %v995, %v991
        %v1428 = vpack.c.b16 %v996, %v992
        %v1429 = vpack.c.b16 %v997, %v993
        %v1430 = vpack.c.b16 %v998, %v994
        %v1431 = vpack.c.b16 %v1003, %v999
        %v1432 = vpack.c.b16 %v1004, %v1000
        %v1433 = vpack.c.b16 %v1005, %v1001
        %v1434 = vpack.c.b16 %v1006, %v1002
        %v1435 = vpack.c.b16 %v1011, %v1007
        %v1436 = vpack.c.b16 %v1012, %v1008
        %v1437 = vpack.c.b16 %v1013, %v1009
        %v1438 = vpack.c.b16 %v1014, %v1010
        %v1439 = vpack.c.b16 %v1019, %v1015
        %v1440 = vpack.c.b16 %v1020, %v1016
        %v1441 = vpack.c.b16 %v1021, %v1017
        %v1442 = vpack.c.b16 %v1022, %v1018
        %v1443 = vpack.c.b16 %v1027, %v1023
        %v1444 = vpack.c.b16 %v1028, %v1024
        %v1445 = vpack.c.b16 %v1029, %v1025
        %v1446 = vpack.c.b16 %v1030, %v1026
        %v1447 = vpack.c.b16 %v1035, %v1031
        %v1448 = vpack.c.b16 %v1036, %v1032
        %v1449 = vpack.c.b16 %v1037, %v1033
        %v1450 = vpack.c.b16 %v1038, %v1034
        %v1451 = vpack.c.b16 %v1043, %v1039
        %v1452 = vpack.c.b16 %v1044, %v1040
        %v1453 = vpack.c.b16 %v1045, %v1041
        %v1454 = vpack.c.b16 %v1046, %v1042
        %v1455 = vpack.c.b16 %v1051, %v1047
        %v1456 = vpack.c.b16 %v1052, %v1048
        %v1457 = vpack.c.b16 %v1053, %v1049
        %v1458 = vpack.c.b16 %v1054, %v1050
        %v1459 = vpack.c.b16 %v1059, %v1055
        %v1460 = vpack.c.b16 %v1060, %v1056
        %v1461 = vpack.c.b16 %v1061, %v1057
        %v1462 = vpack.c.b16 %v1062, %v1058
        %v1463 = vpack.c.b16 %v1067, %v1063
        %v1464 = vpack.c.b16 %v1068, %v1064
        %v1465 = vpack.c.b16 %v1069, %v1065
        %v1466 = vpack.c.b16 %v1070, %v1066
        %v1467 = vpack.c.b16 %v1075, %v1071
        %v1468 = vpack.c.b16 %v1076, %v1072
        %v1469 = vpack.c.b16 %v1077, %v1073
        %v1470 = vpack.c.b16 %v1078, %v1074
        %v1471 = vpack.c.b16 %v1083, %v1079
        %v1472 = vpack.c.b16 %v1084, %v1080
        %v1473 = vpack.c.b16 %v1085, %v1081
        %v1474 = vpack.c.b16 %v1086, %v1082
        %v1475 = vpack.c.b16 %v1091, %v1087
        %v1476 = vpack.c.b16 %v1092, %v1088
        %v1477 = vpack.c.b16 %v1093, %v1089
        %v1478 = vpack.c.b16 %v1094, %v1090
        %v1479 = vpack.c.b16 %v1099, %v1095
        %v1480 = vpack.c.b16 %v1100, %v1096
        %v1481 = vpack.c.b16 %v1101, %v1097
        %v1482 = vpack.c.b16 %v1102, %v1098
        %v1483 = vpack.c.b16 %v1107, %v1103
        %v1484 = vpack.c.b16 %v1108, %v1104
        %v1485 = vpack.c.b16 %v1109, %v1105
        %v1486 = vpack.c.b16 %v1110, %v1106
        %v1487 = vpack.c.b16 %v1115, %v1111
        %v1488 = vpack.c.b16 %v1116, %v1112
        %v1489 = vpack.c.b16 %v1117, %v1113
        %v1490 = vpack.c.b16 %v1118, %v1114
        %v1491 = vpack.c.b16 %v1123, %v1119
        %v1492 = vpack.c.b16 %v1124, %v1120
        %v1493 = vpack.c.b16 %v1125, %v1121
        %v1494 = vpack.c.b16 %v1126, %v1122
        %v1495 = vpack.c.b16 %v1131, %v1127
        %v1496 = vpack.c.b16 %v1132, %v1128
        %v1497 = vpack.c.b16 %v1133, %v1129
        %v1498 = vpack.c.b16 %v1134, %v1130
        %v1499 = vpack.c.b16 %v1139, %v1135
        %v1500 = vpack.c.b16 %v1140, %v1136
        %v1501 = vpack.c.b16 %v1141, %v1137
        %v1502 = vpack.c.b16 %v1142, %v1138
        %v1503 = vpack.c.b16 %v1147, %v1143
        %v1504 = vpack.c.b16 %v1148, %v1144
        %v1505 = vpack.c.b16 %v1149, %v1145
        %v1506 = vpack.c.b16 %v1150, %v1146
        %v1507 = vpack.c.b16 %v1155, %v1151
        %v1508 = vpack.c.b16 %v1156, %v1152
        %v1509 = vpack.c.b16 %v1157, %v1153
        %v1510 = vpack.c.b16 %v1158, %v1154
        %v1511 = vpack.c.b16 %v1163, %v1159
        %v1512 = vpack.c.b16 %v1164, %v1160
        %v1513 = vpack.c.b16 %v1165, %v1161
        %v1514 = vpack.c.b16 %v1166, %v1162
        %v1515 = vpack.c.b16 %v1171, %v1167
        %v1516 = vpack.c.b16 %v1172, %v1168
        %v1517 = vpack.c.b16 %v1173, %v1169
        %v1518 = vpack.c.b16 %v1174, %v1170
        %v1519 = vpack.c.b16 %v1179, %v1175
        %v1520 = vpack.c.b16 %v1180, %v1176
        %v1521 = vpack.c.b16 %v1181, %v1177
        %v1522 = vpack.c.b16 %v1182, %v1178
        %v1523 = vpack.c.b16 %v1187, %v1183
        %v1524 = vpack.c.b16 %v1188, %v1184
        %v1525 = vpack.c.b16 %v1189, %v1185
        %v1526 = vpack.c.b16 %v1190, %v1186
        %v1527 = vpack.c.b16 %v1195, %v1191
        %v1528 = vpack.c.b16 %v1196, %v1192
        %v1529 = vpack.c.b16 %v1197, %v1193
        %v1530 = vpack.c.b16 %v1198, %v1194
        %v1531 = vpack.c.b16 %v1203, %v1199
        %v1532 = vpack.c.b16 %v1204, %v1200
        %v1533 = vpack.c.b16 %v1205, %v1201
        %v1534 = vpack.c.b16 %v1206, %v1202
        %v1535 = vpack.c.b16 %v1211, %v1207
        %v1536 = vpack.c.b16 %v1212, %v1208
        %v1537 = vpack.c.b16 %v1213, %v1209
        %v1538 = vpack.c.b16 %v1214, %v1210
        %v1539 = vpack.c.b16 %v1219, %v1215
        %v1540 = vpack.c.b16 %v1220, %v1216
        %v1541 = vpack.c.b16 %v1221, %v1217
        %v1542 = vpack.c.b16 %v1222, %v1218
        %v1543 = vpack.c.b16 %v1227, %v1223
        %v1544 = vpack.c.b16 %v1228, %v1224
        %v1545 = vpack.c.b16 %v1229, %v1225
        %v1546 = vpack.c.b16 %v1230, %v1226
        %v1547 = vpack.c.b16 %v1235, %v1231
        %v1548 = vpack.c.b16 %v1236, %v1232
        %v1549 = vpack.c.b16 %v1237, %v1233
        %v1550 = vpack.c.b16 %v1238, %v1234
        %v1551 = vpack.c.b16 %v1243, %v1239
        %v1552 = vpack.c.b16 %v1244, %v1240
        %v1553 = vpack.c.b16 %v1245, %v1241
        %v1554 = vpack.c.b16 %v1246, %v1242
        %v1555 = vpack.c.b16 %v1251, %v1247
        %v1556 = vpack.c.b16 %v1252, %v1248
        %v1557 = vpack.c.b16 %v1253, %v1249
        %v1558 = vpack.c.b16 %v1254, %v1250
        %v1559 = vpack.c.b16 %v1259, %v1255
        %v1560 = vpack.c.b16 %v1260, %v1256
        %v1561 = vpack.c.b16 %v1261, %v1257
        %v1562 = vpack.c.b16 %v1262, %v1258
        %v1563 = vpack.c.b16 %v1267, %v1263
        %v1564 = vpack.c.b16 %v1268, %v1264
        %v1565 = vpack.c.b16 %v1269, %v1265
        %v1566 = vpack.c.b16 %v1270, %v1266
        %v1567 = vpack.c.b16 %v1275, %v1271
        %v1568 = vpack.c.b16 %v1276, %v1272
        %v1569 = vpack.c.b16 %v1277, %v1273
        %v1570 = vpack.c.b16 %v1278, %v1274
        %v1571 = vpack.c.b16 %v1283, %v1279
        %v1572 = vpack.c.b16 %v1284, %v1280
        %v1573 = vpack.c.b16 %v1285, %v1281
        %v1574 = vpack.c.b16 %v1286, %v1282
        %v1575 = vpack.c.b16 %v1291, %v1287
        %v1576 = vpack.c.b16 %v1292, %v1288
        %v1577 = vpack.c.b16 %v1293, %v1289
        %v1578 = vpack.c.b16 %v1294, %v1290
        %v1579 = vpack.c.b16 %v1299, %v1295
        %v1580 = vpack.c.b16 %v1300, %v1296
        %v1581 = vpack.c.b16 %v1301, %v1297
        %v1582 = vpack.c.b16 %v1302, %v1298
        %v1583 = vpack.c.b16 %v1307, %v1303
        %v1584 = vpack.c.b16 %v1308, %v1304
        %v1585 = vpack.c.b16 %v1309, %v1305
        %v1586 = vpack.c.b16 %v1310, %v1306
        %v1587 = vpack.c.b16 %v1315, %v1311
        %v1588 = vpack.c.b16 %v1316, %v1312
        %v1589 = vpack.c.b16 %v1317, %v1313
        %v1590 = vpack.c.b16 %v1318, %v1314
        %v1591 = vpack.c.b16 %v1323, %v1319
        %v1592 = vpack.c.b16 %v1324, %v1320
        %v1593 = vpack.c.b16 %v1325, %v1321
        %v1594 = vpack.c.b16 %v1326, %v1322
        %v1595 = vpack.c.b16 %v1331, %v1327
        %v1596 = vpack.c.b16 %v1332, %v1328
        %v1597 = vpack.c.b16 %v1333, %v1329
        %v1598 = vpack.c.b16 %v1334, %v1330
        %v1599 = vpack.c.b16 %v1339, %v1335
        %v1600 = vpack.c.b16 %v1340, %v1336
        %v1601 = vpack.c.b16 %v1341, %v1337
        %v1602 = vpack.c.b16 %v1342, %v1338
        %v1603 = vpack.c.b16 %v1347, %v1343
        %v1604 = vpack.c.b16 %v1348, %v1344
        %v1605 = vpack.c.b16 %v1349, %v1345
        %v1606 = vpack.c.b16 %v1350, %v1346
        %1863 = vmatprep.subr.bf16.mxu0 %v1352
        %1864 = vmatpush1.bf16.msra.mxu0 %v1351
        %1865 = vmatprep.subr.bf16.mxu0 %v1356
        %1866 = vmatpush1.bf16.msra.mxu0 %v1355
        %1867 = vmatprep.subr.bf16.mxu0 %v1360
        %1868 = vmatpush1.bf16.msra.mxu0 %v1359
        %1869 = vmatprep.subr.bf16.mxu0 %v1364
        %1870 = vmatpush1.bf16.msra.mxu0 %v1363
        %1871 = vmatprep.subr.bf16.mxu0 %v1368
        %1872 = vmatpush1.bf16.msra.mxu0 %v1367
        %1873 = vmatprep.subr.bf16.mxu0 %v1372
        %1874 = vmatpush1.bf16.msra.mxu0 %v1371
        %1875 = vmatprep.subr.bf16.mxu0 %v1376
        %1876 = vmatpush1.bf16.msra.mxu0 %v1375
        %1877 = vmatprep.subr.bf16.mxu0 %v1380
        %1878 = vmatpush1.bf16.msra.mxu0 %v1379
        %1879 = vmatprep.subr.bf16.mxu0 %v1384
        %1880 = vmatpush1.bf16.msra.mxu0 %v1383
        %1881 = vmatprep.subr.bf16.mxu0 %v1388
        %1882 = vmatpush1.bf16.msra.mxu0 %v1387
        %1883 = vmatprep.subr.bf16.mxu0 %v1392
        %1884 = vmatpush1.bf16.msra.mxu0 %v1391
        %1885 = vmatprep.subr.bf16.mxu0 %v1396
        %1886 = vmatpush1.bf16.msra.mxu0 %v1395
        %1887 = vmatprep.subr.bf16.mxu0 %v1400
        %1888 = vmatpush1.bf16.msra.mxu0 %v1399
        %1889 = vmatprep.subr.bf16.mxu0 %v1404
        %1890 = vmatpush1.bf16.msra.mxu0 %v1403
        %1891 = vmatprep.subr.bf16.mxu0 %v1408
        %1892 = vmatpush1.bf16.msra.mxu0 %v1407
        %1893 = vmatprep.subr.bf16.mxu0 %v1412
        %1894 = vmatpush1.bf16.msra.mxu0 %v1411
        %1895 = vmatprep.mubr.bf16.mxu0 %v568
        %1896 = vmatmul.mubr.bf16.gmra.mrb[0].mxu0 %v567
        %v1897 = vpop.f32.mrb[0].mxu0
        %v1898 = vadd.f32 0.0, %v1897
        %v1899 = vpop.f32.mrb[0].mxu0
        %v1900 = vadd.f32 0.0, %v1899
        %v1901 = vpop.f32.mrb[0].mxu0
        %v1902 = vpop.f32.mrb[0].mxu0
        %1903 = vdwg.mxu0
        %1904 = vmatprep.subr.bf16.mxu0 %v1416
        %1905 = vmatpush1.bf16.msra.mxu0 %v1415
        %1906 = vmatprep.subr.bf16.mxu0 %v1420
        %1907 = vmatpush1.bf16.msra.mxu0 %v1419
        %1908 = vmatprep.subr.bf16.mxu0 %v1424
        %1909 = vmatpush1.bf16.msra.mxu0 %v1423
        %1910 = vmatprep.subr.bf16.mxu0 %v1428
        %1911 = vmatpush1.bf16.msra.mxu0 %v1427
        %1912 = vmatprep.subr.bf16.mxu0 %v1432
        %1913 = vmatpush1.bf16.msra.mxu0 %v1431
        %1914 = vmatprep.subr.bf16.mxu0 %v1436
        %1915 = vmatpush1.bf16.msra.mxu0 %v1435
        %1916 = vmatprep.subr.bf16.mxu0 %v1440
        %1917 = vmatpush1.bf16.msra.mxu0 %v1439
        %1918 = vmatprep.subr.bf16.mxu0 %v1444
        %1919 = vmatpush1.bf16.msra.mxu0 %v1443
        %1920 = vmatprep.subr.bf16.mxu0 %v1448
        %1921 = vmatpush1.bf16.msra.mxu0 %v1447
        %1922 = vmatprep.subr.bf16.mxu0 %v1452
        %1923 = vmatpush1.bf16.msra.mxu0 %v1451
        %1924 = vmatprep.subr.bf16.mxu0 %v1456
        %1925 = vmatpush1.bf16.msra.mxu0 %v1455
        %1926 = vmatprep.subr.bf16.mxu0 %v1460
        %1927 = vmatpush1.bf16.msra.mxu0 %v1459
        %1928 = vmatprep.subr.bf16.mxu0 %v1464
        %1929 = vmatpush1.bf16.msra.mxu0 %v1463
        %1930 = vmatprep.subr.bf16.mxu0 %v1468
        %1931 = vmatpush1.bf16.msra.mxu0 %v1467
        %1932 = vmatprep.subr.bf16.mxu0 %v1472
        %1933 = vmatpush1.bf16.msra.mxu0 %v1471
        %1934 = vmatprep.subr.bf16.mxu0 %v1476
        %1935 = vmatpush1.bf16.msra.mxu0 %v1475
        %1936 = vmatprep.mubr.bf16.mxu0 %v570
        %1937 = vmatmul.mubr.bf16.gmra.mrb[0].mxu0 %v569
        %v1938 = vpop.f32.mrb[0].mxu0
        %v1939 = vadd.f32 %v1898, %v1938
        %v1940 = vpop.f32.mrb[0].mxu0
        %v1941 = vadd.f32 %v1900, %v1940
        %v1942 = vpop.f32.mrb[0].mxu0
        %v1943 = vpop.f32.mrb[0].mxu0
        %1944 = vdwg.mxu0
        %1945 = vmatprep.subr.bf16.mxu0 %v1480
        %1946 = vmatpush1.bf16.msra.mxu0 %v1479
        %1947 = vmatprep.subr.bf16.mxu0 %v1484
        %1948 = vmatpush1.bf16.msra.mxu0 %v1483
        %1949 = vmatprep.subr.bf16.mxu0 %v1488
        %1950 = vmatpush1.bf16.msra.mxu0 %v1487
        %1951 = vmatprep.subr.bf16.mxu0 %v1492
        %1952 = vmatpush1.bf16.msra.mxu0 %v1491
        %1953 = vmatprep.subr.bf16.mxu0 %v1496
        %1954 = vmatpush1.bf16.msra.mxu0 %v1495
        %1955 = vmatprep.subr.bf16.mxu0 %v1500
        %1956 = vmatpush1.bf16.msra.mxu0 %v1499
        %1957 = vmatprep.subr.bf16.mxu0 %v1504
        %1958 = vmatpush1.bf16.msra.mxu0 %v1503
        %1959 = vmatprep.subr.bf16.mxu0 %v1508
        %1960 = vmatpush1.bf16.msra.mxu0 %v1507
        %1961 = vmatprep.subr.bf16.mxu0 %v1512
        %1962 = vmatpush1.bf16.msra.mxu0 %v1511
        %1963 = vmatprep.subr.bf16.mxu0 %v1516
        %1964 = vmatpush1.bf16.msra.mxu0 %v1515
        %1965 = vmatprep.subr.bf16.mxu0 %v1520
        %1966 = vmatpush1.bf16.msra.mxu0 %v1519
        %1967 = vmatprep.subr.bf16.mxu0 %v1524
        %1968 = vmatpush1.bf16.msra.mxu0 %v1523
        %1969 = vmatprep.subr.bf16.mxu0 %v1528
        %1970 = vmatpush1.bf16.msra.mxu0 %v1527
        %1971 = vmatprep.subr.bf16.mxu0 %v1532
        %1972 = vmatpush1.bf16.msra.mxu0 %v1531
        %1973 = vmatprep.subr.bf16.mxu0 %v1536
        %1974 = vmatpush1.bf16.msra.mxu0 %v1535
        %1975 = vmatprep.subr.bf16.mxu0 %v1540
        %1976 = vmatpush1.bf16.msra.mxu0 %v1539
        %1977 = vmatprep.mubr.bf16.mxu0 %v572
        %1978 = vmatmul.mubr.bf16.gmra.mrb[0].mxu0 %v571
        %v1979 = vpop.f32.mrb[0].mxu0
        %v1980 = vadd.f32 %v1939, %v1979
        %v1981 = vpop.f32.mrb[0].mxu0
        %v1982 = vadd.f32 %v1941, %v1981
        %v1983 = vpop.f32.mrb[0].mxu0
        %v1984 = vpop.f32.mrb[0].mxu0
        %1985 = vdwg.mxu0
        %1986 = vmatprep.subr.bf16.mxu0 %v1544
        %1987 = vmatpush1.bf16.msra.mxu0 %v1543
        %1988 = vmatprep.subr.bf16.mxu0 %v1548
        %1989 = vmatpush1.bf16.msra.mxu0 %v1547
        %1990 = vmatprep.subr.bf16.mxu0 %v1552
        %1991 = vmatpush1.bf16.msra.mxu0 %v1551
        %1992 = vmatprep.subr.bf16.mxu0 %v1556
        %1993 = vmatpush1.bf16.msra.mxu0 %v1555
        %1994 = vmatprep.subr.bf16.mxu0 %v1560
        %1995 = vmatpush1.bf16.msra.mxu0 %v1559
        %1996 = vmatprep.subr.bf16.mxu0 %v1564
        %1997 = vmatpush1.bf16.msra.mxu0 %v1563
        %1998 = vmatprep.subr.bf16.mxu0 %v1568
        %1999 = vmatpush1.bf16.msra.mxu0 %v1567
        %2000 = vmatprep.subr.bf16.mxu0 %v1572
        %2001 = vmatpush1.bf16.msra.mxu0 %v1571
        %2002 = vmatprep.subr.bf16.mxu0 %v1576
        %2003 = vmatpush1.bf16.msra.mxu0 %v1575
        %2004 = vmatprep.subr.bf16.mxu0 %v1580
        %2005 = vmatpush1.bf16.msra.mxu0 %v1579
        %2006 = vmatprep.subr.bf16.mxu0 %v1584
        %2007 = vmatpush1.bf16.msra.mxu0 %v1583
        %2008 = vmatprep.subr.bf16.mxu0 %v1588
        %2009 = vmatpush1.bf16.msra.mxu0 %v1587
        %2010 = vmatprep.subr.bf16.mxu0 %v1592
        %2011 = vmatpush1.bf16.msra.mxu0 %v1591
        %2012 = vmatprep.subr.bf16.mxu0 %v1596
        %2013 = vmatpush1.bf16.msra.mxu0 %v1595
        %2014 = vmatprep.subr.bf16.mxu0 %v1600
        %2015 = vmatpush1.bf16.msra.mxu0 %v1599
        %2016 = vmatprep.subr.bf16.mxu0 %v1604
        %2017 = vmatpush1.bf16.msra.mxu0 %v1603
        %2018 = vmatprep.mubr.bf16.mxu0 %v574
        %2019 = vmatmul.mubr.bf16.gmra.mrb[0].mxu0 %v573
        %v2020 = vpop.f32.mrb[0].mxu0
        %v2021 = vadd.f32 %v1980, %v2020
        %v2022 = vpop.f32.mrb[0].mxu0
        %v2023 = vadd.f32 %v1982, %v2022
        %v2024 = vpop.f32.mrb[0].mxu0
        %v2025 = vpop.f32.mrb[0].mxu0
        %2026 = vdwg.mxu0
        %2027 = vmatprep.subr.bf16.mxu0 %v1354
        %2028 = vmatpush1.bf16.msra.mxu0 %v1353
        %2029 = vmatprep.subr.bf16.mxu0 %v1358
        %2030 = vmatpush1.bf16.msra.mxu0 %v1357
        %2031 = vmatprep.subr.bf16.mxu0 %v1362
        %2032 = vmatpush1.bf16.msra.mxu0 %v1361
        %2033 = vmatprep.subr.bf16.mxu0 %v1366
        %2034 = vmatpush1.bf16.msra.mxu0 %v1365
        %2035 = vmatprep.subr.bf16.mxu0 %v1370
        %2036 = vmatpush1.bf16.msra.mxu0 %v1369
        %2037 = vmatprep.subr.bf16.mxu0 %v1374
        %2038 = vmatpush1.bf16.msra.mxu0 %v1373
        %2039 = vmatprep.subr.bf16.mxu0 %v1378
        %2040 = vmatpush1.bf16.msra.mxu0 %v1377
        %2041 = vmatprep.subr.bf16.mxu0 %v1382
        %2042 = vmatpush1.bf16.msra.mxu0 %v1381
        %2043 = vmatprep.subr.bf16.mxu0 %v1386
        %2044 = vmatpush1.bf16.msra.mxu0 %v1385
        %2045 = vmatprep.subr.bf16.mxu0 %v1390
        %2046 = vmatpush1.bf16.msra.mxu0 %v1389
        %2047 = vmatprep.subr.bf16.mxu0 %v1394
        %2048 = vmatpush1.bf16.msra.mxu0 %v1393
        %2049 = vmatprep.subr.bf16.mxu0 %v1398
        %2050 = vmatpush1.bf16.msra.mxu0 %v1397
        %2051 = vmatprep.subr.bf16.mxu0 %v1402
        %2052 = vmatpush1.bf16.msra.mxu0 %v1401
        %2053 = vmatprep.subr.bf16.mxu0 %v1406
        %2054 = vmatpush1.bf16.msra.mxu0 %v1405
        %2055 = vmatprep.subr.bf16.mxu0 %v1410
        %2056 = vmatpush1.bf16.msra.mxu0 %v1409
        %2057 = vmatprep.subr.bf16.mxu0 %v1414
        %2058 = vmatpush1.bf16.msra.mxu0 %v1413
        %2059 = vmatprep.mubr.bf16.mxu0 %v568
        %2060 = vmatmul.mubr.bf16.gmra.mrb[0].mxu0 %v567
        %v2061 = vpop.f32.mrb[0].mxu0
        %v2062 = vadd.f32 0.0, %v2061
        %v2063 = vpop.f32.mrb[0].mxu0
        %v2064 = vadd.f32 0.0, %v2063
        %v2065 = vpop.f32.mrb[0].mxu0
        %v2066 = vpop.f32.mrb[0].mxu0
        %2067 = vdwg.mxu0
        %2068 = vmatprep.subr.bf16.mxu0 %v1418
        %2069 = vmatpush1.bf16.msra.mxu0 %v1417
        %2070 = vmatprep.subr.bf16.mxu0 %v1422
        %2071 = vmatpush1.bf16.msra.mxu0 %v1421
        %2072 = vmatprep.subr.bf16.mxu0 %v1426
        %2073 = vmatpush1.bf16.msra.mxu0 %v1425
        %2074 = vmatprep.subr.bf16.mxu0 %v1430
        %2075 = vmatpush1.bf16.msra.mxu0 %v1429
        %2076 = vmatprep.subr.bf16.mxu0 %v1434
        %2077 = vmatpush1.bf16.msra.mxu0 %v1433
        %2078 = vmatprep.subr.bf16.mxu0 %v1438
        %2079 = vmatpush1.bf16.msra.mxu0 %v1437
        %2080 = vmatprep.subr.bf16.mxu0 %v1442
        %2081 = vmatpush1.bf16.msra.mxu0 %v1441
        %2082 = vmatprep.subr.bf16.mxu0 %v1446
        %2083 = vmatpush1.bf16.msra.mxu0 %v1445
        %2084 = vmatprep.subr.bf16.mxu0 %v1450
        %2085 = vmatpush1.bf16.msra.mxu0 %v1449
        %2086 = vmatprep.subr.bf16.mxu0 %v1454
        %2087 = vmatpush1.bf16.msra.mxu0 %v1453
        %2088 = vmatprep.subr.bf16.mxu0 %v1458
        %2089 = vmatpush1.bf16.msra.mxu0 %v1457
        %2090 = vmatprep.subr.bf16.mxu0 %v1462
        %2091 = vmatpush1.bf16.msra.mxu0 %v1461
        %2092 = vmatprep.subr.bf16.mxu0 %v1466
        %2093 = vmatpush1.bf16.msra.mxu0 %v1465
        %2094 = vmatprep.subr.bf16.mxu0 %v1470
        %2095 = vmatpush1.bf16.msra.mxu0 %v1469
        %2096 = vmatprep.subr.bf16.mxu0 %v1474
        %2097 = vmatpush1.bf16.msra.mxu0 %v1473
        %2098 = vmatprep.subr.bf16.mxu0 %v1478
        %2099 = vmatpush1.bf16.msra.mxu0 %v1477
        %2100 = vmatprep.mubr.bf16.mxu0 %v570
        %2101 = vmatmul.mubr.bf16.gmra.mrb[0].mxu0 %v569
        %v2102 = vpop.f32.mrb[0].mxu0
        %v2103 = vadd.f32 %v2062, %v2102
        %v2104 = vpop.f32.mrb[0].mxu0
        %v2105 = vadd.f32 %v2064, %v2104
        %v2106 = vpop.f32.mrb[0].mxu0
        %v2107 = vpop.f32.mrb[0].mxu0
        %2108 = vdwg.mxu0
        %2109 = vmatprep.subr.bf16.mxu0 %v1482
        %2110 = vmatpush1.bf16.msra.mxu0 %v1481
        %2111 = vmatprep.subr.bf16.mxu0 %v1486
        %2112 = vmatpush1.bf16.msra.mxu0 %v1485
        %2113 = vmatprep.subr.bf16.mxu0 %v1490
        %2114 = vmatpush1.bf16.msra.mxu0 %v1489
        %2115 = vmatprep.subr.bf16.mxu0 %v1494
        %2116 = vmatpush1.bf16.msra.mxu0 %v1493
        %2117 = vmatprep.subr.bf16.mxu0 %v1498
        %2118 = vmatpush1.bf16.msra.mxu0 %v1497
        %2119 = vmatprep.subr.bf16.mxu0 %v1502
        %2120 = vmatpush1.bf16.msra.mxu0 %v1501
        %2121 = vmatprep.subr.bf16.mxu0 %v1506
        %2122 = vmatpush1.bf16.msra.mxu0 %v1505
        %2123 = vmatprep.subr.bf16.mxu0 %v1510
        %2124 = vmatpush1.bf16.msra.mxu0 %v1509
        %2125 = vmatprep.subr.bf16.mxu0 %v1514
        %2126 = vmatpush1.bf16.msra.mxu0 %v1513
        %2127 = vmatprep.subr.bf16.mxu0 %v1518
        %2128 = vmatpush1.bf16.msra.mxu0 %v1517
        %2129 = vmatprep.subr.bf16.mxu0 %v1522
        %2130 = vmatpush1.bf16.msra.mxu0 %v1521
        %2131 = vmatprep.subr.bf16.mxu0 %v1526
        %2132 = vmatpush1.bf16.msra.mxu0 %v1525
        %2133 = vmatprep.subr.bf16.mxu0 %v1530
        %2134 = vmatpush1.bf16.msra.mxu0 %v1529
        %2135 = vmatprep.subr.bf16.mxu0 %v1534
        %2136 = vmatpush1.bf16.msra.mxu0 %v1533
        %2137 = vmatprep.subr.bf16.mxu0 %v1538
        %2138 = vmatpush1.bf16.msra.mxu0 %v1537
        %2139 = vmatprep.subr.bf16.mxu0 %v1542
        %2140 = vmatpush1.bf16.msra.mxu0 %v1541
        %2141 = vmatprep.mubr.bf16.mxu0 %v572
        %2142 = vmatmul.mubr.bf16.gmra.mrb[0].mxu0 %v571
        %v2143 = vpop.f32.mrb[0].mxu0
        %v2144 = vadd.f32 %v2103, %v2143
        %v2145 = vpop.f32.mrb[0].mxu0
        %v2146 = vadd.f32 %v2105, %v2145
        %v2147 = vpop.f32.mrb[0].mxu0
        %v2148 = vpop.f32.mrb[0].mxu0
        %2149 = vdwg.mxu0
        %2150 = vmatprep.subr.bf16.mxu0 %v1546
        %2151 = vmatpush1.bf16.msra.mxu0 %v1545
        %2152 = vmatprep.subr.bf16.mxu0 %v1550
        %2153 = vmatpush1.bf16.msra.mxu0 %v1549
        %2154 = vmatprep.subr.bf16.mxu0 %v1554
        %2155 = vmatpush1.bf16.msra.mxu0 %v1553
        %2156 = vmatprep.subr.bf16.mxu0 %v1558
        %2157 = vmatpush1.bf16.msra.mxu0 %v1557
        %2158 = vmatprep.subr.bf16.mxu0 %v1562
        %2159 = vmatpush1.bf16.msra.mxu0 %v1561
        %2160 = vmatprep.subr.bf16.mxu0 %v1566
        %2161 = vmatpush1.bf16.msra.mxu0 %v1565
        %2162 = vmatprep.subr.bf16.mxu0 %v1570
        %2163 = vmatpush1.bf16.msra.mxu0 %v1569
        %2164 = vmatprep.subr.bf16.mxu0 %v1574
        %2165 = vmatpush1.bf16.msra.mxu0 %v1573
        %2166 = vmatprep.subr.bf16.mxu0 %v1578
        %2167 = vmatpush1.bf16.msra.mxu0 %v1577
        %2168 = vmatprep.subr.bf16.mxu0 %v1582
        %2169 = vmatpush1.bf16.msra.mxu0 %v1581
        %2170 = vmatprep.subr.bf16.mxu0 %v1586
        %2171 = vmatpush1.bf16.msra.mxu0 %v1585
        %2172 = vmatprep.subr.bf16.mxu0 %v1590
        %2173 = vmatpush1.bf16.msra.mxu0 %v1589
        %2174 = vmatprep.subr.bf16.mxu0 %v1594
        %2175 = vmatpush1.bf16.msra.mxu0 %v1593
        %2176 = vmatprep.subr.bf16.mxu0 %v1598
        %2177 = vmatpush1.bf16.msra.mxu0 %v1597
        %2178 = vmatprep.subr.bf16.mxu0 %v1602
        %2179 = vmatpush1.bf16.msra.mxu0 %v1601
        %2180 = vmatprep.subr.bf16.mxu0 %v1606
        %2181 = vmatpush1.bf16.msra.mxu0 %v1605
        %2182 = vmatprep.mubr.bf16.mxu0 %v574
        %2183 = vmatmul.mubr.bf16.gmra.mrb[0].mxu0 %v573
        %v2184 = vpop.f32.mrb[0].mxu0
        %v2185 = vadd.f32 %v2144, %v2184
        %v2186 = vpop.f32.mrb[0].mxu0
        %v2187 = vadd.f32 %v2146, %v2186
        %v2188 = vpop.f32.mrb[0].mxu0
        %v2189 = vpop.f32.mrb[0].mxu0
        %2190 = vdwg.mxu0
        %v2191 = vadd.f32 %v291, %v2021
        %v2192 = vadd.f32 %v292, %v2023
        %v2193 = vadd.f32 %v293, %v2185
        %v2194 = vadd.f32 %v294, %v2187
        %2195 = vst [vmem:[%s281] sm:$0xff] %v2191
        %2196 = vst [vmem:[%s281 + $0x8] sm:$0xff] %v2192
        %2197 = vst [vmem:[%s281 + $0x10] sm:$0xff] %v2193
        %2198 = vst [vmem:[%s281 + $0x18] sm:$0xff] %v2194
        %p2199 = scmp.eq.s32.totalorder %s24, 2
        // Predicated region
        $region41: #{fast_rcnn_forward.4} parent=31 // pred_check
          %p2200 = pneg %p2199
        $region42: #{fast_rcnn_forward.4} parent=31 // pred_check_branch
          %2202 = sbr.rel (%p2200) target = $region44
        $region43: #{fast_rcnn_forward.4} parent=31 // pred_region
          %v2203 = vld [vmem:[%s281] sm:$0xff]
          %v2204 = vld [vmem:[%s281 + $0x8] sm:$0xff]
          %v2205 = vld [vmem:[%s281 + $0x10] sm:$0xff]
          %v2206 = vld [vmem:[%s281 + $0x18] sm:$0xff]
          %v2207 = vld [vmem:[%s271] sm:$0xf]
          %v2209 = vlaneseq
          %v2210 = vshrl.u32 %v2209, 7
          %v2211 = vsub.s32 0, %v2210
          %v2212 = vrot.slane %v2207, %v2211
          %v2213 = vlaneseq
          %v2214 = vshrl.u32 %v2213, 7
          %v2215 = vsub.s32 1, %v2214
          %v2216 = vrot.slane %v2207, %v2215
          %v2217 = vlaneseq
          %v2218 = vshrl.u32 %v2217, 7
          %v2219 = vsub.s32 2, %v2218
          %v2220 = vrot.slane %v2207, %v2219
          %v2221 = vlaneseq
          %v2222 = vshrl.u32 %v2221, 7
          %v2223 = vsub.s32 3, %v2222
          %v2224 = vrot.slane %v2207, %v2223
          %v2229 = vadd.f32 %v2203, %v2212
          %v2230 = vadd.f32 %v2204, %v2216
          %v2231 = vadd.f32 %v2205, %v2220
          %v2232 = vadd.f32 %v2206, %v2224
          %v2233 = vmax.f32 %v2229, 0.0
          %v2234 = vmax.f32 %v2230, 0.0
          %v2235 = vmax.f32 %v2231, 0.0
          %v2236 = vmax.f32 %v2232, 0.0
          %2237 = vst [vmem:[%s281] sm:$0xff] %v2233
          %2238 = vst [vmem:[%s281 + $0x8] sm:$0xff] %v2234
          %2239 = vst [vmem:[%s281 + $0x10] sm:$0xff] %v2235
          %2240 = vst [vmem:[%s281 + $0x18] sm:$0xff] %v2236
        $region44: #{fast_rcnn_forward.4} parent=31 // pred_fallthru
          _
        %s2241 = smul.u32 4, %s23
        %p2242 = scmp.lt.s32.totalorder %s22, 0
        %s2243 = scalar_select %p2242, %s22, 0
        %p2244 = scmp.lt.s32.totalorder %s2241, 15
        %s2245 = scalar_select %p2244, %s2241, 15
        %s2246 = smul.addr %s2243, 16
        %s2247 = sadd.s32 %s2245, %s2246
        %s2248 = smul.addr %s2247, 8
        %s2249 = scalar_lea.vmem %s3, %s2248
        // Predicated region
        $region45: #{fast_rcnn_forward.4} parent=31 // pred_check
          %p2250 = pneg %p138
        $region46: #{fast_rcnn_forward.4} parent=31 // pred_check_branch
          %2252 = sbr.rel (%p2250) target = $region48
        $region47: #{fast_rcnn_forward.4} parent=31 // pred_region
          %s2253 = smul.u32 4, %s23
        $region48: #{fast_rcnn_forward.4} parent=31 // pred_fallthru
          _
      $region32: #{fast_rcnn_forward.4} parent=5 // pred_fallthru
        _
      %p2254 = scmp.le.s32.totalorder 2, %s12
      // Predicated region
      $region49: #{fast_rcnn_forward.4} parent=5 // pred_check
        %p2255 = pneg %p2254
      $region50: #{fast_rcnn_forward.4} parent=5 // pred_check_branch
        %2257 = sbr.rel (%p2255) target = $region52
      $region51: #{fast_rcnn_forward.4} parent=5 // pred_region
        %s2258 = ssub.s32 %s12, 2
        // Predicated region
        $region53: #{fast_rcnn_forward.4} parent=51 // pred_check
          %p2259 = pneg %p144
        $region54: #{fast_rcnn_forward.4} parent=51 // pred_check_branch
          %2261 = sbr.rel (%p2259) target = $region56
        $region55: #{fast_rcnn_forward.4} parent=51 // pred_region
          %s2262 = smul.u32 4, %s26
          %p2263 = scmp.lt.s32.totalorder %s25, 0
          %s2264 = scalar_select %p2263, %s25, 0
          %p2265 = scmp.lt.s32.totalorder %s2262, 15
          %s2266 = scalar_select %p2265, %s2262, 15
          %s2267 = smul.addr %s2264, 16
          %s2268 = sadd.s32 %s2266, %s2267
          %s2269 = smul.addr %s2268, 8
          %s2270 = scalar_lea.vmem %s3, %s2269
        $region56: #{fast_rcnn_forward.4} parent=51 // pred_fallthru
          _
      $region52: #{fast_rcnn_forward.4} parent=5 // pred_fallthru
        _
    $region6: #{fast_rcnn_forward.4} parent=1 // loop_footer
      %s16 = sadd.s32 1, %s12
    $region7: #{fast_rcnn_forward.4} parent=1 // loop_footer_branch
      %11 = sbr.rel target = $region3
    $region8: #{fast_rcnn_forward.4} parent=1 // loop_exit
      _
    %2271 = vsyncpa [#allocation3], 1
    %s2272 = scalar_lea.sflag [#allocation3], 1
    %2273 = vsyncpa %s2272, 1

// kernel: fast_rcnn_forward.6
$region0: #{fast_rcnn_forward.6}
  #allocation0 [shape = 'u32[]', space=smem, size = 0x4, offset = 0x4, fixed_abs, tag = 'smem constant byte address 0x4 - core index']
  #allocation1 [shape = 'u32[144,128]{1,0:T(1,128)}', space=vmem, size = 0x12000, scoped, tag = 'internal scratch']
  %s0 = inlined_call_operand.vmem [shape: bf16[8,100352], index: 0, kind: input, shape index: {}]
  %s1 = inlined_call_operand.hbm [shape: bf16[100352,2048], index: 1, kind: input, shape index: {}]
  %s2 = inlined_call_operand.vmem [shape: f32[1,2048], index: 2, kind: input, shape index: {}]
  %s3 = inlined_call_operand.vmem [shape: f32[8,2048], index: 3, kind: output, shape index: {}]
  %s4 = sld [smem:[#allocation0]]
  $region57: #{fast_rcnn_forward.6} parent=0
    _
  %s6 = ssub.s32 1, %s4
  %s7 = scalar_select 0, %s6, %s4
  $region1: #{fast_rcnn_forward.6} parent=0
    #allocation2 [shape = 'u8[4194304]{0}', space=vmem, size = 0x400000, scoped, tag = 'input window, operand 1']
    #allocation3 [shape = 's32[2]{0}', space=sflag, size = 0x8, scoped, tag = 'scoped memory for fast_rcnn_forward.6']
    %8 = vsyncpa [#allocation3], 0
    %s9 = scalar_lea.sflag [#allocation3], 1
    %10 = vsyncpa %s9, 0
    loop: start=0, step=1, limit=198
    $region2: #{fast_rcnn_forward.6} parent=1 // loop_pre_header
      _
    $region3: #{fast_rcnn_forward.6} parent=1 // loop_header
      %s12 = sphi 0, %s16
      %p13 = scmp.ge.s32.totalorder %s12, 198
      %s19 = sphi 0, %s38
      %s20 = sphi 0, %s34
      %s21 = sphi 0, %s30
      %s22 = sphi 0, %s19
      %s23 = sphi 0, %s20
      %s24 = sphi 0, %s21
      %s25 = sphi 0, %s22
      %s26 = sphi 0, %s23
      %s27 = sphi 0, %s24
      %s43 = sphi 0, %s45
      %s46 = sphi 0, %s43
      %s47 = sphi 0, %s46
      %s63 = sphi 0, %s47
      %s71 = sphi 0, %s73
      %s74 = sphi 0, %s71
      %s75 = sphi 0, %s74
      %s91 = sphi 0, %s75
      %s97 = sphi 0, %s99
      %s100 = sphi 0, %s97
      %s101 = sphi 0, %s100
      %s117 = sphi 0, %s101
      %s125 = sphi 0, %s127
      %s128 = sphi 0, %s125
      %s129 = sphi 0, %s128
      %s145 = sphi 0, %s129
    $region4: #{fast_rcnn_forward.6} parent=1 // loop_header_branch
      %15 = sbr.rel (%p13) target = $region8
    $region5: #{fast_rcnn_forward.6} parent=1 // loop_body
      %s17 = ssub.s32 %s12, 1
      %s18 = ssub.s32 %s12, 2
      %s28 = sadd.s32 1, %s21
      %p29 = scmp.ge.s32.totalorder %s28, 49
      %s30 = scalar_select %p29, 0, %s28
      %s31 = sadd.s32 1, %s20
      %s32 = scalar_select %p29, %s31, %s20
      %p33 = scmp.ge.s32.totalorder %s32, 4
      %s34 = scalar_select %p33, 0, %s32
      %s35 = sadd.s32 1, %s19
      %s36 = scalar_select %p33, %s35, %s19
      %p37 = scmp.ge.s32.totalorder %s36, 1
      %s38 = scalar_select %p37, 0, %s36
      %s39 = ssub.s32 %s19, %s38
      %s40 = ssub.s32 %s21, %s30
      %s41 = sor.u32 %s39, %s40
      %p42 = scmp.eq.s32.totalorder %s41, 0
      %s44 = sadd.s32 %s43, 1
      %s45 = scalar_select %p42, %s43, %s44
      %p48 = pneg %p42
      %p49 = scmp.eq.s32.totalorder %s12, 195
      %p50 = por %p48, %p49
      %p51 = scmp.ne.s32.totalorder %s43, %s46
      %p52 = scmp.eq.s32.totalorder %s12, 0
      %p53 = por %p51, %p52
      %p54 = scmp.ne.s32.totalorder %s43, %s46
      %p55 = scmp.eq.s32.totalorder %s17, 195
      %p56 = por %p54, %p55
      %p57 = scmp.ne.s32.totalorder %s46, %s47
      %p58 = scmp.eq.s32.totalorder %s17, 0
      %p59 = por %p57, %p58
      %p60 = scmp.ne.s32.totalorder %s46, %s47
      %p61 = scmp.eq.s32.totalorder %s18, 195
      %p62 = por %p60, %p61
      %p64 = scmp.ne.s32.totalorder %s47, %s63
      %p65 = scmp.eq.s32.totalorder %s18, 0
      %p66 = por %p64, %p65
      %s67 = ssub.s32 %s21, %s30
      %s68 = ssub.s32 %s20, %s34
      %s69 = sor.u32 %s67, %s68
      %p70 = scmp.eq.s32.totalorder %s69, 0
      %s72 = sadd.s32 %s71, 1
      %s73 = scalar_select %p70, %s71, %s72
      %p76 = pneg %p70
      %p77 = scmp.eq.s32.totalorder %s12, 195
      %p78 = por %p76, %p77
      %p79 = scmp.ne.s32.totalorder %s71, %s74
      %p80 = scmp.eq.s32.totalorder %s12, 0
      %p81 = por %p79, %p80
      %p82 = scmp.ne.s32.totalorder %s71, %s74
      %p83 = scmp.eq.s32.totalorder %s17, 195
      %p84 = por %p82, %p83
      %p85 = scmp.ne.s32.totalorder %s74, %s75
      %p86 = scmp.eq.s32.totalorder %s17, 0
      %p87 = por %p85, %p86
      %p88 = scmp.ne.s32.totalorder %s74, %s75
      %p89 = scmp.eq.s32.totalorder %s18, 195
      %p90 = por %p88, %p89
      %p92 = scmp.ne.s32.totalorder %s75, %s91
      %p93 = scmp.eq.s32.totalorder %s18, 0
      %p94 = por %p92, %p93
      %s95 = ssub.s32 %s20, %s34
      %p96 = scmp.eq.s32.totalorder %s95, 0
      %s98 = sadd.s32 %s97, 1
      %s99 = scalar_select %p96, %s97, %s98
      %p102 = pneg %p96
      %p103 = scmp.eq.s32.totalorder %s12, 195
      %p104 = por %p102, %p103
      %p105 = scmp.ne.s32.totalorder %s97, %s100
      %p106 = scmp.eq.s32.totalorder %s12, 0
      %p107 = por %p105, %p106
      %p108 = scmp.ne.s32.totalorder %s97, %s100
      %p109 = scmp.eq.s32.totalorder %s17, 195
      %p110 = por %p108, %p109
      %p111 = scmp.ne.s32.totalorder %s100, %s101
      %p112 = scmp.eq.s32.totalorder %s17, 0
      %p113 = por %p111, %p112
      %p114 = scmp.ne.s32.totalorder %s100, %s101
      %p115 = scmp.eq.s32.totalorder %s18, 195
      %p116 = por %p114, %p115
      %p118 = scmp.ne.s32.totalorder %s101, %s117
      %p119 = scmp.eq.s32.totalorder %s18, 0
      %p120 = por %p118, %p119
      %s121 = ssub.s32 %s19, %s38
      %s122 = ssub.s32 %s20, %s34
      %s123 = sor.u32 %s121, %s122
      %p124 = scmp.eq.s32.totalorder %s123, 0
      %s126 = sadd.s32 %s125, 1
      %s127 = scalar_select %p124, %s125, %s126
      %p130 = pneg %p124
      %p131 = scmp.eq.s32.totalorder %s12, 195
      %p132 = por %p130, %p131
      %p133 = scmp.ne.s32.totalorder %s125, %s128
      %p134 = scmp.eq.s32.totalorder %s12, 0
      %p135 = por %p133, %p134
      %p136 = scmp.ne.s32.totalorder %s125, %s128
      %p137 = scmp.eq.s32.totalorder %s17, 195
      %p138 = por %p136, %p137
      %p139 = scmp.ne.s32.totalorder %s128, %s129
      %p140 = scmp.eq.s32.totalorder %s17, 0
      %p141 = por %p139, %p140
      %p142 = scmp.ne.s32.totalorder %s128, %s129
      %p143 = scmp.eq.s32.totalorder %s18, 195
      %p144 = por %p142, %p143
      %p146 = scmp.ne.s32.totalorder %s129, %s145
      %p147 = scmp.eq.s32.totalorder %s18, 0
      %p148 = por %p146, %p147
      %p149 = scmp.le.s32.totalorder 1, %s12
      %p150 = scmp.lt.s32.totalorder %s12, 197
      %p151 = pnand %p149, %p150
      %p152 = pneg %p151
      // Predicated region
      $region9: #{fast_rcnn_forward.6} parent=5 // pred_check
        _
      $region10: #{fast_rcnn_forward.6} parent=5 // pred_check_branch
        %154 = sbr.rel (%p151) target = $region12
      $region11: #{fast_rcnn_forward.6} parent=5 // pred_region
        %s155 = ssub.s32 %s12, 1
      $region12: #{fast_rcnn_forward.6} parent=5 // pred_fallthru
        _
      %p156 = scmp.lt.s32.totalorder %s12, 196
      // Predicated region
      $region13: #{fast_rcnn_forward.6} parent=5 // pred_check
        %p157 = pneg %p156
      $region14: #{fast_rcnn_forward.6} parent=5 // pred_check_branch
        %159 = sbr.rel (%p157) target = $region16
      $region15: #{fast_rcnn_forward.6} parent=5 // pred_region
        // Predicated region
        $region17: #{fast_rcnn_forward.6} parent=15 // pred_check
          %p160 = pneg %p53
        $region18: #{fast_rcnn_forward.6} parent=15 // pred_check_branch
          %162 = sbr.rel (%p160) target = $region20
        $region19: #{fast_rcnn_forward.6} parent=15 // pred_region
          %s163 = smul.u32 16, %s21
          %p164 = scmp.lt.s32.totalorder %s19, 0
          %s165 = scalar_select %p164, %s19, 0
          %p166 = scmp.lt.s32.totalorder %s163, 783
          %s167 = scalar_select %p166, %s163, 783
          %s168 = smul.addr %s165, 784
          %s169 = sadd.s32 %s167, %s168
          %s170 = smul.addr %s169, 4
          %s171 = scalar_lea.vmem %s0, %s170
          %s172 = smul.u32 16, %s21
        $region20: #{fast_rcnn_forward.6} parent=15 // pred_fallthru
          _
        // Predicated region
        $region21: #{fast_rcnn_forward.6} parent=15 // pred_check
          %p173 = pneg %p81
        $region22: #{fast_rcnn_forward.6} parent=15 // pred_check_branch
          %175 = sbr.rel (%p173) target = $region24
        $region23: #{fast_rcnn_forward.6} parent=15 // pred_region
          %s176 = sand.u32 %s71, 1
          %s177 = scalar_lea.sflag [#allocation3], %s176
          %s178 = sand.u32 %s71, 1
          %s179 = smul.addr %s178, 4096
          %s180 = scalar_lea.vmem [#allocation2], %s179
          %s181 = smul.u32 256, %s21
          %s182 = smul.u32 4, %s20
          %s184 = ssub.s32 65536, 65536
          %185 = vsyncadd %s177, %s184
          %s186 = smul.addr %s181, 16
          %s187 = sadd.s32 %s182, %s186
          %s188 = smul.addr %s187, 64
          %s189 = scalar_lea.hbm %s1, %s188
          %s190 = sshll.u32 %s180, 4
          %s191 = int_to_ptr.vmem [resolvable:$true] %s190
          %196 = dma.hbm_to_vmem [thread:$0]  %s189, 65536, %s191, %s177, 1024, 256, 16
        $region24: #{fast_rcnn_forward.6} parent=15 // pred_fallthru
          _
        // Predicated region
        $region25: #{fast_rcnn_forward.6} parent=15 // pred_check
          %p197 = pneg %p107
        $region26: #{fast_rcnn_forward.6} parent=15 // pred_check_branch
          %199 = sbr.rel (%p197) target = $region28
        $region27: #{fast_rcnn_forward.6} parent=15 // pred_region
          %s200 = smul.u32 4, %s20
          %p201 = scmp.lt.s32.totalorder %s200, 15
          %s202 = scalar_select %p201, %s200, 15
          %s203 = scalar_lea.vmem %s2, %s202
          %s204 = smul.u32 4, %s20
        $region28: #{fast_rcnn_forward.6} parent=15 // pred_fallthru
          _
      $region16: #{fast_rcnn_forward.6} parent=5 // pred_fallthru
        _
      %p205 = scmp.le.s32.totalorder 1, %s12
      %p206 = scmp.lt.s32.totalorder %s12, 197
      %p207 = pnand %p205, %p206
      %p208 = pneg %p207
      // Predicated region
      $region29: #{fast_rcnn_forward.6} parent=5 // pred_check
        _
      $region30: #{fast_rcnn_forward.6} parent=5 // pred_check_branch
        %210 = sbr.rel (%p207) target = $region32
      $region31: #{fast_rcnn_forward.6} parent=5 // pred_region
        %s211 = ssub.s32 %s12, 1
        %s212 = sand.u32 %s74, 1
        %s213 = scalar_lea.sflag [#allocation3], %s212
        %s214 = sand.u32 %s74, 1
        %s215 = smul.addr %s214, 4096
        %s216 = scalar_lea.vmem [#allocation2], %s215
        // Predicated region
        $region33: #{fast_rcnn_forward.6} parent=31 // pred_check
          %p217 = pneg %p87
        $region34: #{fast_rcnn_forward.6} parent=31 // pred_check_branch
          %219 = sbr.rel (%p217) target = $region36
        $region35: #{fast_rcnn_forward.6} parent=31 // pred_region
          %220 = dma.done %s213, 65536
        $region36: #{fast_rcnn_forward.6} parent=31 // pred_fallthru
          _
        %s221 = smul.u32 16, %s24
        %p222 = scmp.lt.s32.totalorder %s22, 0
        %s223 = scalar_select %p222, %s22, 0
        %p224 = scmp.lt.s32.totalorder %s221, 783
        %s225 = scalar_select %p224, %s221, 783
        %s226 = smul.addr %s223, 784
        %s227 = sadd.s32 %s225, %s226
        %s228 = smul.addr %s227, 4
        %s229 = scalar_lea.vmem %s0, %s228
        %p230 = pneg %p59
        %p231 = pneg %p56
        %s232 = sand.u32 %s74, 1
        %s233 = scalar_lea.sflag [#allocation3], %s232
        %s234 = sand.u32 %s74, 1
        %s235 = smul.addr %s234, 4096
        %s236 = scalar_lea.vmem [#allocation2], %s235
        %p237 = pneg %p87
        %p238 = pneg %p84
        %s239 = smul.u32 4, %s23
        %p240 = scmp.lt.s32.totalorder %s239, 15
        %s241 = scalar_select %p240, %s239, 15
        %s242 = scalar_lea.vmem %s2, %s241
        %p243 = pneg %p113
        %p244 = pneg %p110
        %p245 = pneg %p141
        %p246 = pneg %p138
        %s247 = smul.u32 4, %s23
        %p248 = scmp.lt.s32.totalorder %s22, 0
        %s249 = scalar_select %p248, %s22, 0
        %p250 = scmp.lt.s32.totalorder %s247, 15
        %s251 = scalar_select %p250, %s247, 15
        %s252 = smul.addr %s249, 16
        %s253 = sadd.s32 %s251, %s252
        %s254 = smul.addr %s253, 8
        %s255 = scalar_lea.vmem %s3, %s254
        %s256 = smul.u32 16, %s24
        %p257 = scmp.lt.s32.totalorder %s22, 0
        %s258 = scalar_select %p257, %s22, 0
        %p259 = scmp.lt.s32.totalorder %s256, 783
        %s260 = scalar_select %p259, %s256, 783
        %s261 = smul.addr %s258, 784
        %s262 = sadd.s32 %s260, %s261
        %s263 = smul.addr %s262, 4
        %s264 = scalar_lea.vmem %s0, %s263
        %s265 = smul.u32 16, %s24
        %s266 = smul.u32 256, %s24
        %s267 = smul.u32 4, %s23
        %s268 = smul.u32 4, %s23
        %p269 = scmp.lt.s32.totalorder %s268, 15
        %s270 = scalar_select %p269, %s268, 15
        %s271 = scalar_lea.vmem %s2, %s270
        %s272 = smul.u32 4, %s23
        %s273 = smul.u32 4, %s23
        %p274 = scmp.lt.s32.totalorder %s22, 0
        %s275 = scalar_select %p274, %s22, 0
        %p276 = scmp.lt.s32.totalorder %s273, 15
        %s277 = scalar_select %p276, %s273, 15
        %s278 = smul.addr %s275, 16
        %s279 = sadd.s32 %s277, %s278
        %s280 = smul.addr %s279, 8
        %s281 = scalar_lea.vmem %s3, %s280
        %s282 = smul.u32 4, %s23
        %p283 = scmp.eq.s32.totalorder %s24, 0
        // Predicated region
        $region37: #{fast_rcnn_forward.6} parent=31 // pred_check
          %p284 = pneg %p283
        $region38: #{fast_rcnn_forward.6} parent=31 // pred_check_branch
          %286 = sbr.rel (%p284) target = $region40
        $region39: #{fast_rcnn_forward.6} parent=31 // pred_region
          %287 = vst [vmem:[%s281] sm:$0xff] 0.0
          %288 = vst [vmem:[%s281 + $0x8] sm:$0xff] 0.0
          %289 = vst [vmem:[%s281 + $0x10] sm:$0xff] 0.0
          %290 = vst [vmem:[%s281 + $0x18] sm:$0xff] 0.0
        $region40: #{fast_rcnn_forward.6} parent=31 // pred_fallthru
          _
        %v291 = vld [vmem:[%s281] sm:$0xff]
        %v292 = vld [vmem:[%s281 + $0x8] sm:$0xff]
        %v293 = vld [vmem:[%s281 + $0x10] sm:$0xff]
        %v294 = vld [vmem:[%s281 + $0x18] sm:$0xff]
        %v295 = vld [vmem:[%s264] sm:$0xff]
        %v296 = vld [vmem:[%s264 + $0x8] sm:$0xff]
        %v297 = vld [vmem:[%s264 + $0x10] sm:$0xff]
        %v298 = vld [vmem:[%s264 + $0x18] sm:$0xff]
        %v299 = vld [vmem:[%s264 + $0x20] sm:$0xff]
        %v300 = vld [vmem:[%s264 + $0x28] sm:$0xff]
        %v301 = vld [vmem:[%s264 + $0x30] sm:$0xff]
        %v302 = vld [vmem:[%s264 + $0x38] sm:$0xff]
        %v303 = vld [vmem:[%s216] sm:$0xff]
        %v304 = vld [vmem:[%s216 + $0x8] sm:$0xff]
        %v305 = vld [vmem:[%s216 + $0x10] sm:$0xff]
        %v306 = vld [vmem:[%s216 + $0x18] sm:$0xff]
        %v307 = vld [vmem:[%s216 + $0x20] sm:$0xff]
        %v308 = vld [vmem:[%s216 + $0x28] sm:$0xff]
        %v309 = vld [vmem:[%s216 + $0x30] sm:$0xff]
        %v310 = vld [vmem:[%s216 + $0x38] sm:$0xff]
        %v311 = vld [vmem:[%s216 + $0x40] sm:$0xff]
        %v312 = vld [vmem:[%s216 + $0x48] sm:$0xff]
        %v313 = vld [vmem:[%s216 + $0x50] sm:$0xff]
        %v314 = vld [vmem:[%s216 + $0x58] sm:$0xff]
        %v315 = vld [vmem:[%s216 + $0x60] sm:$0xff]
        %v316 = vld [vmem:[%s216 + $0x68] sm:$0xff]
        %v317 = vld [vmem:[%s216 + $0x70] sm:$0xff]
        %v318 = vld [vmem:[%s216 + $0x78] sm:$0xff]
        %v319 = vld [vmem:[%s216 + $0x80] sm:$0xff]
        %v320 = vld [vmem:[%s216 + $0x88] sm:$0xff]
        %v321 = vld [vmem:[%s216 + $0x90] sm:$0xff]
        %v322 = vld [vmem:[%s216 + $0x98] sm:$0xff]
        %v323 = vld [vmem:[%s216 + $0xa0] sm:$0xff]
        %v324 = vld [vmem:[%s216 + $0xa8] sm:$0xff]
        %v325 = vld [vmem:[%s216 + $0xb0] sm:$0xff]
        %v326 = vld [vmem:[%s216 + $0xb8] sm:$0xff]
        %v327 = vld [vmem:[%s216 + $0xc0] sm:$0xff]
        %v328 = vld [vmem:[%s216 + $0xc8] sm:$0xff]
        %v329 = vld [vmem:[%s216 + $0xd0] sm:$0xff]
        %v330 = vld [vmem:[%s216 + $0xd8] sm:$0xff]
        %v331 = vld [vmem:[%s216 + $0xe0] sm:$0xff]
        %v332 = vld [vmem:[%s216 + $0xe8] sm:$0xff]
        %v333 = vld [vmem:[%s216 + $0xf0] sm:$0xff]
        %v334 = vld [vmem:[%s216 + $0xf8] sm:$0xff]
        %v335 = vld [vmem:[%s216 + $0x100] sm:$0xff]
        %v336 = vld [vmem:[%s216 + $0x108] sm:$0xff]
        %v337 = vld [vmem:[%s216 + $0x110] sm:$0xff]
        %v338 = vld [vmem:[%s216 + $0x118] sm:$0xff]
        %v339 = vld [vmem:[%s216 + $0x120] sm:$0xff]
        %v340 = vld [vmem:[%s216 + $0x128] sm:$0xff]
        %v341 = vld [vmem:[%s216 + $0x130] sm:$0xff]
        %v342 = vld [vmem:[%s216 + $0x138] sm:$0xff]
        %v343 = vld [vmem:[%s216 + $0x140] sm:$0xff]
        %v344 = vld [vmem:[%s216 + $0x148] sm:$0xff]
        %v345 = vld [vmem:[%s216 + $0x150] sm:$0xff]
        %v346 = vld [vmem:[%s216 + $0x158] sm:$0xff]
        %v347 = vld [vmem:[%s216 + $0x160] sm:$0xff]
        %v348 = vld [vmem:[%s216 + $0x168] sm:$0xff]
        %v349 = vld [vmem:[%s216 + $0x170] sm:$0xff]
        %v350 = vld [vmem:[%s216 + $0x178] sm:$0xff]
        %v351 = vld [vmem:[%s216 + $0x180] sm:$0xff]
        %v352 = vld [vmem:[%s216 + $0x188] sm:$0xff]
        %v353 = vld [vmem:[%s216 + $0x190] sm:$0xff]
        %v354 = vld [vmem:[%s216 + $0x198] sm:$0xff]
        %v355 = vld [vmem:[%s216 + $0x1a0] sm:$0xff]
        %v356 = vld [vmem:[%s216 + $0x1a8] sm:$0xff]
        %v357 = vld [vmem:[%s216 + $0x1b0] sm:$0xff]
        %v358 = vld [vmem:[%s216 + $0x1b8] sm:$0xff]
        %v359 = vld [vmem:[%s216 + $0x1c0] sm:$0xff]
        %v360 = vld [vmem:[%s216 + $0x1c8] sm:$0xff]
        %v361 = vld [vmem:[%s216 + $0x1d0] sm:$0xff]
        %v362 = vld [vmem:[%s216 + $0x1d8] sm:$0xff]
        %v363 = vld [vmem:[%s216 + $0x1e0] sm:$0xff]
        %v364 = vld [vmem:[%s216 + $0x1e8] sm:$0xff]
        %v365 = vld [vmem:[%s216 + $0x1f0] sm:$0xff]
        %v366 = vld [vmem:[%s216 + $0x1f8] sm:$0xff]
        %v367 = vld [vmem:[%s216 + $0x200] sm:$0xff]
        %v368 = vld [vmem:[%s216 + $0x208] sm:$0xff]
        %v369 = vld [vmem:[%s216 + $0x210] sm:$0xff]
        %v370 = vld [vmem:[%s216 + $0x218] sm:$0xff]
        %v371 = vld [vmem:[%s216 + $0x220] sm:$0xff]
        %v372 = vld [vmem:[%s216 + $0x228] sm:$0xff]
        %v373 = vld [vmem:[%s216 + $0x230] sm:$0xff]
        %v374 = vld [vmem:[%s216 + $0x238] sm:$0xff]
        %v375 = vld [vmem:[%s216 + $0x240] sm:$0xff]
        %v376 = vld [vmem:[%s216 + $0x248] sm:$0xff]
        %v377 = vld [vmem:[%s216 + $0x250] sm:$0xff]
        %v378 = vld [vmem:[%s216 + $0x258] sm:$0xff]
        %v379 = vld [vmem:[%s216 + $0x260] sm:$0xff]
        %v380 = vld [vmem:[%s216 + $0x268] sm:$0xff]
        %v381 = vld [vmem:[%s216 + $0x270] sm:$0xff]
        %v382 = vld [vmem:[%s216 + $0x278] sm:$0xff]
        %v383 = vld [vmem:[%s216 + $0x280] sm:$0xff]
        %v384 = vld [vmem:[%s216 + $0x288] sm:$0xff]
        %v385 = vld [vmem:[%s216 + $0x290] sm:$0xff]
        %v386 = vld [vmem:[%s216 + $0x298] sm:$0xff]
        %v387 = vld [vmem:[%s216 + $0x2a0] sm:$0xff]
        %v388 = vld [vmem:[%s216 + $0x2a8] sm:$0xff]
        %v389 = vld [vmem:[%s216 + $0x2b0] sm:$0xff]
        %v390 = vld [vmem:[%s216 + $0x2b8] sm:$0xff]
        %v391 = vld [vmem:[%s216 + $0x2c0] sm:$0xff]
        %v392 = vld [vmem:[%s216 + $0x2c8] sm:$0xff]
        %v393 = vld [vmem:[%s216 + $0x2d0] sm:$0xff]
        %v394 = vld [vmem:[%s216 + $0x2d8] sm:$0xff]
        %v395 = vld [vmem:[%s216 + $0x2e0] sm:$0xff]
        %v396 = vld [vmem:[%s216 + $0x2e8] sm:$0xff]
        %v397 = vld [vmem:[%s216 + $0x2f0] sm:$0xff]
        %v398 = vld [vmem:[%s216 + $0x2f8] sm:$0xff]
        %v399 = vld [vmem:[%s216 + $0x300] sm:$0xff]
        %v400 = vld [vmem:[%s216 + $0x308] sm:$0xff]
        %v401 = vld [vmem:[%s216 + $0x310] sm:$0xff]
        %v402 = vld [vmem:[%s216 + $0x318] sm:$0xff]
        %v403 = vld [vmem:[%s216 + $0x320] sm:$0xff]
        %v404 = vld [vmem:[%s216 + $0x328] sm:$0xff]
        %v405 = vld [vmem:[%s216 + $0x330] sm:$0xff]
        %v406 = vld [vmem:[%s216 + $0x338] sm:$0xff]
        %v407 = vld [vmem:[%s216 + $0x340] sm:$0xff]
        %v408 = vld [vmem:[%s216 + $0x348] sm:$0xff]
        %v409 = vld [vmem:[%s216 + $0x350] sm:$0xff]
        %v410 = vld [vmem:[%s216 + $0x358] sm:$0xff]
        %v411 = vld [vmem:[%s216 + $0x360] sm:$0xff]
        %v412 = vld [vmem:[%s216 + $0x368] sm:$0xff]
        %v413 = vld [vmem:[%s216 + $0x370] sm:$0xff]
        %v414 = vld [vmem:[%s216 + $0x378] sm:$0xff]
        %v415 = vld [vmem:[%s216 + $0x380] sm:$0xff]
        %v416 = vld [vmem:[%s216 + $0x388] sm:$0xff]
        %v417 = vld [vmem:[%s216 + $0x390] sm:$0xff]
        %v418 = vld [vmem:[%s216 + $0x398] sm:$0xff]
        %v419 = vld [vmem:[%s216 + $0x3a0] sm:$0xff]
        %v420 = vld [vmem:[%s216 + $0x3a8] sm:$0xff]
        %v421 = vld [vmem:[%s216 + $0x3b0] sm:$0xff]
        %v422 = vld [vmem:[%s216 + $0x3b8] sm:$0xff]
        %v423 = vld [vmem:[%s216 + $0x3c0] sm:$0xff]
        %v424 = vld [vmem:[%s216 + $0x3c8] sm:$0xff]
        %v425 = vld [vmem:[%s216 + $0x3d0] sm:$0xff]
        %v426 = vld [vmem:[%s216 + $0x3d8] sm:$0xff]
        %v427 = vld [vmem:[%s216 + $0x3e0] sm:$0xff]
        %v428 = vld [vmem:[%s216 + $0x3e8] sm:$0xff]
        %v429 = vld [vmem:[%s216 + $0x3f0] sm:$0xff]
        %v430 = vld [vmem:[%s216 + $0x3f8] sm:$0xff]
        %v431 = vld [vmem:[%s216 + $0x400] sm:$0xff]
        %v432 = vld [vmem:[%s216 + $0x408] sm:$0xff]
        %v433 = vld [vmem:[%s216 + $0x410] sm:$0xff]
        %v434 = vld [vmem:[%s216 + $0x418] sm:$0xff]
        %v435 = vld [vmem:[%s216 + $0x420] sm:$0xff]
        %v436 = vld [vmem:[%s216 + $0x428] sm:$0xff]
        %v437 = vld [vmem:[%s216 + $0x430] sm:$0xff]
        %v438 = vld [vmem:[%s216 + $0x438] sm:$0xff]
        %v439 = vld [vmem:[%s216 + $0x440] sm:$0xff]
        %v440 = vld [vmem:[%s216 + $0x448] sm:$0xff]
        %v441 = vld [vmem:[%s216 + $0x450] sm:$0xff]
        %v442 = vld [vmem:[%s216 + $0x458] sm:$0xff]
        %v443 = vld [vmem:[%s216 + $0x460] sm:$0xff]
        %v444 = vld [vmem:[%s216 + $0x468] sm:$0xff]
        %v445 = vld [vmem:[%s216 + $0x470] sm:$0xff]
        %v446 = vld [vmem:[%s216 + $0x478] sm:$0xff]
        %v447 = vld [vmem:[%s216 + $0x480] sm:$0xff]
        %v448 = vld [vmem:[%s216 + $0x488] sm:$0xff]
        %v449 = vld [vmem:[%s216 + $0x490] sm:$0xff]
        %v450 = vld [vmem:[%s216 + $0x498] sm:$0xff]
        %v451 = vld [vmem:[%s216 + $0x4a0] sm:$0xff]
        %v452 = vld [vmem:[%s216 + $0x4a8] sm:$0xff]
        %v453 = vld [vmem:[%s216 + $0x4b0] sm:$0xff]
        %v454 = vld [vmem:[%s216 + $0x4b8] sm:$0xff]
        %v455 = vld [vmem:[%s216 + $0x4c0] sm:$0xff]
        %v456 = vld [vmem:[%s216 + $0x4c8] sm:$0xff]
        %v457 = vld [vmem:[%s216 + $0x4d0] sm:$0xff]
        %v458 = vld [vmem:[%s216 + $0x4d8] sm:$0xff]
        %v459 = vld [vmem:[%s216 + $0x4e0] sm:$0xff]
        %v460 = vld [vmem:[%s216 + $0x4e8] sm:$0xff]
        %v461 = vld [vmem:[%s216 + $0x4f0] sm:$0xff]
        %v462 = vld [vmem:[%s216 + $0x4f8] sm:$0xff]
        %v463 = vld [vmem:[%s216 + $0x500] sm:$0xff]
        %v464 = vld [vmem:[%s216 + $0x508] sm:$0xff]
        %v465 = vld [vmem:[%s216 + $0x510] sm:$0xff]
        %v466 = vld [vmem:[%s216 + $0x518] sm:$0xff]
        %v467 = vld [vmem:[%s216 + $0x520] sm:$0xff]
        %v468 = vld [vmem:[%s216 + $0x528] sm:$0xff]
        %v469 = vld [vmem:[%s216 + $0x530] sm:$0xff]
        %v470 = vld [vmem:[%s216 + $0x538] sm:$0xff]
        %v471 = vld [vmem:[%s216 + $0x540] sm:$0xff]
        %v472 = vld [vmem:[%s216 + $0x548] sm:$0xff]
        %v473 = vld [vmem:[%s216 + $0x550] sm:$0xff]
        %v474 = vld [vmem:[%s216 + $0x558] sm:$0xff]
        %v475 = vld [vmem:[%s216 + $0x560] sm:$0xff]
        %v476 = vld [vmem:[%s216 + $0x568] sm:$0xff]
        %v477 = vld [vmem:[%s216 + $0x570] sm:$0xff]
        %v478 = vld [vmem:[%s216 + $0x578] sm:$0xff]
        %v479 = vld [vmem:[%s216 + $0x580] sm:$0xff]
        %v480 = vld [vmem:[%s216 + $0x588] sm:$0xff]
        %v481 = vld [vmem:[%s216 + $0x590] sm:$0xff]
        %v482 = vld [vmem:[%s216 + $0x598] sm:$0xff]
        %v483 = vld [vmem:[%s216 + $0x5a0] sm:$0xff]
        %v484 = vld [vmem:[%s216 + $0x5a8] sm:$0xff]
        %v485 = vld [vmem:[%s216 + $0x5b0] sm:$0xff]
        %v486 = vld [vmem:[%s216 + $0x5b8] sm:$0xff]
        %v487 = vld [vmem:[%s216 + $0x5c0] sm:$0xff]
        %v488 = vld [vmem:[%s216 + $0x5c8] sm:$0xff]
        %v489 = vld [vmem:[%s216 + $0x5d0] sm:$0xff]
        %v490 = vld [vmem:[%s216 + $0x5d8] sm:$0xff]
        %v491 = vld [vmem:[%s216 + $0x5e0] sm:$0xff]
        %v492 = vld [vmem:[%s216 + $0x5e8] sm:$0xff]
        %v493 = vld [vmem:[%s216 + $0x5f0] sm:$0xff]
        %v494 = vld [vmem:[%s216 + $0x5f8] sm:$0xff]
        %v495 = vld [vmem:[%s216 + $0x600] sm:$0xff]
        %v496 = vld [vmem:[%s216 + $0x608] sm:$0xff]
        %v497 = vld [vmem:[%s216 + $0x610] sm:$0xff]
        %v498 = vld [vmem:[%s216 + $0x618] sm:$0xff]
        %v499 = vld [vmem:[%s216 + $0x620] sm:$0xff]
        %v500 = vld [vmem:[%s216 + $0x628] sm:$0xff]
        %v501 = vld [vmem:[%s216 + $0x630] sm:$0xff]
        %v502 = vld [vmem:[%s216 + $0x638] sm:$0xff]
        %v503 = vld [vmem:[%s216 + $0x640] sm:$0xff]
        %v504 = vld [vmem:[%s216 + $0x648] sm:$0xff]
        %v505 = vld [vmem:[%s216 + $0x650] sm:$0xff]
        %v506 = vld [vmem:[%s216 + $0x658] sm:$0xff]
        %v507 = vld [vmem:[%s216 + $0x660] sm:$0xff]
        %v508 = vld [vmem:[%s216 + $0x668] sm:$0xff]
        %v509 = vld [vmem:[%s216 + $0x670] sm:$0xff]
        %v510 = vld [vmem:[%s216 + $0x678] sm:$0xff]
        %v511 = vld [vmem:[%s216 + $0x680] sm:$0xff]
        %v512 = vld [vmem:[%s216 + $0x688] sm:$0xff]
        %v513 = vld [vmem:[%s216 + $0x690] sm:$0xff]
        %v514 = vld [vmem:[%s216 + $0x698] sm:$0xff]
        %v515 = vld [vmem:[%s216 + $0x6a0] sm:$0xff]
        %v516 = vld [vmem:[%s216 + $0x6a8] sm:$0xff]
        %v517 = vld [vmem:[%s216 + $0x6b0] sm:$0xff]
        %v518 = vld [vmem:[%s216 + $0x6b8] sm:$0xff]
        %v519 = vld [vmem:[%s216 + $0x6c0] sm:$0xff]
        %v520 = vld [vmem:[%s216 + $0x6c8] sm:$0xff]
        %v521 = vld [vmem:[%s216 + $0x6d0] sm:$0xff]
        %v522 = vld [vmem:[%s216 + $0x6d8] sm:$0xff]
        %v523 = vld [vmem:[%s216 + $0x6e0] sm:$0xff]
        %v524 = vld [vmem:[%s216 + $0x6e8] sm:$0xff]
        %v525 = vld [vmem:[%s216 + $0x6f0] sm:$0xff]
        %v526 = vld [vmem:[%s216 + $0x6f8] sm:$0xff]
        %v527 = vld [vmem:[%s216 + $0x700] sm:$0xff]
        %v528 = vld [vmem:[%s216 + $0x708] sm:$0xff]
        %v529 = vld [vmem:[%s216 + $0x710] sm:$0xff]
        %v530 = vld [vmem:[%s216 + $0x718] sm:$0xff]
        %v531 = vld [vmem:[%s216 + $0x720] sm:$0xff]
        %v532 = vld [vmem:[%s216 + $0x728] sm:$0xff]
        %v533 = vld [vmem:[%s216 + $0x730] sm:$0xff]
        %v534 = vld [vmem:[%s216 + $0x738] sm:$0xff]
        %v535 = vld [vmem:[%s216 + $0x740] sm:$0xff]
        %v536 = vld [vmem:[%s216 + $0x748] sm:$0xff]
        %v537 = vld [vmem:[%s216 + $0x750] sm:$0xff]
        %v538 = vld [vmem:[%s216 + $0x758] sm:$0xff]
        %v539 = vld [vmem:[%s216 + $0x760] sm:$0xff]
        %v540 = vld [vmem:[%s216 + $0x768] sm:$0xff]
        %v541 = vld [vmem:[%s216 + $0x770] sm:$0xff]
        %v542 = vld [vmem:[%s216 + $0x778] sm:$0xff]
        %v543 = vld [vmem:[%s216 + $0x780] sm:$0xff]
        %v544 = vld [vmem:[%s216 + $0x788] sm:$0xff]
        %v545 = vld [vmem:[%s216 + $0x790] sm:$0xff]
        %v546 = vld [vmem:[%s216 + $0x798] sm:$0xff]
        %v547 = vld [vmem:[%s216 + $0x7a0] sm:$0xff]
        %v548 = vld [vmem:[%s216 + $0x7a8] sm:$0xff]
        %v549 = vld [vmem:[%s216 + $0x7b0] sm:$0xff]
        %v550 = vld [vmem:[%s216 + $0x7b8] sm:$0xff]
        %v551 = vld [vmem:[%s216 + $0x7c0] sm:$0xff]
        %v552 = vld [vmem:[%s216 + $0x7c8] sm:$0xff]
        %v553 = vld [vmem:[%s216 + $0x7d0] sm:$0xff]
        %v554 = vld [vmem:[%s216 + $0x7d8] sm:$0xff]
        %v555 = vld [vmem:[%s216 + $0x7e0] sm:$0xff]
        %v556 = vld [vmem:[%s216 + $0x7e8] sm:$0xff]
        %v557 = vld [vmem:[%s216 + $0x7f0] sm:$0xff]
        %v558 = vld [vmem:[%s216 + $0x7f8] sm:$0xff]
        %v559 = vld [vmem:[%s216 + $0x800] sm:$0xff]
        %v560 = vld [vmem:[%s216 + $0x808] sm:$0xff]
        %v561 = vld [vmem:[%s216 + $0x810] sm:$0xff]
        %v562 = vld [vmem:[%s216 + $0x818] sm:$0xff]
        %v563 = vld [vmem:[%s216 + $0x820] sm:$0xff]
        %v564 = vld [vmem:[%s216 + $0x828] sm:$0xff]
        %v565 = vld [vmem:[%s216 + $0x830] sm:$0xff]
        %v566 = vld [vmem:[%s216 + $0x838] sm:$0xff]
        %v567 = vld [vmem:[%s216 + $0x840] sm:$0xff]
        %v568 = vld [vmem:[%s216 + $0x848] sm:$0xff]
        %v569 = vld [vmem:[%s216 + $0x850] sm:$0xff]
        %v570 = vld [vmem:[%s216 + $0x858] sm:$0xff]
        %v571 = vld [vmem:[%s216 + $0x860] sm:$0xff]
        %v572 = vld [vmem:[%s216 + $0x868] sm:$0xff]
        %v573 = vld [vmem:[%s216 + $0x870] sm:$0xff]
        %v574 = vld [vmem:[%s216 + $0x878] sm:$0xff]
        %v575 = vld [vmem:[%s216 + $0x880] sm:$0xff]
        %v576 = vld [vmem:[%s216 + $0x888] sm:$0xff]
        %v577 = vld [vmem:[%s216 + $0x890] sm:$0xff]
        %v578 = vld [vmem:[%s216 + $0x898] sm:$0xff]
        %v579 = vld [vmem:[%s216 + $0x8a0] sm:$0xff]
        %v580 = vld [vmem:[%s216 + $0x8a8] sm:$0xff]
        %v581 = vld [vmem:[%s216 + $0x8b0] sm:$0xff]
        %v582 = vld [vmem:[%s216 + $0x8b8] sm:$0xff]
        %v583 = vld [vmem:[%s216 + $0x8c0] sm:$0xff]
        %v584 = vld [vmem:[%s216 + $0x8c8] sm:$0xff]
        %v585 = vld [vmem:[%s216 + $0x8d0] sm:$0xff]
        %v586 = vld [vmem:[%s216 + $0x8d8] sm:$0xff]
        %v587 = vld [vmem:[%s216 + $0x8e0] sm:$0xff]
        %v588 = vld [vmem:[%s216 + $0x8e8] sm:$0xff]
        %v589 = vld [vmem:[%s216 + $0x8f0] sm:$0xff]
        %v590 = vld [vmem:[%s216 + $0x8f8] sm:$0xff]
        %v591 = vld [vmem:[%s216 + $0x900] sm:$0xff]
        %v592 = vld [vmem:[%s216 + $0x908] sm:$0xff]
        %v593 = vld [vmem:[%s216 + $0x910] sm:$0xff]
        %v594 = vld [vmem:[%s216 + $0x918] sm:$0xff]
        %v595 = vld [vmem:[%s216 + $0x920] sm:$0xff]
        %v596 = vld [vmem:[%s216 + $0x928] sm:$0xff]
        %v597 = vld [vmem:[%s216 + $0x930] sm:$0xff]
        %v598 = vld [vmem:[%s216 + $0x938] sm:$0xff]
        %v599 = vld [vmem:[%s216 + $0x940] sm:$0xff]
        %v600 = vld [vmem:[%s216 + $0x948] sm:$0xff]
        %v601 = vld [vmem:[%s216 + $0x950] sm:$0xff]
        %v602 = vld [vmem:[%s216 + $0x958] sm:$0xff]
        %v603 = vld [vmem:[%s216 + $0x960] sm:$0xff]
        %v604 = vld [vmem:[%s216 + $0x968] sm:$0xff]
        %v605 = vld [vmem:[%s216 + $0x970] sm:$0xff]
        %v606 = vld [vmem:[%s216 + $0x978] sm:$0xff]
        %v607 = vld [vmem:[%s216 + $0x980] sm:$0xff]
        %v608 = vld [vmem:[%s216 + $0x988] sm:$0xff]
        %v609 = vld [vmem:[%s216 + $0x990] sm:$0xff]
        %v610 = vld [vmem:[%s216 + $0x998] sm:$0xff]
        %v611 = vld [vmem:[%s216 + $0x9a0] sm:$0xff]
        %v612 = vld [vmem:[%s216 + $0x9a8] sm:$0xff]
        %v613 = vld [vmem:[%s216 + $0x9b0] sm:$0xff]
        %v614 = vld [vmem:[%s216 + $0x9b8] sm:$0xff]
        %v615 = vld [vmem:[%s216 + $0x9c0] sm:$0xff]
        %v616 = vld [vmem:[%s216 + $0x9c8] sm:$0xff]
        %v617 = vld [vmem:[%s216 + $0x9d0] sm:$0xff]
        %v618 = vld [vmem:[%s216 + $0x9d8] sm:$0xff]
        %v619 = vld [vmem:[%s216 + $0x9e0] sm:$0xff]
        %v620 = vld [vmem:[%s216 + $0x9e8] sm:$0xff]
        %v621 = vld [vmem:[%s216 + $0x9f0] sm:$0xff]
        %v622 = vld [vmem:[%s216 + $0x9f8] sm:$0xff]
        %v623 = vld [vmem:[%s216 + $0xa00] sm:$0xff]
        %v624 = vld [vmem:[%s216 + $0xa08] sm:$0xff]
        %v625 = vld [vmem:[%s216 + $0xa10] sm:$0xff]
        %v626 = vld [vmem:[%s216 + $0xa18] sm:$0xff]
        %v627 = vld [vmem:[%s216 + $0xa20] sm:$0xff]
        %v628 = vld [vmem:[%s216 + $0xa28] sm:$0xff]
        %v629 = vld [vmem:[%s216 + $0xa30] sm:$0xff]
        %v630 = vld [vmem:[%s216 + $0xa38] sm:$0xff]
        %v631 = vld [vmem:[%s216 + $0xa40] sm:$0xff]
        %v632 = vld [vmem:[%s216 + $0xa48] sm:$0xff]
        %v633 = vld [vmem:[%s216 + $0xa50] sm:$0xff]
        %v634 = vld [vmem:[%s216 + $0xa58] sm:$0xff]
        %v635 = vld [vmem:[%s216 + $0xa60] sm:$0xff]
        %v636 = vld [vmem:[%s216 + $0xa68] sm:$0xff]
        %v637 = vld [vmem:[%s216 + $0xa70] sm:$0xff]
        %v638 = vld [vmem:[%s216 + $0xa78] sm:$0xff]
        %v639 = vld [vmem:[%s216 + $0xa80] sm:$0xff]
        %v640 = vld [vmem:[%s216 + $0xa88] sm:$0xff]
        %v641 = vld [vmem:[%s216 + $0xa90] sm:$0xff]
        %v642 = vld [vmem:[%s216 + $0xa98] sm:$0xff]
        %v643 = vld [vmem:[%s216 + $0xaa0] sm:$0xff]
        %v644 = vld [vmem:[%s216 + $0xaa8] sm:$0xff]
        %v645 = vld [vmem:[%s216 + $0xab0] sm:$0xff]
        %v646 = vld [vmem:[%s216 + $0xab8] sm:$0xff]
        %v647 = vld [vmem:[%s216 + $0xac0] sm:$0xff]
        %v648 = vld [vmem:[%s216 + $0xac8] sm:$0xff]
        %v649 = vld [vmem:[%s216 + $0xad0] sm:$0xff]
        %v650 = vld [vmem:[%s216 + $0xad8] sm:$0xff]
        %v651 = vld [vmem:[%s216 + $0xae0] sm:$0xff]
        %v652 = vld [vmem:[%s216 + $0xae8] sm:$0xff]
        %v653 = vld [vmem:[%s216 + $0xaf0] sm:$0xff]
        %v654 = vld [vmem:[%s216 + $0xaf8] sm:$0xff]
        %v655 = vld [vmem:[%s216 + $0xb00] sm:$0xff]
        %v656 = vld [vmem:[%s216 + $0xb08] sm:$0xff]
        %v657 = vld [vmem:[%s216 + $0xb10] sm:$0xff]
        %v658 = vld [vmem:[%s216 + $0xb18] sm:$0xff]
        %v659 = vld [vmem:[%s216 + $0xb20] sm:$0xff]
        %v660 = vld [vmem:[%s216 + $0xb28] sm:$0xff]
        %v661 = vld [vmem:[%s216 + $0xb30] sm:$0xff]
        %v662 = vld [vmem:[%s216 + $0xb38] sm:$0xff]
        %v663 = vld [vmem:[%s216 + $0xb40] sm:$0xff]
        %v664 = vld [vmem:[%s216 + $0xb48] sm:$0xff]
        %v665 = vld [vmem:[%s216 + $0xb50] sm:$0xff]
        %v666 = vld [vmem:[%s216 + $0xb58] sm:$0xff]
        %v667 = vld [vmem:[%s216 + $0xb60] sm:$0xff]
        %v668 = vld [vmem:[%s216 + $0xb68] sm:$0xff]
        %v669 = vld [vmem:[%s216 + $0xb70] sm:$0xff]
        %v670 = vld [vmem:[%s216 + $0xb78] sm:$0xff]
        %v671 = vld [vmem:[%s216 + $0xb80] sm:$0xff]
        %v672 = vld [vmem:[%s216 + $0xb88] sm:$0xff]
        %v673 = vld [vmem:[%s216 + $0xb90] sm:$0xff]
        %v674 = vld [vmem:[%s216 + $0xb98] sm:$0xff]
        %v675 = vld [vmem:[%s216 + $0xba0] sm:$0xff]
        %v676 = vld [vmem:[%s216 + $0xba8] sm:$0xff]
        %v677 = vld [vmem:[%s216 + $0xbb0] sm:$0xff]
        %v678 = vld [vmem:[%s216 + $0xbb8] sm:$0xff]
        %v679 = vld [vmem:[%s216 + $0xbc0] sm:$0xff]
        %v680 = vld [vmem:[%s216 + $0xbc8] sm:$0xff]
        %v681 = vld [vmem:[%s216 + $0xbd0] sm:$0xff]
        %v682 = vld [vmem:[%s216 + $0xbd8] sm:$0xff]
        %v683 = vld [vmem:[%s216 + $0xbe0] sm:$0xff]
        %v684 = vld [vmem:[%s216 + $0xbe8] sm:$0xff]
        %v685 = vld [vmem:[%s216 + $0xbf0] sm:$0xff]
        %v686 = vld [vmem:[%s216 + $0xbf8] sm:$0xff]
        %v687 = vld [vmem:[%s216 + $0xc00] sm:$0xff]
        %v688 = vld [vmem:[%s216 + $0xc08] sm:$0xff]
        %v689 = vld [vmem:[%s216 + $0xc10] sm:$0xff]
        %v690 = vld [vmem:[%s216 + $0xc18] sm:$0xff]
        %v691 = vld [vmem:[%s216 + $0xc20] sm:$0xff]
        %v692 = vld [vmem:[%s216 + $0xc28] sm:$0xff]
        %v693 = vld [vmem:[%s216 + $0xc30] sm:$0xff]
        %v694 = vld [vmem:[%s216 + $0xc38] sm:$0xff]
        %v695 = vld [vmem:[%s216 + $0xc40] sm:$0xff]
        %v696 = vld [vmem:[%s216 + $0xc48] sm:$0xff]
        %v697 = vld [vmem:[%s216 + $0xc50] sm:$0xff]
        %v698 = vld [vmem:[%s216 + $0xc58] sm:$0xff]
        %v699 = vld [vmem:[%s216 + $0xc60] sm:$0xff]
        %v700 = vld [vmem:[%s216 + $0xc68] sm:$0xff]
        %v701 = vld [vmem:[%s216 + $0xc70] sm:$0xff]
        %v702 = vld [vmem:[%s216 + $0xc78] sm:$0xff]
        %v703 = vld [vmem:[%s216 + $0xc80] sm:$0xff]
        %v704 = vld [vmem:[%s216 + $0xc88] sm:$0xff]
        %v705 = vld [vmem:[%s216 + $0xc90] sm:$0xff]
        %v706 = vld [vmem:[%s216 + $0xc98] sm:$0xff]
        %v707 = vld [vmem:[%s216 + $0xca0] sm:$0xff]
        %v708 = vld [vmem:[%s216 + $0xca8] sm:$0xff]
        %v709 = vld [vmem:[%s216 + $0xcb0] sm:$0xff]
        %v710 = vld [vmem:[%s216 + $0xcb8] sm:$0xff]
        %v711 = vld [vmem:[%s216 + $0xcc0] sm:$0xff]
        %v712 = vld [vmem:[%s216 + $0xcc8] sm:$0xff]
        %v713 = vld [vmem:[%s216 + $0xcd0] sm:$0xff]
        %v714 = vld [vmem:[%s216 + $0xcd8] sm:$0xff]
        %v715 = vld [vmem:[%s216 + $0xce0] sm:$0xff]
        %v716 = vld [vmem:[%s216 + $0xce8] sm:$0xff]
        %v717 = vld [vmem:[%s216 + $0xcf0] sm:$0xff]
        %v718 = vld [vmem:[%s216 + $0xcf8] sm:$0xff]
        %v719 = vld [vmem:[%s216 + $0xd00] sm:$0xff]
        %v720 = vld [vmem:[%s216 + $0xd08] sm:$0xff]
        %v721 = vld [vmem:[%s216 + $0xd10] sm:$0xff]
        %v722 = vld [vmem:[%s216 + $0xd18] sm:$0xff]
        %v723 = vld [vmem:[%s216 + $0xd20] sm:$0xff]
        %v724 = vld [vmem:[%s216 + $0xd28] sm:$0xff]
        %v725 = vld [vmem:[%s216 + $0xd30] sm:$0xff]
        %v726 = vld [vmem:[%s216 + $0xd38] sm:$0xff]
        %v727 = vld [vmem:[%s216 + $0xd40] sm:$0xff]
        %v728 = vld [vmem:[%s216 + $0xd48] sm:$0xff]
        %v729 = vld [vmem:[%s216 + $0xd50] sm:$0xff]
        %v730 = vld [vmem:[%s216 + $0xd58] sm:$0xff]
        %v731 = vld [vmem:[%s216 + $0xd60] sm:$0xff]
        %v732 = vld [vmem:[%s216 + $0xd68] sm:$0xff]
        %v733 = vld [vmem:[%s216 + $0xd70] sm:$0xff]
        %v734 = vld [vmem:[%s216 + $0xd78] sm:$0xff]
        %v735 = vld [vmem:[%s216 + $0xd80] sm:$0xff]
        %v736 = vld [vmem:[%s216 + $0xd88] sm:$0xff]
        %v737 = vld [vmem:[%s216 + $0xd90] sm:$0xff]
        %v738 = vld [vmem:[%s216 + $0xd98] sm:$0xff]
        %v739 = vld [vmem:[%s216 + $0xda0] sm:$0xff]
        %v740 = vld [vmem:[%s216 + $0xda8] sm:$0xff]
        %v741 = vld [vmem:[%s216 + $0xdb0] sm:$0xff]
        %v742 = vld [vmem:[%s216 + $0xdb8] sm:$0xff]
        %v743 = vld [vmem:[%s216 + $0xdc0] sm:$0xff]
        %v744 = vld [vmem:[%s216 + $0xdc8] sm:$0xff]
        %v745 = vld [vmem:[%s216 + $0xdd0] sm:$0xff]
        %v746 = vld [vmem:[%s216 + $0xdd8] sm:$0xff]
        %v747 = vld [vmem:[%s216 + $0xde0] sm:$0xff]
        %v748 = vld [vmem:[%s216 + $0xde8] sm:$0xff]
        %v749 = vld [vmem:[%s216 + $0xdf0] sm:$0xff]
        %v750 = vld [vmem:[%s216 + $0xdf8] sm:$0xff]
        %v751 = vld [vmem:[%s216 + $0xe00] sm:$0xff]
        %v752 = vld [vmem:[%s216 + $0xe08] sm:$0xff]
        %v753 = vld [vmem:[%s216 + $0xe10] sm:$0xff]
        %v754 = vld [vmem:[%s216 + $0xe18] sm:$0xff]
        %v755 = vld [vmem:[%s216 + $0xe20] sm:$0xff]
        %v756 = vld [vmem:[%s216 + $0xe28] sm:$0xff]
        %v757 = vld [vmem:[%s216 + $0xe30] sm:$0xff]
        %v758 = vld [vmem:[%s216 + $0xe38] sm:$0xff]
        %v759 = vld [vmem:[%s216 + $0xe40] sm:$0xff]
        %v760 = vld [vmem:[%s216 + $0xe48] sm:$0xff]
        %v761 = vld [vmem:[%s216 + $0xe50] sm:$0xff]
        %v762 = vld [vmem:[%s216 + $0xe58] sm:$0xff]
        %v763 = vld [vmem:[%s216 + $0xe60] sm:$0xff]
        %v764 = vld [vmem:[%s216 + $0xe68] sm:$0xff]
        %v765 = vld [vmem:[%s216 + $0xe70] sm:$0xff]
        %v766 = vld [vmem:[%s216 + $0xe78] sm:$0xff]
        %v767 = vld [vmem:[%s216 + $0xe80] sm:$0xff]
        %v768 = vld [vmem:[%s216 + $0xe88] sm:$0xff]
        %v769 = vld [vmem:[%s216 + $0xe90] sm:$0xff]
        %v770 = vld [vmem:[%s216 + $0xe98] sm:$0xff]
        %v771 = vld [vmem:[%s216 + $0xea0] sm:$0xff]
        %v772 = vld [vmem:[%s216 + $0xea8] sm:$0xff]
        %v773 = vld [vmem:[%s216 + $0xeb0] sm:$0xff]
        %v774 = vld [vmem:[%s216 + $0xeb8] sm:$0xff]
        %v775 = vld [vmem:[%s216 + $0xec0] sm:$0xff]
        %v776 = vld [vmem:[%s216 + $0xec8] sm:$0xff]
        %v777 = vld [vmem:[%s216 + $0xed0] sm:$0xff]
        %v778 = vld [vmem:[%s216 + $0xed8] sm:$0xff]
        %v779 = vld [vmem:[%s216 + $0xee0] sm:$0xff]
        %v780 = vld [vmem:[%s216 + $0xee8] sm:$0xff]
        %v781 = vld [vmem:[%s216 + $0xef0] sm:$0xff]
        %v782 = vld [vmem:[%s216 + $0xef8] sm:$0xff]
        %v783 = vld [vmem:[%s216 + $0xf00] sm:$0xff]
        %v784 = vld [vmem:[%s216 + $0xf08] sm:$0xff]
        %v785 = vld [vmem:[%s216 + $0xf10] sm:$0xff]
        %v786 = vld [vmem:[%s216 + $0xf18] sm:$0xff]
        %v787 = vld [vmem:[%s216 + $0xf20] sm:$0xff]
        %v788 = vld [vmem:[%s216 + $0xf28] sm:$0xff]
        %v789 = vld [vmem:[%s216 + $0xf30] sm:$0xff]
        %v790 = vld [vmem:[%s216 + $0xf38] sm:$0xff]
        %v791 = vld [vmem:[%s216 + $0xf40] sm:$0xff]
        %v792 = vld [vmem:[%s216 + $0xf48] sm:$0xff]
        %v793 = vld [vmem:[%s216 + $0xf50] sm:$0xff]
        %v794 = vld [vmem:[%s216 + $0xf58] sm:$0xff]
        %v795 = vld [vmem:[%s216 + $0xf60] sm:$0xff]
        %v796 = vld [vmem:[%s216 + $0xf68] sm:$0xff]
        %v797 = vld [vmem:[%s216 + $0xf70] sm:$0xff]
        %v798 = vld [vmem:[%s216 + $0xf78] sm:$0xff]
        %v799 = vld [vmem:[%s216 + $0xf80] sm:$0xff]
        %v800 = vld [vmem:[%s216 + $0xf88] sm:$0xff]
        %v801 = vld [vmem:[%s216 + $0xf90] sm:$0xff]
        %v802 = vld [vmem:[%s216 + $0xf98] sm:$0xff]
        %v803 = vld [vmem:[%s216 + $0xfa0] sm:$0xff]
        %v804 = vld [vmem:[%s216 + $0xfa8] sm:$0xff]
        %v805 = vld [vmem:[%s216 + $0xfb0] sm:$0xff]
        %v806 = vld [vmem:[%s216 + $0xfb8] sm:$0xff]
        %v807 = vld [vmem:[%s216 + $0xfc0] sm:$0xff]
        %v808 = vld [vmem:[%s216 + $0xfc8] sm:$0xff]
        %v809 = vld [vmem:[%s216 + $0xfd0] sm:$0xff]
        %v810 = vld [vmem:[%s216 + $0xfd8] sm:$0xff]
        %v811 = vld [vmem:[%s216 + $0xfe0] sm:$0xff]
        %v812 = vld [vmem:[%s216 + $0xfe8] sm:$0xff]
        %v813 = vld [vmem:[%s216 + $0xff0] sm:$0xff]
        %v814 = vld [vmem:[%s216 + $0xff8] sm:$0xff]
        %v823 = vunpack.c.l.b16 %v295
        %v824 = vunpack.c.h.b16 %v295
        %v825 = vunpack.c.l.b16 %v296
        %v826 = vunpack.c.h.b16 %v296
        %v827 = vunpack.c.l.b16 %v297
        %v828 = vunpack.c.h.b16 %v297
        %v829 = vunpack.c.l.b16 %v298
        %v830 = vunpack.c.h.b16 %v298
        %v831 = vunpack.c.l.b16 %v299
        %v832 = vunpack.c.h.b16 %v299
        %v833 = vunpack.c.l.b16 %v300
        %v834 = vunpack.c.h.b16 %v300
        %v835 = vunpack.c.l.b16 %v301
        %v836 = vunpack.c.h.b16 %v301
        %v837 = vunpack.c.l.b16 %v302
        %v838 = vunpack.c.h.b16 %v302
        %v839 = vpack.c.b16 %v823, %v823
        %v840 = vpack.c.b16 %v824, %v824
        %v841 = vpack.c.b16 %v825, %v825
        %v842 = vpack.c.b16 %v826, %v826
        %v843 = vpack.c.b16 %v827, %v827
        %v844 = vpack.c.b16 %v828, %v828
        %v845 = vpack.c.b16 %v829, %v829
        %v846 = vpack.c.b16 %v830, %v830
        %v847 = vpack.c.b16 %v831, %v831
        %v848 = vpack.c.b16 %v832, %v832
        %v849 = vpack.c.b16 %v833, %v833
        %v850 = vpack.c.b16 %v834, %v834
        %v851 = vpack.c.b16 %v835, %v835
        %v852 = vpack.c.b16 %v836, %v836
        %v853 = vpack.c.b16 %v837, %v837
        %v854 = vpack.c.b16 %v838, %v838
        %v1383 = vunpack.c.l.b16 %v303
        %v1384 = vunpack.c.h.b16 %v303
        %v1385 = vunpack.c.l.b16 %v304
        %v1386 = vunpack.c.h.b16 %v304
        %v1387 = vunpack.c.l.b16 %v305
        %v1388 = vunpack.c.h.b16 %v305
        %v1389 = vunpack.c.l.b16 %v306
        %v1390 = vunpack.c.h.b16 %v306
        %v1391 = vunpack.c.l.b16 %v307
        %v1392 = vunpack.c.h.b16 %v307
        %v1393 = vunpack.c.l.b16 %v308
        %v1394 = vunpack.c.h.b16 %v308
        %v1395 = vunpack.c.l.b16 %v309
        %v1396 = vunpack.c.h.b16 %v309
        %v1397 = vunpack.c.l.b16 %v310
        %v1398 = vunpack.c.h.b16 %v310
        %v1399 = vunpack.c.l.b16 %v311
        %v1400 = vunpack.c.h.b16 %v311
        %v1401 = vunpack.c.l.b16 %v312
        %v1402 = vunpack.c.h.b16 %v312
        %v1403 = vunpack.c.l.b16 %v313
        %v1404 = vunpack.c.h.b16 %v313
        %v1405 = vunpack.c.l.b16 %v314
        %v1406 = vunpack.c.h.b16 %v314
        %v1407 = vunpack.c.l.b16 %v315
        %v1408 = vunpack.c.h.b16 %v315
        %v1409 = vunpack.c.l.b16 %v316
        %v1410 = vunpack.c.h.b16 %v316
        %v1411 = vunpack.c.l.b16 %v317
        %v1412 = vunpack.c.h.b16 %v317
        %v1413 = vunpack.c.l.b16 %v318
        %v1414 = vunpack.c.h.b16 %v318
        %v1415 = vunpack.c.l.b16 %v319
        %v1416 = vunpack.c.h.b16 %v319
        %v1417 = vunpack.c.l.b16 %v320
        %v1418 = vunpack.c.h.b16 %v320
        %v1419 = vunpack.c.l.b16 %v321
        %v1420 = vunpack.c.h.b16 %v321
        %v1421 = vunpack.c.l.b16 %v322
        %v1422 = vunpack.c.h.b16 %v322
        %v1423 = vunpack.c.l.b16 %v323
        %v1424 = vunpack.c.h.b16 %v323
        %v1425 = vunpack.c.l.b16 %v324
        %v1426 = vunpack.c.h.b16 %v324
        %v1427 = vunpack.c.l.b16 %v325
        %v1428 = vunpack.c.h.b16 %v325
        %v1429 = vunpack.c.l.b16 %v326
        %v1430 = vunpack.c.h.b16 %v326
        %v1431 = vunpack.c.l.b16 %v327
        %v1432 = vunpack.c.h.b16 %v327
        %v1433 = vunpack.c.l.b16 %v328
        %v1434 = vunpack.c.h.b16 %v328
        %v1435 = vunpack.c.l.b16 %v329
        %v1436 = vunpack.c.h.b16 %v329
        %v1437 = vunpack.c.l.b16 %v330
        %v1438 = vunpack.c.h.b16 %v330
        %v1439 = vunpack.c.l.b16 %v331
        %v1440 = vunpack.c.h.b16 %v331
        %v1441 = vunpack.c.l.b16 %v332
        %v1442 = vunpack.c.h.b16 %v332
        %v1443 = vunpack.c.l.b16 %v333
        %v1444 = vunpack.c.h.b16 %v333
        %v1445 = vunpack.c.l.b16 %v334
        %v1446 = vunpack.c.h.b16 %v334
        %v1447 = vunpack.c.l.b16 %v335
        %v1448 = vunpack.c.h.b16 %v335
        %v1449 = vunpack.c.l.b16 %v336
        %v1450 = vunpack.c.h.b16 %v336
        %v1451 = vunpack.c.l.b16 %v337
        %v1452 = vunpack.c.h.b16 %v337
        %v1453 = vunpack.c.l.b16 %v338
        %v1454 = vunpack.c.h.b16 %v338
        %v1455 = vunpack.c.l.b16 %v339
        %v1456 = vunpack.c.h.b16 %v339
        %v1457 = vunpack.c.l.b16 %v340
        %v1458 = vunpack.c.h.b16 %v340
        %v1459 = vunpack.c.l.b16 %v341
        %v1460 = vunpack.c.h.b16 %v341
        %v1461 = vunpack.c.l.b16 %v342
        %v1462 = vunpack.c.h.b16 %v342
        %v1463 = vunpack.c.l.b16 %v343
        %v1464 = vunpack.c.h.b16 %v343
        %v1465 = vunpack.c.l.b16 %v344
        %v1466 = vunpack.c.h.b16 %v344
        %v1467 = vunpack.c.l.b16 %v345
        %v1468 = vunpack.c.h.b16 %v345
        %v1469 = vunpack.c.l.b16 %v346
        %v1470 = vunpack.c.h.b16 %v346
        %v1471 = vunpack.c.l.b16 %v347
        %v1472 = vunpack.c.h.b16 %v347
        %v1473 = vunpack.c.l.b16 %v348
        %v1474 = vunpack.c.h.b16 %v348
        %v1475 = vunpack.c.l.b16 %v349
        %v1476 = vunpack.c.h.b16 %v349
        %v1477 = vunpack.c.l.b16 %v350
        %v1478 = vunpack.c.h.b16 %v350
        %v1479 = vunpack.c.l.b16 %v351
        %v1480 = vunpack.c.h.b16 %v351
        %v1481 = vunpack.c.l.b16 %v352
        %v1482 = vunpack.c.h.b16 %v352
        %v1483 = vunpack.c.l.b16 %v353
        %v1484 = vunpack.c.h.b16 %v353
        %v1485 = vunpack.c.l.b16 %v354
        %v1486 = vunpack.c.h.b16 %v354
        %v1487 = vunpack.c.l.b16 %v355
        %v1488 = vunpack.c.h.b16 %v355
        %v1489 = vunpack.c.l.b16 %v356
        %v1490 = vunpack.c.h.b16 %v356
        %v1491 = vunpack.c.l.b16 %v357
        %v1492 = vunpack.c.h.b16 %v357
        %v1493 = vunpack.c.l.b16 %v358
        %v1494 = vunpack.c.h.b16 %v358
        %v1495 = vunpack.c.l.b16 %v359
        %v1496 = vunpack.c.h.b16 %v359
        %v1497 = vunpack.c.l.b16 %v360
        %v1498 = vunpack.c.h.b16 %v360
        %v1499 = vunpack.c.l.b16 %v361
        %v1500 = vunpack.c.h.b16 %v361
        %v1501 = vunpack.c.l.b16 %v362
        %v1502 = vunpack.c.h.b16 %v362
        %v1503 = vunpack.c.l.b16 %v363
        %v1504 = vunpack.c.h.b16 %v363
        %v1505 = vunpack.c.l.b16 %v364
        %v1506 = vunpack.c.h.b16 %v364
        %v1507 = vunpack.c.l.b16 %v365
        %v1508 = vunpack.c.h.b16 %v365
        %v1509 = vunpack.c.l.b16 %v366
        %v1510 = vunpack.c.h.b16 %v366
        %v1511 = vunpack.c.l.b16 %v367
        %v1512 = vunpack.c.h.b16 %v367
        %v1513 = vunpack.c.l.b16 %v368
        %v1514 = vunpack.c.h.b16 %v368
        %v1515 = vunpack.c.l.b16 %v369
        %v1516 = vunpack.c.h.b16 %v369
        %v1517 = vunpack.c.l.b16 %v370
        %v1518 = vunpack.c.h.b16 %v370
        %v1519 = vunpack.c.l.b16 %v371
        %v1520 = vunpack.c.h.b16 %v371
        %v1521 = vunpack.c.l.b16 %v372
        %v1522 = vunpack.c.h.b16 %v372
        %v1523 = vunpack.c.l.b16 %v373
        %v1524 = vunpack.c.h.b16 %v373
        %v1525 = vunpack.c.l.b16 %v374
        %v1526 = vunpack.c.h.b16 %v374
        %v1527 = vunpack.c.l.b16 %v375
        %v1528 = vunpack.c.h.b16 %v375
        %v1529 = vunpack.c.l.b16 %v376
        %v1530 = vunpack.c.h.b16 %v376
        %v1531 = vunpack.c.l.b16 %v377
        %v1532 = vunpack.c.h.b16 %v377
        %v1533 = vunpack.c.l.b16 %v378
        %v1534 = vunpack.c.h.b16 %v378
        %v1535 = vunpack.c.l.b16 %v379
        %v1536 = vunpack.c.h.b16 %v379
        %v1537 = vunpack.c.l.b16 %v380
        %v1538 = vunpack.c.h.b16 %v380
        %v1539 = vunpack.c.l.b16 %v381
        %v1540 = vunpack.c.h.b16 %v381
        %v1541 = vunpack.c.l.b16 %v382
        %v1542 = vunpack.c.h.b16 %v382
        %v1543 = vunpack.c.l.b16 %v383
        %v1544 = vunpack.c.h.b16 %v383
        %v1545 = vunpack.c.l.b16 %v384
        %v1546 = vunpack.c.h.b16 %v384
        %v1547 = vunpack.c.l.b16 %v385
        %v1548 = vunpack.c.h.b16 %v385
        %v1549 = vunpack.c.l.b16 %v386
        %v1550 = vunpack.c.h.b16 %v386
        %v1551 = vunpack.c.l.b16 %v387
        %v1552 = vunpack.c.h.b16 %v387
        %v1553 = vunpack.c.l.b16 %v388
        %v1554 = vunpack.c.h.b16 %v388
        %v1555 = vunpack.c.l.b16 %v389
        %v1556 = vunpack.c.h.b16 %v389
        %v1557 = vunpack.c.l.b16 %v390
        %v1558 = vunpack.c.h.b16 %v390
        %v1559 = vunpack.c.l.b16 %v391
        %v1560 = vunpack.c.h.b16 %v391
        %v1561 = vunpack.c.l.b16 %v392
        %v1562 = vunpack.c.h.b16 %v392
        %v1563 = vunpack.c.l.b16 %v393
        %v1564 = vunpack.c.h.b16 %v393
        %v1565 = vunpack.c.l.b16 %v394
        %v1566 = vunpack.c.h.b16 %v394
        %v1567 = vunpack.c.l.b16 %v395
        %v1568 = vunpack.c.h.b16 %v395
        %v1569 = vunpack.c.l.b16 %v396
        %v1570 = vunpack.c.h.b16 %v396
        %v1571 = vunpack.c.l.b16 %v397
        %v1572 = vunpack.c.h.b16 %v397
        %v1573 = vunpack.c.l.b16 %v398
        %v1574 = vunpack.c.h.b16 %v398
        %v1575 = vunpack.c.l.b16 %v399
        %v1576 = vunpack.c.h.b16 %v399
        %v1577 = vunpack.c.l.b16 %v400
        %v1578 = vunpack.c.h.b16 %v400
        %v1579 = vunpack.c.l.b16 %v401
        %v1580 = vunpack.c.h.b16 %v401
        %v1581 = vunpack.c.l.b16 %v402
        %v1582 = vunpack.c.h.b16 %v402
        %v1583 = vunpack.c.l.b16 %v403
        %v1584 = vunpack.c.h.b16 %v403
        %v1585 = vunpack.c.l.b16 %v404
        %v1586 = vunpack.c.h.b16 %v404
        %v1587 = vunpack.c.l.b16 %v405
        %v1588 = vunpack.c.h.b16 %v405
        %v1589 = vunpack.c.l.b16 %v406
        %v1590 = vunpack.c.h.b16 %v406
        %v1591 = vunpack.c.l.b16 %v407
        %v1592 = vunpack.c.h.b16 %v407
        %v1593 = vunpack.c.l.b16 %v408
        %v1594 = vunpack.c.h.b16 %v408
        %v1595 = vunpack.c.l.b16 %v409
        %v1596 = vunpack.c.h.b16 %v409
        %v1597 = vunpack.c.l.b16 %v410
        %v1598 = vunpack.c.h.b16 %v410
        %v1599 = vunpack.c.l.b16 %v411
        %v1600 = vunpack.c.h.b16 %v411
        %v1601 = vunpack.c.l.b16 %v412
        %v1602 = vunpack.c.h.b16 %v412
        %v1603 = vunpack.c.l.b16 %v413
        %v1604 = vunpack.c.h.b16 %v413
        %v1605 = vunpack.c.l.b16 %v414
        %v1606 = vunpack.c.h.b16 %v414
        %v1607 = vunpack.c.l.b16 %v415
        %v1608 = vunpack.c.h.b16 %v415
        %v1609 = vunpack.c.l.b16 %v416
        %v1610 = vunpack.c.h.b16 %v416
        %v1611 = vunpack.c.l.b16 %v417
        %v1612 = vunpack.c.h.b16 %v417
        %v1613 = vunpack.c.l.b16 %v418
        %v1614 = vunpack.c.h.b16 %v418
        %v1615 = vunpack.c.l.b16 %v419
        %v1616 = vunpack.c.h.b16 %v419
        %v1617 = vunpack.c.l.b16 %v420
        %v1618 = vunpack.c.h.b16 %v420
        %v1619 = vunpack.c.l.b16 %v421
        %v1620 = vunpack.c.h.b16 %v421
        %v1621 = vunpack.c.l.b16 %v422
        %v1622 = vunpack.c.h.b16 %v422
        %v1623 = vunpack.c.l.b16 %v423
        %v1624 = vunpack.c.h.b16 %v423
        %v1625 = vunpack.c.l.b16 %v424
        %v1626 = vunpack.c.h.b16 %v424
        %v1627 = vunpack.c.l.b16 %v425
        %v1628 = vunpack.c.h.b16 %v425
        %v1629 = vunpack.c.l.b16 %v426
        %v1630 = vunpack.c.h.b16 %v426
        %v1631 = vunpack.c.l.b16 %v427
        %v1632 = vunpack.c.h.b16 %v427
        %v1633 = vunpack.c.l.b16 %v428
        %v1634 = vunpack.c.h.b16 %v428
        %v1635 = vunpack.c.l.b16 %v429
        %v1636 = vunpack.c.h.b16 %v429
        %v1637 = vunpack.c.l.b16 %v430
        %v1638 = vunpack.c.h.b16 %v430
        %v1639 = vunpack.c.l.b16 %v431
        %v1640 = vunpack.c.h.b16 %v431
        %v1641 = vunpack.c.l.b16 %v432
        %v1642 = vunpack.c.h.b16 %v432
        %v1643 = vunpack.c.l.b16 %v433
        %v1644 = vunpack.c.h.b16 %v433
        %v1645 = vunpack.c.l.b16 %v434
        %v1646 = vunpack.c.h.b16 %v434
        %v1647 = vunpack.c.l.b16 %v435
        %v1648 = vunpack.c.h.b16 %v435
        %v1649 = vunpack.c.l.b16 %v436
        %v1650 = vunpack.c.h.b16 %v436
        %v1651 = vunpack.c.l.b16 %v437
        %v1652 = vunpack.c.h.b16 %v437
        %v1653 = vunpack.c.l.b16 %v438
        %v1654 = vunpack.c.h.b16 %v438
        %v1655 = vunpack.c.l.b16 %v439
        %v1656 = vunpack.c.h.b16 %v439
        %v1657 = vunpack.c.l.b16 %v440
        %v1658 = vunpack.c.h.b16 %v440
        %v1659 = vunpack.c.l.b16 %v441
        %v1660 = vunpack.c.h.b16 %v441
        %v1661 = vunpack.c.l.b16 %v442
        %v1662 = vunpack.c.h.b16 %v442
        %v1663 = vunpack.c.l.b16 %v443
        %v1664 = vunpack.c.h.b16 %v443
        %v1665 = vunpack.c.l.b16 %v444
        %v1666 = vunpack.c.h.b16 %v444
        %v1667 = vunpack.c.l.b16 %v445
        %v1668 = vunpack.c.h.b16 %v445
        %v1669 = vunpack.c.l.b16 %v446
        %v1670 = vunpack.c.h.b16 %v446
        %v1671 = vunpack.c.l.b16 %v447
        %v1672 = vunpack.c.h.b16 %v447
        %v1673 = vunpack.c.l.b16 %v448
        %v1674 = vunpack.c.h.b16 %v448
        %v1675 = vunpack.c.l.b16 %v449
        %v1676 = vunpack.c.h.b16 %v449
        %v1677 = vunpack.c.l.b16 %v450
        %v1678 = vunpack.c.h.b16 %v450
        %v1679 = vunpack.c.l.b16 %v451
        %v1680 = vunpack.c.h.b16 %v451
        %v1681 = vunpack.c.l.b16 %v452
        %v1682 = vunpack.c.h.b16 %v452
        %v1683 = vunpack.c.l.b16 %v453
        %v1684 = vunpack.c.h.b16 %v453
        %v1685 = vunpack.c.l.b16 %v454
        %v1686 = vunpack.c.h.b16 %v454
        %v1687 = vunpack.c.l.b16 %v455
        %v1688 = vunpack.c.h.b16 %v455
        %v1689 = vunpack.c.l.b16 %v456
        %v1690 = vunpack.c.h.b16 %v456
        %v1691 = vunpack.c.l.b16 %v457
        %v1692 = vunpack.c.h.b16 %v457
        %v1693 = vunpack.c.l.b16 %v458
        %v1694 = vunpack.c.h.b16 %v458
        %v1695 = vunpack.c.l.b16 %v459
        %v1696 = vunpack.c.h.b16 %v459
        %v1697 = vunpack.c.l.b16 %v460
        %v1698 = vunpack.c.h.b16 %v460
        %v1699 = vunpack.c.l.b16 %v461
        %v1700 = vunpack.c.h.b16 %v461
        %v1701 = vunpack.c.l.b16 %v462
        %v1702 = vunpack.c.h.b16 %v462
        %v1703 = vunpack.c.l.b16 %v463
        %v1704 = vunpack.c.h.b16 %v463
        %v1705 = vunpack.c.l.b16 %v464
        %v1706 = vunpack.c.h.b16 %v464
        %v1707 = vunpack.c.l.b16 %v465
        %v1708 = vunpack.c.h.b16 %v465
        %v1709 = vunpack.c.l.b16 %v466
        %v1710 = vunpack.c.h.b16 %v466
        %v1711 = vunpack.c.l.b16 %v467
        %v1712 = vunpack.c.h.b16 %v467
        %v1713 = vunpack.c.l.b16 %v468
        %v1714 = vunpack.c.h.b16 %v468
        %v1715 = vunpack.c.l.b16 %v469
        %v1716 = vunpack.c.h.b16 %v469
        %v1717 = vunpack.c.l.b16 %v470
        %v1718 = vunpack.c.h.b16 %v470
        %v1719 = vunpack.c.l.b16 %v471
        %v1720 = vunpack.c.h.b16 %v471
        %v1721 = vunpack.c.l.b16 %v472
        %v1722 = vunpack.c.h.b16 %v472
        %v1723 = vunpack.c.l.b16 %v473
        %v1724 = vunpack.c.h.b16 %v473
        %v1725 = vunpack.c.l.b16 %v474
        %v1726 = vunpack.c.h.b16 %v474
        %v1727 = vunpack.c.l.b16 %v475
        %v1728 = vunpack.c.h.b16 %v475
        %v1729 = vunpack.c.l.b16 %v476
        %v1730 = vunpack.c.h.b16 %v476
        %v1731 = vunpack.c.l.b16 %v477
        %v1732 = vunpack.c.h.b16 %v477
        %v1733 = vunpack.c.l.b16 %v478
        %v1734 = vunpack.c.h.b16 %v478
        %v1735 = vunpack.c.l.b16 %v479
        %v1736 = vunpack.c.h.b16 %v479
        %v1737 = vunpack.c.l.b16 %v480
        %v1738 = vunpack.c.h.b16 %v480
        %v1739 = vunpack.c.l.b16 %v481
        %v1740 = vunpack.c.h.b16 %v481
        %v1741 = vunpack.c.l.b16 %v482
        %v1742 = vunpack.c.h.b16 %v482
        %v1743 = vunpack.c.l.b16 %v483
        %v1744 = vunpack.c.h.b16 %v483
        %v1745 = vunpack.c.l.b16 %v484
        %v1746 = vunpack.c.h.b16 %v484
        %v1747 = vunpack.c.l.b16 %v485
        %v1748 = vunpack.c.h.b16 %v485
        %v1749 = vunpack.c.l.b16 %v486
        %v1750 = vunpack.c.h.b16 %v486
        %v1751 = vunpack.c.l.b16 %v487
        %v1752 = vunpack.c.h.b16 %v487
        %v1753 = vunpack.c.l.b16 %v488
        %v1754 = vunpack.c.h.b16 %v488
        %v1755 = vunpack.c.l.b16 %v489
        %v1756 = vunpack.c.h.b16 %v489
        %v1757 = vunpack.c.l.b16 %v490
        %v1758 = vunpack.c.h.b16 %v490
        %v1759 = vunpack.c.l.b16 %v491
        %v1760 = vunpack.c.h.b16 %v491
        %v1761 = vunpack.c.l.b16 %v492
        %v1762 = vunpack.c.h.b16 %v492
        %v1763 = vunpack.c.l.b16 %v493
        %v1764 = vunpack.c.h.b16 %v493
        %v1765 = vunpack.c.l.b16 %v494
        %v1766 = vunpack.c.h.b16 %v494
        %v1767 = vunpack.c.l.b16 %v495
        %v1768 = vunpack.c.h.b16 %v495
        %v1769 = vunpack.c.l.b16 %v496
        %v1770 = vunpack.c.h.b16 %v496
        %v1771 = vunpack.c.l.b16 %v497
        %v1772 = vunpack.c.h.b16 %v497
        %v1773 = vunpack.c.l.b16 %v498
        %v1774 = vunpack.c.h.b16 %v498
        %v1775 = vunpack.c.l.b16 %v499
        %v1776 = vunpack.c.h.b16 %v499
        %v1777 = vunpack.c.l.b16 %v500
        %v1778 = vunpack.c.h.b16 %v500
        %v1779 = vunpack.c.l.b16 %v501
        %v1780 = vunpack.c.h.b16 %v501
        %v1781 = vunpack.c.l.b16 %v502
        %v1782 = vunpack.c.h.b16 %v502
        %v1783 = vunpack.c.l.b16 %v503
        %v1784 = vunpack.c.h.b16 %v503
        %v1785 = vunpack.c.l.b16 %v504
        %v1786 = vunpack.c.h.b16 %v504
        %v1787 = vunpack.c.l.b16 %v505
        %v1788 = vunpack.c.h.b16 %v505
        %v1789 = vunpack.c.l.b16 %v506
        %v1790 = vunpack.c.h.b16 %v506
        %v1791 = vunpack.c.l.b16 %v507
        %v1792 = vunpack.c.h.b16 %v507
        %v1793 = vunpack.c.l.b16 %v508
        %v1794 = vunpack.c.h.b16 %v508
        %v1795 = vunpack.c.l.b16 %v509
        %v1796 = vunpack.c.h.b16 %v509
        %v1797 = vunpack.c.l.b16 %v510
        %v1798 = vunpack.c.h.b16 %v510
        %v1799 = vunpack.c.l.b16 %v511
        %v1800 = vunpack.c.h.b16 %v511
        %v1801 = vunpack.c.l.b16 %v512
        %v1802 = vunpack.c.h.b16 %v512
        %v1803 = vunpack.c.l.b16 %v513
        %v1804 = vunpack.c.h.b16 %v513
        %v1805 = vunpack.c.l.b16 %v514
        %v1806 = vunpack.c.h.b16 %v514
        %v1807 = vunpack.c.l.b16 %v515
        %v1808 = vunpack.c.h.b16 %v515
        %v1809 = vunpack.c.l.b16 %v516
        %v1810 = vunpack.c.h.b16 %v516
        %v1811 = vunpack.c.l.b16 %v517
        %v1812 = vunpack.c.h.b16 %v517
        %v1813 = vunpack.c.l.b16 %v518
        %v1814 = vunpack.c.h.b16 %v518
        %v1815 = vunpack.c.l.b16 %v519
        %v1816 = vunpack.c.h.b16 %v519
        %v1817 = vunpack.c.l.b16 %v520
        %v1818 = vunpack.c.h.b16 %v520
        %v1819 = vunpack.c.l.b16 %v521
        %v1820 = vunpack.c.h.b16 %v521
        %v1821 = vunpack.c.l.b16 %v522
        %v1822 = vunpack.c.h.b16 %v522
        %v1823 = vunpack.c.l.b16 %v523
        %v1824 = vunpack.c.h.b16 %v523
        %v1825 = vunpack.c.l.b16 %v524
        %v1826 = vunpack.c.h.b16 %v524
        %v1827 = vunpack.c.l.b16 %v525
        %v1828 = vunpack.c.h.b16 %v525
        %v1829 = vunpack.c.l.b16 %v526
        %v1830 = vunpack.c.h.b16 %v526
        %v1831 = vunpack.c.l.b16 %v527
        %v1832 = vunpack.c.h.b16 %v527
        %v1833 = vunpack.c.l.b16 %v528
        %v1834 = vunpack.c.h.b16 %v528
        %v1835 = vunpack.c.l.b16 %v529
        %v1836 = vunpack.c.h.b16 %v529
        %v1837 = vunpack.c.l.b16 %v530
        %v1838 = vunpack.c.h.b16 %v530
        %v1839 = vunpack.c.l.b16 %v531
        %v1840 = vunpack.c.h.b16 %v531
        %v1841 = vunpack.c.l.b16 %v532
        %v1842 = vunpack.c.h.b16 %v532
        %v1843 = vunpack.c.l.b16 %v533
        %v1844 = vunpack.c.h.b16 %v533
        %v1845 = vunpack.c.l.b16 %v534
        %v1846 = vunpack.c.h.b16 %v534
        %v1847 = vunpack.c.l.b16 %v535
        %v1848 = vunpack.c.h.b16 %v535
        %v1849 = vunpack.c.l.b16 %v536
        %v1850 = vunpack.c.h.b16 %v536
        %v1851 = vunpack.c.l.b16 %v537
        %v1852 = vunpack.c.h.b16 %v537
        %v1853 = vunpack.c.l.b16 %v538
        %v1854 = vunpack.c.h.b16 %v538
        %v1855 = vunpack.c.l.b16 %v539
        %v1856 = vunpack.c.h.b16 %v539
        %v1857 = vunpack.c.l.b16 %v540
        %v1858 = vunpack.c.h.b16 %v540
        %v1859 = vunpack.c.l.b16 %v541
        %v1860 = vunpack.c.h.b16 %v541
        %v1861 = vunpack.c.l.b16 %v542
        %v1862 = vunpack.c.h.b16 %v542
        %v1863 = vunpack.c.l.b16 %v543
        %v1864 = vunpack.c.h.b16 %v543
        %v1865 = vunpack.c.l.b16 %v544
        %v1866 = vunpack.c.h.b16 %v544
        %v1867 = vunpack.c.l.b16 %v545
        %v1868 = vunpack.c.h.b16 %v545
        %v1869 = vunpack.c.l.b16 %v546
        %v1870 = vunpack.c.h.b16 %v546
        %v1871 = vunpack.c.l.b16 %v547
        %v1872 = vunpack.c.h.b16 %v547
        %v1873 = vunpack.c.l.b16 %v548
        %v1874 = vunpack.c.h.b16 %v548
        %v1875 = vunpack.c.l.b16 %v549
        %v1876 = vunpack.c.h.b16 %v549
        %v1877 = vunpack.c.l.b16 %v550
        %v1878 = vunpack.c.h.b16 %v550
        %v1879 = vunpack.c.l.b16 %v551
        %v1880 = vunpack.c.h.b16 %v551
        %v1881 = vunpack.c.l.b16 %v552
        %v1882 = vunpack.c.h.b16 %v552
        %v1883 = vunpack.c.l.b16 %v553
        %v1884 = vunpack.c.h.b16 %v553
        %v1885 = vunpack.c.l.b16 %v554
        %v1886 = vunpack.c.h.b16 %v554
        %v1887 = vunpack.c.l.b16 %v555
        %v1888 = vunpack.c.h.b16 %v555
        %v1889 = vunpack.c.l.b16 %v556
        %v1890 = vunpack.c.h.b16 %v556
        %v1891 = vunpack.c.l.b16 %v557
        %v1892 = vunpack.c.h.b16 %v557
        %v1893 = vunpack.c.l.b16 %v558
        %v1894 = vunpack.c.h.b16 %v558
        %v1895 = vunpack.c.l.b16 %v559
        %v1896 = vunpack.c.h.b16 %v559
        %v1897 = vunpack.c.l.b16 %v560
        %v1898 = vunpack.c.h.b16 %v560
        %v1899 = vunpack.c.l.b16 %v561
        %v1900 = vunpack.c.h.b16 %v561
        %v1901 = vunpack.c.l.b16 %v562
        %v1902 = vunpack.c.h.b16 %v562
        %v1903 = vunpack.c.l.b16 %v563
        %v1904 = vunpack.c.h.b16 %v563
        %v1905 = vunpack.c.l.b16 %v564
        %v1906 = vunpack.c.h.b16 %v564
        %v1907 = vunpack.c.l.b16 %v565
        %v1908 = vunpack.c.h.b16 %v565
        %v1909 = vunpack.c.l.b16 %v566
        %v1910 = vunpack.c.h.b16 %v566
        %v1911 = vunpack.c.l.b16 %v567
        %v1912 = vunpack.c.h.b16 %v567
        %v1913 = vunpack.c.l.b16 %v568
        %v1914 = vunpack.c.h.b16 %v568
        %v1915 = vunpack.c.l.b16 %v569
        %v1916 = vunpack.c.h.b16 %v569
        %v1917 = vunpack.c.l.b16 %v570
        %v1918 = vunpack.c.h.b16 %v570
        %v1919 = vunpack.c.l.b16 %v571
        %v1920 = vunpack.c.h.b16 %v571
        %v1921 = vunpack.c.l.b16 %v572
        %v1922 = vunpack.c.h.b16 %v572
        %v1923 = vunpack.c.l.b16 %v573
        %v1924 = vunpack.c.h.b16 %v573
        %v1925 = vunpack.c.l.b16 %v574
        %v1926 = vunpack.c.h.b16 %v574
        %v1927 = vunpack.c.l.b16 %v575
        %v1928 = vunpack.c.h.b16 %v575
        %v1929 = vunpack.c.l.b16 %v576
        %v1930 = vunpack.c.h.b16 %v576
        %v1931 = vunpack.c.l.b16 %v577
        %v1932 = vunpack.c.h.b16 %v577
        %v1933 = vunpack.c.l.b16 %v578
        %v1934 = vunpack.c.h.b16 %v578
        %v1935 = vunpack.c.l.b16 %v579
        %v1936 = vunpack.c.h.b16 %v579
        %v1937 = vunpack.c.l.b16 %v580
        %v1938 = vunpack.c.h.b16 %v580
        %v1939 = vunpack.c.l.b16 %v581
        %v1940 = vunpack.c.h.b16 %v581
        %v1941 = vunpack.c.l.b16 %v582
        %v1942 = vunpack.c.h.b16 %v582
        %v1943 = vunpack.c.l.b16 %v583
        %v1944 = vunpack.c.h.b16 %v583
        %v1945 = vunpack.c.l.b16 %v584
        %v1946 = vunpack.c.h.b16 %v584
        %v1947 = vunpack.c.l.b16 %v585
        %v1948 = vunpack.c.h.b16 %v585
        %v1949 = vunpack.c.l.b16 %v586
        %v1950 = vunpack.c.h.b16 %v586
        %v1951 = vunpack.c.l.b16 %v587
        %v1952 = vunpack.c.h.b16 %v587
        %v1953 = vunpack.c.l.b16 %v588
        %v1954 = vunpack.c.h.b16 %v588
        %v1955 = vunpack.c.l.b16 %v589
        %v1956 = vunpack.c.h.b16 %v589
        %v1957 = vunpack.c.l.b16 %v590
        %v1958 = vunpack.c.h.b16 %v590
        %v1959 = vunpack.c.l.b16 %v591
        %v1960 = vunpack.c.h.b16 %v591
        %v1961 = vunpack.c.l.b16 %v592
        %v1962 = vunpack.c.h.b16 %v592
        %v1963 = vunpack.c.l.b16 %v593
        %v1964 = vunpack.c.h.b16 %v593
        %v1965 = vunpack.c.l.b16 %v594
        %v1966 = vunpack.c.h.b16 %v594
        %v1967 = vunpack.c.l.b16 %v595
        %v1968 = vunpack.c.h.b16 %v595
        %v1969 = vunpack.c.l.b16 %v596
        %v1970 = vunpack.c.h.b16 %v596
        %v1971 = vunpack.c.l.b16 %v597
        %v1972 = vunpack.c.h.b16 %v597
        %v1973 = vunpack.c.l.b16 %v598
        %v1974 = vunpack.c.h.b16 %v598
        %v1975 = vunpack.c.l.b16 %v599
        %v1976 = vunpack.c.h.b16 %v599
        %v1977 = vunpack.c.l.b16 %v600
        %v1978 = vunpack.c.h.b16 %v600
        %v1979 = vunpack.c.l.b16 %v601
        %v1980 = vunpack.c.h.b16 %v601
        %v1981 = vunpack.c.l.b16 %v602
        %v1982 = vunpack.c.h.b16 %v602
        %v1983 = vunpack.c.l.b16 %v603
        %v1984 = vunpack.c.h.b16 %v603
        %v1985 = vunpack.c.l.b16 %v604
        %v1986 = vunpack.c.h.b16 %v604
        %v1987 = vunpack.c.l.b16 %v605
        %v1988 = vunpack.c.h.b16 %v605
        %v1989 = vunpack.c.l.b16 %v606
        %v1990 = vunpack.c.h.b16 %v606
        %v1991 = vunpack.c.l.b16 %v607
        %v1992 = vunpack.c.h.b16 %v607
        %v1993 = vunpack.c.l.b16 %v608
        %v1994 = vunpack.c.h.b16 %v608
        %v1995 = vunpack.c.l.b16 %v609
        %v1996 = vunpack.c.h.b16 %v609
        %v1997 = vunpack.c.l.b16 %v610
        %v1998 = vunpack.c.h.b16 %v610
        %v1999 = vunpack.c.l.b16 %v611
        %v2000 = vunpack.c.h.b16 %v611
        %v2001 = vunpack.c.l.b16 %v612
        %v2002 = vunpack.c.h.b16 %v612
        %v2003 = vunpack.c.l.b16 %v613
        %v2004 = vunpack.c.h.b16 %v613
        %v2005 = vunpack.c.l.b16 %v614
        %v2006 = vunpack.c.h.b16 %v614
        %v2007 = vunpack.c.l.b16 %v615
        %v2008 = vunpack.c.h.b16 %v615
        %v2009 = vunpack.c.l.b16 %v616
        %v2010 = vunpack.c.h.b16 %v616
        %v2011 = vunpack.c.l.b16 %v617
        %v2012 = vunpack.c.h.b16 %v617
        %v2013 = vunpack.c.l.b16 %v618
        %v2014 = vunpack.c.h.b16 %v618
        %v2015 = vunpack.c.l.b16 %v619
        %v2016 = vunpack.c.h.b16 %v619
        %v2017 = vunpack.c.l.b16 %v620
        %v2018 = vunpack.c.h.b16 %v620
        %v2019 = vunpack.c.l.b16 %v621
        %v2020 = vunpack.c.h.b16 %v621
        %v2021 = vunpack.c.l.b16 %v622
        %v2022 = vunpack.c.h.b16 %v622
        %v2023 = vunpack.c.l.b16 %v623
        %v2024 = vunpack.c.h.b16 %v623
        %v2025 = vunpack.c.l.b16 %v624
        %v2026 = vunpack.c.h.b16 %v624
        %v2027 = vunpack.c.l.b16 %v625
        %v2028 = vunpack.c.h.b16 %v625
        %v2029 = vunpack.c.l.b16 %v626
        %v2030 = vunpack.c.h.b16 %v626
        %v2031 = vunpack.c.l.b16 %v627
        %v2032 = vunpack.c.h.b16 %v627
        %v2033 = vunpack.c.l.b16 %v628
        %v2034 = vunpack.c.h.b16 %v628
        %v2035 = vunpack.c.l.b16 %v629
        %v2036 = vunpack.c.h.b16 %v629
        %v2037 = vunpack.c.l.b16 %v630
        %v2038 = vunpack.c.h.b16 %v630
        %v2039 = vunpack.c.l.b16 %v631
        %v2040 = vunpack.c.h.b16 %v631
        %v2041 = vunpack.c.l.b16 %v632
        %v2042 = vunpack.c.h.b16 %v632
        %v2043 = vunpack.c.l.b16 %v633
        %v2044 = vunpack.c.h.b16 %v633
        %v2045 = vunpack.c.l.b16 %v634
        %v2046 = vunpack.c.h.b16 %v634
        %v2047 = vunpack.c.l.b16 %v635
        %v2048 = vunpack.c.h.b16 %v635
        %v2049 = vunpack.c.l.b16 %v636
        %v2050 = vunpack.c.h.b16 %v636
        %v2051 = vunpack.c.l.b16 %v637
        %v2052 = vunpack.c.h.b16 %v637
        %v2053 = vunpack.c.l.b16 %v638
        %v2054 = vunpack.c.h.b16 %v638
        %v2055 = vunpack.c.l.b16 %v639
        %v2056 = vunpack.c.h.b16 %v639
        %v2057 = vunpack.c.l.b16 %v640
        %v2058 = vunpack.c.h.b16 %v640
        %v2059 = vunpack.c.l.b16 %v641
        %v2060 = vunpack.c.h.b16 %v641
        %v2061 = vunpack.c.l.b16 %v642
        %v2062 = vunpack.c.h.b16 %v642
        %v2063 = vunpack.c.l.b16 %v643
        %v2064 = vunpack.c.h.b16 %v643
        %v2065 = vunpack.c.l.b16 %v644
        %v2066 = vunpack.c.h.b16 %v644
        %v2067 = vunpack.c.l.b16 %v645
        %v2068 = vunpack.c.h.b16 %v645
        %v2069 = vunpack.c.l.b16 %v646
        %v2070 = vunpack.c.h.b16 %v646
        %v2071 = vunpack.c.l.b16 %v647
        %v2072 = vunpack.c.h.b16 %v647
        %v2073 = vunpack.c.l.b16 %v648
        %v2074 = vunpack.c.h.b16 %v648
        %v2075 = vunpack.c.l.b16 %v649
        %v2076 = vunpack.c.h.b16 %v649
        %v2077 = vunpack.c.l.b16 %v650
        %v2078 = vunpack.c.h.b16 %v650
        %v2079 = vunpack.c.l.b16 %v651
        %v2080 = vunpack.c.h.b16 %v651
        %v2081 = vunpack.c.l.b16 %v652
        %v2082 = vunpack.c.h.b16 %v652
        %v2083 = vunpack.c.l.b16 %v653
        %v2084 = vunpack.c.h.b16 %v653
        %v2085 = vunpack.c.l.b16 %v654
        %v2086 = vunpack.c.h.b16 %v654
        %v2087 = vunpack.c.l.b16 %v655
        %v2088 = vunpack.c.h.b16 %v655
        %v2089 = vunpack.c.l.b16 %v656
        %v2090 = vunpack.c.h.b16 %v656
        %v2091 = vunpack.c.l.b16 %v657
        %v2092 = vunpack.c.h.b16 %v657
        %v2093 = vunpack.c.l.b16 %v658
        %v2094 = vunpack.c.h.b16 %v658
        %v2095 = vunpack.c.l.b16 %v659
        %v2096 = vunpack.c.h.b16 %v659
        %v2097 = vunpack.c.l.b16 %v660
        %v2098 = vunpack.c.h.b16 %v660
        %v2099 = vunpack.c.l.b16 %v661
        %v2100 = vunpack.c.h.b16 %v661
        %v2101 = vunpack.c.l.b16 %v662
        %v2102 = vunpack.c.h.b16 %v662
        %v2103 = vunpack.c.l.b16 %v663
        %v2104 = vunpack.c.h.b16 %v663
        %v2105 = vunpack.c.l.b16 %v664
        %v2106 = vunpack.c.h.b16 %v664
        %v2107 = vunpack.c.l.b16 %v665
        %v2108 = vunpack.c.h.b16 %v665
        %v2109 = vunpack.c.l.b16 %v666
        %v2110 = vunpack.c.h.b16 %v666
        %v2111 = vunpack.c.l.b16 %v667
        %v2112 = vunpack.c.h.b16 %v667
        %v2113 = vunpack.c.l.b16 %v668
        %v2114 = vunpack.c.h.b16 %v668
        %v2115 = vunpack.c.l.b16 %v669
        %v2116 = vunpack.c.h.b16 %v669
        %v2117 = vunpack.c.l.b16 %v670
        %v2118 = vunpack.c.h.b16 %v670
        %v2119 = vunpack.c.l.b16 %v671
        %v2120 = vunpack.c.h.b16 %v671
        %v2121 = vunpack.c.l.b16 %v672
        %v2122 = vunpack.c.h.b16 %v672
        %v2123 = vunpack.c.l.b16 %v673
        %v2124 = vunpack.c.h.b16 %v673
        %v2125 = vunpack.c.l.b16 %v674
        %v2126 = vunpack.c.h.b16 %v674
        %v2127 = vunpack.c.l.b16 %v675
        %v2128 = vunpack.c.h.b16 %v675
        %v2129 = vunpack.c.l.b16 %v676
        %v2130 = vunpack.c.h.b16 %v676
        %v2131 = vunpack.c.l.b16 %v677
        %v2132 = vunpack.c.h.b16 %v677
        %v2133 = vunpack.c.l.b16 %v678
        %v2134 = vunpack.c.h.b16 %v678
        %v2135 = vunpack.c.l.b16 %v679
        %v2136 = vunpack.c.h.b16 %v679
        %v2137 = vunpack.c.l.b16 %v680
        %v2138 = vunpack.c.h.b16 %v680
        %v2139 = vunpack.c.l.b16 %v681
        %v2140 = vunpack.c.h.b16 %v681
        %v2141 = vunpack.c.l.b16 %v682
        %v2142 = vunpack.c.h.b16 %v682
        %v2143 = vunpack.c.l.b16 %v683
        %v2144 = vunpack.c.h.b16 %v683
        %v2145 = vunpack.c.l.b16 %v684
        %v2146 = vunpack.c.h.b16 %v684
        %v2147 = vunpack.c.l.b16 %v685
        %v2148 = vunpack.c.h.b16 %v685
        %v2149 = vunpack.c.l.b16 %v686
        %v2150 = vunpack.c.h.b16 %v686
        %v2151 = vunpack.c.l.b16 %v687
        %v2152 = vunpack.c.h.b16 %v687
        %v2153 = vunpack.c.l.b16 %v688
        %v2154 = vunpack.c.h.b16 %v688
        %v2155 = vunpack.c.l.b16 %v689
        %v2156 = vunpack.c.h.b16 %v689
        %v2157 = vunpack.c.l.b16 %v690
        %v2158 = vunpack.c.h.b16 %v690
        %v2159 = vunpack.c.l.b16 %v691
        %v2160 = vunpack.c.h.b16 %v691
        %v2161 = vunpack.c.l.b16 %v692
        %v2162 = vunpack.c.h.b16 %v692
        %v2163 = vunpack.c.l.b16 %v693
        %v2164 = vunpack.c.h.b16 %v693
        %v2165 = vunpack.c.l.b16 %v694
        %v2166 = vunpack.c.h.b16 %v694
        %v2167 = vunpack.c.l.b16 %v695
        %v2168 = vunpack.c.h.b16 %v695
        %v2169 = vunpack.c.l.b16 %v696
        %v2170 = vunpack.c.h.b16 %v696
        %v2171 = vunpack.c.l.b16 %v697
        %v2172 = vunpack.c.h.b16 %v697
        %v2173 = vunpack.c.l.b16 %v698
        %v2174 = vunpack.c.h.b16 %v698
        %v2175 = vunpack.c.l.b16 %v699
        %v2176 = vunpack.c.h.b16 %v699
        %v2177 = vunpack.c.l.b16 %v700
        %v2178 = vunpack.c.h.b16 %v700
        %v2179 = vunpack.c.l.b16 %v701
        %v2180 = vunpack.c.h.b16 %v701
        %v2181 = vunpack.c.l.b16 %v702
        %v2182 = vunpack.c.h.b16 %v702
        %v2183 = vunpack.c.l.b16 %v703
        %v2184 = vunpack.c.h.b16 %v703
        %v2185 = vunpack.c.l.b16 %v704
        %v2186 = vunpack.c.h.b16 %v704
        %v2187 = vunpack.c.l.b16 %v705
        %v2188 = vunpack.c.h.b16 %v705
        %v2189 = vunpack.c.l.b16 %v706
        %v2190 = vunpack.c.h.b16 %v706
        %v2191 = vunpack.c.l.b16 %v707
        %v2192 = vunpack.c.h.b16 %v707
        %v2193 = vunpack.c.l.b16 %v708
        %v2194 = vunpack.c.h.b16 %v708
        %v2195 = vunpack.c.l.b16 %v709
        %v2196 = vunpack.c.h.b16 %v709
        %v2197 = vunpack.c.l.b16 %v710
        %v2198 = vunpack.c.h.b16 %v710
        %v2199 = vunpack.c.l.b16 %v711
        %v2200 = vunpack.c.h.b16 %v711
        %v2201 = vunpack.c.l.b16 %v712
        %v2202 = vunpack.c.h.b16 %v712
        %v2203 = vunpack.c.l.b16 %v713
        %v2204 = vunpack.c.h.b16 %v713
        %v2205 = vunpack.c.l.b16 %v714
        %v2206 = vunpack.c.h.b16 %v714
        %v2207 = vunpack.c.l.b16 %v715
        %v2208 = vunpack.c.h.b16 %v715
        %v2209 = vunpack.c.l.b16 %v716
        %v2210 = vunpack.c.h.b16 %v716
        %v2211 = vunpack.c.l.b16 %v717
        %v2212 = vunpack.c.h.b16 %v717
        %v2213 = vunpack.c.l.b16 %v718
        %v2214 = vunpack.c.h.b16 %v718
        %v2215 = vunpack.c.l.b16 %v719
        %v2216 = vunpack.c.h.b16 %v719
        %v2217 = vunpack.c.l.b16 %v720
        %v2218 = vunpack.c.h.b16 %v720
        %v2219 = vunpack.c.l.b16 %v721
        %v2220 = vunpack.c.h.b16 %v721
        %v2221 = vunpack.c.l.b16 %v722
        %v2222 = vunpack.c.h.b16 %v722
        %v2223 = vunpack.c.l.b16 %v723
        %v2224 = vunpack.c.h.b16 %v723
        %v2225 = vunpack.c.l.b16 %v724
        %v2226 = vunpack.c.h.b16 %v724
        %v2227 = vunpack.c.l.b16 %v725
        %v2228 = vunpack.c.h.b16 %v725
        %v2229 = vunpack.c.l.b16 %v726
        %v2230 = vunpack.c.h.b16 %v726
        %v2231 = vunpack.c.l.b16 %v727
        %v2232 = vunpack.c.h.b16 %v727
        %v2233 = vunpack.c.l.b16 %v728
        %v2234 = vunpack.c.h.b16 %v728
        %v2235 = vunpack.c.l.b16 %v729
        %v2236 = vunpack.c.h.b16 %v729
        %v2237 = vunpack.c.l.b16 %v730
        %v2238 = vunpack.c.h.b16 %v730
        %v2239 = vunpack.c.l.b16 %v731
        %v2240 = vunpack.c.h.b16 %v731
        %v2241 = vunpack.c.l.b16 %v732
        %v2242 = vunpack.c.h.b16 %v732
        %v2243 = vunpack.c.l.b16 %v733
        %v2244 = vunpack.c.h.b16 %v733
        %v2245 = vunpack.c.l.b16 %v734
        %v2246 = vunpack.c.h.b16 %v734
        %v2247 = vunpack.c.l.b16 %v735
        %v2248 = vunpack.c.h.b16 %v735
        %v2249 = vunpack.c.l.b16 %v736
        %v2250 = vunpack.c.h.b16 %v736
        %v2251 = vunpack.c.l.b16 %v737
        %v2252 = vunpack.c.h.b16 %v737
        %v2253 = vunpack.c.l.b16 %v738
        %v2254 = vunpack.c.h.b16 %v738
        %v2255 = vunpack.c.l.b16 %v739
        %v2256 = vunpack.c.h.b16 %v739
        %v2257 = vunpack.c.l.b16 %v740
        %v2258 = vunpack.c.h.b16 %v740
        %v2259 = vunpack.c.l.b16 %v741
        %v2260 = vunpack.c.h.b16 %v741
        %v2261 = vunpack.c.l.b16 %v742
        %v2262 = vunpack.c.h.b16 %v742
        %v2263 = vunpack.c.l.b16 %v743
        %v2264 = vunpack.c.h.b16 %v743
        %v2265 = vunpack.c.l.b16 %v744
        %v2266 = vunpack.c.h.b16 %v744
        %v2267 = vunpack.c.l.b16 %v745
        %v2268 = vunpack.c.h.b16 %v745
        %v2269 = vunpack.c.l.b16 %v746
        %v2270 = vunpack.c.h.b16 %v746
        %v2271 = vunpack.c.l.b16 %v747
        %v2272 = vunpack.c.h.b16 %v747
        %v2273 = vunpack.c.l.b16 %v748
        %v2274 = vunpack.c.h.b16 %v748
        %v2275 = vunpack.c.l.b16 %v749
        %v2276 = vunpack.c.h.b16 %v749
        %v2277 = vunpack.c.l.b16 %v750
        %v2278 = vunpack.c.h.b16 %v750
        %v2279 = vunpack.c.l.b16 %v751
        %v2280 = vunpack.c.h.b16 %v751
        %v2281 = vunpack.c.l.b16 %v752
        %v2282 = vunpack.c.h.b16 %v752
        %v2283 = vunpack.c.l.b16 %v753
        %v2284 = vunpack.c.h.b16 %v753
        %v2285 = vunpack.c.l.b16 %v754
        %v2286 = vunpack.c.h.b16 %v754
        %v2287 = vunpack.c.l.b16 %v755
        %v2288 = vunpack.c.h.b16 %v755
        %v2289 = vunpack.c.l.b16 %v756
        %v2290 = vunpack.c.h.b16 %v756
        %v2291 = vunpack.c.l.b16 %v757
        %v2292 = vunpack.c.h.b16 %v757
        %v2293 = vunpack.c.l.b16 %v758
        %v2294 = vunpack.c.h.b16 %v758
        %v2295 = vunpack.c.l.b16 %v759
        %v2296 = vunpack.c.h.b16 %v759
        %v2297 = vunpack.c.l.b16 %v760
        %v2298 = vunpack.c.h.b16 %v760
        %v2299 = vunpack.c.l.b16 %v761
        %v2300 = vunpack.c.h.b16 %v761
        %v2301 = vunpack.c.l.b16 %v762
        %v2302 = vunpack.c.h.b16 %v762
        %v2303 = vunpack.c.l.b16 %v763
        %v2304 = vunpack.c.h.b16 %v763
        %v2305 = vunpack.c.l.b16 %v764
        %v2306 = vunpack.c.h.b16 %v764
        %v2307 = vunpack.c.l.b16 %v765
        %v2308 = vunpack.c.h.b16 %v765
        %v2309 = vunpack.c.l.b16 %v766
        %v2310 = vunpack.c.h.b16 %v766
        %v2311 = vunpack.c.l.b16 %v767
        %v2312 = vunpack.c.h.b16 %v767
        %v2313 = vunpack.c.l.b16 %v768
        %v2314 = vunpack.c.h.b16 %v768
        %v2315 = vunpack.c.l.b16 %v769
        %v2316 = vunpack.c.h.b16 %v769
        %v2317 = vunpack.c.l.b16 %v770
        %v2318 = vunpack.c.h.b16 %v770
        %v2319 = vunpack.c.l.b16 %v771
        %v2320 = vunpack.c.h.b16 %v771
        %v2321 = vunpack.c.l.b16 %v772
        %v2322 = vunpack.c.h.b16 %v772
        %v2323 = vunpack.c.l.b16 %v773
        %v2324 = vunpack.c.h.b16 %v773
        %v2325 = vunpack.c.l.b16 %v774
        %v2326 = vunpack.c.h.b16 %v774
        %v2327 = vunpack.c.l.b16 %v775
        %v2328 = vunpack.c.h.b16 %v775
        %v2329 = vunpack.c.l.b16 %v776
        %v2330 = vunpack.c.h.b16 %v776
        %v2331 = vunpack.c.l.b16 %v777
        %v2332 = vunpack.c.h.b16 %v777
        %v2333 = vunpack.c.l.b16 %v778
        %v2334 = vunpack.c.h.b16 %v778
        %v2335 = vunpack.c.l.b16 %v779
        %v2336 = vunpack.c.h.b16 %v779
        %v2337 = vunpack.c.l.b16 %v780
        %v2338 = vunpack.c.h.b16 %v780
        %v2339 = vunpack.c.l.b16 %v781
        %v2340 = vunpack.c.h.b16 %v781
        %v2341 = vunpack.c.l.b16 %v782
        %v2342 = vunpack.c.h.b16 %v782
        %v2343 = vunpack.c.l.b16 %v783
        %v2344 = vunpack.c.h.b16 %v783
        %v2345 = vunpack.c.l.b16 %v784
        %v2346 = vunpack.c.h.b16 %v784
        %v2347 = vunpack.c.l.b16 %v785
        %v2348 = vunpack.c.h.b16 %v785
        %v2349 = vunpack.c.l.b16 %v786
        %v2350 = vunpack.c.h.b16 %v786
        %v2351 = vunpack.c.l.b16 %v787
        %v2352 = vunpack.c.h.b16 %v787
        %v2353 = vunpack.c.l.b16 %v788
        %v2354 = vunpack.c.h.b16 %v788
        %v2355 = vunpack.c.l.b16 %v789
        %v2356 = vunpack.c.h.b16 %v789
        %v2357 = vunpack.c.l.b16 %v790
        %v2358 = vunpack.c.h.b16 %v790
        %v2359 = vunpack.c.l.b16 %v791
        %v2360 = vunpack.c.h.b16 %v791
        %v2361 = vunpack.c.l.b16 %v792
        %v2362 = vunpack.c.h.b16 %v792
        %v2363 = vunpack.c.l.b16 %v793
        %v2364 = vunpack.c.h.b16 %v793
        %v2365 = vunpack.c.l.b16 %v794
        %v2366 = vunpack.c.h.b16 %v794
        %v2367 = vunpack.c.l.b16 %v795
        %v2368 = vunpack.c.h.b16 %v795
        %v2369 = vunpack.c.l.b16 %v796
        %v2370 = vunpack.c.h.b16 %v796
        %v2371 = vunpack.c.l.b16 %v797
        %v2372 = vunpack.c.h.b16 %v797
        %v2373 = vunpack.c.l.b16 %v798
        %v2374 = vunpack.c.h.b16 %v798
        %v2375 = vunpack.c.l.b16 %v799
        %v2376 = vunpack.c.h.b16 %v799
        %v2377 = vunpack.c.l.b16 %v800
        %v2378 = vunpack.c.h.b16 %v800
        %v2379 = vunpack.c.l.b16 %v801
        %v2380 = vunpack.c.h.b16 %v801
        %v2381 = vunpack.c.l.b16 %v802
        %v2382 = vunpack.c.h.b16 %v802
        %v2383 = vunpack.c.l.b16 %v803
        %v2384 = vunpack.c.h.b16 %v803
        %v2385 = vunpack.c.l.b16 %v804
        %v2386 = vunpack.c.h.b16 %v804
        %v2387 = vunpack.c.l.b16 %v805
        %v2388 = vunpack.c.h.b16 %v805
        %v2389 = vunpack.c.l.b16 %v806
        %v2390 = vunpack.c.h.b16 %v806
        %v2391 = vunpack.c.l.b16 %v807
        %v2392 = vunpack.c.h.b16 %v807
        %v2393 = vunpack.c.l.b16 %v808
        %v2394 = vunpack.c.h.b16 %v808
        %v2395 = vunpack.c.l.b16 %v809
        %v2396 = vunpack.c.h.b16 %v809
        %v2397 = vunpack.c.l.b16 %v810
        %v2398 = vunpack.c.h.b16 %v810
        %v2399 = vunpack.c.l.b16 %v811
        %v2400 = vunpack.c.h.b16 %v811
        %v2401 = vunpack.c.l.b16 %v812
        %v2402 = vunpack.c.h.b16 %v812
        %v2403 = vunpack.c.l.b16 %v813
        %v2404 = vunpack.c.h.b16 %v813
        %v2405 = vunpack.c.l.b16 %v814
        %v2406 = vunpack.c.h.b16 %v814
        %v2407 = vpack.c.b16 %v1387, %v1383
        %v2408 = vpack.c.b16 %v1388, %v1384
        %v2409 = vpack.c.b16 %v1389, %v1385
        %v2410 = vpack.c.b16 %v1390, %v1386
        %v2411 = vpack.c.b16 %v1395, %v1391
        %v2412 = vpack.c.b16 %v1396, %v1392
        %v2413 = vpack.c.b16 %v1397, %v1393
        %v2414 = vpack.c.b16 %v1398, %v1394
        %v2415 = vpack.c.b16 %v1403, %v1399
        %v2416 = vpack.c.b16 %v1404, %v1400
        %v2417 = vpack.c.b16 %v1405, %v1401
        %v2418 = vpack.c.b16 %v1406, %v1402
        %v2419 = vpack.c.b16 %v1411, %v1407
        %v2420 = vpack.c.b16 %v1412, %v1408
        %v2421 = vpack.c.b16 %v1413, %v1409
        %v2422 = vpack.c.b16 %v1414, %v1410
        %v2423 = vpack.c.b16 %v1419, %v1415
        %v2424 = vpack.c.b16 %v1420, %v1416
        %v2425 = vpack.c.b16 %v1421, %v1417
        %v2426 = vpack.c.b16 %v1422, %v1418
        %v2427 = vpack.c.b16 %v1427, %v1423
        %v2428 = vpack.c.b16 %v1428, %v1424
        %v2429 = vpack.c.b16 %v1429, %v1425
        %v2430 = vpack.c.b16 %v1430, %v1426
        %v2431 = vpack.c.b16 %v1435, %v1431
        %v2432 = vpack.c.b16 %v1436, %v1432
        %v2433 = vpack.c.b16 %v1437, %v1433
        %v2434 = vpack.c.b16 %v1438, %v1434
        %v2435 = vpack.c.b16 %v1443, %v1439
        %v2436 = vpack.c.b16 %v1444, %v1440
        %v2437 = vpack.c.b16 %v1445, %v1441
        %v2438 = vpack.c.b16 %v1446, %v1442
        %v2439 = vpack.c.b16 %v1451, %v1447
        %v2440 = vpack.c.b16 %v1452, %v1448
        %v2441 = vpack.c.b16 %v1453, %v1449
        %v2442 = vpack.c.b16 %v1454, %v1450
        %v2443 = vpack.c.b16 %v1459, %v1455
        %v2444 = vpack.c.b16 %v1460, %v1456
        %v2445 = vpack.c.b16 %v1461, %v1457
        %v2446 = vpack.c.b16 %v1462, %v1458
        %v2447 = vpack.c.b16 %v1467, %v1463
        %v2448 = vpack.c.b16 %v1468, %v1464
        %v2449 = vpack.c.b16 %v1469, %v1465
        %v2450 = vpack.c.b16 %v1470, %v1466
        %v2451 = vpack.c.b16 %v1475, %v1471
        %v2452 = vpack.c.b16 %v1476, %v1472
        %v2453 = vpack.c.b16 %v1477, %v1473
        %v2454 = vpack.c.b16 %v1478, %v1474
        %v2455 = vpack.c.b16 %v1483, %v1479
        %v2456 = vpack.c.b16 %v1484, %v1480
        %v2457 = vpack.c.b16 %v1485, %v1481
        %v2458 = vpack.c.b16 %v1486, %v1482
        %v2459 = vpack.c.b16 %v1491, %v1487
        %v2460 = vpack.c.b16 %v1492, %v1488
        %v2461 = vpack.c.b16 %v1493, %v1489
        %v2462 = vpack.c.b16 %v1494, %v1490
        %v2463 = vpack.c.b16 %v1499, %v1495
        %v2464 = vpack.c.b16 %v1500, %v1496
        %v2465 = vpack.c.b16 %v1501, %v1497
        %v2466 = vpack.c.b16 %v1502, %v1498
        %v2467 = vpack.c.b16 %v1507, %v1503
        %v2468 = vpack.c.b16 %v1508, %v1504
        %v2469 = vpack.c.b16 %v1509, %v1505
        %v2470 = vpack.c.b16 %v1510, %v1506
        %v2471 = vpack.c.b16 %v1515, %v1511
        %v2472 = vpack.c.b16 %v1516, %v1512
        %v2473 = vpack.c.b16 %v1517, %v1513
        %v2474 = vpack.c.b16 %v1518, %v1514
        %v2475 = vpack.c.b16 %v1523, %v1519
        %v2476 = vpack.c.b16 %v1524, %v1520
        %v2477 = vpack.c.b16 %v1525, %v1521
        %v2478 = vpack.c.b16 %v1526, %v1522
        %v2479 = vpack.c.b16 %v1531, %v1527
        %v2480 = vpack.c.b16 %v1532, %v1528
        %v2481 = vpack.c.b16 %v1533, %v1529
        %v2482 = vpack.c.b16 %v1534, %v1530
        %v2483 = vpack.c.b16 %v1539, %v1535
        %v2484 = vpack.c.b16 %v1540, %v1536
        %v2485 = vpack.c.b16 %v1541, %v1537
        %v2486 = vpack.c.b16 %v1542, %v1538
        %v2487 = vpack.c.b16 %v1547, %v1543
        %v2488 = vpack.c.b16 %v1548, %v1544
        %v2489 = vpack.c.b16 %v1549, %v1545
        %v2490 = vpack.c.b16 %v1550, %v1546
        %v2491 = vpack.c.b16 %v1555, %v1551
        %v2492 = vpack.c.b16 %v1556, %v1552
        %v2493 = vpack.c.b16 %v1557, %v1553
        %v2494 = vpack.c.b16 %v1558, %v1554
        %v2495 = vpack.c.b16 %v1563, %v1559
        %v2496 = vpack.c.b16 %v1564, %v1560
        %v2497 = vpack.c.b16 %v1565, %v1561
        %v2498 = vpack.c.b16 %v1566, %v1562
        %v2499 = vpack.c.b16 %v1571, %v1567
        %v2500 = vpack.c.b16 %v1572, %v1568
        %v2501 = vpack.c.b16 %v1573, %v1569
        %v2502 = vpack.c.b16 %v1574, %v1570
        %v2503 = vpack.c.b16 %v1579, %v1575
        %v2504 = vpack.c.b16 %v1580, %v1576
        %v2505 = vpack.c.b16 %v1581, %v1577
        %v2506 = vpack.c.b16 %v1582, %v1578
        %v2507 = vpack.c.b16 %v1587, %v1583
        %v2508 = vpack.c.b16 %v1588, %v1584
        %v2509 = vpack.c.b16 %v1589, %v1585
        %v2510 = vpack.c.b16 %v1590, %v1586
        %v2511 = vpack.c.b16 %v1595, %v1591
        %v2512 = vpack.c.b16 %v1596, %v1592
        %v2513 = vpack.c.b16 %v1597, %v1593
        %v2514 = vpack.c.b16 %v1598, %v1594
        %v2515 = vpack.c.b16 %v1603, %v1599
        %v2516 = vpack.c.b16 %v1604, %v1600
        %v2517 = vpack.c.b16 %v1605, %v1601
        %v2518 = vpack.c.b16 %v1606, %v1602
        %v2519 = vpack.c.b16 %v1611, %v1607
        %v2520 = vpack.c.b16 %v1612, %v1608
        %v2521 = vpack.c.b16 %v1613, %v1609
        %v2522 = vpack.c.b16 %v1614, %v1610
        %v2523 = vpack.c.b16 %v1619, %v1615
        %v2524 = vpack.c.b16 %v1620, %v1616
        %v2525 = vpack.c.b16 %v1621, %v1617
        %v2526 = vpack.c.b16 %v1622, %v1618
        %v2527 = vpack.c.b16 %v1627, %v1623
        %v2528 = vpack.c.b16 %v1628, %v1624
        %v2529 = vpack.c.b16 %v1629, %v1625
        %v2530 = vpack.c.b16 %v1630, %v1626
        %v2531 = vpack.c.b16 %v1635, %v1631
        %v2532 = vpack.c.b16 %v1636, %v1632
        %v2533 = vpack.c.b16 %v1637, %v1633
        %v2534 = vpack.c.b16 %v1638, %v1634
        %v2535 = vpack.c.b16 %v1643, %v1639
        %v2536 = vpack.c.b16 %v1644, %v1640
        %v2537 = vpack.c.b16 %v1645, %v1641
        %v2538 = vpack.c.b16 %v1646, %v1642
        %v2539 = vpack.c.b16 %v1651, %v1647
        %v2540 = vpack.c.b16 %v1652, %v1648
        %v2541 = vpack.c.b16 %v1653, %v1649
        %v2542 = vpack.c.b16 %v1654, %v1650
        %v2543 = vpack.c.b16 %v1659, %v1655
        %v2544 = vpack.c.b16 %v1660, %v1656
        %v2545 = vpack.c.b16 %v1661, %v1657
        %v2546 = vpack.c.b16 %v1662, %v1658
        %v2547 = vpack.c.b16 %v1667, %v1663
        %v2548 = vpack.c.b16 %v1668, %v1664
        %v2549 = vpack.c.b16 %v1669, %v1665
        %v2550 = vpack.c.b16 %v1670, %v1666
        %v2551 = vpack.c.b16 %v1675, %v1671
        %v2552 = vpack.c.b16 %v1676, %v1672
        %v2553 = vpack.c.b16 %v1677, %v1673
        %v2554 = vpack.c.b16 %v1678, %v1674
        %v2555 = vpack.c.b16 %v1683, %v1679
        %v2556 = vpack.c.b16 %v1684, %v1680
        %v2557 = vpack.c.b16 %v1685, %v1681
        %v2558 = vpack.c.b16 %v1686, %v1682
        %v2559 = vpack.c.b16 %v1691, %v1687
        %v2560 = vpack.c.b16 %v1692, %v1688
        %v2561 = vpack.c.b16 %v1693, %v1689
        %v2562 = vpack.c.b16 %v1694, %v1690
        %v2563 = vpack.c.b16 %v1699, %v1695
        %v2564 = vpack.c.b16 %v1700, %v1696
        %v2565 = vpack.c.b16 %v1701, %v1697
        %v2566 = vpack.c.b16 %v1702, %v1698
        %v2567 = vpack.c.b16 %v1707, %v1703
        %v2568 = vpack.c.b16 %v1708, %v1704
        %v2569 = vpack.c.b16 %v1709, %v1705
        %v2570 = vpack.c.b16 %v1710, %v1706
        %v2571 = vpack.c.b16 %v1715, %v1711
        %v2572 = vpack.c.b16 %v1716, %v1712
        %v2573 = vpack.c.b16 %v1717, %v1713
        %v2574 = vpack.c.b16 %v1718, %v1714
        %v2575 = vpack.c.b16 %v1723, %v1719
        %v2576 = vpack.c.b16 %v1724, %v1720
        %v2577 = vpack.c.b16 %v1725, %v1721
        %v2578 = vpack.c.b16 %v1726, %v1722
        %v2579 = vpack.c.b16 %v1731, %v1727
        %v2580 = vpack.c.b16 %v1732, %v1728
        %v2581 = vpack.c.b16 %v1733, %v1729
        %v2582 = vpack.c.b16 %v1734, %v1730
        %v2583 = vpack.c.b16 %v1739, %v1735
        %v2584 = vpack.c.b16 %v1740, %v1736
        %v2585 = vpack.c.b16 %v1741, %v1737
        %v2586 = vpack.c.b16 %v1742, %v1738
        %v2587 = vpack.c.b16 %v1747, %v1743
        %v2588 = vpack.c.b16 %v1748, %v1744
        %v2589 = vpack.c.b16 %v1749, %v1745
        %v2590 = vpack.c.b16 %v1750, %v1746
        %v2591 = vpack.c.b16 %v1755, %v1751
        %v2592 = vpack.c.b16 %v1756, %v1752
        %v2593 = vpack.c.b16 %v1757, %v1753
        %v2594 = vpack.c.b16 %v1758, %v1754
        %v2595 = vpack.c.b16 %v1763, %v1759
        %v2596 = vpack.c.b16 %v1764, %v1760
        %v2597 = vpack.c.b16 %v1765, %v1761
        %v2598 = vpack.c.b16 %v1766, %v1762
        %v2599 = vpack.c.b16 %v1771, %v1767
        %v2600 = vpack.c.b16 %v1772, %v1768
        %v2601 = vpack.c.b16 %v1773, %v1769
        %v2602 = vpack.c.b16 %v1774, %v1770
        %v2603 = vpack.c.b16 %v1779, %v1775
        %v2604 = vpack.c.b16 %v1780, %v1776
        %v2605 = vpack.c.b16 %v1781, %v1777
        %v2606 = vpack.c.b16 %v1782, %v1778
        %v2607 = vpack.c.b16 %v1787, %v1783
        %v2608 = vpack.c.b16 %v1788, %v1784
        %v2609 = vpack.c.b16 %v1789, %v1785
        %v2610 = vpack.c.b16 %v1790, %v1786
        %v2611 = vpack.c.b16 %v1795, %v1791
        %v2612 = vpack.c.b16 %v1796, %v1792
        %v2613 = vpack.c.b16 %v1797, %v1793
        %v2614 = vpack.c.b16 %v1798, %v1794
        %v2615 = vpack.c.b16 %v1803, %v1799
        %v2616 = vpack.c.b16 %v1804, %v1800
        %v2617 = vpack.c.b16 %v1805, %v1801
        %v2618 = vpack.c.b16 %v1806, %v1802
        %v2619 = vpack.c.b16 %v1811, %v1807
        %v2620 = vpack.c.b16 %v1812, %v1808
        %v2621 = vpack.c.b16 %v1813, %v1809
        %v2622 = vpack.c.b16 %v1814, %v1810
        %v2623 = vpack.c.b16 %v1819, %v1815
        %v2624 = vpack.c.b16 %v1820, %v1816
        %v2625 = vpack.c.b16 %v1821, %v1817
        %v2626 = vpack.c.b16 %v1822, %v1818
        %v2627 = vpack.c.b16 %v1827, %v1823
        %v2628 = vpack.c.b16 %v1828, %v1824
        %v2629 = vpack.c.b16 %v1829, %v1825
        %v2630 = vpack.c.b16 %v1830, %v1826
        %v2631 = vpack.c.b16 %v1835, %v1831
        %v2632 = vpack.c.b16 %v1836, %v1832
        %v2633 = vpack.c.b16 %v1837, %v1833
        %v2634 = vpack.c.b16 %v1838, %v1834
        %v2635 = vpack.c.b16 %v1843, %v1839
        %v2636 = vpack.c.b16 %v1844, %v1840
        %v2637 = vpack.c.b16 %v1845, %v1841
        %v2638 = vpack.c.b16 %v1846, %v1842
        %v2639 = vpack.c.b16 %v1851, %v1847
        %v2640 = vpack.c.b16 %v1852, %v1848
        %v2641 = vpack.c.b16 %v1853, %v1849
        %v2642 = vpack.c.b16 %v1854, %v1850
        %v2643 = vpack.c.b16 %v1859, %v1855
        %v2644 = vpack.c.b16 %v1860, %v1856
        %v2645 = vpack.c.b16 %v1861, %v1857
        %v2646 = vpack.c.b16 %v1862, %v1858
        %v2647 = vpack.c.b16 %v1867, %v1863
        %v2648 = vpack.c.b16 %v1868, %v1864
        %v2649 = vpack.c.b16 %v1869, %v1865
        %v2650 = vpack.c.b16 %v1870, %v1866
        %v2651 = vpack.c.b16 %v1875, %v1871
        %v2652 = vpack.c.b16 %v1876, %v1872
        %v2653 = vpack.c.b16 %v1877, %v1873
        %v2654 = vpack.c.b16 %v1878, %v1874
        %v2655 = vpack.c.b16 %v1883, %v1879
        %v2656 = vpack.c.b16 %v1884, %v1880
        %v2657 = vpack.c.b16 %v1885, %v1881
        %v2658 = vpack.c.b16 %v1886, %v1882
        %v2659 = vpack.c.b16 %v1891, %v1887
        %v2660 = vpack.c.b16 %v1892, %v1888
        %v2661 = vpack.c.b16 %v1893, %v1889
        %v2662 = vpack.c.b16 %v1894, %v1890
        %v2663 = vpack.c.b16 %v1899, %v1895
        %v2664 = vpack.c.b16 %v1900, %v1896
        %v2665 = vpack.c.b16 %v1901, %v1897
        %v2666 = vpack.c.b16 %v1902, %v1898
        %v2667 = vpack.c.b16 %v1907, %v1903
        %v2668 = vpack.c.b16 %v1908, %v1904
        %v2669 = vpack.c.b16 %v1909, %v1905
        %v2670 = vpack.c.b16 %v1910, %v1906
        %v2671 = vpack.c.b16 %v1915, %v1911
        %v2672 = vpack.c.b16 %v1916, %v1912
        %v2673 = vpack.c.b16 %v1917, %v1913
        %v2674 = vpack.c.b16 %v1918, %v1914
        %v2675 = vpack.c.b16 %v1923, %v1919
        %v2676 = vpack.c.b16 %v1924, %v1920
        %v2677 = vpack.c.b16 %v1925, %v1921
        %v2678 = vpack.c.b16 %v1926, %v1922
        %v2679 = vpack.c.b16 %v1931, %v1927
        %v2680 = vpack.c.b16 %v1932, %v1928
        %v2681 = vpack.c.b16 %v1933, %v1929
        %v2682 = vpack.c.b16 %v1934, %v1930
        %v2683 = vpack.c.b16 %v1939, %v1935
        %v2684 = vpack.c.b16 %v1940, %v1936
        %v2685 = vpack.c.b16 %v1941, %v1937
        %v2686 = vpack.c.b16 %v1942, %v1938
        %v2687 = vpack.c.b16 %v1947, %v1943
        %v2688 = vpack.c.b16 %v1948, %v1944
        %v2689 = vpack.c.b16 %v1949, %v1945
        %v2690 = vpack.c.b16 %v1950, %v1946
        %v2691 = vpack.c.b16 %v1955, %v1951
        %v2692 = vpack.c.b16 %v1956, %v1952
        %v2693 = vpack.c.b16 %v1957, %v1953
        %v2694 = vpack.c.b16 %v1958, %v1954
        %v2695 = vpack.c.b16 %v1963, %v1959
        %v2696 = vpack.c.b16 %v1964, %v1960
        %v2697 = vpack.c.b16 %v1965, %v1961
        %v2698 = vpack.c.b16 %v1966, %v1962
        %v2699 = vpack.c.b16 %v1971, %v1967
        %v2700 = vpack.c.b16 %v1972, %v1968
        %v2701 = vpack.c.b16 %v1973, %v1969
        %v2702 = vpack.c.b16 %v1974, %v1970
        %v2703 = vpack.c.b16 %v1979, %v1975
        %v2704 = vpack.c.b16 %v1980, %v1976
        %v2705 = vpack.c.b16 %v1981, %v1977
        %v2706 = vpack.c.b16 %v1982, %v1978
        %v2707 = vpack.c.b16 %v1987, %v1983
        %v2708 = vpack.c.b16 %v1988, %v1984
        %v2709 = vpack.c.b16 %v1989, %v1985
        %v2710 = vpack.c.b16 %v1990, %v1986
        %v2711 = vpack.c.b16 %v1995, %v1991
        %v2712 = vpack.c.b16 %v1996, %v1992
        %v2713 = vpack.c.b16 %v1997, %v1993
        %v2714 = vpack.c.b16 %v1998, %v1994
        %v2715 = vpack.c.b16 %v2003, %v1999
        %v2716 = vpack.c.b16 %v2004, %v2000
        %v2717 = vpack.c.b16 %v2005, %v2001
        %v2718 = vpack.c.b16 %v2006, %v2002
        %v2719 = vpack.c.b16 %v2011, %v2007
        %v2720 = vpack.c.b16 %v2012, %v2008
        %v2721 = vpack.c.b16 %v2013, %v2009
        %v2722 = vpack.c.b16 %v2014, %v2010
        %v2723 = vpack.c.b16 %v2019, %v2015
        %v2724 = vpack.c.b16 %v2020, %v2016
        %v2725 = vpack.c.b16 %v2021, %v2017
        %v2726 = vpack.c.b16 %v2022, %v2018
        %v2727 = vpack.c.b16 %v2027, %v2023
        %v2728 = vpack.c.b16 %v2028, %v2024
        %v2729 = vpack.c.b16 %v2029, %v2025
        %v2730 = vpack.c.b16 %v2030, %v2026
        %v2731 = vpack.c.b16 %v2035, %v2031
        %v2732 = vpack.c.b16 %v2036, %v2032
        %v2733 = vpack.c.b16 %v2037, %v2033
        %v2734 = vpack.c.b16 %v2038, %v2034
        %v2735 = vpack.c.b16 %v2043, %v2039
        %v2736 = vpack.c.b16 %v2044, %v2040
        %v2737 = vpack.c.b16 %v2045, %v2041
        %v2738 = vpack.c.b16 %v2046, %v2042
        %v2739 = vpack.c.b16 %v2051, %v2047
        %v2740 = vpack.c.b16 %v2052, %v2048
        %v2741 = vpack.c.b16 %v2053, %v2049
        %v2742 = vpack.c.b16 %v2054, %v2050
        %v2743 = vpack.c.b16 %v2059, %v2055
        %v2744 = vpack.c.b16 %v2060, %v2056
        %v2745 = vpack.c.b16 %v2061, %v2057
        %v2746 = vpack.c.b16 %v2062, %v2058
        %v2747 = vpack.c.b16 %v2067, %v2063
        %v2748 = vpack.c.b16 %v2068, %v2064
        %v2749 = vpack.c.b16 %v2069, %v2065
        %v2750 = vpack.c.b16 %v2070, %v2066
        %v2751 = vpack.c.b16 %v2075, %v2071
        %v2752 = vpack.c.b16 %v2076, %v2072
        %v2753 = vpack.c.b16 %v2077, %v2073
        %v2754 = vpack.c.b16 %v2078, %v2074
        %v2755 = vpack.c.b16 %v2083, %v2079
        %v2756 = vpack.c.b16 %v2084, %v2080
        %v2757 = vpack.c.b16 %v2085, %v2081
        %v2758 = vpack.c.b16 %v2086, %v2082
        %v2759 = vpack.c.b16 %v2091, %v2087
        %v2760 = vpack.c.b16 %v2092, %v2088
        %v2761 = vpack.c.b16 %v2093, %v2089
        %v2762 = vpack.c.b16 %v2094, %v2090
        %v2763 = vpack.c.b16 %v2099, %v2095
        %v2764 = vpack.c.b16 %v2100, %v2096
        %v2765 = vpack.c.b16 %v2101, %v2097
        %v2766 = vpack.c.b16 %v2102, %v2098
        %v2767 = vpack.c.b16 %v2107, %v2103
        %v2768 = vpack.c.b16 %v2108, %v2104
        %v2769 = vpack.c.b16 %v2109, %v2105
        %v2770 = vpack.c.b16 %v2110, %v2106
        %v2771 = vpack.c.b16 %v2115, %v2111
        %v2772 = vpack.c.b16 %v2116, %v2112
        %v2773 = vpack.c.b16 %v2117, %v2113
        %v2774 = vpack.c.b16 %v2118, %v2114
        %v2775 = vpack.c.b16 %v2123, %v2119
        %v2776 = vpack.c.b16 %v2124, %v2120
        %v2777 = vpack.c.b16 %v2125, %v2121
        %v2778 = vpack.c.b16 %v2126, %v2122
        %v2779 = vpack.c.b16 %v2131, %v2127
        %v2780 = vpack.c.b16 %v2132, %v2128
        %v2781 = vpack.c.b16 %v2133, %v2129
        %v2782 = vpack.c.b16 %v2134, %v2130
        %v2783 = vpack.c.b16 %v2139, %v2135
        %v2784 = vpack.c.b16 %v2140, %v2136
        %v2785 = vpack.c.b16 %v2141, %v2137
        %v2786 = vpack.c.b16 %v2142, %v2138
        %v2787 = vpack.c.b16 %v2147, %v2143
        %v2788 = vpack.c.b16 %v2148, %v2144
        %v2789 = vpack.c.b16 %v2149, %v2145
        %v2790 = vpack.c.b16 %v2150, %v2146
        %v2791 = vpack.c.b16 %v2155, %v2151
        %v2792 = vpack.c.b16 %v2156, %v2152
        %v2793 = vpack.c.b16 %v2157, %v2153
        %v2794 = vpack.c.b16 %v2158, %v2154
        %v2795 = vpack.c.b16 %v2163, %v2159
        %v2796 = vpack.c.b16 %v2164, %v2160
        %v2797 = vpack.c.b16 %v2165, %v2161
        %v2798 = vpack.c.b16 %v2166, %v2162
        %v2799 = vpack.c.b16 %v2171, %v2167
        %v2800 = vpack.c.b16 %v2172, %v2168
        %v2801 = vpack.c.b16 %v2173, %v2169
        %v2802 = vpack.c.b16 %v2174, %v2170
        %v2803 = vpack.c.b16 %v2179, %v2175
        %v2804 = vpack.c.b16 %v2180, %v2176
        %v2805 = vpack.c.b16 %v2181, %v2177
        %v2806 = vpack.c.b16 %v2182, %v2178
        %v2807 = vpack.c.b16 %v2187, %v2183
        %v2808 = vpack.c.b16 %v2188, %v2184
        %v2809 = vpack.c.b16 %v2189, %v2185
        %v2810 = vpack.c.b16 %v2190, %v2186
        %v2811 = vpack.c.b16 %v2195, %v2191
        %v2812 = vpack.c.b16 %v2196, %v2192
        %v2813 = vpack.c.b16 %v2197, %v2193
        %v2814 = vpack.c.b16 %v2198, %v2194
        %v2815 = vpack.c.b16 %v2203, %v2199
        %v2816 = vpack.c.b16 %v2204, %v2200
        %v2817 = vpack.c.b16 %v2205, %v2201
        %v2818 = vpack.c.b16 %v2206, %v2202
        %v2819 = vpack.c.b16 %v2211, %v2207
        %v2820 = vpack.c.b16 %v2212, %v2208
        %v2821 = vpack.c.b16 %v2213, %v2209
        %v2822 = vpack.c.b16 %v2214, %v2210
        %v2823 = vpack.c.b16 %v2219, %v2215
        %v2824 = vpack.c.b16 %v2220, %v2216
        %v2825 = vpack.c.b16 %v2221, %v2217
        %v2826 = vpack.c.b16 %v2222, %v2218
        %v2827 = vpack.c.b16 %v2227, %v2223
        %v2828 = vpack.c.b16 %v2228, %v2224
        %v2829 = vpack.c.b16 %v2229, %v2225
        %v2830 = vpack.c.b16 %v2230, %v2226
        %v2831 = vpack.c.b16 %v2235, %v2231
        %v2832 = vpack.c.b16 %v2236, %v2232
        %v2833 = vpack.c.b16 %v2237, %v2233
        %v2834 = vpack.c.b16 %v2238, %v2234
        %v2835 = vpack.c.b16 %v2243, %v2239
        %v2836 = vpack.c.b16 %v2244, %v2240
        %v2837 = vpack.c.b16 %v2245, %v2241
        %v2838 = vpack.c.b16 %v2246, %v2242
        %v2839 = vpack.c.b16 %v2251, %v2247
        %v2840 = vpack.c.b16 %v2252, %v2248
        %v2841 = vpack.c.b16 %v2253, %v2249
        %v2842 = vpack.c.b16 %v2254, %v2250
        %v2843 = vpack.c.b16 %v2259, %v2255
        %v2844 = vpack.c.b16 %v2260, %v2256
        %v2845 = vpack.c.b16 %v2261, %v2257
        %v2846 = vpack.c.b16 %v2262, %v2258
        %v2847 = vpack.c.b16 %v2267, %v2263
        %v2848 = vpack.c.b16 %v2268, %v2264
        %v2849 = vpack.c.b16 %v2269, %v2265
        %v2850 = vpack.c.b16 %v2270, %v2266
        %v2851 = vpack.c.b16 %v2275, %v2271
        %v2852 = vpack.c.b16 %v2276, %v2272
        %v2853 = vpack.c.b16 %v2277, %v2273
        %v2854 = vpack.c.b16 %v2278, %v2274
        %v2855 = vpack.c.b16 %v2283, %v2279
        %v2856 = vpack.c.b16 %v2284, %v2280
        %v2857 = vpack.c.b16 %v2285, %v2281
        %v2858 = vpack.c.b16 %v2286, %v2282
        %v2859 = vpack.c.b16 %v2291, %v2287
        %v2860 = vpack.c.b16 %v2292, %v2288
        %v2861 = vpack.c.b16 %v2293, %v2289
        %v2862 = vpack.c.b16 %v2294, %v2290
        %v2863 = vpack.c.b16 %v2299, %v2295
        %v2864 = vpack.c.b16 %v2300, %v2296
        %v2865 = vpack.c.b16 %v2301, %v2297
        %v2866 = vpack.c.b16 %v2302, %v2298
        %v2867 = vpack.c.b16 %v2307, %v2303
        %v2868 = vpack.c.b16 %v2308, %v2304
        %v2869 = vpack.c.b16 %v2309, %v2305
        %v2870 = vpack.c.b16 %v2310, %v2306
        %v2871 = vpack.c.b16 %v2315, %v2311
        %v2872 = vpack.c.b16 %v2316, %v2312
        %v2873 = vpack.c.b16 %v2317, %v2313
        %v2874 = vpack.c.b16 %v2318, %v2314
        %v2875 = vpack.c.b16 %v2323, %v2319
        %v2876 = vpack.c.b16 %v2324, %v2320
        %v2877 = vpack.c.b16 %v2325, %v2321
        %v2878 = vpack.c.b16 %v2326, %v2322
        %v2879 = vpack.c.b16 %v2331, %v2327
        %v2880 = vpack.c.b16 %v2332, %v2328
        %v2881 = vpack.c.b16 %v2333, %v2329
        %v2882 = vpack.c.b16 %v2334, %v2330
        %v2883 = vpack.c.b16 %v2339, %v2335
        %v2884 = vpack.c.b16 %v2340, %v2336
        %v2885 = vpack.c.b16 %v2341, %v2337
        %v2886 = vpack.c.b16 %v2342, %v2338
        %v2887 = vpack.c.b16 %v2347, %v2343
        %v2888 = vpack.c.b16 %v2348, %v2344
        %v2889 = vpack.c.b16 %v2349, %v2345
        %v2890 = vpack.c.b16 %v2350, %v2346
        %v2891 = vpack.c.b16 %v2355, %v2351
        %v2892 = vpack.c.b16 %v2356, %v2352
        %v2893 = vpack.c.b16 %v2357, %v2353
        %v2894 = vpack.c.b16 %v2358, %v2354
        %v2895 = vpack.c.b16 %v2363, %v2359
        %v2896 = vpack.c.b16 %v2364, %v2360
        %v2897 = vpack.c.b16 %v2365, %v2361
        %v2898 = vpack.c.b16 %v2366, %v2362
        %v2899 = vpack.c.b16 %v2371, %v2367
        %v2900 = vpack.c.b16 %v2372, %v2368
        %v2901 = vpack.c.b16 %v2373, %v2369
        %v2902 = vpack.c.b16 %v2374, %v2370
        %v2903 = vpack.c.b16 %v2379, %v2375
        %v2904 = vpack.c.b16 %v2380, %v2376
        %v2905 = vpack.c.b16 %v2381, %v2377
        %v2906 = vpack.c.b16 %v2382, %v2378
        %v2907 = vpack.c.b16 %v2387, %v2383
        %v2908 = vpack.c.b16 %v2388, %v2384
        %v2909 = vpack.c.b16 %v2389, %v2385
        %v2910 = vpack.c.b16 %v2390, %v2386
        %v2911 = vpack.c.b16 %v2395, %v2391
        %v2912 = vpack.c.b16 %v2396, %v2392
        %v2913 = vpack.c.b16 %v2397, %v2393
        %v2914 = vpack.c.b16 %v2398, %v2394
        %v2915 = vpack.c.b16 %v2403, %v2399
        %v2916 = vpack.c.b16 %v2404, %v2400
        %v2917 = vpack.c.b16 %v2405, %v2401
        %v2918 = vpack.c.b16 %v2406, %v2402
        %3431 = vmatprep.subr.bf16.mxu0 %v2408
        %3432 = vmatpush1.bf16.msra.mxu0 %v2407
        %3433 = vmatprep.subr.bf16.mxu0 %v2412
        %3434 = vmatpush1.bf16.msra.mxu0 %v2411
        %3435 = vmatprep.subr.bf16.mxu0 %v2416
        %3436 = vmatpush1.bf16.msra.mxu0 %v2415
        %3437 = vmatprep.subr.bf16.mxu0 %v2420
        %3438 = vmatpush1.bf16.msra.mxu0 %v2419
        %3439 = vmatprep.subr.bf16.mxu0 %v2424
        %3440 = vmatpush1.bf16.msra.mxu0 %v2423
        %3441 = vmatprep.subr.bf16.mxu0 %v2428
        %3442 = vmatpush1.bf16.msra.mxu0 %v2427
        %3443 = vmatprep.subr.bf16.mxu0 %v2432
        %3444 = vmatpush1.bf16.msra.mxu0 %v2431
        %3445 = vmatprep.subr.bf16.mxu0 %v2436
        %3446 = vmatpush1.bf16.msra.mxu0 %v2435
        %3447 = vmatprep.subr.bf16.mxu0 %v2440
        %3448 = vmatpush1.bf16.msra.mxu0 %v2439
        %3449 = vmatprep.subr.bf16.mxu0 %v2444
        %3450 = vmatpush1.bf16.msra.mxu0 %v2443
        %3451 = vmatprep.subr.bf16.mxu0 %v2448
        %3452 = vmatpush1.bf16.msra.mxu0 %v2447
        %3453 = vmatprep.subr.bf16.mxu0 %v2452
        %3454 = vmatpush1.bf16.msra.mxu0 %v2451
        %3455 = vmatprep.subr.bf16.mxu0 %v2456
        %3456 = vmatpush1.bf16.msra.mxu0 %v2455
        %3457 = vmatprep.subr.bf16.mxu0 %v2460
        %3458 = vmatpush1.bf16.msra.mxu0 %v2459
        %3459 = vmatprep.subr.bf16.mxu0 %v2464
        %3460 = vmatpush1.bf16.msra.mxu0 %v2463
        %3461 = vmatprep.subr.bf16.mxu0 %v2468
        %3462 = vmatpush1.bf16.msra.mxu0 %v2467
        %3463 = vmatprep.mubr.bf16.mxu0 %v840
        %3464 = vmatmul.mubr.bf16.gmra.mrb[0].mxu0 %v839
        %v3465 = vpop.f32.mrb[0].mxu0
        %v3466 = vadd.f32 0.0, %v3465
        %v3467 = vpop.f32.mrb[0].mxu0
        %v3468 = vadd.f32 0.0, %v3467
        %v3469 = vpop.f32.mrb[0].mxu0
        %v3470 = vpop.f32.mrb[0].mxu0
        %3471 = vdwg.mxu0
        %3472 = vmatprep.subr.bf16.mxu0 %v2472
        %3473 = vmatpush1.bf16.msra.mxu0 %v2471
        %3474 = vmatprep.subr.bf16.mxu0 %v2476
        %3475 = vmatpush1.bf16.msra.mxu0 %v2475
        %3476 = vmatprep.subr.bf16.mxu0 %v2480
        %3477 = vmatpush1.bf16.msra.mxu0 %v2479
        %3478 = vmatprep.subr.bf16.mxu0 %v2484
        %3479 = vmatpush1.bf16.msra.mxu0 %v2483
        %3480 = vmatprep.subr.bf16.mxu0 %v2488
        %3481 = vmatpush1.bf16.msra.mxu0 %v2487
        %3482 = vmatprep.subr.bf16.mxu0 %v2492
        %3483 = vmatpush1.bf16.msra.mxu0 %v2491
        %3484 = vmatprep.subr.bf16.mxu0 %v2496
        %3485 = vmatpush1.bf16.msra.mxu0 %v2495
        %3486 = vmatprep.subr.bf16.mxu0 %v2500
        %3487 = vmatpush1.bf16.msra.mxu0 %v2499
        %3488 = vmatprep.subr.bf16.mxu0 %v2504
        %3489 = vmatpush1.bf16.msra.mxu0 %v2503
        %3490 = vmatprep.subr.bf16.mxu0 %v2508
        %3491 = vmatpush1.bf16.msra.mxu0 %v2507
        %3492 = vmatprep.subr.bf16.mxu0 %v2512
        %3493 = vmatpush1.bf16.msra.mxu0 %v2511
        %3494 = vmatprep.subr.bf16.mxu0 %v2516
        %3495 = vmatpush1.bf16.msra.mxu0 %v2515
        %3496 = vmatprep.subr.bf16.mxu0 %v2520
        %3497 = vmatpush1.bf16.msra.mxu0 %v2519
        %3498 = vmatprep.subr.bf16.mxu0 %v2524
        %3499 = vmatpush1.bf16.msra.mxu0 %v2523
        %3500 = vmatprep.subr.bf16.mxu0 %v2528
        %3501 = vmatpush1.bf16.msra.mxu0 %v2527
        %3502 = vmatprep.subr.bf16.mxu0 %v2532
        %3503 = vmatpush1.bf16.msra.mxu0 %v2531
        %3504 = vmatprep.mubr.bf16.mxu0 %v842
        %3505 = vmatmul.mubr.bf16.gmra.mrb[0].mxu0 %v841
        %v3506 = vpop.f32.mrb[0].mxu0
        %v3507 = vadd.f32 %v3466, %v3506
        %v3508 = vpop.f32.mrb[0].mxu0
        %v3509 = vadd.f32 %v3468, %v3508
        %v3510 = vpop.f32.mrb[0].mxu0
        %v3511 = vpop.f32.mrb[0].mxu0
        %3512 = vdwg.mxu0
        %3513 = vmatprep.subr.bf16.mxu0 %v2536
        %3514 = vmatpush1.bf16.msra.mxu0 %v2535
        %3515 = vmatprep.subr.bf16.mxu0 %v2540
        %3516 = vmatpush1.bf16.msra.mxu0 %v2539
        %3517 = vmatprep.subr.bf16.mxu0 %v2544
        %3518 = vmatpush1.bf16.msra.mxu0 %v2543
        %3519 = vmatprep.subr.bf16.mxu0 %v2548
        %3520 = vmatpush1.bf16.msra.mxu0 %v2547
        %3521 = vmatprep.subr.bf16.mxu0 %v2552
        %3522 = vmatpush1.bf16.msra.mxu0 %v2551
        %3523 = vmatprep.subr.bf16.mxu0 %v2556
        %3524 = vmatpush1.bf16.msra.mxu0 %v2555
        %3525 = vmatprep.subr.bf16.mxu0 %v2560
        %3526 = vmatpush1.bf16.msra.mxu0 %v2559
        %3527 = vmatprep.subr.bf16.mxu0 %v2564
        %3528 = vmatpush1.bf16.msra.mxu0 %v2563
        %3529 = vmatprep.subr.bf16.mxu0 %v2568
        %3530 = vmatpush1.bf16.msra.mxu0 %v2567
        %3531 = vmatprep.subr.bf16.mxu0 %v2572
        %3532 = vmatpush1.bf16.msra.mxu0 %v2571
        %3533 = vmatprep.subr.bf16.mxu0 %v2576
        %3534 = vmatpush1.bf16.msra.mxu0 %v2575
        %3535 = vmatprep.subr.bf16.mxu0 %v2580
        %3536 = vmatpush1.bf16.msra.mxu0 %v2579
        %3537 = vmatprep.subr.bf16.mxu0 %v2584
        %3538 = vmatpush1.bf16.msra.mxu0 %v2583
        %3539 = vmatprep.subr.bf16.mxu0 %v2588
        %3540 = vmatpush1.bf16.msra.mxu0 %v2587
        %3541 = vmatprep.subr.bf16.mxu0 %v2592
        %3542 = vmatpush1.bf16.msra.mxu0 %v2591
        %3543 = vmatprep.subr.bf16.mxu0 %v2596
        %3544 = vmatpush1.bf16.msra.mxu0 %v2595
        %3545 = vmatprep.mubr.bf16.mxu0 %v844
        %3546 = vmatmul.mubr.bf16.gmra.mrb[0].mxu0 %v843
        %v3547 = vpop.f32.mrb[0].mxu0
        %v3548 = vadd.f32 %v3507, %v3547
        %v3549 = vpop.f32.mrb[0].mxu0
        %v3550 = vadd.f32 %v3509, %v3549
        %v3551 = vpop.f32.mrb[0].mxu0
        %v3552 = vpop.f32.mrb[0].mxu0
        %3553 = vdwg.mxu0
        %3554 = vmatprep.subr.bf16.mxu0 %v2600
        %3555 = vmatpush1.bf16.msra.mxu0 %v2599
        %3556 = vmatprep.subr.bf16.mxu0 %v2604
        %3557 = vmatpush1.bf16.msra.mxu0 %v2603
        %3558 = vmatprep.subr.bf16.mxu0 %v2608
        %3559 = vmatpush1.bf16.msra.mxu0 %v2607
        %3560 = vmatprep.subr.bf16.mxu0 %v2612
        %3561 = vmatpush1.bf16.msra.mxu0 %v2611
        %3562 = vmatprep.subr.bf16.mxu0 %v2616
        %3563 = vmatpush1.bf16.msra.mxu0 %v2615
        %3564 = vmatprep.subr.bf16.mxu0 %v2620
        %3565 = vmatpush1.bf16.msra.mxu0 %v2619
        %3566 = vmatprep.subr.bf16.mxu0 %v2624
        %3567 = vmatpush1.bf16.msra.mxu0 %v2623
        %3568 = vmatprep.subr.bf16.mxu0 %v2628
        %3569 = vmatpush1.bf16.msra.mxu0 %v2627
        %3570 = vmatprep.subr.bf16.mxu0 %v2632
        %3571 = vmatpush1.bf16.msra.mxu0 %v2631
        %3572 = vmatprep.subr.bf16.mxu0 %v2636
        %3573 = vmatpush1.bf16.msra.mxu0 %v2635
        %3574 = vmatprep.subr.bf16.mxu0 %v2640
        %3575 = vmatpush1.bf16.msra.mxu0 %v2639
        %3576 = vmatprep.subr.bf16.mxu0 %v2644
        %3577 = vmatpush1.bf16.msra.mxu0 %v2643
        %3578 = vmatprep.subr.bf16.mxu0 %v2648
        %3579 = vmatpush1.bf16.msra.mxu0 %v2647
        %3580 = vmatprep.subr.bf16.mxu0 %v2652
        %3581 = vmatpush1.bf16.msra.mxu0 %v2651
        %3582 = vmatprep.subr.bf16.mxu0 %v2656
        %3583 = vmatpush1.bf16.msra.mxu0 %v2655
        %3584 = vmatprep.subr.bf16.mxu0 %v2660
        %3585 = vmatpush1.bf16.msra.mxu0 %v2659
        %3586 = vmatprep.mubr.bf16.mxu0 %v846
        %3587 = vmatmul.mubr.bf16.gmra.mrb[0].mxu0 %v845
        %v3588 = vpop.f32.mrb[0].mxu0
        %v3589 = vadd.f32 %v3548, %v3588
        %v3590 = vpop.f32.mrb[0].mxu0
        %v3591 = vadd.f32 %v3550, %v3590
        %v3592 = vpop.f32.mrb[0].mxu0
        %v3593 = vpop.f32.mrb[0].mxu0
        %3594 = vdwg.mxu0
        %3595 = vmatprep.subr.bf16.mxu0 %v2664
        %3596 = vmatpush1.bf16.msra.mxu0 %v2663
        %3597 = vmatprep.subr.bf16.mxu0 %v2668
        %3598 = vmatpush1.bf16.msra.mxu0 %v2667
        %3599 = vmatprep.subr.bf16.mxu0 %v2672
        %3600 = vmatpush1.bf16.msra.mxu0 %v2671
        %3601 = vmatprep.subr.bf16.mxu0 %v2676
        %3602 = vmatpush1.bf16.msra.mxu0 %v2675
        %3603 = vmatprep.subr.bf16.mxu0 %v2680
        %3604 = vmatpush1.bf16.msra.mxu0 %v2679
        %3605 = vmatprep.subr.bf16.mxu0 %v2684
        %3606 = vmatpush1.bf16.msra.mxu0 %v2683
        %3607 = vmatprep.subr.bf16.mxu0 %v2688
        %3608 = vmatpush1.bf16.msra.mxu0 %v2687
        %3609 = vmatprep.subr.bf16.mxu0 %v2692
        %3610 = vmatpush1.bf16.msra.mxu0 %v2691
        %3611 = vmatprep.subr.bf16.mxu0 %v2696
        %3612 = vmatpush1.bf16.msra.mxu0 %v2695
        %3613 = vmatprep.subr.bf16.mxu0 %v2700
        %3614 = vmatpush1.bf16.msra.mxu0 %v2699
        %3615 = vmatprep.subr.bf16.mxu0 %v2704
        %3616 = vmatpush1.bf16.msra.mxu0 %v2703
        %3617 = vmatprep.subr.bf16.mxu0 %v2708
        %3618 = vmatpush1.bf16.msra.mxu0 %v2707
        %3619 = vmatprep.subr.bf16.mxu0 %v2712
        %3620 = vmatpush1.bf16.msra.mxu0 %v2711
        %3621 = vmatprep.subr.bf16.mxu0 %v2716
        %3622 = vmatpush1.bf16.msra.mxu0 %v2715
        %3623 = vmatprep.subr.bf16.mxu0 %v2720
        %3624 = vmatpush1.bf16.msra.mxu0 %v2719
        %3625 = vmatprep.subr.bf16.mxu0 %v2724
        %3626 = vmatpush1.bf16.msra.mxu0 %v2723
        %3627 = vmatprep.mubr.bf16.mxu0 %v848
        %3628 = vmatmul.mubr.bf16.gmra.mrb[0].mxu0 %v847
        %v3629 = vpop.f32.mrb[0].mxu0
        %v3630 = vadd.f32 %v3589, %v3629
        %v3631 = vpop.f32.mrb[0].mxu0
        %v3632 = vadd.f32 %v3591, %v3631
        %v3633 = vpop.f32.mrb[0].mxu0
        %v3634 = vpop.f32.mrb[0].mxu0
        %3635 = vdwg.mxu0
        %3636 = vmatprep.subr.bf16.mxu0 %v2728
        %3637 = vmatpush1.bf16.msra.mxu0 %v2727
        %3638 = vmatprep.subr.bf16.mxu0 %v2732
        %3639 = vmatpush1.bf16.msra.mxu0 %v2731
        %3640 = vmatprep.subr.bf16.mxu0 %v2736
        %3641 = vmatpush1.bf16.msra.mxu0 %v2735
        %3642 = vmatprep.subr.bf16.mxu0 %v2740
        %3643 = vmatpush1.bf16.msra.mxu0 %v2739
        %3644 = vmatprep.subr.bf16.mxu0 %v2744
        %3645 = vmatpush1.bf16.msra.mxu0 %v2743
        %3646 = vmatprep.subr.bf16.mxu0 %v2748
        %3647 = vmatpush1.bf16.msra.mxu0 %v2747
        %3648 = vmatprep.subr.bf16.mxu0 %v2752
        %3649 = vmatpush1.bf16.msra.mxu0 %v2751
        %3650 = vmatprep.subr.bf16.mxu0 %v2756
        %3651 = vmatpush1.bf16.msra.mxu0 %v2755
        %3652 = vmatprep.subr.bf16.mxu0 %v2760
        %3653 = vmatpush1.bf16.msra.mxu0 %v2759
        %3654 = vmatprep.subr.bf16.mxu0 %v2764
        %3655 = vmatpush1.bf16.msra.mxu0 %v2763
        %3656 = vmatprep.subr.bf16.mxu0 %v2768
        %3657 = vmatpush1.bf16.msra.mxu0 %v2767
        %3658 = vmatprep.subr.bf16.mxu0 %v2772
        %3659 = vmatpush1.bf16.msra.mxu0 %v2771
        %3660 = vmatprep.subr.bf16.mxu0 %v2776
        %3661 = vmatpush1.bf16.msra.mxu0 %v2775
        %3662 = vmatprep.subr.bf16.mxu0 %v2780
        %3663 = vmatpush1.bf16.msra.mxu0 %v2779
        %3664 = vmatprep.subr.bf16.mxu0 %v2784
        %3665 = vmatpush1.bf16.msra.mxu0 %v2783
        %3666 = vmatprep.subr.bf16.mxu0 %v2788
        %3667 = vmatpush1.bf16.msra.mxu0 %v2787
        %3668 = vmatprep.mubr.bf16.mxu0 %v850
        %3669 = vmatmul.mubr.bf16.gmra.mrb[0].mxu0 %v849
        %v3670 = vpop.f32.mrb[0].mxu0
        %v3671 = vadd.f32 %v3630, %v3670
        %v3672 = vpop.f32.mrb[0].mxu0
        %v3673 = vadd.f32 %v3632, %v3672
        %v3674 = vpop.f32.mrb[0].mxu0
        %v3675 = vpop.f32.mrb[0].mxu0
        %3676 = vdwg.mxu0
        %3677 = vmatprep.subr.bf16.mxu0 %v2792
        %3678 = vmatpush1.bf16.msra.mxu0 %v2791
        %3679 = vmatprep.subr.bf16.mxu0 %v2796
        %3680 = vmatpush1.bf16.msra.mxu0 %v2795
        %3681 = vmatprep.subr.bf16.mxu0 %v2800
        %3682 = vmatpush1.bf16.msra.mxu0 %v2799
        %3683 = vmatprep.subr.bf16.mxu0 %v2804
        %3684 = vmatpush1.bf16.msra.mxu0 %v2803
        %3685 = vmatprep.subr.bf16.mxu0 %v2808
        %3686 = vmatpush1.bf16.msra.mxu0 %v2807
        %3687 = vmatprep.subr.bf16.mxu0 %v2812
        %3688 = vmatpush1.bf16.msra.mxu0 %v2811
        %3689 = vmatprep.subr.bf16.mxu0 %v2816
        %3690 = vmatpush1.bf16.msra.mxu0 %v2815
        %3691 = vmatprep.subr.bf16.mxu0 %v2820
        %3692 = vmatpush1.bf16.msra.mxu0 %v2819
        %3693 = vmatprep.subr.bf16.mxu0 %v2824
        %3694 = vmatpush1.bf16.msra.mxu0 %v2823
        %3695 = vmatprep.subr.bf16.mxu0 %v2828
        %3696 = vmatpush1.bf16.msra.mxu0 %v2827
        %3697 = vmatprep.subr.bf16.mxu0 %v2832
        %3698 = vmatpush1.bf16.msra.mxu0 %v2831
        %3699 = vmatprep.subr.bf16.mxu0 %v2836
        %3700 = vmatpush1.bf16.msra.mxu0 %v2835
        %3701 = vmatprep.subr.bf16.mxu0 %v2840
        %3702 = vmatpush1.bf16.msra.mxu0 %v2839
        %3703 = vmatprep.subr.bf16.mxu0 %v2844
        %3704 = vmatpush1.bf16.msra.mxu0 %v2843
        %3705 = vmatprep.subr.bf16.mxu0 %v2848
        %3706 = vmatpush1.bf16.msra.mxu0 %v2847
        %3707 = vmatprep.subr.bf16.mxu0 %v2852
        %3708 = vmatpush1.bf16.msra.mxu0 %v2851
        %3709 = vmatprep.mubr.bf16.mxu0 %v852
        %3710 = vmatmul.mubr.bf16.gmra.mrb[0].mxu0 %v851
        %v3711 = vpop.f32.mrb[0].mxu0
        %v3712 = vadd.f32 %v3671, %v3711
        %v3713 = vpop.f32.mrb[0].mxu0
        %v3714 = vadd.f32 %v3673, %v3713
        %v3715 = vpop.f32.mrb[0].mxu0
        %v3716 = vpop.f32.mrb[0].mxu0
        %3717 = vdwg.mxu0
        %3718 = vmatprep.subr.bf16.mxu0 %v2856
        %3719 = vmatpush1.bf16.msra.mxu0 %v2855
        %3720 = vmatprep.subr.bf16.mxu0 %v2860
        %3721 = vmatpush1.bf16.msra.mxu0 %v2859
        %3722 = vmatprep.subr.bf16.mxu0 %v2864
        %3723 = vmatpush1.bf16.msra.mxu0 %v2863
        %3724 = vmatprep.subr.bf16.mxu0 %v2868
        %3725 = vmatpush1.bf16.msra.mxu0 %v2867
        %3726 = vmatprep.subr.bf16.mxu0 %v2872
        %3727 = vmatpush1.bf16.msra.mxu0 %v2871
        %3728 = vmatprep.subr.bf16.mxu0 %v2876
        %3729 = vmatpush1.bf16.msra.mxu0 %v2875
        %3730 = vmatprep.subr.bf16.mxu0 %v2880
        %3731 = vmatpush1.bf16.msra.mxu0 %v2879
        %3732 = vmatprep.subr.bf16.mxu0 %v2884
        %3733 = vmatpush1.bf16.msra.mxu0 %v2883
        %3734 = vmatprep.subr.bf16.mxu0 %v2888
        %3735 = vmatpush1.bf16.msra.mxu0 %v2887
        %3736 = vmatprep.subr.bf16.mxu0 %v2892
        %3737 = vmatpush1.bf16.msra.mxu0 %v2891
        %3738 = vmatprep.subr.bf16.mxu0 %v2896
        %3739 = vmatpush1.bf16.msra.mxu0 %v2895
        %3740 = vmatprep.subr.bf16.mxu0 %v2900
        %3741 = vmatpush1.bf16.msra.mxu0 %v2899
        %3742 = vmatprep.subr.bf16.mxu0 %v2904
        %3743 = vmatpush1.bf16.msra.mxu0 %v2903
        %3744 = vmatprep.subr.bf16.mxu0 %v2908
        %3745 = vmatpush1.bf16.msra.mxu0 %v2907
        %3746 = vmatprep.subr.bf16.mxu0 %v2912
        %3747 = vmatpush1.bf16.msra.mxu0 %v2911
        %3748 = vmatprep.subr.bf16.mxu0 %v2916
        %3749 = vmatpush1.bf16.msra.mxu0 %v2915
        %3750 = vmatprep.mubr.bf16.mxu0 %v854
        %3751 = vmatmul.mubr.bf16.gmra.mrb[0].mxu0 %v853
        %v3752 = vpop.f32.mrb[0].mxu0
        %v3753 = vadd.f32 %v3712, %v3752
        %v3754 = vpop.f32.mrb[0].mxu0
        %v3755 = vadd.f32 %v3714, %v3754
        %v3756 = vpop.f32.mrb[0].mxu0
        %v3757 = vpop.f32.mrb[0].mxu0
        %3758 = vdwg.mxu0
        %3759 = vmatprep.subr.bf16.mxu0 %v2410
        %3760 = vmatpush1.bf16.msra.mxu0 %v2409
        %3761 = vmatprep.subr.bf16.mxu0 %v2414
        %3762 = vmatpush1.bf16.msra.mxu0 %v2413
        %3763 = vmatprep.subr.bf16.mxu0 %v2418
        %3764 = vmatpush1.bf16.msra.mxu0 %v2417
        %3765 = vmatprep.subr.bf16.mxu0 %v2422
        %3766 = vmatpush1.bf16.msra.mxu0 %v2421
        %3767 = vmatprep.subr.bf16.mxu0 %v2426
        %3768 = vmatpush1.bf16.msra.mxu0 %v2425
        %3769 = vmatprep.subr.bf16.mxu0 %v2430
        %3770 = vmatpush1.bf16.msra.mxu0 %v2429
        %3771 = vmatprep.subr.bf16.mxu0 %v2434
        %3772 = vmatpush1.bf16.msra.mxu0 %v2433
        %3773 = vmatprep.subr.bf16.mxu0 %v2438
        %3774 = vmatpush1.bf16.msra.mxu0 %v2437
        %3775 = vmatprep.subr.bf16.mxu0 %v2442
        %3776 = vmatpush1.bf16.msra.mxu0 %v2441
        %3777 = vmatprep.subr.bf16.mxu0 %v2446
        %3778 = vmatpush1.bf16.msra.mxu0 %v2445
        %3779 = vmatprep.subr.bf16.mxu0 %v2450
        %3780 = vmatpush1.bf16.msra.mxu0 %v2449
        %3781 = vmatprep.subr.bf16.mxu0 %v2454
        %3782 = vmatpush1.bf16.msra.mxu0 %v2453
        %3783 = vmatprep.subr.bf16.mxu0 %v2458
        %3784 = vmatpush1.bf16.msra.mxu0 %v2457
        %3785 = vmatprep.subr.bf16.mxu0 %v2462
        %3786 = vmatpush1.bf16.msra.mxu0 %v2461
        %3787 = vmatprep.subr.bf16.mxu0 %v2466
        %3788 = vmatpush1.bf16.msra.mxu0 %v2465
        %3789 = vmatprep.subr.bf16.mxu0 %v2470
        %3790 = vmatpush1.bf16.msra.mxu0 %v2469
        %3791 = vmatprep.mubr.bf16.mxu0 %v840
        %3792 = vmatmul.mubr.bf16.gmra.mrb[0].mxu0 %v839
        %v3793 = vpop.f32.mrb[0].mxu0
        %v3794 = vadd.f32 0.0, %v3793
        %v3795 = vpop.f32.mrb[0].mxu0
        %v3796 = vadd.f32 0.0, %v3795
        %v3797 = vpop.f32.mrb[0].mxu0
        %v3798 = vpop.f32.mrb[0].mxu0
        %3799 = vdwg.mxu0
        %3800 = vmatprep.subr.bf16.mxu0 %v2474
        %3801 = vmatpush1.bf16.msra.mxu0 %v2473
        %3802 = vmatprep.subr.bf16.mxu0 %v2478
        %3803 = vmatpush1.bf16.msra.mxu0 %v2477
        %3804 = vmatprep.subr.bf16.mxu0 %v2482
        %3805 = vmatpush1.bf16.msra.mxu0 %v2481
        %3806 = vmatprep.subr.bf16.mxu0 %v2486
        %3807 = vmatpush1.bf16.msra.mxu0 %v2485
        %3808 = vmatprep.subr.bf16.mxu0 %v2490
        %3809 = vmatpush1.bf16.msra.mxu0 %v2489
        %3810 = vmatprep.subr.bf16.mxu0 %v2494
        %3811 = vmatpush1.bf16.msra.mxu0 %v2493
        %3812 = vmatprep.subr.bf16.mxu0 %v2498
        %3813 = vmatpush1.bf16.msra.mxu0 %v2497
        %3814 = vmatprep.subr.bf16.mxu0 %v2502
        %3815 = vmatpush1.bf16.msra.mxu0 %v2501
        %3816 = vmatprep.subr.bf16.mxu0 %v2506
        %3817 = vmatpush1.bf16.msra.mxu0 %v2505
        %3818 = vmatprep.subr.bf16.mxu0 %v2510
        %3819 = vmatpush1.bf16.msra.mxu0 %v2509
        %3820 = vmatprep.subr.bf16.mxu0 %v2514
        %3821 = vmatpush1.bf16.msra.mxu0 %v2513
        %3822 = vmatprep.subr.bf16.mxu0 %v2518
        %3823 = vmatpush1.bf16.msra.mxu0 %v2517
        %3824 = vmatprep.subr.bf16.mxu0 %v2522
        %3825 = vmatpush1.bf16.msra.mxu0 %v2521
        %3826 = vmatprep.subr.bf16.mxu0 %v2526
        %3827 = vmatpush1.bf16.msra.mxu0 %v2525
        %3828 = vmatprep.subr.bf16.mxu0 %v2530
        %3829 = vmatpush1.bf16.msra.mxu0 %v2529
        %3830 = vmatprep.subr.bf16.mxu0 %v2534
        %3831 = vmatpush1.bf16.msra.mxu0 %v2533
        %3832 = vmatprep.mubr.bf16.mxu0 %v842
        %3833 = vmatmul.mubr.bf16.gmra.mrb[0].mxu0 %v841
        %v3834 = vpop.f32.mrb[0].mxu0
        %v3835 = vadd.f32 %v3794, %v3834
        %v3836 = vpop.f32.mrb[0].mxu0
        %v3837 = vadd.f32 %v3796, %v3836
        %v3838 = vpop.f32.mrb[0].mxu0
        %v3839 = vpop.f32.mrb[0].mxu0
        %3840 = vdwg.mxu0
        %3841 = vmatprep.subr.bf16.mxu0 %v2538
        %3842 = vmatpush1.bf16.msra.mxu0 %v2537
        %3843 = vmatprep.subr.bf16.mxu0 %v2542
        %3844 = vmatpush1.bf16.msra.mxu0 %v2541
        %3845 = vmatprep.subr.bf16.mxu0 %v2546
        %3846 = vmatpush1.bf16.msra.mxu0 %v2545
        %3847 = vmatprep.subr.bf16.mxu0 %v2550
        %3848 = vmatpush1.bf16.msra.mxu0 %v2549
        %3849 = vmatprep.subr.bf16.mxu0 %v2554
        %3850 = vmatpush1.bf16.msra.mxu0 %v2553
        %3851 = vmatprep.subr.bf16.mxu0 %v2558
        %3852 = vmatpush1.bf16.msra.mxu0 %v2557
        %3853 = vmatprep.subr.bf16.mxu0 %v2562
        %3854 = vmatpush1.bf16.msra.mxu0 %v2561
        %3855 = vmatprep.subr.bf16.mxu0 %v2566
        %3856 = vmatpush1.bf16.msra.mxu0 %v2565
        %3857 = vmatprep.subr.bf16.mxu0 %v2570
        %3858 = vmatpush1.bf16.msra.mxu0 %v2569
        %3859 = vmatprep.subr.bf16.mxu0 %v2574
        %3860 = vmatpush1.bf16.msra.mxu0 %v2573
        %3861 = vmatprep.subr.bf16.mxu0 %v2578
        %3862 = vmatpush1.bf16.msra.mxu0 %v2577
        %3863 = vmatprep.subr.bf16.mxu0 %v2582
        %3864 = vmatpush1.bf16.msra.mxu0 %v2581
        %3865 = vmatprep.subr.bf16.mxu0 %v2586
        %3866 = vmatpush1.bf16.msra.mxu0 %v2585
        %3867 = vmatprep.subr.bf16.mxu0 %v2590
        %3868 = vmatpush1.bf16.msra.mxu0 %v2589
        %3869 = vmatprep.subr.bf16.mxu0 %v2594
        %3870 = vmatpush1.bf16.msra.mxu0 %v2593
        %3871 = vmatprep.subr.bf16.mxu0 %v2598
        %3872 = vmatpush1.bf16.msra.mxu0 %v2597
        %3873 = vmatprep.mubr.bf16.mxu0 %v844
        %3874 = vmatmul.mubr.bf16.gmra.mrb[0].mxu0 %v843
        %v3875 = vpop.f32.mrb[0].mxu0
        %v3876 = vadd.f32 %v3835, %v3875
        %v3877 = vpop.f32.mrb[0].mxu0
        %v3878 = vadd.f32 %v3837, %v3877
        %v3879 = vpop.f32.mrb[0].mxu0
        %v3880 = vpop.f32.mrb[0].mxu0
        %3881 = vdwg.mxu0
        %3882 = vmatprep.subr.bf16.mxu0 %v2602
        %3883 = vmatpush1.bf16.msra.mxu0 %v2601
        %3884 = vmatprep.subr.bf16.mxu0 %v2606
        %3885 = vmatpush1.bf16.msra.mxu0 %v2605
        %3886 = vmatprep.subr.bf16.mxu0 %v2610
        %3887 = vmatpush1.bf16.msra.mxu0 %v2609
        %3888 = vmatprep.subr.bf16.mxu0 %v2614
        %3889 = vmatpush1.bf16.msra.mxu0 %v2613
        %3890 = vmatprep.subr.bf16.mxu0 %v2618
        %3891 = vmatpush1.bf16.msra.mxu0 %v2617
        %3892 = vmatprep.subr.bf16.mxu0 %v2622
        %3893 = vmatpush1.bf16.msra.mxu0 %v2621
        %3894 = vmatprep.subr.bf16.mxu0 %v2626
        %3895 = vmatpush1.bf16.msra.mxu0 %v2625
        %3896 = vmatprep.subr.bf16.mxu0 %v2630
        %3897 = vmatpush1.bf16.msra.mxu0 %v2629
        %3898 = vmatprep.subr.bf16.mxu0 %v2634
        %3899 = vmatpush1.bf16.msra.mxu0 %v2633
        %3900 = vmatprep.subr.bf16.mxu0 %v2638
        %3901 = vmatpush1.bf16.msra.mxu0 %v2637
        %3902 = vmatprep.subr.bf16.mxu0 %v2642
        %3903 = vmatpush1.bf16.msra.mxu0 %v2641
        %3904 = vmatprep.subr.bf16.mxu0 %v2646
        %3905 = vmatpush1.bf16.msra.mxu0 %v2645
        %3906 = vmatprep.subr.bf16.mxu0 %v2650
        %3907 = vmatpush1.bf16.msra.mxu0 %v2649
        %3908 = vmatprep.subr.bf16.mxu0 %v2654
        %3909 = vmatpush1.bf16.msra.mxu0 %v2653
        %3910 = vmatprep.subr.bf16.mxu0 %v2658
        %3911 = vmatpush1.bf16.msra.mxu0 %v2657
        %3912 = vmatprep.subr.bf16.mxu0 %v2662
        %3913 = vmatpush1.bf16.msra.mxu0 %v2661
        %3914 = vmatprep.mubr.bf16.mxu0 %v846
        %3915 = vmatmul.mubr.bf16.gmra.mrb[0].mxu0 %v845
        %v3916 = vpop.f32.mrb[0].mxu0
        %v3917 = vadd.f32 %v3876, %v3916
        %v3918 = vpop.f32.mrb[0].mxu0
        %v3919 = vadd.f32 %v3878, %v3918
        %v3920 = vpop.f32.mrb[0].mxu0
        %v3921 = vpop.f32.mrb[0].mxu0
        %3922 = vdwg.mxu0
        %3923 = vmatprep.subr.bf16.mxu0 %v2666
        %3924 = vmatpush1.bf16.msra.mxu0 %v2665
        %3925 = vmatprep.subr.bf16.mxu0 %v2670
        %3926 = vmatpush1.bf16.msra.mxu0 %v2669
        %3927 = vmatprep.subr.bf16.mxu0 %v2674
        %3928 = vmatpush1.bf16.msra.mxu0 %v2673
        %3929 = vmatprep.subr.bf16.mxu0 %v2678
        %3930 = vmatpush1.bf16.msra.mxu0 %v2677
        %3931 = vmatprep.subr.bf16.mxu0 %v2682
        %3932 = vmatpush1.bf16.msra.mxu0 %v2681
        %3933 = vmatprep.subr.bf16.mxu0 %v2686
        %3934 = vmatpush1.bf16.msra.mxu0 %v2685
        %3935 = vmatprep.subr.bf16.mxu0 %v2690
        %3936 = vmatpush1.bf16.msra.mxu0 %v2689
        %3937 = vmatprep.subr.bf16.mxu0 %v2694
        %3938 = vmatpush1.bf16.msra.mxu0 %v2693
        %3939 = vmatprep.subr.bf16.mxu0 %v2698
        %3940 = vmatpush1.bf16.msra.mxu0 %v2697
        %3941 = vmatprep.subr.bf16.mxu0 %v2702
        %3942 = vmatpush1.bf16.msra.mxu0 %v2701
        %3943 = vmatprep.subr.bf16.mxu0 %v2706
        %3944 = vmatpush1.bf16.msra.mxu0 %v2705
        %3945 = vmatprep.subr.bf16.mxu0 %v2710
        %3946 = vmatpush1.bf16.msra.mxu0 %v2709
        %3947 = vmatprep.subr.bf16.mxu0 %v2714
        %3948 = vmatpush1.bf16.msra.mxu0 %v2713
        %3949 = vmatprep.subr.bf16.mxu0 %v2718
        %3950 = vmatpush1.bf16.msra.mxu0 %v2717
        %3951 = vmatprep.subr.bf16.mxu0 %v2722
        %3952 = vmatpush1.bf16.msra.mxu0 %v2721
        %3953 = vmatprep.subr.bf16.mxu0 %v2726
        %3954 = vmatpush1.bf16.msra.mxu0 %v2725
        %3955 = vmatprep.mubr.bf16.mxu0 %v848
        %3956 = vmatmul.mubr.bf16.gmra.mrb[0].mxu0 %v847
        %v3957 = vpop.f32.mrb[0].mxu0
        %v3958 = vadd.f32 %v3917, %v3957
        %v3959 = vpop.f32.mrb[0].mxu0
        %v3960 = vadd.f32 %v3919, %v3959
        %v3961 = vpop.f32.mrb[0].mxu0
        %v3962 = vpop.f32.mrb[0].mxu0
        %3963 = vdwg.mxu0
        %3964 = vmatprep.subr.bf16.mxu0 %v2730
        %3965 = vmatpush1.bf16.msra.mxu0 %v2729
        %3966 = vmatprep.subr.bf16.mxu0 %v2734
        %3967 = vmatpush1.bf16.msra.mxu0 %v2733
        %3968 = vmatprep.subr.bf16.mxu0 %v2738
        %3969 = vmatpush1.bf16.msra.mxu0 %v2737
        %3970 = vmatprep.subr.bf16.mxu0 %v2742
        %3971 = vmatpush1.bf16.msra.mxu0 %v2741
        %3972 = vmatprep.subr.bf16.mxu0 %v2746
        %3973 = vmatpush1.bf16.msra.mxu0 %v2745
        %3974 = vmatprep.subr.bf16.mxu0 %v2750
        %3975 = vmatpush1.bf16.msra.mxu0 %v2749
        %3976 = vmatprep.subr.bf16.mxu0 %v2754
        %3977 = vmatpush1.bf16.msra.mxu0 %v2753
        %3978 = vmatprep.subr.bf16.mxu0 %v2758
        %3979 = vmatpush1.bf16.msra.mxu0 %v2757
        %3980 = vmatprep.subr.bf16.mxu0 %v2762
        %3981 = vmatpush1.bf16.msra.mxu0 %v2761
        %3982 = vmatprep.subr.bf16.mxu0 %v2766
        %3983 = vmatpush1.bf16.msra.mxu0 %v2765
        %3984 = vmatprep.subr.bf16.mxu0 %v2770
        %3985 = vmatpush1.bf16.msra.mxu0 %v2769
        %3986 = vmatprep.subr.bf16.mxu0 %v2774
        %3987 = vmatpush1.bf16.msra.mxu0 %v2773
        %3988 = vmatprep.subr.bf16.mxu0 %v2778
        %3989 = vmatpush1.bf16.msra.mxu0 %v2777
        %3990 = vmatprep.subr.bf16.mxu0 %v2782
        %3991 = vmatpush1.bf16.msra.mxu0 %v2781
        %3992 = vmatprep.subr.bf16.mxu0 %v2786
        %3993 = vmatpush1.bf16.msra.mxu0 %v2785
        %3994 = vmatprep.subr.bf16.mxu0 %v2790
        %3995 = vmatpush1.bf16.msra.mxu0 %v2789
        %3996 = vmatprep.mubr.bf16.mxu0 %v850
        %3997 = vmatmul.mubr.bf16.gmra.mrb[0].mxu0 %v849
        %v3998 = vpop.f32.mrb[0].mxu0
        %v3999 = vadd.f32 %v3958, %v3998
        %v4000 = vpop.f32.mrb[0].mxu0
        %v4001 = vadd.f32 %v3960, %v4000
        %v4002 = vpop.f32.mrb[0].mxu0
        %v4003 = vpop.f32.mrb[0].mxu0
        %4004 = vdwg.mxu0
        %4005 = vmatprep.subr.bf16.mxu0 %v2794
        %4006 = vmatpush1.bf16.msra.mxu0 %v2793
        %4007 = vmatprep.subr.bf16.mxu0 %v2798
        %4008 = vmatpush1.bf16.msra.mxu0 %v2797
        %4009 = vmatprep.subr.bf16.mxu0 %v2802
        %4010 = vmatpush1.bf16.msra.mxu0 %v2801
        %4011 = vmatprep.subr.bf16.mxu0 %v2806
        %4012 = vmatpush1.bf16.msra.mxu0 %v2805
        %4013 = vmatprep.subr.bf16.mxu0 %v2810
        %4014 = vmatpush1.bf16.msra.mxu0 %v2809
        %4015 = vmatprep.subr.bf16.mxu0 %v2814
        %4016 = vmatpush1.bf16.msra.mxu0 %v2813
        %4017 = vmatprep.subr.bf16.mxu0 %v2818
        %4018 = vmatpush1.bf16.msra.mxu0 %v2817
        %4019 = vmatprep.subr.bf16.mxu0 %v2822
        %4020 = vmatpush1.bf16.msra.mxu0 %v2821
        %4021 = vmatprep.subr.bf16.mxu0 %v2826
        %4022 = vmatpush1.bf16.msra.mxu0 %v2825
        %4023 = vmatprep.subr.bf16.mxu0 %v2830
        %4024 = vmatpush1.bf16.msra.mxu0 %v2829
        %4025 = vmatprep.subr.bf16.mxu0 %v2834
        %4026 = vmatpush1.bf16.msra.mxu0 %v2833
        %4027 = vmatprep.subr.bf16.mxu0 %v2838
        %4028 = vmatpush1.bf16.msra.mxu0 %v2837
        %4029 = vmatprep.subr.bf16.mxu0 %v2842
        %4030 = vmatpush1.bf16.msra.mxu0 %v2841
        %4031 = vmatprep.subr.bf16.mxu0 %v2846
        %4032 = vmatpush1.bf16.msra.mxu0 %v2845
        %4033 = vmatprep.subr.bf16.mxu0 %v2850
        %4034 = vmatpush1.bf16.msra.mxu0 %v2849
        %4035 = vmatprep.subr.bf16.mxu0 %v2854
        %4036 = vmatpush1.bf16.msra.mxu0 %v2853
        %4037 = vmatprep.mubr.bf16.mxu0 %v852
        %4038 = vmatmul.mubr.bf16.gmra.mrb[0].mxu0 %v851
        %v4039 = vpop.f32.mrb[0].mxu0
        %v4040 = vadd.f32 %v3999, %v4039
        %v4041 = vpop.f32.mrb[0].mxu0
        %v4042 = vadd.f32 %v4001, %v4041
        %v4043 = vpop.f32.mrb[0].mxu0
        %v4044 = vpop.f32.mrb[0].mxu0
        %4045 = vdwg.mxu0
        %4046 = vmatprep.subr.bf16.mxu0 %v2858
        %4047 = vmatpush1.bf16.msra.mxu0 %v2857
        %4048 = vmatprep.subr.bf16.mxu0 %v2862
        %4049 = vmatpush1.bf16.msra.mxu0 %v2861
        %4050 = vmatprep.subr.bf16.mxu0 %v2866
        %4051 = vmatpush1.bf16.msra.mxu0 %v2865
        %4052 = vmatprep.subr.bf16.mxu0 %v2870
        %4053 = vmatpush1.bf16.msra.mxu0 %v2869
        %4054 = vmatprep.subr.bf16.mxu0 %v2874
        %4055 = vmatpush1.bf16.msra.mxu0 %v2873
        %4056 = vmatprep.subr.bf16.mxu0 %v2878
        %4057 = vmatpush1.bf16.msra.mxu0 %v2877
        %4058 = vmatprep.subr.bf16.mxu0 %v2882
        %4059 = vmatpush1.bf16.msra.mxu0 %v2881
        %4060 = vmatprep.subr.bf16.mxu0 %v2886
        %4061 = vmatpush1.bf16.msra.mxu0 %v2885
        %4062 = vmatprep.subr.bf16.mxu0 %v2890
        %4063 = vmatpush1.bf16.msra.mxu0 %v2889
        %4064 = vmatprep.subr.bf16.mxu0 %v2894
        %4065 = vmatpush1.bf16.msra.mxu0 %v2893
        %4066 = vmatprep.subr.bf16.mxu0 %v2898
        %4067 = vmatpush1.bf16.msra.mxu0 %v2897
        %4068 = vmatprep.subr.bf16.mxu0 %v2902
        %4069 = vmatpush1.bf16.msra.mxu0 %v2901
        %4070 = vmatprep.subr.bf16.mxu0 %v2906
        %4071 = vmatpush1.bf16.msra.mxu0 %v2905
        %4072 = vmatprep.subr.bf16.mxu0 %v2910
        %4073 = vmatpush1.bf16.msra.mxu0 %v2909
        %4074 = vmatprep.subr.bf16.mxu0 %v2914
        %4075 = vmatpush1.bf16.msra.mxu0 %v2913
        %4076 = vmatprep.subr.bf16.mxu0 %v2918
        %4077 = vmatpush1.bf16.msra.mxu0 %v2917
        %4078 = vmatprep.mubr.bf16.mxu0 %v854
        %4079 = vmatmul.mubr.bf16.gmra.mrb[0].mxu0 %v853
        %v4080 = vpop.f32.mrb[0].mxu0
        %v4081 = vadd.f32 %v4040, %v4080
        %v4082 = vpop.f32.mrb[0].mxu0
        %v4083 = vadd.f32 %v4042, %v4082
        %v4084 = vpop.f32.mrb[0].mxu0
        %v4085 = vpop.f32.mrb[0].mxu0
        %4086 = vdwg.mxu0
        %v4087 = vadd.f32 %v291, %v3753
        %v4088 = vadd.f32 %v292, %v3755
        %v4089 = vadd.f32 %v293, %v4081
        %v4090 = vadd.f32 %v294, %v4083
        %4091 = vst [vmem:[%s281] sm:$0xff] %v4087
        %4092 = vst [vmem:[%s281 + $0x8] sm:$0xff] %v4088
        %4093 = vst [vmem:[%s281 + $0x10] sm:$0xff] %v4089
        %4094 = vst [vmem:[%s281 + $0x18] sm:$0xff] %v4090
        %p4095 = scmp.eq.s32.totalorder %s24, 48
        // Predicated region
        $region41: #{fast_rcnn_forward.6} parent=31 // pred_check
          %p4096 = pneg %p4095
        $region42: #{fast_rcnn_forward.6} parent=31 // pred_check_branch
          %4098 = sbr.rel (%p4096) target = $region44
        $region43: #{fast_rcnn_forward.6} parent=31 // pred_region
          %v4099 = vld [vmem:[%s281] sm:$0xff]
          %v4100 = vld [vmem:[%s281 + $0x8] sm:$0xff]
          %v4101 = vld [vmem:[%s281 + $0x10] sm:$0xff]
          %v4102 = vld [vmem:[%s281 + $0x18] sm:$0xff]
          %v4103 = vld [vmem:[%s271] sm:$0xf]
          %v4105 = vlaneseq
          %v4106 = vshrl.u32 %v4105, 7
          %v4107 = vsub.s32 0, %v4106
          %v4108 = vrot.slane %v4103, %v4107
          %v4109 = vlaneseq
          %v4110 = vshrl.u32 %v4109, 7
          %v4111 = vsub.s32 1, %v4110
          %v4112 = vrot.slane %v4103, %v4111
          %v4113 = vlaneseq
          %v4114 = vshrl.u32 %v4113, 7
          %v4115 = vsub.s32 2, %v4114
          %v4116 = vrot.slane %v4103, %v4115
          %v4117 = vlaneseq
          %v4118 = vshrl.u32 %v4117, 7
          %v4119 = vsub.s32 3, %v4118
          %v4120 = vrot.slane %v4103, %v4119
          %v4125 = vadd.f32 %v4099, %v4108
          %v4126 = vadd.f32 %v4100, %v4112
          %v4127 = vadd.f32 %v4101, %v4116
          %v4128 = vadd.f32 %v4102, %v4120
          %4129 = vst [vmem:[%s281] sm:$0xff] %v4125
          %4130 = vst [vmem:[%s281 + $0x8] sm:$0xff] %v4126
          %4131 = vst [vmem:[%s281 + $0x10] sm:$0xff] %v4127
          %4132 = vst [vmem:[%s281 + $0x18] sm:$0xff] %v4128
        $region44: #{fast_rcnn_forward.6} parent=31 // pred_fallthru
          _
        %s4133 = smul.u32 4, %s23
        %p4134 = scmp.lt.s32.totalorder %s22, 0
        %s4135 = scalar_select %p4134, %s22, 0
        %p4136 = scmp.lt.s32.totalorder %s4133, 15
        %s4137 = scalar_select %p4136, %s4133, 15
        %s4138 = smul.addr %s4135, 16
        %s4139 = sadd.s32 %s4137, %s4138
        %s4140 = smul.addr %s4139, 8
        %s4141 = scalar_lea.vmem %s3, %s4140
        // Predicated region
        $region45: #{fast_rcnn_forward.6} parent=31 // pred_check
          %p4142 = pneg %p138
        $region46: #{fast_rcnn_forward.6} parent=31 // pred_check_branch
          %4144 = sbr.rel (%p4142) target = $region48
        $region47: #{fast_rcnn_forward.6} parent=31 // pred_region
          %s4145 = smul.u32 4, %s23
        $region48: #{fast_rcnn_forward.6} parent=31 // pred_fallthru
          _
      $region32: #{fast_rcnn_forward.6} parent=5 // pred_fallthru
        _
      %p4146 = scmp.le.s32.totalorder 2, %s12
      // Predicated region
      $region49: #{fast_rcnn_forward.6} parent=5 // pred_check
        %p4147 = pneg %p4146
      $region50: #{fast_rcnn_forward.6} parent=5 // pred_check_branch
        %4149 = sbr.rel (%p4147) target = $region52
      $region51: #{fast_rcnn_forward.6} parent=5 // pred_region
        %s4150 = ssub.s32 %s12, 2
        // Predicated region
        $region53: #{fast_rcnn_forward.6} parent=51 // pred_check
          %p4151 = pneg %p144
        $region54: #{fast_rcnn_forward.6} parent=51 // pred_check_branch
          %4153 = sbr.rel (%p4151) target = $region56
        $region55: #{fast_rcnn_forward.6} parent=51 // pred_region
          %s4154 = smul.u32 4, %s26
          %p4155 = scmp.lt.s32.totalorder %s25, 0
          %s4156 = scalar_select %p4155, %s25, 0
          %p4157 = scmp.lt.s32.totalorder %s4154, 15
          %s4158 = scalar_select %p4157, %s4154, 15
          %s4159 = smul.addr %s4156, 16
          %s4160 = sadd.s32 %s4158, %s4159
          %s4161 = smul.addr %s4160, 8
          %s4162 = scalar_lea.vmem %s3, %s4161
        $region56: #{fast_rcnn_forward.6} parent=51 // pred_fallthru
          _
      $region52: #{fast_rcnn_forward.6} parent=5 // pred_fallthru
        _
    $region6: #{fast_rcnn_forward.6} parent=1 // loop_footer
      %s16 = sadd.s32 1, %s12
    $region7: #{fast_rcnn_forward.6} parent=1 // loop_footer_branch
      %11 = sbr.rel target = $region3
    $region8: #{fast_rcnn_forward.6} parent=1 // loop_exit
      _
    %4163 = vsyncpa [#allocation3], 1
    %s4164 = scalar_lea.sflag [#allocation3], 1
    %4165 = vsyncpa %s4164, 1

// kernel: fast_rcnn_forward.7
$region0: #{fast_rcnn_forward.7}
  #allocation0 [shape = 'u32[]', space=smem, size = 0x4, offset = 0x4, fixed_abs, tag = 'smem constant byte address 0x4 - core index']
  #allocation1 [shape = 'u32[144,128]{1,0:T(1,128)}', space=vmem, size = 0x12000, scoped, tag = 'internal scratch']
  %s0 = inlined_call_operand.vmem [shape: bf16[8,2048], index: 0, kind: input, shape index: {}]
  %s1 = inlined_call_operand.vmem [shape: bf16[2048,128], index: 1, kind: input, shape index: {}]
  %s2 = inlined_call_operand.vmem [shape: f32[1,128], index: 2, kind: input, shape index: {}]
  %s3 = inlined_call_operand.vmem [shape: f32[8,128], index: 3, kind: output, shape index: {}]
  %s4 = sld [smem:[#allocation0]]
  $region30: #{fast_rcnn_forward.7} parent=0
    _
  %s6 = ssub.s32 1, %s4
  %s7 = scalar_select 0, %s6, %s4
  // Predicated region
  $region2: #{fast_rcnn_forward.7} parent=0 // pred_check
    _
  $region3: #{fast_rcnn_forward.7} parent=0 // pred_check_branch
    %9 = sbr.rel (0) target = $region5
  $region4: #{fast_rcnn_forward.7} parent=0 // pred_region
    _
  $region5: #{fast_rcnn_forward.7} parent=0 // pred_fallthru
    _
  // Predicated region
  $region6: #{fast_rcnn_forward.7} parent=0 // pred_check
    _
  $region7: #{fast_rcnn_forward.7} parent=0 // pred_check_branch
    %11 = sbr.rel (0) target = $region9
  $region8: #{fast_rcnn_forward.7} parent=0 // pred_region
    _
  $region9: #{fast_rcnn_forward.7} parent=0 // pred_fallthru
    _
  // Predicated region
  $region10: #{fast_rcnn_forward.7} parent=0 // pred_check
    _
  $region11: #{fast_rcnn_forward.7} parent=0 // pred_check_branch
    %13 = sbr.rel (0) target = $region13
  $region12: #{fast_rcnn_forward.7} parent=0 // pred_region
    _
  $region13: #{fast_rcnn_forward.7} parent=0 // pred_fallthru
    _
  %p15 = scmp.eq.s32.totalorder 0, 0
  // Predicated region
  $region14: #{fast_rcnn_forward.7} parent=0 // pred_check
    %p16 = pneg %p15
  $region15: #{fast_rcnn_forward.7} parent=0 // pred_check_branch
    %18 = sbr.rel (%p16) target = $region17
  $region16: #{fast_rcnn_forward.7} parent=0 // pred_region
    %19 = vst [vmem:[%s3] sm:$0xff] 0.0
  $region17: #{fast_rcnn_forward.7} parent=0 // pred_fallthru
    _
  %v20 = vld [vmem:[%s3] sm:$0xff]
  %v21 = vld [vmem:[%s0] sm:$0xff]
  %v22 = vld [vmem:[%s0 + $0x8] sm:$0xff]
  %v23 = vld [vmem:[%s0 + $0x10] sm:$0xff]
  %v24 = vld [vmem:[%s0 + $0x18] sm:$0xff]
  %v25 = vld [vmem:[%s0 + $0x20] sm:$0xff]
  %v26 = vld [vmem:[%s0 + $0x28] sm:$0xff]
  %v27 = vld [vmem:[%s0 + $0x30] sm:$0xff]
  %v28 = vld [vmem:[%s0 + $0x38] sm:$0xff]
  %v29 = vld [vmem:[%s1] sm:$0xf]
  %v30 = vld [vmem:[%s1 + $0x4] sm:$0xf]
  %v31 = vld [vmem:[%s1 + $0x8] sm:$0xf]
  %v32 = vld [vmem:[%s1 + $0xc] sm:$0xf]
  %v33 = vld [vmem:[%s1 + $0x10] sm:$0xf]
  %v34 = vld [vmem:[%s1 + $0x14] sm:$0xf]
  %v35 = vld [vmem:[%s1 + $0x18] sm:$0xf]
  %v36 = vld [vmem:[%s1 + $0x1c] sm:$0xf]
  %v37 = vld [vmem:[%s1 + $0x20] sm:$0xf]
  %v38 = vld [vmem:[%s1 + $0x24] sm:$0xf]
  %v39 = vld [vmem:[%s1 + $0x28] sm:$0xf]
  %v40 = vld [vmem:[%s1 + $0x2c] sm:$0xf]
  %v41 = vld [vmem:[%s1 + $0x30] sm:$0xf]
  %v42 = vld [vmem:[%s1 + $0x34] sm:$0xf]
  %v43 = vld [vmem:[%s1 + $0x38] sm:$0xf]
  %v44 = vld [vmem:[%s1 + $0x3c] sm:$0xf]
  %v45 = vld [vmem:[%s1 + $0x40] sm:$0xf]
  %v46 = vld [vmem:[%s1 + $0x44] sm:$0xf]
  %v47 = vld [vmem:[%s1 + $0x48] sm:$0xf]
  %v48 = vld [vmem:[%s1 + $0x4c] sm:$0xf]
  %v49 = vld [vmem:[%s1 + $0x50] sm:$0xf]
  %v50 = vld [vmem:[%s1 + $0x54] sm:$0xf]
  %v51 = vld [vmem:[%s1 + $0x58] sm:$0xf]
  %v52 = vld [vmem:[%s1 + $0x5c] sm:$0xf]
  %v53 = vld [vmem:[%s1 + $0x60] sm:$0xf]
  %v54 = vld [vmem:[%s1 + $0x64] sm:$0xf]
  %v55 = vld [vmem:[%s1 + $0x68] sm:$0xf]
  %v56 = vld [vmem:[%s1 + $0x6c] sm:$0xf]
  %v57 = vld [vmem:[%s1 + $0x70] sm:$0xf]
  %v58 = vld [vmem:[%s1 + $0x74] sm:$0xf]
  %v59 = vld [vmem:[%s1 + $0x78] sm:$0xf]
  %v60 = vld [vmem:[%s1 + $0x7c] sm:$0xf]
  %v61 = vld [vmem:[%s1 + $0x80] sm:$0xf]
  %v62 = vld [vmem:[%s1 + $0x84] sm:$0xf]
  %v63 = vld [vmem:[%s1 + $0x88] sm:$0xf]
  %v64 = vld [vmem:[%s1 + $0x8c] sm:$0xf]
  %v65 = vld [vmem:[%s1 + $0x90] sm:$0xf]
  %v66 = vld [vmem:[%s1 + $0x94] sm:$0xf]
  %v67 = vld [vmem:[%s1 + $0x98] sm:$0xf]
  %v68 = vld [vmem:[%s1 + $0x9c] sm:$0xf]
  %v69 = vld [vmem:[%s1 + $0xa0] sm:$0xf]
  %v70 = vld [vmem:[%s1 + $0xa4] sm:$0xf]
  %v71 = vld [vmem:[%s1 + $0xa8] sm:$0xf]
  %v72 = vld [vmem:[%s1 + $0xac] sm:$0xf]
  %v73 = vld [vmem:[%s1 + $0xb0] sm:$0xf]
  %v74 = vld [vmem:[%s1 + $0xb4] sm:$0xf]
  %v75 = vld [vmem:[%s1 + $0xb8] sm:$0xf]
  %v76 = vld [vmem:[%s1 + $0xbc] sm:$0xf]
  %v77 = vld [vmem:[%s1 + $0xc0] sm:$0xf]
  %v78 = vld [vmem:[%s1 + $0xc4] sm:$0xf]
  %v79 = vld [vmem:[%s1 + $0xc8] sm:$0xf]
  %v80 = vld [vmem:[%s1 + $0xcc] sm:$0xf]
  %v81 = vld [vmem:[%s1 + $0xd0] sm:$0xf]
  %v82 = vld [vmem:[%s1 + $0xd4] sm:$0xf]
  %v83 = vld [vmem:[%s1 + $0xd8] sm:$0xf]
  %v84 = vld [vmem:[%s1 + $0xdc] sm:$0xf]
  %v85 = vld [vmem:[%s1 + $0xe0] sm:$0xf]
  %v86 = vld [vmem:[%s1 + $0xe4] sm:$0xf]
  %v87 = vld [vmem:[%s1 + $0xe8] sm:$0xf]
  %v88 = vld [vmem:[%s1 + $0xec] sm:$0xf]
  %v89 = vld [vmem:[%s1 + $0xf0] sm:$0xf]
  %v90 = vld [vmem:[%s1 + $0xf4] sm:$0xf]
  %v91 = vld [vmem:[%s1 + $0xf8] sm:$0xf]
  %v92 = vld [vmem:[%s1 + $0xfc] sm:$0xf]
  %v93 = vld [vmem:[%s1 + $0x100] sm:$0xf]
  %v94 = vld [vmem:[%s1 + $0x104] sm:$0xf]
  %v95 = vld [vmem:[%s1 + $0x108] sm:$0xf]
  %v96 = vld [vmem:[%s1 + $0x10c] sm:$0xf]
  %v97 = vld [vmem:[%s1 + $0x110] sm:$0xf]
  %v98 = vld [vmem:[%s1 + $0x114] sm:$0xf]
  %v99 = vld [vmem:[%s1 + $0x118] sm:$0xf]
  %v100 = vld [vmem:[%s1 + $0x11c] sm:$0xf]
  %v101 = vld [vmem:[%s1 + $0x120] sm:$0xf]
  %v102 = vld [vmem:[%s1 + $0x124] sm:$0xf]
  %v103 = vld [vmem:[%s1 + $0x128] sm:$0xf]
  %v104 = vld [vmem:[%s1 + $0x12c] sm:$0xf]
  %v105 = vld [vmem:[%s1 + $0x130] sm:$0xf]
  %v106 = vld [vmem:[%s1 + $0x134] sm:$0xf]
  %v107 = vld [vmem:[%s1 + $0x138] sm:$0xf]
  %v108 = vld [vmem:[%s1 + $0x13c] sm:$0xf]
  %v109 = vld [vmem:[%s1 + $0x140] sm:$0xf]
  %v110 = vld [vmem:[%s1 + $0x144] sm:$0xf]
  %v111 = vld [vmem:[%s1 + $0x148] sm:$0xf]
  %v112 = vld [vmem:[%s1 + $0x14c] sm:$0xf]
  %v113 = vld [vmem:[%s1 + $0x150] sm:$0xf]
  %v114 = vld [vmem:[%s1 + $0x154] sm:$0xf]
  %v115 = vld [vmem:[%s1 + $0x158] sm:$0xf]
  %v116 = vld [vmem:[%s1 + $0x15c] sm:$0xf]
  %v117 = vld [vmem:[%s1 + $0x160] sm:$0xf]
  %v118 = vld [vmem:[%s1 + $0x164] sm:$0xf]
  %v119 = vld [vmem:[%s1 + $0x168] sm:$0xf]
  %v120 = vld [vmem:[%s1 + $0x16c] sm:$0xf]
  %v121 = vld [vmem:[%s1 + $0x170] sm:$0xf]
  %v122 = vld [vmem:[%s1 + $0x174] sm:$0xf]
  %v123 = vld [vmem:[%s1 + $0x178] sm:$0xf]
  %v124 = vld [vmem:[%s1 + $0x17c] sm:$0xf]
  %v125 = vld [vmem:[%s1 + $0x180] sm:$0xf]
  %v126 = vld [vmem:[%s1 + $0x184] sm:$0xf]
  %v127 = vld [vmem:[%s1 + $0x188] sm:$0xf]
  %v128 = vld [vmem:[%s1 + $0x18c] sm:$0xf]
  %v129 = vld [vmem:[%s1 + $0x190] sm:$0xf]
  %v130 = vld [vmem:[%s1 + $0x194] sm:$0xf]
  %v131 = vld [vmem:[%s1 + $0x198] sm:$0xf]
  %v132 = vld [vmem:[%s1 + $0x19c] sm:$0xf]
  %v133 = vld [vmem:[%s1 + $0x1a0] sm:$0xf]
  %v134 = vld [vmem:[%s1 + $0x1a4] sm:$0xf]
  %v135 = vld [vmem:[%s1 + $0x1a8] sm:$0xf]
  %v136 = vld [vmem:[%s1 + $0x1ac] sm:$0xf]
  %v137 = vld [vmem:[%s1 + $0x1b0] sm:$0xf]
  %v138 = vld [vmem:[%s1 + $0x1b4] sm:$0xf]
  %v139 = vld [vmem:[%s1 + $0x1b8] sm:$0xf]
  %v140 = vld [vmem:[%s1 + $0x1bc] sm:$0xf]
  %v141 = vld [vmem:[%s1 + $0x1c0] sm:$0xf]
  %v142 = vld [vmem:[%s1 + $0x1c4] sm:$0xf]
  %v143 = vld [vmem:[%s1 + $0x1c8] sm:$0xf]
  %v144 = vld [vmem:[%s1 + $0x1cc] sm:$0xf]
  %v145 = vld [vmem:[%s1 + $0x1d0] sm:$0xf]
  %v146 = vld [vmem:[%s1 + $0x1d4] sm:$0xf]
  %v147 = vld [vmem:[%s1 + $0x1d8] sm:$0xf]
  %v148 = vld [vmem:[%s1 + $0x1dc] sm:$0xf]
  %v149 = vld [vmem:[%s1 + $0x1e0] sm:$0xf]
  %v150 = vld [vmem:[%s1 + $0x1e4] sm:$0xf]
  %v151 = vld [vmem:[%s1 + $0x1e8] sm:$0xf]
  %v152 = vld [vmem:[%s1 + $0x1ec] sm:$0xf]
  %v153 = vld [vmem:[%s1 + $0x1f0] sm:$0xf]
  %v154 = vld [vmem:[%s1 + $0x1f4] sm:$0xf]
  %v155 = vld [vmem:[%s1 + $0x1f8] sm:$0xf]
  %v156 = vld [vmem:[%s1 + $0x1fc] sm:$0xf]
  %v157 = vld [vmem:[%s1 + $0x200] sm:$0xf]
  %v158 = vld [vmem:[%s1 + $0x204] sm:$0xf]
  %v159 = vld [vmem:[%s1 + $0x208] sm:$0xf]
  %v160 = vld [vmem:[%s1 + $0x20c] sm:$0xf]
  %v161 = vld [vmem:[%s1 + $0x210] sm:$0xf]
  %v162 = vld [vmem:[%s1 + $0x214] sm:$0xf]
  %v163 = vld [vmem:[%s1 + $0x218] sm:$0xf]
  %v164 = vld [vmem:[%s1 + $0x21c] sm:$0xf]
  %v165 = vld [vmem:[%s1 + $0x220] sm:$0xf]
  %v166 = vld [vmem:[%s1 + $0x224] sm:$0xf]
  %v167 = vld [vmem:[%s1 + $0x228] sm:$0xf]
  %v168 = vld [vmem:[%s1 + $0x22c] sm:$0xf]
  %v169 = vld [vmem:[%s1 + $0x230] sm:$0xf]
  %v170 = vld [vmem:[%s1 + $0x234] sm:$0xf]
  %v171 = vld [vmem:[%s1 + $0x238] sm:$0xf]
  %v172 = vld [vmem:[%s1 + $0x23c] sm:$0xf]
  %v173 = vld [vmem:[%s1 + $0x240] sm:$0xf]
  %v174 = vld [vmem:[%s1 + $0x244] sm:$0xf]
  %v175 = vld [vmem:[%s1 + $0x248] sm:$0xf]
  %v176 = vld [vmem:[%s1 + $0x24c] sm:$0xf]
  %v177 = vld [vmem:[%s1 + $0x250] sm:$0xf]
  %v178 = vld [vmem:[%s1 + $0x254] sm:$0xf]
  %v179 = vld [vmem:[%s1 + $0x258] sm:$0xf]
  %v180 = vld [vmem:[%s1 + $0x25c] sm:$0xf]
  %v181 = vld [vmem:[%s1 + $0x260] sm:$0xf]
  %v182 = vld [vmem:[%s1 + $0x264] sm:$0xf]
  %v183 = vld [vmem:[%s1 + $0x268] sm:$0xf]
  %v184 = vld [vmem:[%s1 + $0x26c] sm:$0xf]
  %v185 = vld [vmem:[%s1 + $0x270] sm:$0xf]
  %v186 = vld [vmem:[%s1 + $0x274] sm:$0xf]
  %v187 = vld [vmem:[%s1 + $0x278] sm:$0xf]
  %v188 = vld [vmem:[%s1 + $0x27c] sm:$0xf]
  %v189 = vld [vmem:[%s1 + $0x280] sm:$0xf]
  %v190 = vld [vmem:[%s1 + $0x284] sm:$0xf]
  %v191 = vld [vmem:[%s1 + $0x288] sm:$0xf]
  %v192 = vld [vmem:[%s1 + $0x28c] sm:$0xf]
  %v193 = vld [vmem:[%s1 + $0x290] sm:$0xf]
  %v194 = vld [vmem:[%s1 + $0x294] sm:$0xf]
  %v195 = vld [vmem:[%s1 + $0x298] sm:$0xf]
  %v196 = vld [vmem:[%s1 + $0x29c] sm:$0xf]
  %v197 = vld [vmem:[%s1 + $0x2a0] sm:$0xf]
  %v198 = vld [vmem:[%s1 + $0x2a4] sm:$0xf]
  %v199 = vld [vmem:[%s1 + $0x2a8] sm:$0xf]
  %v200 = vld [vmem:[%s1 + $0x2ac] sm:$0xf]
  %v201 = vld [vmem:[%s1 + $0x2b0] sm:$0xf]
  %v202 = vld [vmem:[%s1 + $0x2b4] sm:$0xf]
  %v203 = vld [vmem:[%s1 + $0x2b8] sm:$0xf]
  %v204 = vld [vmem:[%s1 + $0x2bc] sm:$0xf]
  %v205 = vld [vmem:[%s1 + $0x2c0] sm:$0xf]
  %v206 = vld [vmem:[%s1 + $0x2c4] sm:$0xf]
  %v207 = vld [vmem:[%s1 + $0x2c8] sm:$0xf]
  %v208 = vld [vmem:[%s1 + $0x2cc] sm:$0xf]
  %v209 = vld [vmem:[%s1 + $0x2d0] sm:$0xf]
  %v210 = vld [vmem:[%s1 + $0x2d4] sm:$0xf]
  %v211 = vld [vmem:[%s1 + $0x2d8] sm:$0xf]
  %v212 = vld [vmem:[%s1 + $0x2dc] sm:$0xf]
  %v213 = vld [vmem:[%s1 + $0x2e0] sm:$0xf]
  %v214 = vld [vmem:[%s1 + $0x2e4] sm:$0xf]
  %v215 = vld [vmem:[%s1 + $0x2e8] sm:$0xf]
  %v216 = vld [vmem:[%s1 + $0x2ec] sm:$0xf]
  %v217 = vld [vmem:[%s1 + $0x2f0] sm:$0xf]
  %v218 = vld [vmem:[%s1 + $0x2f4] sm:$0xf]
  %v219 = vld [vmem:[%s1 + $0x2f8] sm:$0xf]
  %v220 = vld [vmem:[%s1 + $0x2fc] sm:$0xf]
  %v221 = vld [vmem:[%s1 + $0x300] sm:$0xf]
  %v222 = vld [vmem:[%s1 + $0x304] sm:$0xf]
  %v223 = vld [vmem:[%s1 + $0x308] sm:$0xf]
  %v224 = vld [vmem:[%s1 + $0x30c] sm:$0xf]
  %v225 = vld [vmem:[%s1 + $0x310] sm:$0xf]
  %v226 = vld [vmem:[%s1 + $0x314] sm:$0xf]
  %v227 = vld [vmem:[%s1 + $0x318] sm:$0xf]
  %v228 = vld [vmem:[%s1 + $0x31c] sm:$0xf]
  %v229 = vld [vmem:[%s1 + $0x320] sm:$0xf]
  %v230 = vld [vmem:[%s1 + $0x324] sm:$0xf]
  %v231 = vld [vmem:[%s1 + $0x328] sm:$0xf]
  %v232 = vld [vmem:[%s1 + $0x32c] sm:$0xf]
  %v233 = vld [vmem:[%s1 + $0x330] sm:$0xf]
  %v234 = vld [vmem:[%s1 + $0x334] sm:$0xf]
  %v235 = vld [vmem:[%s1 + $0x338] sm:$0xf]
  %v236 = vld [vmem:[%s1 + $0x33c] sm:$0xf]
  %v237 = vld [vmem:[%s1 + $0x340] sm:$0xf]
  %v238 = vld [vmem:[%s1 + $0x344] sm:$0xf]
  %v239 = vld [vmem:[%s1 + $0x348] sm:$0xf]
  %v240 = vld [vmem:[%s1 + $0x34c] sm:$0xf]
  %v241 = vld [vmem:[%s1 + $0x350] sm:$0xf]
  %v242 = vld [vmem:[%s1 + $0x354] sm:$0xf]
  %v243 = vld [vmem:[%s1 + $0x358] sm:$0xf]
  %v244 = vld [vmem:[%s1 + $0x35c] sm:$0xf]
  %v245 = vld [vmem:[%s1 + $0x360] sm:$0xf]
  %v246 = vld [vmem:[%s1 + $0x364] sm:$0xf]
  %v247 = vld [vmem:[%s1 + $0x368] sm:$0xf]
  %v248 = vld [vmem:[%s1 + $0x36c] sm:$0xf]
  %v249 = vld [vmem:[%s1 + $0x370] sm:$0xf]
  %v250 = vld [vmem:[%s1 + $0x374] sm:$0xf]
  %v251 = vld [vmem:[%s1 + $0x378] sm:$0xf]
  %v252 = vld [vmem:[%s1 + $0x37c] sm:$0xf]
  %v253 = vld [vmem:[%s1 + $0x380] sm:$0xf]
  %v254 = vld [vmem:[%s1 + $0x384] sm:$0xf]
  %v255 = vld [vmem:[%s1 + $0x388] sm:$0xf]
  %v256 = vld [vmem:[%s1 + $0x38c] sm:$0xf]
  %v257 = vld [vmem:[%s1 + $0x390] sm:$0xf]
  %v258 = vld [vmem:[%s1 + $0x394] sm:$0xf]
  %v259 = vld [vmem:[%s1 + $0x398] sm:$0xf]
  %v260 = vld [vmem:[%s1 + $0x39c] sm:$0xf]
  %v261 = vld [vmem:[%s1 + $0x3a0] sm:$0xf]
  %v262 = vld [vmem:[%s1 + $0x3a4] sm:$0xf]
  %v263 = vld [vmem:[%s1 + $0x3a8] sm:$0xf]
  %v264 = vld [vmem:[%s1 + $0x3ac] sm:$0xf]
  %v265 = vld [vmem:[%s1 + $0x3b0] sm:$0xf]
  %v266 = vld [vmem:[%s1 + $0x3b4] sm:$0xf]
  %v267 = vld [vmem:[%s1 + $0x3b8] sm:$0xf]
  %v268 = vld [vmem:[%s1 + $0x3bc] sm:$0xf]
  %v269 = vld [vmem:[%s1 + $0x3c0] sm:$0xf]
  %v270 = vld [vmem:[%s1 + $0x3c4] sm:$0xf]
  %v271 = vld [vmem:[%s1 + $0x3c8] sm:$0xf]
  %v272 = vld [vmem:[%s1 + $0x3cc] sm:$0xf]
  %v273 = vld [vmem:[%s1 + $0x3d0] sm:$0xf]
  %v274 = vld [vmem:[%s1 + $0x3d4] sm:$0xf]
  %v275 = vld [vmem:[%s1 + $0x3d8] sm:$0xf]
  %v276 = vld [vmem:[%s1 + $0x3dc] sm:$0xf]
  %v277 = vld [vmem:[%s1 + $0x3e0] sm:$0xf]
  %v278 = vld [vmem:[%s1 + $0x3e4] sm:$0xf]
  %v279 = vld [vmem:[%s1 + $0x3e8] sm:$0xf]
  %v280 = vld [vmem:[%s1 + $0x3ec] sm:$0xf]
  %v281 = vld [vmem:[%s1 + $0x3f0] sm:$0xf]
  %v282 = vld [vmem:[%s1 + $0x3f4] sm:$0xf]
  %v283 = vld [vmem:[%s1 + $0x3f8] sm:$0xf]
  %v284 = vld [vmem:[%s1 + $0x3fc] sm:$0xf]
  %v293 = vunpack.c.l.b16 %v21
  %v294 = vunpack.c.h.b16 %v21
  %v295 = vunpack.c.l.b16 %v22
  %v296 = vunpack.c.h.b16 %v22
  %v297 = vunpack.c.l.b16 %v23
  %v298 = vunpack.c.h.b16 %v23
  %v299 = vunpack.c.l.b16 %v24
  %v300 = vunpack.c.h.b16 %v24
  %v301 = vunpack.c.l.b16 %v25
  %v302 = vunpack.c.h.b16 %v25
  %v303 = vunpack.c.l.b16 %v26
  %v304 = vunpack.c.h.b16 %v26
  %v305 = vunpack.c.l.b16 %v27
  %v306 = vunpack.c.h.b16 %v27
  %v307 = vunpack.c.l.b16 %v28
  %v308 = vunpack.c.h.b16 %v28
  %v309 = vpack.c.b16 %v293, %v293
  %v310 = vpack.c.b16 %v294, %v294
  %v311 = vpack.c.b16 %v295, %v295
  %v312 = vpack.c.b16 %v296, %v296
  %v313 = vpack.c.b16 %v297, %v297
  %v314 = vpack.c.b16 %v298, %v298
  %v315 = vpack.c.b16 %v299, %v299
  %v316 = vpack.c.b16 %v300, %v300
  %v317 = vpack.c.b16 %v301, %v301
  %v318 = vpack.c.b16 %v302, %v302
  %v319 = vpack.c.b16 %v303, %v303
  %v320 = vpack.c.b16 %v304, %v304
  %v321 = vpack.c.b16 %v305, %v305
  %v322 = vpack.c.b16 %v306, %v306
  %v323 = vpack.c.b16 %v307, %v307
  %v324 = vpack.c.b16 %v308, %v308
  %v597 = vunpack.c.l.b16 %v29
  %v598 = vunpack.c.l.b16 %v30
  %v599 = vunpack.c.l.b16 %v31
  %v600 = vunpack.c.l.b16 %v32
  %v601 = vunpack.c.l.b16 %v33
  %v602 = vunpack.c.l.b16 %v34
  %v603 = vunpack.c.l.b16 %v35
  %v604 = vunpack.c.l.b16 %v36
  %v605 = vunpack.c.l.b16 %v37
  %v606 = vunpack.c.l.b16 %v38
  %v607 = vunpack.c.l.b16 %v39
  %v608 = vunpack.c.l.b16 %v40
  %v609 = vunpack.c.l.b16 %v41
  %v610 = vunpack.c.l.b16 %v42
  %v611 = vunpack.c.l.b16 %v43
  %v612 = vunpack.c.l.b16 %v44
  %v613 = vunpack.c.l.b16 %v45
  %v614 = vunpack.c.l.b16 %v46
  %v615 = vunpack.c.l.b16 %v47
  %v616 = vunpack.c.l.b16 %v48
  %v617 = vunpack.c.l.b16 %v49
  %v618 = vunpack.c.l.b16 %v50
  %v619 = vunpack.c.l.b16 %v51
  %v620 = vunpack.c.l.b16 %v52
  %v621 = vunpack.c.l.b16 %v53
  %v622 = vunpack.c.l.b16 %v54
  %v623 = vunpack.c.l.b16 %v55
  %v624 = vunpack.c.l.b16 %v56
  %v625 = vunpack.c.l.b16 %v57
  %v626 = vunpack.c.l.b16 %v58
  %v627 = vunpack.c.l.b16 %v59
  %v628 = vunpack.c.l.b16 %v60
  %v629 = vunpack.c.l.b16 %v61
  %v630 = vunpack.c.l.b16 %v62
  %v631 = vunpack.c.l.b16 %v63
  %v632 = vunpack.c.l.b16 %v64
  %v633 = vunpack.c.l.b16 %v65
  %v634 = vunpack.c.l.b16 %v66
  %v635 = vunpack.c.l.b16 %v67
  %v636 = vunpack.c.l.b16 %v68
  %v637 = vunpack.c.l.b16 %v69
  %v638 = vunpack.c.l.b16 %v70
  %v639 = vunpack.c.l.b16 %v71
  %v640 = vunpack.c.l.b16 %v72
  %v641 = vunpack.c.l.b16 %v73
  %v642 = vunpack.c.l.b16 %v74
  %v643 = vunpack.c.l.b16 %v75
  %v644 = vunpack.c.l.b16 %v76
  %v645 = vunpack.c.l.b16 %v77
  %v646 = vunpack.c.l.b16 %v78
  %v647 = vunpack.c.l.b16 %v79
  %v648 = vunpack.c.l.b16 %v80
  %v649 = vunpack.c.l.b16 %v81
  %v650 = vunpack.c.l.b16 %v82
  %v651 = vunpack.c.l.b16 %v83
  %v652 = vunpack.c.l.b16 %v84
  %v653 = vunpack.c.l.b16 %v85
  %v654 = vunpack.c.l.b16 %v86
  %v655 = vunpack.c.l.b16 %v87
  %v656 = vunpack.c.l.b16 %v88
  %v657 = vunpack.c.l.b16 %v89
  %v658 = vunpack.c.l.b16 %v90
  %v659 = vunpack.c.l.b16 %v91
  %v660 = vunpack.c.l.b16 %v92
  %v661 = vunpack.c.l.b16 %v93
  %v662 = vunpack.c.l.b16 %v94
  %v663 = vunpack.c.l.b16 %v95
  %v664 = vunpack.c.l.b16 %v96
  %v665 = vunpack.c.l.b16 %v97
  %v666 = vunpack.c.l.b16 %v98
  %v667 = vunpack.c.l.b16 %v99
  %v668 = vunpack.c.l.b16 %v100
  %v669 = vunpack.c.l.b16 %v101
  %v670 = vunpack.c.l.b16 %v102
  %v671 = vunpack.c.l.b16 %v103
  %v672 = vunpack.c.l.b16 %v104
  %v673 = vunpack.c.l.b16 %v105
  %v674 = vunpack.c.l.b16 %v106
  %v675 = vunpack.c.l.b16 %v107
  %v676 = vunpack.c.l.b16 %v108
  %v677 = vunpack.c.l.b16 %v109
  %v678 = vunpack.c.l.b16 %v110
  %v679 = vunpack.c.l.b16 %v111
  %v680 = vunpack.c.l.b16 %v112
  %v681 = vunpack.c.l.b16 %v113
  %v682 = vunpack.c.l.b16 %v114
  %v683 = vunpack.c.l.b16 %v115
  %v684 = vunpack.c.l.b16 %v116
  %v685 = vunpack.c.l.b16 %v117
  %v686 = vunpack.c.l.b16 %v118
  %v687 = vunpack.c.l.b16 %v119
  %v688 = vunpack.c.l.b16 %v120
  %v689 = vunpack.c.l.b16 %v121
  %v690 = vunpack.c.l.b16 %v122
  %v691 = vunpack.c.l.b16 %v123
  %v692 = vunpack.c.l.b16 %v124
  %v693 = vunpack.c.l.b16 %v125
  %v694 = vunpack.c.l.b16 %v126
  %v695 = vunpack.c.l.b16 %v127
  %v696 = vunpack.c.l.b16 %v128
  %v697 = vunpack.c.l.b16 %v129
  %v698 = vunpack.c.l.b16 %v130
  %v699 = vunpack.c.l.b16 %v131
  %v700 = vunpack.c.l.b16 %v132
  %v701 = vunpack.c.l.b16 %v133
  %v702 = vunpack.c.l.b16 %v134
  %v703 = vunpack.c.l.b16 %v135
  %v704 = vunpack.c.l.b16 %v136
  %v705 = vunpack.c.l.b16 %v137
  %v706 = vunpack.c.l.b16 %v138
  %v707 = vunpack.c.l.b16 %v139
  %v708 = vunpack.c.l.b16 %v140
  %v709 = vunpack.c.l.b16 %v141
  %v710 = vunpack.c.l.b16 %v142
  %v711 = vunpack.c.l.b16 %v143
  %v712 = vunpack.c.l.b16 %v144
  %v713 = vunpack.c.l.b16 %v145
  %v714 = vunpack.c.l.b16 %v146
  %v715 = vunpack.c.l.b16 %v147
  %v716 = vunpack.c.l.b16 %v148
  %v717 = vunpack.c.l.b16 %v149
  %v718 = vunpack.c.l.b16 %v150
  %v719 = vunpack.c.l.b16 %v151
  %v720 = vunpack.c.l.b16 %v152
  %v721 = vunpack.c.l.b16 %v153
  %v722 = vunpack.c.l.b16 %v154
  %v723 = vunpack.c.l.b16 %v155
  %v724 = vunpack.c.l.b16 %v156
  %v725 = vunpack.c.l.b16 %v157
  %v726 = vunpack.c.l.b16 %v158
  %v727 = vunpack.c.l.b16 %v159
  %v728 = vunpack.c.l.b16 %v160
  %v729 = vunpack.c.l.b16 %v161
  %v730 = vunpack.c.l.b16 %v162
  %v731 = vunpack.c.l.b16 %v163
  %v732 = vunpack.c.l.b16 %v164
  %v733 = vunpack.c.l.b16 %v165
  %v734 = vunpack.c.l.b16 %v166
  %v735 = vunpack.c.l.b16 %v167
  %v736 = vunpack.c.l.b16 %v168
  %v737 = vunpack.c.l.b16 %v169
  %v738 = vunpack.c.l.b16 %v170
  %v739 = vunpack.c.l.b16 %v171
  %v740 = vunpack.c.l.b16 %v172
  %v741 = vunpack.c.l.b16 %v173
  %v742 = vunpack.c.l.b16 %v174
  %v743 = vunpack.c.l.b16 %v175
  %v744 = vunpack.c.l.b16 %v176
  %v745 = vunpack.c.l.b16 %v177
  %v746 = vunpack.c.l.b16 %v178
  %v747 = vunpack.c.l.b16 %v179
  %v748 = vunpack.c.l.b16 %v180
  %v749 = vunpack.c.l.b16 %v181
  %v750 = vunpack.c.l.b16 %v182
  %v751 = vunpack.c.l.b16 %v183
  %v752 = vunpack.c.l.b16 %v184
  %v753 = vunpack.c.l.b16 %v185
  %v754 = vunpack.c.l.b16 %v186
  %v755 = vunpack.c.l.b16 %v187
  %v756 = vunpack.c.l.b16 %v188
  %v757 = vunpack.c.l.b16 %v189
  %v758 = vunpack.c.l.b16 %v190
  %v759 = vunpack.c.l.b16 %v191
  %v760 = vunpack.c.l.b16 %v192
  %v761 = vunpack.c.l.b16 %v193
  %v762 = vunpack.c.l.b16 %v194
  %v763 = vunpack.c.l.b16 %v195
  %v764 = vunpack.c.l.b16 %v196
  %v765 = vunpack.c.l.b16 %v197
  %v766 = vunpack.c.l.b16 %v198
  %v767 = vunpack.c.l.b16 %v199
  %v768 = vunpack.c.l.b16 %v200
  %v769 = vunpack.c.l.b16 %v201
  %v770 = vunpack.c.l.b16 %v202
  %v771 = vunpack.c.l.b16 %v203
  %v772 = vunpack.c.l.b16 %v204
  %v773 = vunpack.c.l.b16 %v205
  %v774 = vunpack.c.l.b16 %v206
  %v775 = vunpack.c.l.b16 %v207
  %v776 = vunpack.c.l.b16 %v208
  %v777 = vunpack.c.l.b16 %v209
  %v778 = vunpack.c.l.b16 %v210
  %v779 = vunpack.c.l.b16 %v211
  %v780 = vunpack.c.l.b16 %v212
  %v781 = vunpack.c.l.b16 %v213
  %v782 = vunpack.c.l.b16 %v214
  %v783 = vunpack.c.l.b16 %v215
  %v784 = vunpack.c.l.b16 %v216
  %v785 = vunpack.c.l.b16 %v217
  %v786 = vunpack.c.l.b16 %v218
  %v787 = vunpack.c.l.b16 %v219
  %v788 = vunpack.c.l.b16 %v220
  %v789 = vunpack.c.l.b16 %v221
  %v790 = vunpack.c.l.b16 %v222
  %v791 = vunpack.c.l.b16 %v223
  %v792 = vunpack.c.l.b16 %v224
  %v793 = vunpack.c.l.b16 %v225
  %v794 = vunpack.c.l.b16 %v226
  %v795 = vunpack.c.l.b16 %v227
  %v796 = vunpack.c.l.b16 %v228
  %v797 = vunpack.c.l.b16 %v229
  %v798 = vunpack.c.l.b16 %v230
  %v799 = vunpack.c.l.b16 %v231
  %v800 = vunpack.c.l.b16 %v232
  %v801 = vunpack.c.l.b16 %v233
  %v802 = vunpack.c.l.b16 %v234
  %v803 = vunpack.c.l.b16 %v235
  %v804 = vunpack.c.l.b16 %v236
  %v805 = vunpack.c.l.b16 %v237
  %v806 = vunpack.c.l.b16 %v238
  %v807 = vunpack.c.l.b16 %v239
  %v808 = vunpack.c.l.b16 %v240
  %v809 = vunpack.c.l.b16 %v241
  %v810 = vunpack.c.l.b16 %v242
  %v811 = vunpack.c.l.b16 %v243
  %v812 = vunpack.c.l.b16 %v244
  %v813 = vunpack.c.l.b16 %v245
  %v814 = vunpack.c.l.b16 %v246
  %v815 = vunpack.c.l.b16 %v247
  %v816 = vunpack.c.l.b16 %v248
  %v817 = vunpack.c.l.b16 %v249
  %v818 = vunpack.c.l.b16 %v250
  %v819 = vunpack.c.l.b16 %v251
  %v820 = vunpack.c.l.b16 %v252
  %v821 = vunpack.c.l.b16 %v253
  %v822 = vunpack.c.l.b16 %v254
  %v823 = vunpack.c.l.b16 %v255
  %v824 = vunpack.c.l.b16 %v256
  %v825 = vunpack.c.l.b16 %v257
  %v826 = vunpack.c.l.b16 %v258
  %v827 = vunpack.c.l.b16 %v259
  %v828 = vunpack.c.l.b16 %v260
  %v829 = vunpack.c.l.b16 %v261
  %v830 = vunpack.c.l.b16 %v262
  %v831 = vunpack.c.l.b16 %v263
  %v832 = vunpack.c.l.b16 %v264
  %v833 = vunpack.c.l.b16 %v265
  %v834 = vunpack.c.l.b16 %v266
  %v835 = vunpack.c.l.b16 %v267
  %v836 = vunpack.c.l.b16 %v268
  %v837 = vunpack.c.l.b16 %v269
  %v838 = vunpack.c.l.b16 %v270
  %v839 = vunpack.c.l.b16 %v271
  %v840 = vunpack.c.l.b16 %v272
  %v841 = vunpack.c.l.b16 %v273
  %v842 = vunpack.c.l.b16 %v274
  %v843 = vunpack.c.l.b16 %v275
  %v844 = vunpack.c.l.b16 %v276
  %v845 = vunpack.c.l.b16 %v277
  %v846 = vunpack.c.l.b16 %v278
  %v847 = vunpack.c.l.b16 %v279
  %v848 = vunpack.c.l.b16 %v280
  %v849 = vunpack.c.l.b16 %v281
  %v850 = vunpack.c.l.b16 %v282
  %v851 = vunpack.c.l.b16 %v283
  %v852 = vunpack.c.l.b16 %v284
  %v853 = vpack.c.b16 %v598, %v597
  %v854 = vpack.c.b16 %v600, %v599
  %v855 = vpack.c.b16 %v602, %v601
  %v856 = vpack.c.b16 %v604, %v603
  %v857 = vpack.c.b16 %v606, %v605
  %v858 = vpack.c.b16 %v608, %v607
  %v859 = vpack.c.b16 %v610, %v609
  %v860 = vpack.c.b16 %v612, %v611
  %v861 = vpack.c.b16 %v614, %v613
  %v862 = vpack.c.b16 %v616, %v615
  %v863 = vpack.c.b16 %v618, %v617
  %v864 = vpack.c.b16 %v620, %v619
  %v865 = vpack.c.b16 %v622, %v621
  %v866 = vpack.c.b16 %v624, %v623
  %v867 = vpack.c.b16 %v626, %v625
  %v868 = vpack.c.b16 %v628, %v627
  %v869 = vpack.c.b16 %v630, %v629
  %v870 = vpack.c.b16 %v632, %v631
  %v871 = vpack.c.b16 %v634, %v633
  %v872 = vpack.c.b16 %v636, %v635
  %v873 = vpack.c.b16 %v638, %v637
  %v874 = vpack.c.b16 %v640, %v639
  %v875 = vpack.c.b16 %v642, %v641
  %v876 = vpack.c.b16 %v644, %v643
  %v877 = vpack.c.b16 %v646, %v645
  %v878 = vpack.c.b16 %v648, %v647
  %v879 = vpack.c.b16 %v650, %v649
  %v880 = vpack.c.b16 %v652, %v651
  %v881 = vpack.c.b16 %v654, %v653
  %v882 = vpack.c.b16 %v656, %v655
  %v883 = vpack.c.b16 %v658, %v657
  %v884 = vpack.c.b16 %v660, %v659
  %v885 = vpack.c.b16 %v662, %v661
  %v886 = vpack.c.b16 %v664, %v663
  %v887 = vpack.c.b16 %v666, %v665
  %v888 = vpack.c.b16 %v668, %v667
  %v889 = vpack.c.b16 %v670, %v669
  %v890 = vpack.c.b16 %v672, %v671
  %v891 = vpack.c.b16 %v674, %v673
  %v892 = vpack.c.b16 %v676, %v675
  %v893 = vpack.c.b16 %v678, %v677
  %v894 = vpack.c.b16 %v680, %v679
  %v895 = vpack.c.b16 %v682, %v681
  %v896 = vpack.c.b16 %v684, %v683
  %v897 = vpack.c.b16 %v686, %v685
  %v898 = vpack.c.b16 %v688, %v687
  %v899 = vpack.c.b16 %v690, %v689
  %v900 = vpack.c.b16 %v692, %v691
  %v901 = vpack.c.b16 %v694, %v693
  %v902 = vpack.c.b16 %v696, %v695
  %v903 = vpack.c.b16 %v698, %v697
  %v904 = vpack.c.b16 %v700, %v699
  %v905 = vpack.c.b16 %v702, %v701
  %v906 = vpack.c.b16 %v704, %v703
  %v907 = vpack.c.b16 %v706, %v705
  %v908 = vpack.c.b16 %v708, %v707
  %v909 = vpack.c.b16 %v710, %v709
  %v910 = vpack.c.b16 %v712, %v711
  %v911 = vpack.c.b16 %v714, %v713
  %v912 = vpack.c.b16 %v716, %v715
  %v913 = vpack.c.b16 %v718, %v717
  %v914 = vpack.c.b16 %v720, %v719
  %v915 = vpack.c.b16 %v722, %v721
  %v916 = vpack.c.b16 %v724, %v723
  %v917 = vpack.c.b16 %v726, %v725
  %v918 = vpack.c.b16 %v728, %v727
  %v919 = vpack.c.b16 %v730, %v729
  %v920 = vpack.c.b16 %v732, %v731
  %v921 = vpack.c.b16 %v734, %v733
  %v922 = vpack.c.b16 %v736, %v735
  %v923 = vpack.c.b16 %v738, %v737
  %v924 = vpack.c.b16 %v740, %v739
  %v925 = vpack.c.b16 %v742, %v741
  %v926 = vpack.c.b16 %v744, %v743
  %v927 = vpack.c.b16 %v746, %v745
  %v928 = vpack.c.b16 %v748, %v747
  %v929 = vpack.c.b16 %v750, %v749
  %v930 = vpack.c.b16 %v752, %v751
  %v931 = vpack.c.b16 %v754, %v753
  %v932 = vpack.c.b16 %v756, %v755
  %v933 = vpack.c.b16 %v758, %v757
  %v934 = vpack.c.b16 %v760, %v759
  %v935 = vpack.c.b16 %v762, %v761
  %v936 = vpack.c.b16 %v764, %v763
  %v937 = vpack.c.b16 %v766, %v765
  %v938 = vpack.c.b16 %v768, %v767
  %v939 = vpack.c.b16 %v770, %v769
  %v940 = vpack.c.b16 %v772, %v771
  %v941 = vpack.c.b16 %v774, %v773
  %v942 = vpack.c.b16 %v776, %v775
  %v943 = vpack.c.b16 %v778, %v777
  %v944 = vpack.c.b16 %v780, %v779
  %v945 = vpack.c.b16 %v782, %v781
  %v946 = vpack.c.b16 %v784, %v783
  %v947 = vpack.c.b16 %v786, %v785
  %v948 = vpack.c.b16 %v788, %v787
  %v949 = vpack.c.b16 %v790, %v789
  %v950 = vpack.c.b16 %v792, %v791
  %v951 = vpack.c.b16 %v794, %v793
  %v952 = vpack.c.b16 %v796, %v795
  %v953 = vpack.c.b16 %v798, %v797
  %v954 = vpack.c.b16 %v800, %v799
  %v955 = vpack.c.b16 %v802, %v801
  %v956 = vpack.c.b16 %v804, %v803
  %v957 = vpack.c.b16 %v806, %v805
  %v958 = vpack.c.b16 %v808, %v807
  %v959 = vpack.c.b16 %v810, %v809
  %v960 = vpack.c.b16 %v812, %v811
  %v961 = vpack.c.b16 %v814, %v813
  %v962 = vpack.c.b16 %v816, %v815
  %v963 = vpack.c.b16 %v818, %v817
  %v964 = vpack.c.b16 %v820, %v819
  %v965 = vpack.c.b16 %v822, %v821
  %v966 = vpack.c.b16 %v824, %v823
  %v967 = vpack.c.b16 %v826, %v825
  %v968 = vpack.c.b16 %v828, %v827
  %v969 = vpack.c.b16 %v830, %v829
  %v970 = vpack.c.b16 %v832, %v831
  %v971 = vpack.c.b16 %v834, %v833
  %v972 = vpack.c.b16 %v836, %v835
  %v973 = vpack.c.b16 %v838, %v837
  %v974 = vpack.c.b16 %v840, %v839
  %v975 = vpack.c.b16 %v842, %v841
  %v976 = vpack.c.b16 %v844, %v843
  %v977 = vpack.c.b16 %v846, %v845
  %v978 = vpack.c.b16 %v848, %v847
  %v979 = vpack.c.b16 %v850, %v849
  %v980 = vpack.c.b16 %v852, %v851
  %1109 = vmatprep.subr.bf16.mxu0 0
  %1110 = vmatpush1.bf16.msra.mxu0 %v853
  %1111 = vmatprep.subr.bf16.mxu0 0
  %1112 = vmatpush1.bf16.msra.mxu0 %v854
  %1113 = vmatprep.subr.bf16.mxu0 0
  %1114 = vmatpush1.bf16.msra.mxu0 %v855
  %1115 = vmatprep.subr.bf16.mxu0 0
  %1116 = vmatpush1.bf16.msra.mxu0 %v856
  %1117 = vmatprep.subr.bf16.mxu0 0
  %1118 = vmatpush1.bf16.msra.mxu0 %v857
  %1119 = vmatprep.subr.bf16.mxu0 0
  %1120 = vmatpush1.bf16.msra.mxu0 %v858
  %1121 = vmatprep.subr.bf16.mxu0 0
  %1122 = vmatpush1.bf16.msra.mxu0 %v859
  %1123 = vmatprep.subr.bf16.mxu0 0
  %1124 = vmatpush1.bf16.msra.mxu0 %v860
  %1125 = vmatprep.subr.bf16.mxu0 0
  %1126 = vmatpush1.bf16.msra.mxu0 %v861
  %1127 = vmatprep.subr.bf16.mxu0 0
  %1128 = vmatpush1.bf16.msra.mxu0 %v862
  %1129 = vmatprep.subr.bf16.mxu0 0
  %1130 = vmatpush1.bf16.msra.mxu0 %v863
  %1131 = vmatprep.subr.bf16.mxu0 0
  %1132 = vmatpush1.bf16.msra.mxu0 %v864
  %1133 = vmatprep.subr.bf16.mxu0 0
  %1134 = vmatpush1.bf16.msra.mxu0 %v865
  %1135 = vmatprep.subr.bf16.mxu0 0
  %1136 = vmatpush1.bf16.msra.mxu0 %v866
  %1137 = vmatprep.subr.bf16.mxu0 0
  %1138 = vmatpush1.bf16.msra.mxu0 %v867
  %1139 = vmatprep.subr.bf16.mxu0 0
  %1140 = vmatpush1.bf16.msra.mxu0 %v868
  %1141 = vmatprep.mubr.bf16.mxu0 %v310
  %1142 = vmatmul.mubr.bf16.gmra.mrb[0].mxu0 %v309
  %v1143 = vpop.f32.mrb[0].mxu0
  %v1144 = vadd.f32 0.0, %v1143
  %v1145 = vpop.f32.mrb[0].mxu0
  %v1146 = vpop.f32.mrb[0].mxu0
  %v1147 = vpop.f32.mrb[0].mxu0
  %1148 = vdwg.mxu0
  %1149 = vmatprep.subr.bf16.mxu0 0
  %1150 = vmatpush1.bf16.msra.mxu0 %v869
  %1151 = vmatprep.subr.bf16.mxu0 0
  %1152 = vmatpush1.bf16.msra.mxu0 %v870
  %1153 = vmatprep.subr.bf16.mxu0 0
  %1154 = vmatpush1.bf16.msra.mxu0 %v871
  %1155 = vmatprep.subr.bf16.mxu0 0
  %1156 = vmatpush1.bf16.msra.mxu0 %v872
  %1157 = vmatprep.subr.bf16.mxu0 0
  %1158 = vmatpush1.bf16.msra.mxu0 %v873
  %1159 = vmatprep.subr.bf16.mxu0 0
  %1160 = vmatpush1.bf16.msra.mxu0 %v874
  %1161 = vmatprep.subr.bf16.mxu0 0
  %1162 = vmatpush1.bf16.msra.mxu0 %v875
  %1163 = vmatprep.subr.bf16.mxu0 0
  %1164 = vmatpush1.bf16.msra.mxu0 %v876
  %1165 = vmatprep.subr.bf16.mxu0 0
  %1166 = vmatpush1.bf16.msra.mxu0 %v877
  %1167 = vmatprep.subr.bf16.mxu0 0
  %1168 = vmatpush1.bf16.msra.mxu0 %v878
  %1169 = vmatprep.subr.bf16.mxu0 0
  %1170 = vmatpush1.bf16.msra.mxu0 %v879
  %1171 = vmatprep.subr.bf16.mxu0 0
  %1172 = vmatpush1.bf16.msra.mxu0 %v880
  %1173 = vmatprep.subr.bf16.mxu0 0
  %1174 = vmatpush1.bf16.msra.mxu0 %v881
  %1175 = vmatprep.subr.bf16.mxu0 0
  %1176 = vmatpush1.bf16.msra.mxu0 %v882
  %1177 = vmatprep.subr.bf16.mxu0 0
  %1178 = vmatpush1.bf16.msra.mxu0 %v883
  %1179 = vmatprep.subr.bf16.mxu0 0
  %1180 = vmatpush1.bf16.msra.mxu0 %v884
  %1181 = vmatprep.mubr.bf16.mxu0 %v312
  %1182 = vmatmul.mubr.bf16.gmra.mrb[0].mxu0 %v311
  %v1183 = vpop.f32.mrb[0].mxu0
  %v1184 = vadd.f32 %v1144, %v1183
  %v1185 = vpop.f32.mrb[0].mxu0
  %v1186 = vpop.f32.mrb[0].mxu0
  %v1187 = vpop.f32.mrb[0].mxu0
  %1188 = vdwg.mxu0
  %1189 = vmatprep.subr.bf16.mxu0 0
  %1190 = vmatpush1.bf16.msra.mxu0 %v885
  %1191 = vmatprep.subr.bf16.mxu0 0
  %1192 = vmatpush1.bf16.msra.mxu0 %v886
  %1193 = vmatprep.subr.bf16.mxu0 0
  %1194 = vmatpush1.bf16.msra.mxu0 %v887
  %1195 = vmatprep.subr.bf16.mxu0 0
  %1196 = vmatpush1.bf16.msra.mxu0 %v888
  %1197 = vmatprep.subr.bf16.mxu0 0
  %1198 = vmatpush1.bf16.msra.mxu0 %v889
  %1199 = vmatprep.subr.bf16.mxu0 0
  %1200 = vmatpush1.bf16.msra.mxu0 %v890
  %1201 = vmatprep.subr.bf16.mxu0 0
  %1202 = vmatpush1.bf16.msra.mxu0 %v891
  %1203 = vmatprep.subr.bf16.mxu0 0
  %1204 = vmatpush1.bf16.msra.mxu0 %v892
  %1205 = vmatprep.subr.bf16.mxu0 0
  %1206 = vmatpush1.bf16.msra.mxu0 %v893
  %1207 = vmatprep.subr.bf16.mxu0 0
  %1208 = vmatpush1.bf16.msra.mxu0 %v894
  %1209 = vmatprep.subr.bf16.mxu0 0
  %1210 = vmatpush1.bf16.msra.mxu0 %v895
  %1211 = vmatprep.subr.bf16.mxu0 0
  %1212 = vmatpush1.bf16.msra.mxu0 %v896
  %1213 = vmatprep.subr.bf16.mxu0 0
  %1214 = vmatpush1.bf16.msra.mxu0 %v897
  %1215 = vmatprep.subr.bf16.mxu0 0
  %1216 = vmatpush1.bf16.msra.mxu0 %v898
  %1217 = vmatprep.subr.bf16.mxu0 0
  %1218 = vmatpush1.bf16.msra.mxu0 %v899
  %1219 = vmatprep.subr.bf16.mxu0 0
  %1220 = vmatpush1.bf16.msra.mxu0 %v900
  %1221 = vmatprep.mubr.bf16.mxu0 %v314
  %1222 = vmatmul.mubr.bf16.gmra.mrb[0].mxu0 %v313
  %v1223 = vpop.f32.mrb[0].mxu0
  %v1224 = vadd.f32 %v1184, %v1223
  %v1225 = vpop.f32.mrb[0].mxu0
  %v1226 = vpop.f32.mrb[0].mxu0
  %v1227 = vpop.f32.mrb[0].mxu0
  %1228 = vdwg.mxu0
  %1229 = vmatprep.subr.bf16.mxu0 0
  %1230 = vmatpush1.bf16.msra.mxu0 %v901
  %1231 = vmatprep.subr.bf16.mxu0 0
  %1232 = vmatpush1.bf16.msra.mxu0 %v902
  %1233 = vmatprep.subr.bf16.mxu0 0
  %1234 = vmatpush1.bf16.msra.mxu0 %v903
  %1235 = vmatprep.subr.bf16.mxu0 0
  %1236 = vmatpush1.bf16.msra.mxu0 %v904
  %1237 = vmatprep.subr.bf16.mxu0 0
  %1238 = vmatpush1.bf16.msra.mxu0 %v905
  %1239 = vmatprep.subr.bf16.mxu0 0
  %1240 = vmatpush1.bf16.msra.mxu0 %v906
  %1241 = vmatprep.subr.bf16.mxu0 0
  %1242 = vmatpush1.bf16.msra.mxu0 %v907
  %1243 = vmatprep.subr.bf16.mxu0 0
  %1244 = vmatpush1.bf16.msra.mxu0 %v908
  %1245 = vmatprep.subr.bf16.mxu0 0
  %1246 = vmatpush1.bf16.msra.mxu0 %v909
  %1247 = vmatprep.subr.bf16.mxu0 0
  %1248 = vmatpush1.bf16.msra.mxu0 %v910
  %1249 = vmatprep.subr.bf16.mxu0 0
  %1250 = vmatpush1.bf16.msra.mxu0 %v911
  %1251 = vmatprep.subr.bf16.mxu0 0
  %1252 = vmatpush1.bf16.msra.mxu0 %v912
  %1253 = vmatprep.subr.bf16.mxu0 0
  %1254 = vmatpush1.bf16.msra.mxu0 %v913
  %1255 = vmatprep.subr.bf16.mxu0 0
  %1256 = vmatpush1.bf16.msra.mxu0 %v914
  %1257 = vmatprep.subr.bf16.mxu0 0
  %1258 = vmatpush1.bf16.msra.mxu0 %v915
  %1259 = vmatprep.subr.bf16.mxu0 0
  %1260 = vmatpush1.bf16.msra.mxu0 %v916
  %1261 = vmatprep.mubr.bf16.mxu0 %v316
  %1262 = vmatmul.mubr.bf16.gmra.mrb[0].mxu0 %v315
  %v1263 = vpop.f32.mrb[0].mxu0
  %v1264 = vadd.f32 %v1224, %v1263
  %v1265 = vpop.f32.mrb[0].mxu0
  %v1266 = vpop.f32.mrb[0].mxu0
  %v1267 = vpop.f32.mrb[0].mxu0
  %1268 = vdwg.mxu0
  %1269 = vmatprep.subr.bf16.mxu0 0
  %1270 = vmatpush1.bf16.msra.mxu0 %v917
  %1271 = vmatprep.subr.bf16.mxu0 0
  %1272 = vmatpush1.bf16.msra.mxu0 %v918
  %1273 = vmatprep.subr.bf16.mxu0 0
  %1274 = vmatpush1.bf16.msra.mxu0 %v919
  %1275 = vmatprep.subr.bf16.mxu0 0
  %1276 = vmatpush1.bf16.msra.mxu0 %v920
  %1277 = vmatprep.subr.bf16.mxu0 0
  %1278 = vmatpush1.bf16.msra.mxu0 %v921
  %1279 = vmatprep.subr.bf16.mxu0 0
  %1280 = vmatpush1.bf16.msra.mxu0 %v922
  %1281 = vmatprep.subr.bf16.mxu0 0
  %1282 = vmatpush1.bf16.msra.mxu0 %v923
  %1283 = vmatprep.subr.bf16.mxu0 0
  %1284 = vmatpush1.bf16.msra.mxu0 %v924
  %1285 = vmatprep.subr.bf16.mxu0 0
  %1286 = vmatpush1.bf16.msra.mxu0 %v925
  %1287 = vmatprep.subr.bf16.mxu0 0
  %1288 = vmatpush1.bf16.msra.mxu0 %v926
  %1289 = vmatprep.subr.bf16.mxu0 0
  %1290 = vmatpush1.bf16.msra.mxu0 %v927
  %1291 = vmatprep.subr.bf16.mxu0 0
  %1292 = vmatpush1.bf16.msra.mxu0 %v928
  %1293 = vmatprep.subr.bf16.mxu0 0
  %1294 = vmatpush1.bf16.msra.mxu0 %v929
  %1295 = vmatprep.subr.bf16.mxu0 0
  %1296 = vmatpush1.bf16.msra.mxu0 %v930
  %1297 = vmatprep.subr.bf16.mxu0 0
  %1298 = vmatpush1.bf16.msra.mxu0 %v931
  %1299 = vmatprep.subr.bf16.mxu0 0
  %1300 = vmatpush1.bf16.msra.mxu0 %v932
  %1301 = vmatprep.mubr.bf16.mxu0 %v318
  %1302 = vmatmul.mubr.bf16.gmra.mrb[0].mxu0 %v317
  %v1303 = vpop.f32.mrb[0].mxu0
  %v1304 = vadd.f32 %v1264, %v1303
  %v1305 = vpop.f32.mrb[0].mxu0
  %v1306 = vpop.f32.mrb[0].mxu0
  %v1307 = vpop.f32.mrb[0].mxu0
  %1308 = vdwg.mxu0
  %1309 = vmatprep.subr.bf16.mxu0 0
  %1310 = vmatpush1.bf16.msra.mxu0 %v933
  %1311 = vmatprep.subr.bf16.mxu0 0
  %1312 = vmatpush1.bf16.msra.mxu0 %v934
  %1313 = vmatprep.subr.bf16.mxu0 0
  %1314 = vmatpush1.bf16.msra.mxu0 %v935
  %1315 = vmatprep.subr.bf16.mxu0 0
  %1316 = vmatpush1.bf16.msra.mxu0 %v936
  %1317 = vmatprep.subr.bf16.mxu0 0
  %1318 = vmatpush1.bf16.msra.mxu0 %v937
  %1319 = vmatprep.subr.bf16.mxu0 0
  %1320 = vmatpush1.bf16.msra.mxu0 %v938
  %1321 = vmatprep.subr.bf16.mxu0 0
  %1322 = vmatpush1.bf16.msra.mxu0 %v939
  %1323 = vmatprep.subr.bf16.mxu0 0
  %1324 = vmatpush1.bf16.msra.mxu0 %v940
  %1325 = vmatprep.subr.bf16.mxu0 0
  %1326 = vmatpush1.bf16.msra.mxu0 %v941
  %1327 = vmatprep.subr.bf16.mxu0 0
  %1328 = vmatpush1.bf16.msra.mxu0 %v942
  %1329 = vmatprep.subr.bf16.mxu0 0
  %1330 = vmatpush1.bf16.msra.mxu0 %v943
  %1331 = vmatprep.subr.bf16.mxu0 0
  %1332 = vmatpush1.bf16.msra.mxu0 %v944
  %1333 = vmatprep.subr.bf16.mxu0 0
  %1334 = vmatpush1.bf16.msra.mxu0 %v945
  %1335 = vmatprep.subr.bf16.mxu0 0
  %1336 = vmatpush1.bf16.msra.mxu0 %v946
  %1337 = vmatprep.subr.bf16.mxu0 0
  %1338 = vmatpush1.bf16.msra.mxu0 %v947
  %1339 = vmatprep.subr.bf16.mxu0 0
  %1340 = vmatpush1.bf16.msra.mxu0 %v948
  %1341 = vmatprep.mubr.bf16.mxu0 %v320
  %1342 = vmatmul.mubr.bf16.gmra.mrb[0].mxu0 %v319
  %v1343 = vpop.f32.mrb[0].mxu0
  %v1344 = vadd.f32 %v1304, %v1343
  %v1345 = vpop.f32.mrb[0].mxu0
  %v1346 = vpop.f32.mrb[0].mxu0
  %v1347 = vpop.f32.mrb[0].mxu0
  %1348 = vdwg.mxu0
  %1349 = vmatprep.subr.bf16.mxu0 0
  %1350 = vmatpush1.bf16.msra.mxu0 %v949
  %1351 = vmatprep.subr.bf16.mxu0 0
  %1352 = vmatpush1.bf16.msra.mxu0 %v950
  %1353 = vmatprep.subr.bf16.mxu0 0
  %1354 = vmatpush1.bf16.msra.mxu0 %v951
  %1355 = vmatprep.subr.bf16.mxu0 0
  %1356 = vmatpush1.bf16.msra.mxu0 %v952
  %1357 = vmatprep.subr.bf16.mxu0 0
  %1358 = vmatpush1.bf16.msra.mxu0 %v953
  %1359 = vmatprep.subr.bf16.mxu0 0
  %1360 = vmatpush1.bf16.msra.mxu0 %v954
  %1361 = vmatprep.subr.bf16.mxu0 0
  %1362 = vmatpush1.bf16.msra.mxu0 %v955
  %1363 = vmatprep.subr.bf16.mxu0 0
  %1364 = vmatpush1.bf16.msra.mxu0 %v956
  %1365 = vmatprep.subr.bf16.mxu0 0
  %1366 = vmatpush1.bf16.msra.mxu0 %v957
  %1367 = vmatprep.subr.bf16.mxu0 0
  %1368 = vmatpush1.bf16.msra.mxu0 %v958
  %1369 = vmatprep.subr.bf16.mxu0 0
  %1370 = vmatpush1.bf16.msra.mxu0 %v959
  %1371 = vmatprep.subr.bf16.mxu0 0
  %1372 = vmatpush1.bf16.msra.mxu0 %v960
  %1373 = vmatprep.subr.bf16.mxu0 0
  %1374 = vmatpush1.bf16.msra.mxu0 %v961
  %1375 = vmatprep.subr.bf16.mxu0 0
  %1376 = vmatpush1.bf16.msra.mxu0 %v962
  %1377 = vmatprep.subr.bf16.mxu0 0
  %1378 = vmatpush1.bf16.msra.mxu0 %v963
  %1379 = vmatprep.subr.bf16.mxu0 0
  %1380 = vmatpush1.bf16.msra.mxu0 %v964
  %1381 = vmatprep.mubr.bf16.mxu0 %v322
  %1382 = vmatmul.mubr.bf16.gmra.mrb[0].mxu0 %v321
  %v1383 = vpop.f32.mrb[0].mxu0
  %v1384 = vadd.f32 %v1344, %v1383
  %v1385 = vpop.f32.mrb[0].mxu0
  %v1386 = vpop.f32.mrb[0].mxu0
  %v1387 = vpop.f32.mrb[0].mxu0
  %1388 = vdwg.mxu0
  %1389 = vmatprep.subr.bf16.mxu0 0
  %1390 = vmatpush1.bf16.msra.mxu0 %v965
  %1391 = vmatprep.subr.bf16.mxu0 0
  %1392 = vmatpush1.bf16.msra.mxu0 %v966
  %1393 = vmatprep.subr.bf16.mxu0 0
  %1394 = vmatpush1.bf16.msra.mxu0 %v967
  %1395 = vmatprep.subr.bf16.mxu0 0
  %1396 = vmatpush1.bf16.msra.mxu0 %v968
  %1397 = vmatprep.subr.bf16.mxu0 0
  %1398 = vmatpush1.bf16.msra.mxu0 %v969
  %1399 = vmatprep.subr.bf16.mxu0 0
  %1400 = vmatpush1.bf16.msra.mxu0 %v970
  %1401 = vmatprep.subr.bf16.mxu0 0
  %1402 = vmatpush1.bf16.msra.mxu0 %v971
  %1403 = vmatprep.subr.bf16.mxu0 0
  %1404 = vmatpush1.bf16.msra.mxu0 %v972
  %1405 = vmatprep.subr.bf16.mxu0 0
  %1406 = vmatpush1.bf16.msra.mxu0 %v973
  %1407 = vmatprep.subr.bf16.mxu0 0
  %1408 = vmatpush1.bf16.msra.mxu0 %v974
  %1409 = vmatprep.subr.bf16.mxu0 0
  %1410 = vmatpush1.bf16.msra.mxu0 %v975
  %1411 = vmatprep.subr.bf16.mxu0 0
  %1412 = vmatpush1.bf16.msra.mxu0 %v976
  %1413 = vmatprep.subr.bf16.mxu0 0
  %1414 = vmatpush1.bf16.msra.mxu0 %v977
  %1415 = vmatprep.subr.bf16.mxu0 0
  %1416 = vmatpush1.bf16.msra.mxu0 %v978
  %1417 = vmatprep.subr.bf16.mxu0 0
  %1418 = vmatpush1.bf16.msra.mxu0 %v979
  %1419 = vmatprep.subr.bf16.mxu0 0
  %1420 = vmatpush1.bf16.msra.mxu0 %v980
  %1421 = vmatprep.mubr.bf16.mxu0 %v324
  %1422 = vmatmul.mubr.bf16.gmra.mrb[0].mxu0 %v323
  %v1423 = vpop.f32.mrb[0].mxu0
  %v1424 = vadd.f32 %v1384, %v1423
  %v1425 = vpop.f32.mrb[0].mxu0
  %v1426 = vpop.f32.mrb[0].mxu0
  %v1427 = vpop.f32.mrb[0].mxu0
  %1428 = vdwg.mxu0
  %v1429 = vadd.f32 %v20, %v1424
  %1430 = vst [vmem:[%s3] sm:$0xff] %v1429
  // Predicated region
  $region18: #{fast_rcnn_forward.7} parent=0 // pred_check
    %p1431 = pneg %p15
  $region19: #{fast_rcnn_forward.7} parent=0 // pred_check_branch
    %1433 = sbr.rel (%p1431) target = $region21
  $region20: #{fast_rcnn_forward.7} parent=0 // pred_region
    %v1434 = vld [vmem:[%s3] sm:$0xff]
    %v1435 = vld [vmem:[%s2] sm:$0x1]
    %v1437 = vlaneseq
    %v1438 = vshrl.u32 %v1437, 7
    %v1439 = vsub.s32 0, %v1438
    %v1440 = vrot.slane %v1435, %v1439
    %v1442 = vadd.f32 %v1434, %v1440
    %1443 = vst [vmem:[%s3] sm:$0xff] %v1442
  $region21: #{fast_rcnn_forward.7} parent=0 // pred_fallthru
    _
  // Predicated region
  $region22: #{fast_rcnn_forward.7} parent=0 // pred_check
    _
  $region23: #{fast_rcnn_forward.7} parent=0 // pred_check_branch
    %1445 = sbr.rel (0) target = $region25
  $region24: #{fast_rcnn_forward.7} parent=0 // pred_region
    _
  $region25: #{fast_rcnn_forward.7} parent=0 // pred_fallthru
    _
  // Predicated region
  $region26: #{fast_rcnn_forward.7} parent=0 // pred_check
    _
  $region27: #{fast_rcnn_forward.7} parent=0 // pred_check_branch
    %1447 = sbr.rel (0) target = $region29
  $region28: #{fast_rcnn_forward.7} parent=0 // pred_region
    _
  $region29: #{fast_rcnn_forward.7} parent=0 // pred_fallthru
    _

</llo_original>
